<compile_context>
chip_gen: v7x
topology: tpu7x:2x2x1
jax: 0.10.0
libtpu: 0.0.40
codegen_flags: <defaults>
</compile_context>

<pallas_src>
import jax
import jax.numpy as jnp
from jax.experimental import pallas as pl
from jax.experimental.pallas import tpu as pltpu

_LANE = 128


def _round_up(x, m):
    return -(-x // m) * m


# ----------------------------------------------------------------------------
# Kernel 1: fused PointNet conv1/conv2/conv3 + global max-pool (channels-major)
# ----------------------------------------------------------------------------
def _encoder_kernel(x_ref, w1_ref, b1_ref, w2_ref, b2_ref, w3_ref, b3_ref,
                    feat_ref, acc_ref):
    pt = pl.program_id(1)

    @pl.when(pt == 0)
    def _():
        acc_ref[...] = jnp.full(acc_ref.shape, -jnp.inf, acc_ref.dtype)

    x = x_ref[0]                                           # (3, tn) f32, lane-dense
    # conv1 (3 -> 64) as three VPU outer-product FMAs; keeps the K=3 matmul
    # off the MXU.  w1_ref[c] is (64, 1), x[c:c+1, :] is (1, tn).
    h = (w1_ref[0] * x[0:1, :] +
         w1_ref[1] * x[1:2, :] +
         w1_ref[2] * x[2:3, :] + b1_ref[...])              # (64, tn)
    h = jnp.maximum(h, 0.0)                                # relu(bn1(conv1))

    # conv2 (64 -> 128) on the MXU, channels-major: tn stays on the lane axis.
    h = jnp.dot(w2_ref[...], h.astype(jnp.bfloat16),
                preferred_element_type=jnp.float32)        # (128, tn)
    h = jnp.maximum(h + b2_ref[...], 0.0)                  # relu(bn2(conv2))

    # conv3 (128 -> 1024).  bn3 bias is added once in the epilogue:
    # per-channel constant => max_p(W x + b) == max_p(W x) + b.
    h = jnp.dot(w3_ref[...], h.astype(jnp.bfloat16),
                preferred_element_type=jnp.float32)        # (1024, tn)

    # Running max over points, VPU-only: fold the tn lanes into 128-wide
    # chunks via tile-aligned static slices; no per-tile XLU reduce.
    tn = h.shape[1]
    m = h[:, 0:_LANE]
    for c in range(1, tn // _LANE):
        m = jnp.maximum(m, h[:, c * _LANE:(c + 1) * _LANE])
    acc_ref[...] = jnp.maximum(acc_ref[...], m)

    @pl.when(pt == pl.num_programs(1) - 1)
    def _():
        # Single cross-lane collapse + conv3/bn3 bias, once per batch row.
        feat_ref[0] = (jnp.max(acc_ref[...], axis=1, keepdims=True)
                       + b3_ref[...])                      # (1024, 1)


def _point_tiling(num_points, max_tile=1024):
    """Pick (point_tile, padded_points); tile is a multiple of 128 <= max_tile."""
    np_pad = _round_up(num_points, _LANE)
    q = np_pad // _LANE
    tn = _LANE
    for d in range(1, q + 1):
        if q % d == 0 and d * _LANE <= max_tile:
            tn = d * _LANE
    # If the divisor-based tile is tiny for a large cloud, accept slightly more
    # padding in exchange for a bigger tile (amortizes per-grid-step overhead).
    if np_pad > max_tile and tn < 512:
        n_tiles = -(-num_points // max_tile)
        tn = _round_up(-(-num_points // n_tiles), _LANE)
        np_pad = tn * n_tiles
    return tn, np_pad


def pointnet_encoder(x, conv1, conv2, conv3, *, tn):
    """x: (B, 3, Np_pad) f32 channels-major  ->  pooled feature (B, 1024) f32."""
    B, _, np_pad = x.shape
    w1, b1 = conv1
    w2, b2 = conv2
    w3, b3 = conv3
    n_feat = w3.shape[0]
    grid = (B, np_pad // tn)   # point axis last: init at pt==0, write at last

    feat = pl.pallas_call(
        _encoder_kernel,
        out_shape=jax.ShapeDtypeStruct((B, n_feat, 1), jnp.float32),
        grid=grid,
        in_specs=[
            pl.BlockSpec((1, 3, tn), lambda b, p: (b, 0, p)),
            pl.BlockSpec(w1.shape, lambda b, p: (0, 0, 0)),
            pl.BlockSpec(b1.shape, lambda b, p: (0, 0)),
            pl.BlockSpec(w2.shape, lambda b, p: (0, 0)),
            pl.BlockSpec(b2.shape, lambda b, p: (0, 0)),
            pl.BlockSpec(w3.shape, lambda b, p: (0, 0)),
            pl.BlockSpec(b3.shape, lambda b, p: (0, 0)),
        ],
        out_specs=pl.BlockSpec((1, n_feat, 1), lambda b, p: (b, 0, 0)),
        scratch_shapes=[pltpu.VMEM((n_feat, _LANE), jnp.float32)],
        compiler_params=pltpu.CompilerParams(
            dimension_semantics=("parallel", "arbitrary"),
            vmem_limit_bytes=32 * 1024 * 1024),
    )(x, w1, b1, w2, b2, w3, b3)
    return feat.reshape(B, n_feat)


# ----------------------------------------------------------------------------
# Kernel 2: fused FC head + fc_mu/fc_var + reparameterize + PointGen decoder
# ----------------------------------------------------------------------------
def _head_decoder_kernel(*refs):
    (feat_ref, eps_ref,
     fc1w, fc1b, fc2w, fc2b, fc3w, fc3b,
     muw, mub, varw, varb,
     g1w, g1b, g2w, g2b, g3w, g3b, g4w, g4b, g5w, g5b,
     recon_ref, mu_ref, logvar_ref) = refs

    def lin(h, w_ref, b_ref, act):
        y = jnp.dot(h.astype(jnp.bfloat16), w_ref[...],
                    preferred_element_type=jnp.float32) + b_ref[...]
        if act == "relu":
            y = jnp.maximum(y, 0.0)
        elif act == "sigmoid":
            y = jax.nn.sigmoid(y)
        elif act == "tanh":
            y = jnp.tanh(y)
        return y

    # PointNetCls classifier head.
    h = lin(feat_ref[...], fc1w, fc1b, "relu")
    h = lin(h, fc2w, fc2b, "relu")
    h = lin(h, fc3w, fc3b, "none")                 # (tb, dim_embed_pad)

    # VAE heads.
    mu = lin(h, muw, mub, "sigmoid")
    logvar = lin(h, varw, varb, "relu")

    # Reparameterize: z = mu + eps * exp(0.5 * logvar).
    z = mu + eps_ref[...] * jnp.exp(0.5 * logvar)

    # PointGen decoder.  (Padded latent columns hit zero weight rows in gfc1.)
    d = lin(z, g1w, g1b, "relu")
    d = lin(d, g2w, g2b, "relu")
    d = lin(d, g3w, g3b, "relu")
    d = lin(d, g4w, g4b, "relu")
    recon_ref[...] = lin(d, g5w, g5b, "tanh")
    mu_ref[...] = mu
    logvar_ref[...] = logvar


_HEAD_LAYERS = ("fc1", "fc2", "fc3", "fc_mu", "fc_var",
                "gfc1", "gfc2", "gfc3", "gfc4", "gfc5")


def vae_head_decoder(feat, eps, params, *, tb=8):
    """feat: (Bp, 1024), eps: (Bp, dim_mu_pad); Bp a multiple of tb."""
    Bp, n_feat = feat.shape
    mu_pad = params["fc_mu"][0].shape[1]
    out_pad = params["gfc5"][0].shape[1]

    flat = []
    specs = [pl.BlockSpec((tb, n_feat), lambda i: (i, 0)),
             pl.BlockSpec((tb, eps.shape[1]), lambda i: (i, 0))]
    for name in _HEAD_LAYERS:
        w, b = params[name]
        flat += [w, b]
        specs += [pl.BlockSpec(w.shape, lambda i: (0, 0)),
                  pl.BlockSpec(b.shape, lambda i: (0, 0))]

    # TODO(synk): for very large num_points (gfc5 weight >> 16 MB) tile the
    # gfc5 output columns over an extra grid axis instead of keeping the full
    # weight VMEM-resident.
    recon, mu, logvar = pl.pallas_call(
        _head_decoder_kernel,
        out_shape=(jax.ShapeDtypeStruct((Bp, out_pad), jnp.float32),
                   jax.ShapeDtypeStruct((Bp, mu_pad), jnp.float32),
                   jax.ShapeDtypeStruct((Bp, mu_pad), jnp.float32)),
        grid=(Bp // tb,),
        in_specs=specs,
        out_specs=(pl.BlockSpec((tb, out_pad), lambda i: (i, 0)),
                   pl.BlockSpec((tb, mu_pad), lambda i: (i, 0)),
                   pl.BlockSpec((tb, mu_pad), lambda i: (i, 0))),
        compiler_params=pltpu.CompilerParams(
            dimension_semantics=("parallel",),
            vmem_limit_bytes=48 * 1024 * 1024),
    )(feat, eps, *flat)
    return recon, mu, logvar


# ----------------------------------------------------------------------------
# Parameter construction (deterministic, synthetic)
# ----------------------------------------------------------------------------
def _init_linear(key, k_in, k_out, scale=0.05):
    kw, kb = jax.random.split(key)
    w = scale * jax.random.normal(kw, (k_in, k_out), dtype=jnp.float32)
    b = scale * jax.random.normal(kb, (k_out,), dtype=jnp.float32)
    return w, b


def _fold_bn(w, b, eps=1e-5):
    # Eval-mode BatchNorm1d with default params: gamma=1, beta=0, mean=0, var=1.
    c_out = w.shape[1]
    gamma = jnp.ones((c_out,), jnp.float32)
    beta = jnp.zeros((c_out,), jnp.float32)
    mean = jnp.zeros((c_out,), jnp.float32)
    var = jnp.ones((c_out,), jnp.float32)
    s = gamma / jnp.sqrt(var + eps)
    return w * s[None, :], (b - mean) * s + beta


def _conv1_layer(key, c_out):
    # (3, c_out, 1) f32 weight (indexed per input channel in-kernel, no lane
    # slicing) + (c_out, 1) f32 bias.  Stays f32: conv1 runs on the VPU.
    w, b = _init_linear(key, 3, c_out)
    w, b = _fold_bn(w, b)
    return (w[:, :, None].astype(jnp.float32),
            b.reshape(c_out, 1).astype(jnp.float32))


def _conv_layer(key, c_in, c_out):
    # Channels-major (C_out, C_in) bf16 weight + (C_out, 1) f32 bias, BN folded.
    w, b = _init_linear(key, c_in, c_out)
    w, b = _fold_bn(w, b)
    return w.T.astype(jnp.bfloat16), b.reshape(c_out, 1).astype(jnp.float32)


def _head_layer(key, k_in, k_out, in_pad, out_pad, fold_bn=False):
    # Zero-padded lane-dense (in_pad, out_pad) bf16 weight + (1, out_pad) bias.
    w, b = _init_linear(key, k_in, k_out)
    if fold_bn:
        w, b = _fold_bn(w, b)
    wp = jnp.zeros((in_pad, out_pad), jnp.float32).at[:k_in, :k_out].set(w)
    bp = jnp.zeros((1, out_pad), jnp.float32).at[0, :k_out].set(b)
    return wp.astype(jnp.bfloat16), bp


def init_vae_params(key, dim_embed=128, dim_mu=20, num_points=64):
    keys = jax.random.split(key, 16)
    e_pad = _round_up(dim_embed, _LANE)
    m_pad = _round_up(dim_mu, _LANE)
    o_pad = _round_up(3 * num_points, _LANE)
    p = {}
    # PointNetCls: shared 1x1-conv MLP (3 -> 64 -> 128 -> 1024), BN folded in.
    p["conv1"] = _conv1_layer(keys[0], 64)
    p["conv2"] = _conv_layer(keys[1], 64, 128)
    p["conv3"] = _conv_layer(keys[2], 128, 1024)
    # PointNetCls classifier head (1024 -> 512 -> 256 -> dim_embed).
    p["fc1"] = _head_layer(keys[3], 1024, 512, 1024, 512, fold_bn=True)
    p["fc2"] = _head_layer(keys[4], 512, 256, 512, 256, fold_bn=True)
    p["fc3"] = _head_layer(keys[5], 256, dim_embed, 256, e_pad)
    # VAE heads.
    p["fc_mu"] = _head_layer(keys[6], dim_embed, dim_mu, e_pad, m_pad)
    p["fc_var"] = _head_layer(keys[7], dim_embed, dim_mu, e_pad, m_pad)
    # PointGen decoder (dim_mu -> 128 -> 256 -> 512 -> 1024 -> num_points*3).
    p["gfc1"] = _head_layer(keys[8], dim_mu, 128, m_pad, 128)
    p["gfc2"] = _head_layer(keys[9], 128, 256, 128, 256)
    p["gfc3"] = _head_layer(keys[10], 256, 512, 256, 512)
    p["gfc4"] = _head_layer(keys[11], 512, 1024, 512, 1024)
    p["gfc5"] = _head_layer(keys[12], 1024, num_points * 3, 1024, o_pad)
    return p


# ----------------------------------------------------------------------------
# VAE forward (thin glue in plain JAX, everything heavy inside two kernels)
# ----------------------------------------------------------------------------
def vae_forward(params, x, eps):
    """x: (B, 3, num_points) f32 (PyTorch NCW). Returns (recon, mu, logvar)."""
    B, _, num_pts = x.shape
    dim_mu = eps.shape[1]

    # Channels-major feed straight into the kernel (no XLA transpose).  The
    # point axis is edge-repeat padded -> max-pool invariant.
    tn, np_pad = _point_tiling(num_pts)
    if np_pad != num_pts:
        x = jnp.pad(x, ((0, 0), (0, 0), (0, np_pad - num_pts)), mode="edge")

    # Fused conv1/conv2/conv3 + global max-pool.
    feat = pointnet_encoder(x, params["conv1"], params["conv2"],
                            params["conv3"], tn=tn)          # (B, 1024)

    # Pad batch rows up to a multiple of the batch tile, and eps to the padded
    # latent width (padded latent columns hit zero weight rows in gfc1).
    tb = 8
    b_pad = _round_up(B, tb)
    mu_pad = params["fc_mu"][0].shape[1]
    feat_p = jnp.pad(feat, ((0, b_pad - B), (0, 0)))
    eps_p = jnp.pad(eps, ((0, b_pad - B), (0, mu_pad - dim_mu)))

    # Fused FC head + fc_mu/fc_var + reparameterize + decoder.
    recon_p, mu_p, logvar_p = vae_head_decoder(feat_p, eps_p, params, tb=tb)

    recon = recon_p[:B, :3 * num_pts].reshape(B, 3, num_pts)  # torch .view
    return recon, mu_p[:B, :dim_mu], logvar_p[:B, :dim_mu]


# ----------------------------------------------------------------------------
if __name__ == "__main__":
    B = 2
    NUM_POINTS = 64     # dim_input (scaled down for the demo)
    DIM_EMBED = 128
    DIM_MU = 20

    key = jax.random.PRNGKey(0)
    k_params, k_x, k_eps = jax.random.split(key, 3)

    params = init_vae_params(k_params, dim_embed=DIM_EMBED, dim_mu=DIM_MU,
                             num_points=NUM_POINTS)
    x = jax.random.normal(k_x, (B, 3, NUM_POINTS), dtype=jnp.float32)
    # eps drawn outside with a fixed key (torch.randn_like is host RNG state).
    eps = jax.random.normal(k_eps, (B, DIM_MU), dtype=jnp.float32)

    recon, mu, logvar = jax.block_until_ready(
        jax.jit(vae_forward)(params, x, eps))

    assert recon.shape == (B, 3, NUM_POINTS)
    assert mu.shape == (B, DIM_MU) and logvar.shape == (B, DIM_MU)
    assert bool(jnp.all(jnp.isfinite(recon)))
    assert bool(jnp.all(jnp.isfinite(mu))) and bool(jnp.all(jnp.isfinite(logvar)))
    print("KERNEL_OK")
</pallas_src>

<mosaic_0001>
module attributes {stable_mosaic.version = 11 : i64} {
  func.func @_encoder_kernel(%arg0: i32, %arg1: i32, %arg2: memref<1x3x128xf32, #tpu.memory_space<vmem>>, %arg3: memref<3x64x1xf32, #tpu.memory_space<vmem>>, %arg4: memref<64x1xf32, #tpu.memory_space<vmem>>, %arg5: memref<128x64xbf16, #tpu.memory_space<vmem>>, %arg6: memref<128x1xf32, #tpu.memory_space<vmem>>, %arg7: memref<1024x128xbf16, #tpu.memory_space<vmem>>, %arg8: memref<1024x1xf32, #tpu.memory_space<vmem>>, %arg9: memref<1x1024x1xf32, #tpu.memory_space<vmem>>, %arg10: memref<1024x128xf32, #tpu.memory_space<vmem>>) attributes {dimension_semantics = [#tpu.dimension_semantics<parallel>, #tpu.dimension_semantics<arbitrary>], iteration_bounds = array<i64: 2, 1>, scalar_prefetch = 0 : i64, scratch_operands = 1 : i64, tpu.core_type = #tpu.core_type<tc>, window_params = [{transform_indices = @transform_0, window_bounds = array<i64: 1, 3, 128>}, {pipeline_mode = #tpu.pipeline_mode<synchronous>, transform_indices = @transform_1, window_bounds = array<i64: 3, 64, 1>}, {pipeline_mode = #tpu.pipeline_mode<synchronous>, transform_indices = @transform_2, window_bounds = array<i64: 64, 1>}, {pipeline_mode = #tpu.pipeline_mode<synchronous>, transform_indices = @transform_3, window_bounds = array<i64: 128, 64>}, {pipeline_mode = #tpu.pipeline_mode<synchronous>, transform_indices = @transform_4, window_bounds = array<i64: 128, 1>}, {pipeline_mode = #tpu.pipeline_mode<synchronous>, transform_indices = @transform_5, window_bounds = array<i64: 1024, 128>}, {pipeline_mode = #tpu.pipeline_mode<synchronous>, transform_indices = @transform_6, window_bounds = array<i64: 1024, 1>}, {transform_indices = @transform_7, window_bounds = array<i64: 1, 1024, 1>}]} {
    %c0_i32 = arith.constant 0 : i32
    %0 = arith.cmpi eq, %arg1, %c0_i32 : i32
    %1 = arith.extui %0 : i1 to i32
    %c0_i32_0 = arith.constant 0 : i32
    %2 = arith.cmpi ne, %1, %c0_i32_0 : i32
    scf.if %2 {
      %cst_27 = arith.constant 0xFF800000 : f32
      %47 = vector.broadcast %cst_27 : f32 to vector<1024x128xf32>
      %c0_28 = arith.constant 0 : index
      %c0_29 = arith.constant 0 : index
      %48 = vector.load %arg10[%c0_28, %c0_29] : memref<1024x128xf32, #tpu.memory_space<vmem>>, vector<1024x128xf32>
      tpu.vector_store %arg10[%c0_28, %c0_29], %47 {strides = array<i32>} : memref<1024x128xf32, #tpu.memory_space<vmem>>, vector<1024x128xf32>,
    } else {
    }
    %c0 = arith.constant 0 : index
    %c0_1 = arith.constant 0 : index
    %c0_2 = arith.constant 0 : index
    %3 = vector.load %arg2[%c0, %c0_1, %c0_2] : memref<1x3x128xf32, #tpu.memory_space<vmem>>, vector<1x3x128xf32>
    %4 = vector.shape_cast %3 : vector<1x3x128xf32> to vector<3x128xf32>
    %c0_3 = arith.constant 0 : index
    %c0_4 = arith.constant 0 : index
    %c0_5 = arith.constant 0 : index
    %5 = vector.load %arg3[%c0_3, %c0_4, %c0_5] : memref<3x64x1xf32, #tpu.memory_space<vmem>>, vector<1x64x1xf32>
    %6 = vector.shape_cast %5 : vector<1x64x1xf32> to vector<64x1xf32>
    %7 = vector.extract_strided_slice %4 {offsets = [0, 0], sizes = [1, 128], strides = [1, 1]} : vector<3x128xf32> to vector<1x128xf32>
    %8 = vector.broadcast %6 : vector<64x1xf32> to vector<64x128xf32>
    %9 = vector.broadcast %7 : vector<1x128xf32> to vector<64x128xf32>
    %10 = arith.mulf %8, %9 : vector<64x128xf32>
    %c1 = arith.constant 1 : index
    %c0_6 = arith.constant 0 : index
    %c0_7 = arith.constant 0 : index
    %11 = vector.load %arg3[%c1, %c0_6, %c0_7] : memref<3x64x1xf32, #tpu.memory_space<vmem>>, vector<1x64x1xf32>
    %12 = vector.shape_cast %11 : vector<1x64x1xf32> to vector<64x1xf32>
    %13 = vector.extract_strided_slice %4 {offsets = [1, 0], sizes = [1, 128], strides = [1, 1]} : vector<3x128xf32> to vector<1x128xf32>
    %14 = vector.broadcast %12 : vector<64x1xf32> to vector<64x128xf32>
    %15 = vector.broadcast %13 : vector<1x128xf32> to vector<64x128xf32>
    %16 = arith.mulf %14, %15 : vector<64x128xf32>
    %17 = arith.addf %10, %16 : vector<64x128xf32>
    %c2 = arith.constant 2 : index
    %c0_8 = arith.constant 0 : index
    %c0_9 = arith.constant 0 : index
    %18 = vector.load %arg3[%c2, %c0_8, %c0_9] : memref<3x64x1xf32, #tpu.memory_space<vmem>>, vector<1x64x1xf32>
    %19 = vector.shape_cast %18 : vector<1x64x1xf32> to vector<64x1xf32>
    %20 = vector.extract_strided_slice %4 {offsets = [2, 0], sizes = [1, 128], strides = [1, 1]} : vector<3x128xf32> to vector<1x128xf32>
    %21 = vector.broadcast %19 : vector<64x1xf32> to vector<64x128xf32>
    %22 = vector.broadcast %20 : vector<1x128xf32> to vector<64x128xf32>
    %23 = arith.mulf %21, %22 : vector<64x128xf32>
    %24 = arith.addf %17, %23 : vector<64x128xf32>
    %c0_10 = arith.constant 0 : index
    %c0_11 = arith.constant 0 : index
    %25 = vector.load %arg4[%c0_10, %c0_11] : memref<64x1xf32, #tpu.memory_space<vmem>>, vector<64x1xf32>
    %26 = vector.broadcast %25 : vector<64x1xf32> to vector<64x128xf32>
    %27 = arith.addf %24, %26 : vector<64x128xf32>
    %cst = arith.constant 0.000000e+00 : f32
    %28 = vector.broadcast %cst : f32 to vector<64x128xf32>
    %29 = arith.maximumf %27, %28 : vector<64x128xf32>
    %c0_12 = arith.constant 0 : index
    %c0_13 = arith.constant 0 : index
    %30 = vector.load %arg5[%c0_12, %c0_13] : memref<128x64xbf16, #tpu.memory_space<vmem>>, vector<128x64xbf16>
    %31 = arith.truncf %29 : vector<64x128xf32> to vector<64x128xbf16>
    %cst_14 = arith.constant dense<0.000000e+00> : vector<128x128xf32>
    %32 = tpu.matmul %30, %31, %cst_14 {dimension_numbers = #tpu.dot_dimension_numbers<[1], [0], [0], [1], [0, 0, 1, 1], [], []>} : vector<128x64xbf16>, vector<64x128xbf16>, vector<128x128xf32> -> vector<128x128xf32>
    %c0_15 = arith.constant 0 : index
    %c0_16 = arith.constant 0 : index
    %33 = vector.load %arg6[%c0_15, %c0_16] : memref<128x1xf32, #tpu.memory_space<vmem>>, vector<128x1xf32>
    %34 = vector.broadcast %33 : vector<128x1xf32> to vector<128x128xf32>
    %35 = arith.addf %32, %34 : vector<128x128xf32>
    %cst_17 = arith.constant 0.000000e+00 : f32
    %36 = vector.broadcast %cst_17 : f32 to vector<128x128xf32>
    %37 = arith.maximumf %35, %36 : vector<128x128xf32>
    %c0_18 = arith.constant 0 : index
    %c0_19 = arith.constant 0 : index
    %38 = vector.load %arg7[%c0_18, %c0_19] : memref<1024x128xbf16, #tpu.memory_space<vmem>>, vector<1024x128xbf16>
    %39 = arith.truncf %37 : vector<128x128xf32> to vector<128x128xbf16>
    %cst_20 = arith.constant dense<0.000000e+00> : vector<1024x128xf32>
    %40 = tpu.matmul %38, %39, %cst_20 {dimension_numbers = #tpu.dot_dimension_numbers<[1], [0], [0], [1], [0, 0, 1, 1], [], []>} : vector<1024x128xbf16>, vector<128x128xbf16>, vector<1024x128xf32> -> vector<1024x128xf32>
    %c0_21 = arith.constant 0 : index
    %c0_22 = arith.constant 0 : index
    %41 = vector.load %arg10[%c0_21, %c0_22] : memref<1024x128xf32, #tpu.memory_space<vmem>>, vector<1024x128xf32>
    %42 = arith.maximumf %41, %40 : vector<1024x128xf32>
    %c0_23 = arith.constant 0 : index
    %c0_24 = arith.constant 0 : index
    %43 = vector.load %arg10[%c0_23, %c0_24] : memref<1024x128xf32, #tpu.memory_space<vmem>>, vector<1024x128xf32>
    tpu.vector_store %arg10[%c0_23, %c0_24], %42 {strides = array<i32>} : memref<1024x128xf32, #tpu.memory_space<vmem>>, vector<1024x128xf32>,
    %c0_i32_25 = arith.constant 0 : i32
    %44 = arith.cmpi eq, %arg1, %c0_i32_25 : i32
    %45 = arith.extui %44 : i1 to i32
    %c0_i32_26 = arith.constant 0 : i32
    %46 = arith.cmpi ne, %45, %c0_i32_26 : i32
    scf.if %46 {
      %c0_27 = arith.constant 0 : index
      %c0_28 = arith.constant 0 : index
      %47 = vector.load %arg10[%c0_27, %c0_28] : memref<1024x128xf32, #tpu.memory_space<vmem>>, vector<1024x128xf32>
      %cst_29 = arith.constant dense<0xFF800000> : vector<1024xf32>
      %48 = vector.multi_reduction <maximumf>, %47, %cst_29 [1] : vector<1024x128xf32> to vector<1024xf32>
      %49 = vector.shape_cast %48 : vector<1024xf32> to vector<1024x1xf32>
      %c0_30 = arith.constant 0 : index
      %c0_31 = arith.constant 0 : index
      %50 = vector.load %arg8[%c0_30, %c0_31] : memref<1024x1xf32, #tpu.memory_space<vmem>>, vector<1024x1xf32>
      %51 = arith.addf %49, %50 : vector<1024x1xf32>
      %c0_32 = arith.constant 0 : index
      %c0_33 = arith.constant 0 : index
      %c0_34 = arith.constant 0 : index
      %52 = vector.load %arg9[%c0_32, %c0_33, %c0_34] : memref<1x1024x1xf32, #tpu.memory_space<vmem>>, vector<1x1024x1xf32>
      %53 = vector.shape_cast %52 : vector<1x1024x1xf32> to vector<1024x1xf32>
      %54 = vector.shape_cast %51 : vector<1024x1xf32> to vector<1x1024x1xf32>
      tpu.vector_store %arg9[%c0_32, %c0_33, %c0_34], %54 {strides = array<i32>} : memref<1x1024x1xf32, #tpu.memory_space<vmem>>, vector<1x1024x1xf32>,
    } else {
    }
    return
  }
  func.func @transform_0(%arg0: i32, %arg1: i32) -> (i32, i32, i32) {
    %c0_i32 = arith.constant 0 : i32
    %c0_i32_0 = arith.constant 0 : i32
    return %arg0, %c0_i32, %arg1 : i32, i32, i32
  }
  func.func @transform_1(%arg0: i32, %arg1: i32) -> (i32, i32, i32) {
    %c0_i32 = arith.constant 0 : i32
    %c0_i32_0 = arith.constant 0 : i32
    %c0_i32_1 = arith.constant 0 : i32
    %c0_i32_2 = arith.constant 0 : i32
    return %c0_i32, %c0_i32_0, %c0_i32_1 : i32, i32, i32
  }
  func.func @transform_2(%arg0: i32, %arg1: i32) -> (i32, i32) {
    %c0_i32 = arith.constant 0 : i32
    %c0_i32_0 = arith.constant 0 : i32
    %c0_i32_1 = arith.constant 0 : i32
    return %c0_i32, %c0_i32_0 : i32, i32
  }
  func.func @transform_3(%arg0: i32, %arg1: i32) -> (i32, i32) {
    %c0_i32 = arith.constant 0 : i32
    %c0_i32_0 = arith.constant 0 : i32
    %c0_i32_1 = arith.constant 0 : i32
    return %c0_i32, %c0_i32_0 : i32, i32
  }
  func.func @transform_4(%arg0: i32, %arg1: i32) -> (i32, i32) {
    %c0_i32 = arith.constant 0 : i32
    %c0_i32_0 = arith.constant 0 : i32
    %c0_i32_1 = arith.constant 0 : i32
    return %c0_i32, %c0_i32_0 : i32, i32
  }
  func.func @transform_5(%arg0: i32, %arg1: i32) -> (i32, i32) {
    %c0_i32 = arith.constant 0 : i32
    %c0_i32_0 = arith.constant 0 : i32
    %c0_i32_1 = arith.constant 0 : i32
    return %c0_i32, %c0_i32_0 : i32, i32
  }
  func.func @transform_6(%arg0: i32, %arg1: i32) -> (i32, i32) {
    %c0_i32 = arith.constant 0 : i32
    %c0_i32_0 = arith.constant 0 : i32
    %c0_i32_1 = arith.constant 0 : i32
    return %c0_i32, %c0_i32_0 : i32, i32
  }
  func.func @transform_7(%arg0: i32, %arg1: i32) -> (i32, i32, i32) {
    %c0_i32 = arith.constant 0 : i32
    %c0_i32_0 = arith.constant 0 : i32
    %c0_i32_1 = arith.constant 0 : i32
    return %arg0, %c0_i32, %c0_i32_0 : i32, i32, i32
  }
}

module attributes {stable_mosaic.version = 11 : i64} {
  func.func @_head_decoder_kernel(%arg0: i32, %arg1: memref<8x1024xf32, #tpu.memory_space<vmem>>, %arg2: memref<8x128xf32, #tpu.memory_space<vmem>>, %arg3: memref<1024x512xbf16, #tpu.memory_space<vmem>>, %arg4: memref<1x512xf32, #tpu.memory_space<vmem>>, %arg5: memref<512x256xbf16, #tpu.memory_space<vmem>>, %arg6: memref<1x256xf32, #tpu.memory_space<vmem>>, %arg7: memref<256x128xbf16, #tpu.memory_space<vmem>>, %arg8: memref<1x128xf32, #tpu.memory_space<vmem>>, %arg9: memref<128x128xbf16, #tpu.memory_space<vmem>>, %arg10: memref<1x128xf32, #tpu.memory_space<vmem>>, %arg11: memref<128x128xbf16, #tpu.memory_space<vmem>>, %arg12: memref<1x128xf32, #tpu.memory_space<vmem>>, %arg13: memref<128x128xbf16, #tpu.memory_space<vmem>>, %arg14: memref<1x128xf32, #tpu.memory_space<vmem>>, %arg15: memref<128x256xbf16, #tpu.memory_space<vmem>>, %arg16: memref<1x256xf32, #tpu.memory_space<vmem>>, %arg17: memref<256x512xbf16, #tpu.memory_space<vmem>>, %arg18: memref<1x512xf32, #tpu.memory_space<vmem>>, %arg19: memref<512x1024xbf16, #tpu.memory_space<vmem>>, %arg20: memref<1x1024xf32, #tpu.memory_space<vmem>>, %arg21: memref<1024x256xbf16, #tpu.memory_space<vmem>>, %arg22: memref<1x256xf32, #tpu.memory_space<vmem>>, %arg23: memref<8x256xf32, #tpu.memory_space<vmem>>, %arg24: memref<8x128xf32, #tpu.memory_space<vmem>>, %arg25: memref<8x128xf32, #tpu.memory_space<vmem>>) attributes {dimension_semantics = [#tpu.dimension_semantics<parallel>], iteration_bounds = array<i64: 1>, scalar_prefetch = 0 : i64, scratch_operands = 0 : i64, tpu.core_type = #tpu.core_type<tc>, window_params = [{transform_indices = @transform_0, window_bounds = array<i64: 8, 1024>}, {transform_indices = @transform_1, window_bounds = array<i64: 8, 128>}, {pipeline_mode = #tpu.pipeline_mode<synchronous>, transform_indices = @transform_2, window_bounds = array<i64: 1024, 512>}, {pipeline_mode = #tpu.pipeline_mode<synchronous>, transform_indices = @transform_3, window_bounds = array<i64: 1, 512>}, {pipeline_mode = #tpu.pipeline_mode<synchronous>, transform_indices = @transform_4, window_bounds = array<i64: 512, 256>}, {pipeline_mode = #tpu.pipeline_mode<synchronous>, transform_indices = @transform_5, window_bounds = array<i64: 1, 256>}, {pipeline_mode = #tpu.pipeline_mode<synchronous>, transform_indices = @transform_6, window_bounds = array<i64: 256, 128>}, {pipeline_mode = #tpu.pipeline_mode<synchronous>, transform_indices = @transform_7, window_bounds = array<i64: 1, 128>}, {pipeline_mode = #tpu.pipeline_mode<synchronous>, transform_indices = @transform_8, window_bounds = array<i64: 128, 128>}, {pipeline_mode = #tpu.pipeline_mode<synchronous>, transform_indices = @transform_9, window_bounds = array<i64: 1, 128>}, {pipeline_mode = #tpu.pipeline_mode<synchronous>, transform_indices = @transform_10, window_bounds = array<i64: 128, 128>}, {pipeline_mode = #tpu.pipeline_mode<synchronous>, transform_indices = @transform_11, window_bounds = array<i64: 1, 128>}, {pipeline_mode = #tpu.pipeline_mode<synchronous>, transform_indices = @transform_12, window_bounds = array<i64: 128, 128>}, {pipeline_mode = #tpu.pipeline_mode<synchronous>, transform_indices = @transform_13, window_bounds = array<i64: 1, 128>}, {pipeline_mode = #tpu.pipeline_mode<synchronous>, transform_indices = @transform_14, window_bounds = array<i64: 128, 256>}, {pipeline_mode = #tpu.pipeline_mode<synchronous>, transform_indices = @transform_15, window_bounds = array<i64: 1, 256>}, {pipeline_mode = #tpu.pipeline_mode<synchronous>, transform_indices = @transform_16, window_bounds = array<i64: 256, 512>}, {pipeline_mode = #tpu.pipeline_mode<synchronous>, transform_indices = @transform_17, window_bounds = array<i64: 1, 512>}, {pipeline_mode = #tpu.pipeline_mode<synchronous>, transform_indices = @transform_18, window_bounds = array<i64: 512, 1024>}, {pipeline_mode = #tpu.pipeline_mode<synchronous>, transform_indices = @transform_19, window_bounds = array<i64: 1, 1024>}, {pipeline_mode = #tpu.pipeline_mode<synchronous>, transform_indices = @transform_20, window_bounds = array<i64: 1024, 256>}, {pipeline_mode = #tpu.pipeline_mode<synchronous>, transform_indices = @transform_21, window_bounds = array<i64: 1, 256>}, {transform_indices = @transform_22, window_bounds = array<i64: 8, 256>}, {transform_indices = @transform_23, window_bounds = array<i64: 8, 128>}, {transform_indices = @transform_24, window_bounds = array<i64: 8, 128>}]} {
    %c0 = arith.constant 0 : index
    %c0_0 = arith.constant 0 : index
    %0 = vector.load %arg1[%c0, %c0_0] : memref<8x1024xf32, #tpu.memory_space<vmem>>, vector<8x1024xf32>
    %1 = arith.truncf %0 : vector<8x1024xf32> to vector<8x1024xbf16>
    %c0_1 = arith.constant 0 : index
    %c0_2 = arith.constant 0 : index
    %2 = vector.load %arg3[%c0_1, %c0_2] : memref<1024x512xbf16, #tpu.memory_space<vmem>>, vector<1024x512xbf16>
    %cst = arith.constant dense<0.000000e+00> : vector<8x512xf32>
    %3 = tpu.matmul %1, %2, %cst {dimension_numbers = #tpu.dot_dimension_numbers<[1], [0], [0], [1], [0, 0, 1, 1], [], []>} : vector<8x1024xbf16>, vector<1024x512xbf16>, vector<8x512xf32> -> vector<8x512xf32>
    %c0_3 = arith.constant 0 : index
    %c0_4 = arith.constant 0 : index
    %4 = vector.load %arg4[%c0_3, %c0_4] : memref<1x512xf32, #tpu.memory_space<vmem>>, vector<1x512xf32>
    %5 = vector.broadcast %4 : vector<1x512xf32> to vector<8x512xf32>
    %6 = arith.addf %3, %5 : vector<8x512xf32>
    %cst_5 = arith.constant 0.000000e+00 : f32
    %7 = vector.broadcast %cst_5 : f32 to vector<8x512xf32>
    %8 = arith.maximumf %6, %7 : vector<8x512xf32>
    %9 = arith.truncf %8 : vector<8x512xf32> to vector<8x512xbf16>
    %c0_6 = arith.constant 0 : index
    %c0_7 = arith.constant 0 : index
    %10 = vector.load %arg5[%c0_6, %c0_7] : memref<512x256xbf16, #tpu.memory_space<vmem>>, vector<512x256xbf16>
    %cst_8 = arith.constant dense<0.000000e+00> : vector<8x256xf32>
    %11 = tpu.matmul %9, %10, %cst_8 {dimension_numbers = #tpu.dot_dimension_numbers<[1], [0], [0], [1], [0, 0, 1, 1], [], []>} : vector<8x512xbf16>, vector<512x256xbf16>, vector<8x256xf32> -> vector<8x256xf32>
    %c0_9 = arith.constant 0 : index
    %c0_10 = arith.constant 0 : index
    %12 = vector.load %arg6[%c0_9, %c0_10] : memref<1x256xf32, #tpu.memory_space<vmem>>, vector<1x256xf32>
    %13 = vector.broadcast %12 : vector<1x256xf32> to vector<8x256xf32>
    %14 = arith.addf %11, %13 : vector<8x256xf32>
    %cst_11 = arith.constant 0.000000e+00 : f32
    %15 = vector.broadcast %cst_11 : f32 to vector<8x256xf32>
    %16 = arith.maximumf %14, %15 : vector<8x256xf32>
    %17 = arith.truncf %16 : vector<8x256xf32> to vector<8x256xbf16>
    %c0_12 = arith.constant 0 : index
    %c0_13 = arith.constant 0 : index
    %18 = vector.load %arg7[%c0_12, %c0_13] : memref<256x128xbf16, #tpu.memory_space<vmem>>, vector<256x128xbf16>
    %cst_14 = arith.constant dense<0.000000e+00> : vector<8x128xf32>
    %19 = tpu.matmul %17, %18, %cst_14 {dimension_numbers = #tpu.dot_dimension_numbers<[1], [0], [0], [1], [0, 0, 1, 1], [], []>} : vector<8x256xbf16>, vector<256x128xbf16>, vector<8x128xf32> -> vector<8x128xf32>
    %c0_15 = arith.constant 0 : index
    %c0_16 = arith.constant 0 : index
    %20 = vector.load %arg8[%c0_15, %c0_16] : memref<1x128xf32, #tpu.memory_space<vmem>>, vector<1x128xf32>
    %21 = vector.broadcast %20 : vector<1x128xf32> to vector<8x128xf32>
    %22 = arith.addf %19, %21 : vector<8x128xf32>
    %23 = arith.truncf %22 : vector<8x128xf32> to vector<8x128xbf16>
    %c0_17 = arith.constant 0 : index
    %c0_18 = arith.constant 0 : index
    %24 = vector.load %arg9[%c0_17, %c0_18] : memref<128x128xbf16, #tpu.memory_space<vmem>>, vector<128x128xbf16>
    %cst_19 = arith.constant dense<0.000000e+00> : vector<8x128xf32>
    %25 = tpu.matmul %23, %24, %cst_19 {dimension_numbers = #tpu.dot_dimension_numbers<[1], [0], [0], [1], [0, 0, 1, 1], [], []>} : vector<8x128xbf16>, vector<128x128xbf16>, vector<8x128xf32> -> vector<8x128xf32>
    %c0_20 = arith.constant 0 : index
    %c0_21 = arith.constant 0 : index
    %26 = vector.load %arg10[%c0_20, %c0_21] : memref<1x128xf32, #tpu.memory_space<vmem>>, vector<1x128xf32>
    %27 = vector.broadcast %26 : vector<1x128xf32> to vector<8x128xf32>
    %28 = arith.addf %25, %27 : vector<8x128xf32>
    %29 = arith.negf %28 : vector<8x128xf32>
    %30 = math.exp %29 : vector<8x128xf32>
    %cst_22 = arith.constant 1.000000e+00 : f32
    %31 = vector.broadcast %cst_22 : f32 to vector<8x128xf32>
    %32 = arith.addf %31, %30 : vector<8x128xf32>
    %33 = arith.divf %31, %32 : vector<8x128xf32>
    %34 = arith.truncf %22 : vector<8x128xf32> to vector<8x128xbf16>
    %c0_23 = arith.constant 0 : index
    %c0_24 = arith.constant 0 : index
    %35 = vector.load %arg11[%c0_23, %c0_24] : memref<128x128xbf16, #tpu.memory_space<vmem>>, vector<128x128xbf16>
    %cst_25 = arith.constant dense<0.000000e+00> : vector<8x128xf32>
    %36 = tpu.matmul %34, %35, %cst_25 {dimension_numbers = #tpu.dot_dimension_numbers<[1], [0], [0], [1], [0, 0, 1, 1], [], []>} : vector<8x128xbf16>, vector<128x128xbf16>, vector<8x128xf32> -> vector<8x128xf32>
    %c0_26 = arith.constant 0 : index
    %c0_27 = arith.constant 0 : index
    %37 = vector.load %arg12[%c0_26, %c0_27] : memref<1x128xf32, #tpu.memory_space<vmem>>, vector<1x128xf32>
    %38 = vector.broadcast %37 : vector<1x128xf32> to vector<8x128xf32>
    %39 = arith.addf %36, %38 : vector<8x128xf32>
    %cst_28 = arith.constant 0.000000e+00 : f32
    %40 = vector.broadcast %cst_28 : f32 to vector<8x128xf32>
    %41 = arith.maximumf %39, %40 : vector<8x128xf32>
    %c0_29 = arith.constant 0 : index
    %c0_30 = arith.constant 0 : index
    %42 = vector.load %arg2[%c0_29, %c0_30] : memref<8x128xf32, #tpu.memory_space<vmem>>, vector<8x128xf32>
    %cst_31 = arith.constant 5.000000e-01 : f32
    %43 = vector.broadcast %cst_31 : f32 to vector<8x128xf32>
    %44 = arith.mulf %43, %41 : vector<8x128xf32>
    %45 = math.exp %44 : vector<8x128xf32>
    %46 = arith.mulf %42, %45 : vector<8x128xf32>
    %47 = arith.addf %33, %46 : vector<8x128xf32>
    %48 = arith.truncf %47 : vector<8x128xf32> to vector<8x128xbf16>
    %c0_32 = arith.constant 0 : index
    %c0_33 = arith.constant 0 : index
    %49 = vector.load %arg13[%c0_32, %c0_33] : memref<128x128xbf16, #tpu.memory_space<vmem>>, vector<128x128xbf16>
    %cst_34 = arith.constant dense<0.000000e+00> : vector<8x128xf32>
    %50 = tpu.matmul %48, %49, %cst_34 {dimension_numbers = #tpu.dot_dimension_numbers<[1], [0], [0], [1], [0, 0, 1, 1], [], []>} : vector<8x128xbf16>, vector<128x128xbf16>, vector<8x128xf32> -> vector<8x128xf32>
    %c0_35 = arith.constant 0 : index
    %c0_36 = arith.constant 0 : index
    %51 = vector.load %arg14[%c0_35, %c0_36] : memref<1x128xf32, #tpu.memory_space<vmem>>, vector<1x128xf32>
    %52 = vector.broadcast %51 : vector<1x128xf32> to vector<8x128xf32>
    %53 = arith.addf %50, %52 : vector<8x128xf32>
    %cst_37 = arith.constant 0.000000e+00 : f32
    %54 = vector.broadcast %cst_37 : f32 to vector<8x128xf32>
    %55 = arith.maximumf %53, %54 : vector<8x128xf32>
    %56 = arith.truncf %55 : vector<8x128xf32> to vector<8x128xbf16>
    %c0_38 = arith.constant 0 : index
    %c0_39 = arith.constant 0 : index
    %57 = vector.load %arg15[%c0_38, %c0_39] : memref<128x256xbf16, #tpu.memory_space<vmem>>, vector<128x256xbf16>
    %cst_40 = arith.constant dense<0.000000e+00> : vector<8x256xf32>
    %58 = tpu.matmul %56, %57, %cst_40 {dimension_numbers = #tpu.dot_dimension_numbers<[1], [0], [0], [1], [0, 0, 1, 1], [], []>} : vector<8x128xbf16>, vector<128x256xbf16>, vector<8x256xf32> -> vector<8x256xf32>
    %c0_41 = arith.constant 0 : index
    %c0_42 = arith.constant 0 : index
    %59 = vector.load %arg16[%c0_41, %c0_42] : memref<1x256xf32, #tpu.memory_space<vmem>>, vector<1x256xf32>
    %60 = vector.broadcast %59 : vector<1x256xf32> to vector<8x256xf32>
    %61 = arith.addf %58, %60 : vector<8x256xf32>
    %cst_43 = arith.constant 0.000000e+00 : f32
    %62 = vector.broadcast %cst_43 : f32 to vector<8x256xf32>
    %63 = arith.maximumf %61, %62 : vector<8x256xf32>
    %64 = arith.truncf %63 : vector<8x256xf32> to vector<8x256xbf16>
    %c0_44 = arith.constant 0 : index
    %c0_45 = arith.constant 0 : index
    %65 = vector.load %arg17[%c0_44, %c0_45] : memref<256x512xbf16, #tpu.memory_space<vmem>>, vector<256x512xbf16>
    %cst_46 = arith.constant dense<0.000000e+00> : vector<8x512xf32>
    %66 = tpu.matmul %64, %65, %cst_46 {dimension_numbers = #tpu.dot_dimension_numbers<[1], [0], [0], [1], [0, 0, 1, 1], [], []>} : vector<8x256xbf16>, vector<256x512xbf16>, vector<8x512xf32> -> vector<8x512xf32>
    %c0_47 = arith.constant 0 : index
    %c0_48 = arith.constant 0 : index
    %67 = vector.load %arg18[%c0_47, %c0_48] : memref<1x512xf32, #tpu.memory_space<vmem>>, vector<1x512xf32>
    %68 = vector.broadcast %67 : vector<1x512xf32> to vector<8x512xf32>
    %69 = arith.addf %66, %68 : vector<8x512xf32>
    %cst_49 = arith.constant 0.000000e+00 : f32
    %70 = vector.broadcast %cst_49 : f32 to vector<8x512xf32>
    %71 = arith.maximumf %69, %70 : vector<8x512xf32>
    %72 = arith.truncf %71 : vector<8x512xf32> to vector<8x512xbf16>
    %c0_50 = arith.constant 0 : index
    %c0_51 = arith.constant 0 : index
    %73 = vector.load %arg19[%c0_50, %c0_51] : memref<512x1024xbf16, #tpu.memory_space<vmem>>, vector<512x1024xbf16>
    %cst_52 = arith.constant dense<0.000000e+00> : vector<8x1024xf32>
    %74 = tpu.matmul %72, %73, %cst_52 {dimension_numbers = #tpu.dot_dimension_numbers<[1], [0], [0], [1], [0, 0, 1, 1], [], []>} : vector<8x512xbf16>, vector<512x1024xbf16>, vector<8x1024xf32> -> vector<8x1024xf32>
    %c0_53 = arith.constant 0 : index
    %c0_54 = arith.constant 0 : index
    %75 = vector.load %arg20[%c0_53, %c0_54] : memref<1x1024xf32, #tpu.memory_space<vmem>>, vector<1x1024xf32>
    %76 = vector.broadcast %75 : vector<1x1024xf32> to vector<8x1024xf32>
    %77 = arith.addf %74, %76 : vector<8x1024xf32>
    %cst_55 = arith.constant 0.000000e+00 : f32
    %78 = vector.broadcast %cst_55 : f32 to vector<8x1024xf32>
    %79 = arith.maximumf %77, %78 : vector<8x1024xf32>
    %80 = arith.truncf %79 : vector<8x1024xf32> to vector<8x1024xbf16>
    %c0_56 = arith.constant 0 : index
    %c0_57 = arith.constant 0 : index
    %81 = vector.load %arg21[%c0_56, %c0_57] : memref<1024x256xbf16, #tpu.memory_space<vmem>>, vector<1024x256xbf16>
    %cst_58 = arith.constant dense<0.000000e+00> : vector<8x256xf32>
    %82 = tpu.matmul %80, %81, %cst_58 {dimension_numbers = #tpu.dot_dimension_numbers<[1], [0], [0], [1], [0, 0, 1, 1], [], []>} : vector<8x1024xbf16>, vector<1024x256xbf16>, vector<8x256xf32> -> vector<8x256xf32>
    %c0_59 = arith.constant 0 : index
    %c0_60 = arith.constant 0 : index
    %83 = vector.load %arg22[%c0_59, %c0_60] : memref<1x256xf32, #tpu.memory_space<vmem>>, vector<1x256xf32>
    %84 = vector.broadcast %83 : vector<1x256xf32> to vector<8x256xf32>
    %85 = arith.addf %82, %84 : vector<8x256xf32>
    %86 = math.tanh %85 : vector<8x256xf32>
    %c0_61 = arith.constant 0 : index
    %c0_62 = arith.constant 0 : index
    %87 = vector.load %arg23[%c0_61, %c0_62] : memref<8x256xf32, #tpu.memory_space<vmem>>, vector<8x256xf32>
    tpu.vector_store %arg23[%c0_61, %c0_62], %86 {strides = array<i32>} : memref<8x256xf32, #tpu.memory_space<vmem>>, vector<8x256xf32>,
    %c0_63 = arith.constant 0 : index
    %c0_64 = arith.constant 0 : index
    %88 = vector.load %arg24[%c0_63, %c0_64] : memref<8x128xf32, #tpu.memory_space<vmem>>, vector<8x128xf32>
    tpu.vector_store %arg24[%c0_63, %c0_64], %33 {strides = array<i32>} : memref<8x128xf32, #tpu.memory_space<vmem>>, vector<8x128xf32>,
    %c0_65 = arith.constant 0 : index
    %c0_66 = arith.constant 0 : index
    %89 = vector.load %arg25[%c0_65, %c0_66] : memref<8x128xf32, #tpu.memory_space<vmem>>, vector<8x128xf32>
    tpu.vector_store %arg25[%c0_65, %c0_66], %41 {strides = array<i32>} : memref<8x128xf32, #tpu.memory_space<vmem>>, vector<8x128xf32>,
    return
  }
  func.func @transform_0(%arg0: i32) -> (i32, i32) {
    %c0_i32 = arith.constant 0 : i32
    %c0_i32_0 = arith.constant 0 : i32
    return %arg0, %c0_i32 : i32, i32
  }
  func.func @transform_1(%arg0: i32) -> (i32, i32) {
    %c0_i32 = arith.constant 0 : i32
    %c0_i32_0 = arith.constant 0 : i32
    return %arg0, %c0_i32 : i32, i32
  }
  func.func @transform_2(%arg0: i32) -> (i32, i32) {
    %c0_i32 = arith.constant 0 : i32
    %c0_i32_0 = arith.constant 0 : i32
    %c0_i32_1 = arith.constant 0 : i32
    return %c0_i32, %c0_i32_0 : i32, i32
  }
  func.func @transform_3(%arg0: i32) -> (i32, i32) {
    %c0_i32 = arith.constant 0 : i32
    %c0_i32_0 = arith.constant 0 : i32
    %c0_i32_1 = arith.constant 0 : i32
    return %c0_i32, %c0_i32_0 : i32, i32
  }
  func.func @transform_4(%arg0: i32) -> (i32, i32) {
    %c0_i32 = arith.constant 0 : i32
    %c0_i32_0 = arith.constant 0 : i32
    %c0_i32_1 = arith.constant 0 : i32
    return %c0_i32, %c0_i32_0 : i32, i32
  }
  func.func @transform_5(%arg0: i32) -> (i32, i32) {
    %c0_i32 = arith.constant 0 : i32
    %c0_i32_0 = arith.constant 0 : i32
    %c0_i32_1 = arith.constant 0 : i32
    return %c0_i32, %c0_i32_0 : i32, i32
  }
  func.func @transform_6(%arg0: i32) -> (i32, i32) {
    %c0_i32 = arith.constant 0 : i32
    %c0_i32_0 = arith.constant 0 : i32
    %c0_i32_1 = arith.constant 0 : i32
    return %c0_i32, %c0_i32_0 : i32, i32
  }
  func.func @transform_7(%arg0: i32) -> (i32, i32) {
    %c0_i32 = arith.constant 0 : i32
    %c0_i32_0 = arith.constant 0 : i32
    %c0_i32_1 = arith.constant 0 : i32
    return %c0_i32, %c0_i32_0 : i32, i32
  }
  func.func @transform_8(%arg0: i32) -> (i32, i32) {
    %c0_i32 = arith.constant 0 : i32
    %c0_i32_0 = arith.constant 0 : i32
    %c0_i32_1 = arith.constant 0 : i32
    return %c0_i32, %c0_i32_0 : i32, i32
  }
  func.func @transform_9(%arg0: i32) -> (i32, i32) {
    %c0_i32 = arith.constant 0 : i32
    %c0_i32_0 = arith.constant 0 : i32
    %c0_i32_1 = arith.constant 0 : i32
    return %c0_i32, %c0_i32_0 : i32, i32
  }
  func.func @transform_10(%arg0: i32) -> (i32, i32) {
    %c0_i32 = arith.constant 0 : i32
    %c0_i32_0 = arith.constant 0 : i32
    %c0_i32_1 = arith.constant 0 : i32
    return %c0_i32, %c0_i32_0 : i32, i32
  }
  func.func @transform_11(%arg0: i32) -> (i32, i32) {
    %c0_i32 = arith.constant 0 : i32
    %c0_i32_0 = arith.constant 0 : i32
    %c0_i32_1 = arith.constant 0 : i32
    return %c0_i32, %c0_i32_0 : i32, i32
  }
  func.func @transform_12(%arg0: i32) -> (i32, i32) {
    %c0_i32 = arith.constant 0 : i32
    %c0_i32_0 = arith.constant 0 : i32
    %c0_i32_1 = arith.constant 0 : i32
    return %c0_i32, %c0_i32_0 : i32, i32
  }
  func.func @transform_13(%arg0: i32) -> (i32, i32) {
    %c0_i32 = arith.constant 0 : i32
    %c0_i32_0 = arith.constant 0 : i32
    %c0_i32_1 = arith.constant 0 : i32
    return %c0_i32, %c0_i32_0 : i32, i32
  }
  func.func @transform_14(%arg0: i32) -> (i32, i32) {
    %c0_i32 = arith.constant 0 : i32
    %c0_i32_0 = arith.constant 0 : i32
    %c0_i32_1 = arith.constant 0 : i32
    return %c0_i32, %c0_i32_0 : i32, i32
  }
  func.func @transform_15(%arg0: i32) -> (i32, i32) {
    %c0_i32 = arith.constant 0 : i32
    %c0_i32_0 = arith.constant 0 : i32
    %c0_i32_1 = arith.constant 0 : i32
    return %c0_i32, %c0_i32_0 : i32, i32
  }
  func.func @transform_16(%arg0: i32) -> (i32, i32) {
    %c0_i32 = arith.constant 0 : i32
    %c0_i32_0 = arith.constant 0 : i32
    %c0_i32_1 = arith.constant 0 : i32
    return %c0_i32, %c0_i32_0 : i32, i32
  }
  func.func @transform_17(%arg0: i32) -> (i32, i32) {
    %c0_i32 = arith.constant 0 : i32
    %c0_i32_0 = arith.constant 0 : i32
    %c0_i32_1 = arith.constant 0 : i32
    return %c0_i32, %c0_i32_0 : i32, i32
  }
  func.func @transform_18(%arg0: i32) -> (i32, i32) {
    %c0_i32 = arith.constant 0 : i32
    %c0_i32_0 = arith.constant 0 : i32
    %c0_i32_1 = arith.constant 0 : i32
    return %c0_i32, %c0_i32_0 : i32, i32
  }
  func.func @transform_19(%arg0: i32) -> (i32, i32) {
    %c0_i32 = arith.constant 0 : i32
    %c0_i32_0 = arith.constant 0 : i32
    %c0_i32_1 = arith.constant 0 : i32
    return %c0_i32, %c0_i32_0 : i32, i32
  }
  func.func @transform_20(%arg0: i32) -> (i32, i32) {
    %c0_i32 = arith.constant 0 : i32
    %c0_i32_0 = arith.constant 0 : i32
    %c0_i32_1 = arith.constant 0 : i32
    return %c0_i32, %c0_i32_0 : i32, i32
  }
  func.func @transform_21(%arg0: i32) -> (i32, i32) {
    %c0_i32 = arith.constant 0 : i32
    %c0_i32_0 = arith.constant 0 : i32
    %c0_i32_1 = arith.constant 0 : i32
    return %c0_i32, %c0_i32_0 : i32, i32
  }
  func.func @transform_22(%arg0: i32) -> (i32, i32) {
    %c0_i32 = arith.constant 0 : i32
    %c0_i32_0 = arith.constant 0 : i32
    return %arg0, %c0_i32 : i32, i32
  }
  func.func @transform_23(%arg0: i32) -> (i32, i32) {
    %c0_i32 = arith.constant 0 : i32
    %c0_i32_0 = arith.constant 0 : i32
    return %arg0, %c0_i32 : i32, i32
  }
  func.func @transform_24(%arg0: i32) -> (i32, i32) {
    %c0_i32 = arith.constant 0 : i32
    %c0_i32_0 = arith.constant 0 : i32
    return %arg0, %c0_i32 : i32, i32
  }
}

</mosaic_0001>

<llo_original>
// kernel: vae_forward.2
$region0: #{vae_forward.2}
  #allocation0 [shape = 'u32[]', space=smem, size = 0x4, offset = 0x4, fixed_abs, tag = 'smem constant byte address 0x4 - core index']
  #allocation1 [shape = 'u32[144,128]{1,0:T(1,128)}', space=vmem, size = 0x12000, scoped, tag = 'internal scratch']
  #allocation2 [shape = 'f32[1024,128]{1,0:T(8,128)}', space=vmem, size = 0x80000, scoped, tag = 'scratch operand']
  %s0 = inlined_call_operand.vmem [shape: f32[2,3,128], index: 0, kind: input, shape index: {}]
  %s1 = inlined_call_operand.vmem [shape: f32[3,64,1], index: 1, kind: input, shape index: {}]
  %s2 = inlined_call_operand.vmem [shape: f32[64,1], index: 2, kind: input, shape index: {}]
  %s3 = inlined_call_operand.vmem [shape: bf16[128,64], index: 3, kind: input, shape index: {}]
  %s4 = inlined_call_operand.vmem [shape: f32[128,1], index: 4, kind: input, shape index: {}]
  %s5 = inlined_call_operand.vmem [shape: bf16[1024,128], index: 5, kind: input, shape index: {}]
  %s6 = inlined_call_operand.vmem [shape: f32[1024,1], index: 6, kind: input, shape index: {}]
  %s7 = inlined_call_operand.vmem [shape: f32[2,1024,1], index: 7, kind: output, shape index: {}]
  %s8 = sld [smem:[#allocation0]]
  $region69: #{vae_forward.2} parent=0
    _
  %s10 = ssub.s32 1, %s8
  %s11 = scalar_select 0, %s10, %s8
  loop: start=0, step=1, limit=4
  $region2: #{vae_forward.2} parent=0 // loop_pre_header
    _
  $region3: #{vae_forward.2} parent=0 // loop_header
    %s13 = sphi 0, %s17
    %p14 = scmp.ge.s32.totalorder %s13, 4
    %s20 = sphi 0, %s32
    %s21 = sphi 0, %s28
    %s22 = sphi 0, %s20
    %s23 = sphi 0, %s21
    %s24 = sphi 0, %s22
    %s25 = sphi 0, %s23
    %s37 = sphi 0, %s39
    %s40 = sphi 0, %s37
    %s41 = sphi 0, %s40
    %s57 = sphi 0, %s41
    %s61 = sphi 0, %s61
    %s63 = sphi 0, %s61
    %s64 = sphi 0, %s63
    %s78 = sphi 0, %s64
    %s82 = sphi 0, %s82
    %s84 = sphi 0, %s82
    %s85 = sphi 0, %s84
    %s99 = sphi 0, %s85
    %s103 = sphi 0, %s103
    %s105 = sphi 0, %s103
    %s106 = sphi 0, %s105
    %s120 = sphi 0, %s106
    %s124 = sphi 0, %s124
    %s126 = sphi 0, %s124
    %s127 = sphi 0, %s126
    %s141 = sphi 0, %s127
    %s145 = sphi 0, %s145
    %s147 = sphi 0, %s145
    %s148 = sphi 0, %s147
    %s162 = sphi 0, %s148
    %s166 = sphi 0, %s166
    %s168 = sphi 0, %s166
    %s169 = sphi 0, %s168
    %s183 = sphi 0, %s169
    %s189 = sphi 0, %s191
    %s192 = sphi 0, %s189
    %s193 = sphi 0, %s192
    %s209 = sphi 0, %s193
  $region4: #{vae_forward.2} parent=0 // loop_header_branch
    %16 = sbr.rel (%p14) target = $region8
  $region5: #{vae_forward.2} parent=0 // loop_body
    %s18 = ssub.s32 %s13, 1
    %s19 = ssub.s32 %s13, 2
    %s26 = sadd.s32 1, %s21
    %p27 = scmp.ge.s32.totalorder %s26, 1
    %s28 = scalar_select %p27, 0, %s26
    %s29 = sadd.s32 1, %s20
    %s30 = scalar_select %p27, %s29, %s20
    %p31 = scmp.ge.s32.totalorder %s30, 2
    %s32 = scalar_select %p31, 0, %s30
    %s33 = ssub.s32 %s20, %s32
    %s34 = ssub.s32 %s21, %s28
    %s35 = sor.u32 %s33, %s34
    %p36 = scmp.eq.s32.totalorder %s35, 0
    %s38 = sadd.s32 %s37, 1
    %s39 = scalar_select %p36, %s37, %s38
    %p42 = pneg %p36
    %p43 = scmp.eq.s32.totalorder %s13, 1
    %p44 = por %p42, %p43
    %p45 = scmp.ne.s32.totalorder %s37, %s40
    %p46 = scmp.eq.s32.totalorder %s13, 0
    %p47 = por %p45, %p46
    %p48 = scmp.ne.s32.totalorder %s37, %s40
    %p49 = scmp.eq.s32.totalorder %s18, 1
    %p50 = por %p48, %p49
    %p51 = scmp.ne.s32.totalorder %s40, %s41
    %p52 = scmp.eq.s32.totalorder %s18, 0
    %p53 = por %p51, %p52
    %p54 = scmp.ne.s32.totalorder %s40, %s41
    %p55 = scmp.eq.s32.totalorder %s19, 1
    %p56 = por %p54, %p55
    %p58 = scmp.ne.s32.totalorder %s41, %s57
    %p59 = scmp.eq.s32.totalorder %s19, 0
    %p60 = por %p58, %p59
    %s62 = sadd.s32 %s61, 1
    %p65 = scmp.eq.s32.totalorder %s13, 1
    %p66 = scmp.ne.s32.totalorder %s61, %s63
    %p67 = scmp.eq.s32.totalorder %s13, 0
    %p68 = por %p66, %p67
    %p69 = scmp.ne.s32.totalorder %s61, %s63
    %p70 = scmp.eq.s32.totalorder %s18, 1
    %p71 = por %p69, %p70
    %p72 = scmp.ne.s32.totalorder %s63, %s64
    %p73 = scmp.eq.s32.totalorder %s18, 0
    %p74 = por %p72, %p73
    %p75 = scmp.ne.s32.totalorder %s63, %s64
    %p76 = scmp.eq.s32.totalorder %s19, 1
    %p77 = por %p75, %p76
    %p79 = scmp.ne.s32.totalorder %s64, %s78
    %p80 = scmp.eq.s32.totalorder %s19, 0
    %p81 = por %p79, %p80
    %s83 = sadd.s32 %s82, 1
    %p86 = scmp.eq.s32.totalorder %s13, 1
    %p87 = scmp.ne.s32.totalorder %s82, %s84
    %p88 = scmp.eq.s32.totalorder %s13, 0
    %p89 = por %p87, %p88
    %p90 = scmp.ne.s32.totalorder %s82, %s84
    %p91 = scmp.eq.s32.totalorder %s18, 1
    %p92 = por %p90, %p91
    %p93 = scmp.ne.s32.totalorder %s84, %s85
    %p94 = scmp.eq.s32.totalorder %s18, 0
    %p95 = por %p93, %p94
    %p96 = scmp.ne.s32.totalorder %s84, %s85
    %p97 = scmp.eq.s32.totalorder %s19, 1
    %p98 = por %p96, %p97
    %p100 = scmp.ne.s32.totalorder %s85, %s99
    %p101 = scmp.eq.s32.totalorder %s19, 0
    %p102 = por %p100, %p101
    %s104 = sadd.s32 %s103, 1
    %p107 = scmp.eq.s32.totalorder %s13, 1
    %p108 = scmp.ne.s32.totalorder %s103, %s105
    %p109 = scmp.eq.s32.totalorder %s13, 0
    %p110 = por %p108, %p109
    %p111 = scmp.ne.s32.totalorder %s103, %s105
    %p112 = scmp.eq.s32.totalorder %s18, 1
    %p113 = por %p111, %p112
    %p114 = scmp.ne.s32.totalorder %s105, %s106
    %p115 = scmp.eq.s32.totalorder %s18, 0
    %p116 = por %p114, %p115
    %p117 = scmp.ne.s32.totalorder %s105, %s106
    %p118 = scmp.eq.s32.totalorder %s19, 1
    %p119 = por %p117, %p118
    %p121 = scmp.ne.s32.totalorder %s106, %s120
    %p122 = scmp.eq.s32.totalorder %s19, 0
    %p123 = por %p121, %p122
    %s125 = sadd.s32 %s124, 1
    %p128 = scmp.eq.s32.totalorder %s13, 1
    %p129 = scmp.ne.s32.totalorder %s124, %s126
    %p130 = scmp.eq.s32.totalorder %s13, 0
    %p131 = por %p129, %p130
    %p132 = scmp.ne.s32.totalorder %s124, %s126
    %p133 = scmp.eq.s32.totalorder %s18, 1
    %p134 = por %p132, %p133
    %p135 = scmp.ne.s32.totalorder %s126, %s127
    %p136 = scmp.eq.s32.totalorder %s18, 0
    %p137 = por %p135, %p136
    %p138 = scmp.ne.s32.totalorder %s126, %s127
    %p139 = scmp.eq.s32.totalorder %s19, 1
    %p140 = por %p138, %p139
    %p142 = scmp.ne.s32.totalorder %s127, %s141
    %p143 = scmp.eq.s32.totalorder %s19, 0
    %p144 = por %p142, %p143
    %s146 = sadd.s32 %s145, 1
    %p149 = scmp.eq.s32.totalorder %s13, 1
    %p150 = scmp.ne.s32.totalorder %s145, %s147
    %p151 = scmp.eq.s32.totalorder %s13, 0
    %p152 = por %p150, %p151
    %p153 = scmp.ne.s32.totalorder %s145, %s147
    %p154 = scmp.eq.s32.totalorder %s18, 1
    %p155 = por %p153, %p154
    %p156 = scmp.ne.s32.totalorder %s147, %s148
    %p157 = scmp.eq.s32.totalorder %s18, 0
    %p158 = por %p156, %p157
    %p159 = scmp.ne.s32.totalorder %s147, %s148
    %p160 = scmp.eq.s32.totalorder %s19, 1
    %p161 = por %p159, %p160
    %p163 = scmp.ne.s32.totalorder %s148, %s162
    %p164 = scmp.eq.s32.totalorder %s19, 0
    %p165 = por %p163, %p164
    %s167 = sadd.s32 %s166, 1
    %p170 = scmp.eq.s32.totalorder %s13, 1
    %p171 = scmp.ne.s32.totalorder %s166, %s168
    %p172 = scmp.eq.s32.totalorder %s13, 0
    %p173 = por %p171, %p172
    %p174 = scmp.ne.s32.totalorder %s166, %s168
    %p175 = scmp.eq.s32.totalorder %s18, 1
    %p176 = por %p174, %p175
    %p177 = scmp.ne.s32.totalorder %s168, %s169
    %p178 = scmp.eq.s32.totalorder %s18, 0
    %p179 = por %p177, %p178
    %p180 = scmp.ne.s32.totalorder %s168, %s169
    %p181 = scmp.eq.s32.totalorder %s19, 1
    %p182 = por %p180, %p181
    %p184 = scmp.ne.s32.totalorder %s169, %s183
    %p185 = scmp.eq.s32.totalorder %s19, 0
    %p186 = por %p184, %p185
    %s187 = ssub.s32 %s20, %s32
    %p188 = scmp.eq.s32.totalorder %s187, 0
    %s190 = sadd.s32 %s189, 1
    %s191 = scalar_select %p188, %s189, %s190
    %p194 = pneg %p188
    %p195 = scmp.eq.s32.totalorder %s13, 1
    %p196 = por %p194, %p195
    %p197 = scmp.ne.s32.totalorder %s189, %s192
    %p198 = scmp.eq.s32.totalorder %s13, 0
    %p199 = por %p197, %p198
    %p200 = scmp.ne.s32.totalorder %s189, %s192
    %p201 = scmp.eq.s32.totalorder %s18, 1
    %p202 = por %p200, %p201
    %p203 = scmp.ne.s32.totalorder %s192, %s193
    %p204 = scmp.eq.s32.totalorder %s18, 0
    %p205 = por %p203, %p204
    %p206 = scmp.ne.s32.totalorder %s192, %s193
    %p207 = scmp.eq.s32.totalorder %s19, 1
    %p208 = por %p206, %p207
    %p210 = scmp.ne.s32.totalorder %s193, %s209
    %p211 = scmp.eq.s32.totalorder %s19, 0
    %p212 = por %p210, %p211
    %p213 = scmp.le.s32.totalorder 1, %s13
    %p214 = scmp.lt.s32.totalorder %s13, 3
    %p215 = pnand %p213, %p214
    %p216 = pneg %p215
    // Predicated region
    $region9: #{vae_forward.2} parent=5 // pred_check
      _
    $region10: #{vae_forward.2} parent=5 // pred_check_branch
      %218 = sbr.rel (%p215) target = $region12
    $region11: #{vae_forward.2} parent=5 // pred_region
      %s219 = ssub.s32 %s13, 1
      // Predicated region
      $region13: #{vae_forward.2} parent=11 // pred_check
        %p220 = pneg %p74
      $region14: #{vae_forward.2} parent=11 // pred_check_branch
        %222 = sbr.rel (%p220) target = $region16
      $region15: #{vae_forward.2} parent=11 // pred_region
        _
      $region16: #{vae_forward.2} parent=11 // pred_fallthru
        _
      // Predicated region
      $region17: #{vae_forward.2} parent=11 // pred_check
        %p223 = pneg %p95
      $region18: #{vae_forward.2} parent=11 // pred_check_branch
        %225 = sbr.rel (%p223) target = $region20
      $region19: #{vae_forward.2} parent=11 // pred_region
        _
      $region20: #{vae_forward.2} parent=11 // pred_fallthru
        _
      // Predicated region
      $region21: #{vae_forward.2} parent=11 // pred_check
        %p226 = pneg %p116
      $region22: #{vae_forward.2} parent=11 // pred_check_branch
        %228 = sbr.rel (%p226) target = $region24
      $region23: #{vae_forward.2} parent=11 // pred_region
        _
      $region24: #{vae_forward.2} parent=11 // pred_fallthru
        _
      // Predicated region
      $region25: #{vae_forward.2} parent=11 // pred_check
        %p229 = pneg %p137
      $region26: #{vae_forward.2} parent=11 // pred_check_branch
        %231 = sbr.rel (%p229) target = $region28
      $region27: #{vae_forward.2} parent=11 // pred_region
        _
      $region28: #{vae_forward.2} parent=11 // pred_fallthru
        _
      // Predicated region
      $region29: #{vae_forward.2} parent=11 // pred_check
        %p232 = pneg %p158
      $region30: #{vae_forward.2} parent=11 // pred_check_branch
        %234 = sbr.rel (%p232) target = $region32
      $region31: #{vae_forward.2} parent=11 // pred_region
        _
      $region32: #{vae_forward.2} parent=11 // pred_fallthru
        _
      // Predicated region
      $region33: #{vae_forward.2} parent=11 // pred_check
        %p235 = pneg %p179
      $region34: #{vae_forward.2} parent=11 // pred_check_branch
        %237 = sbr.rel (%p235) target = $region36
      $region35: #{vae_forward.2} parent=11 // pred_region
        _
      $region36: #{vae_forward.2} parent=11 // pred_fallthru
        _
    $region12: #{vae_forward.2} parent=5 // pred_fallthru
      _
    %p238 = scmp.lt.s32.totalorder %s13, 2
    // Predicated region
    $region37: #{vae_forward.2} parent=5 // pred_check
      %p239 = pneg %p238
    $region38: #{vae_forward.2} parent=5 // pred_check_branch
      %241 = sbr.rel (%p239) target = $region40
    $region39: #{vae_forward.2} parent=5 // pred_region
      // Predicated region
      $region41: #{vae_forward.2} parent=39 // pred_check
        %p242 = pneg %p47
      $region42: #{vae_forward.2} parent=39 // pred_check_branch
        %244 = sbr.rel (%p242) target = $region44
      $region43: #{vae_forward.2} parent=39 // pred_region
        %p245 = scmp.lt.s32.totalorder %s20, 1
        %s246 = scalar_select %p245, %s20, 1
        %p247 = scmp.lt.s32.totalorder %s21, 0
        %s248 = scalar_select %p247, %s21, 0
        %s249 = sadd.s32 %s248, %s246
        %s250 = smul.addr %s249, 4
        %s251 = scalar_lea.vmem %s0, %s250
      $region44: #{vae_forward.2} parent=39 // pred_fallthru
        _
    $region40: #{vae_forward.2} parent=5 // pred_fallthru
      _
    %p252 = scmp.le.s32.totalorder 1, %s13
    %p253 = scmp.lt.s32.totalorder %s13, 3
    %p254 = pnand %p252, %p253
    %p255 = pneg %p254
    // Predicated region
    $region45: #{vae_forward.2} parent=5 // pred_check
      _
    $region46: #{vae_forward.2} parent=5 // pred_check_branch
      %257 = sbr.rel (%p254) target = $region48
    $region47: #{vae_forward.2} parent=5 // pred_region
      %s258 = ssub.s32 %s13, 1
      %p259 = scmp.lt.s32.totalorder %s22, 1
      %s260 = scalar_select %p259, %s22, 1
      %p261 = scmp.lt.s32.totalorder %s23, 0
      %s262 = scalar_select %p261, %s23, 0
      %s263 = sadd.s32 %s262, %s260
      %s264 = smul.addr %s263, 4
      %s265 = scalar_lea.vmem %s0, %s264
      %p266 = pneg %p53
      %p267 = pneg %p50
      %p268 = pneg %p74
      %p269 = pneg %p71
      %p270 = pneg %p95
      %p271 = pneg %p92
      %p272 = pneg %p116
      %p273 = pneg %p113
      %p274 = pneg %p137
      %p275 = pneg %p134
      %p276 = pneg %p158
      %p277 = pneg %p155
      %p278 = pneg %p179
      %p279 = pneg %p176
      %p280 = pneg %p205
      %p281 = pneg %p202
      %p282 = scmp.lt.s32.totalorder %s22, 1
      %s283 = scalar_select %p282, %s22, 1
      %s284 = smul.addr %s283, 128
      %s285 = smul.addr %s284, 8
      %s286 = scalar_lea.vmem %s7, %s285
      %p287 = scmp.lt.s32.totalorder %s22, 1
      %s288 = scalar_select %p287, %s22, 1
      %p289 = scmp.lt.s32.totalorder %s23, 0
      %s290 = scalar_select %p289, %s23, 0
      %s291 = sadd.s32 %s290, %s288
      %s292 = smul.addr %s291, 4
      %s293 = scalar_lea.vmem %s0, %s292
      %p294 = scmp.lt.s32.totalorder %s22, 1
      %s295 = scalar_select %p294, %s22, 1
      %s296 = smul.addr %s295, 128
      %s297 = smul.addr %s296, 8
      %s298 = scalar_lea.vmem %s7, %s297
      %p300 = scmp.eq.s32.totalorder %s23, 0
      // Predicated region
      $region49: #{vae_forward.2} parent=47 // pred_check
        %p301 = pneg %p300
      $region50: #{vae_forward.2} parent=47 // pred_check_branch
        %303 = sbr.rel (%p301) target = $region52
      $region51: #{vae_forward.2} parent=47 // pred_region
        %304 = vst [vmem:[#allocation2] sm:$0xff] -inf
        %305 = vst [vmem:[#allocation2 + $0x8] sm:$0xff] -inf
        %306 = vst [vmem:[#allocation2 + $0x10] sm:$0xff] -inf
        %307 = vst [vmem:[#allocation2 + $0x18] sm:$0xff] -inf
        %308 = vst [vmem:[#allocation2 + $0x20] sm:$0xff] -inf
        %309 = vst [vmem:[#allocation2 + $0x28] sm:$0xff] -inf
        %310 = vst [vmem:[#allocation2 + $0x30] sm:$0xff] -inf
        %311 = vst [vmem:[#allocation2 + $0x38] sm:$0xff] -inf
        %312 = vst [vmem:[#allocation2 + $0x40] sm:$0xff] -inf
        %313 = vst [vmem:[#allocation2 + $0x48] sm:$0xff] -inf
        %314 = vst [vmem:[#allocation2 + $0x50] sm:$0xff] -inf
        %315 = vst [vmem:[#allocation2 + $0x58] sm:$0xff] -inf
        %316 = vst [vmem:[#allocation2 + $0x60] sm:$0xff] -inf
        %317 = vst [vmem:[#allocation2 + $0x68] sm:$0xff] -inf
        %318 = vst [vmem:[#allocation2 + $0x70] sm:$0xff] -inf
        %319 = vst [vmem:[#allocation2 + $0x78] sm:$0xff] -inf
        %320 = vst [vmem:[#allocation2 + $0x80] sm:$0xff] -inf
        %321 = vst [vmem:[#allocation2 + $0x88] sm:$0xff] -inf
        %322 = vst [vmem:[#allocation2 + $0x90] sm:$0xff] -inf
        %323 = vst [vmem:[#allocation2 + $0x98] sm:$0xff] -inf
        %324 = vst [vmem:[#allocation2 + $0xa0] sm:$0xff] -inf
        %325 = vst [vmem:[#allocation2 + $0xa8] sm:$0xff] -inf
        %326 = vst [vmem:[#allocation2 + $0xb0] sm:$0xff] -inf
        %327 = vst [vmem:[#allocation2 + $0xb8] sm:$0xff] -inf
        %328 = vst [vmem:[#allocation2 + $0xc0] sm:$0xff] -inf
        %329 = vst [vmem:[#allocation2 + $0xc8] sm:$0xff] -inf
        %330 = vst [vmem:[#allocation2 + $0xd0] sm:$0xff] -inf
        %331 = vst [vmem:[#allocation2 + $0xd8] sm:$0xff] -inf
        %332 = vst [vmem:[#allocation2 + $0xe0] sm:$0xff] -inf
        %333 = vst [vmem:[#allocation2 + $0xe8] sm:$0xff] -inf
        %334 = vst [vmem:[#allocation2 + $0xf0] sm:$0xff] -inf
        %335 = vst [vmem:[#allocation2 + $0xf8] sm:$0xff] -inf
        %336 = vst [vmem:[#allocation2 + $0x100] sm:$0xff] -inf
        %337 = vst [vmem:[#allocation2 + $0x108] sm:$0xff] -inf
        %338 = vst [vmem:[#allocation2 + $0x110] sm:$0xff] -inf
        %339 = vst [vmem:[#allocation2 + $0x118] sm:$0xff] -inf
        %340 = vst [vmem:[#allocation2 + $0x120] sm:$0xff] -inf
        %341 = vst [vmem:[#allocation2 + $0x128] sm:$0xff] -inf
        %342 = vst [vmem:[#allocation2 + $0x130] sm:$0xff] -inf
        %343 = vst [vmem:[#allocation2 + $0x138] sm:$0xff] -inf
        %344 = vst [vmem:[#allocation2 + $0x140] sm:$0xff] -inf
        %345 = vst [vmem:[#allocation2 + $0x148] sm:$0xff] -inf
        %346 = vst [vmem:[#allocation2 + $0x150] sm:$0xff] -inf
        %347 = vst [vmem:[#allocation2 + $0x158] sm:$0xff] -inf
        %348 = vst [vmem:[#allocation2 + $0x160] sm:$0xff] -inf
        %349 = vst [vmem:[#allocation2 + $0x168] sm:$0xff] -inf
        %350 = vst [vmem:[#allocation2 + $0x170] sm:$0xff] -inf
        %351 = vst [vmem:[#allocation2 + $0x178] sm:$0xff] -inf
        %352 = vst [vmem:[#allocation2 + $0x180] sm:$0xff] -inf
        %353 = vst [vmem:[#allocation2 + $0x188] sm:$0xff] -inf
        %354 = vst [vmem:[#allocation2 + $0x190] sm:$0xff] -inf
        %355 = vst [vmem:[#allocation2 + $0x198] sm:$0xff] -inf
        %356 = vst [vmem:[#allocation2 + $0x1a0] sm:$0xff] -inf
        %357 = vst [vmem:[#allocation2 + $0x1a8] sm:$0xff] -inf
        %358 = vst [vmem:[#allocation2 + $0x1b0] sm:$0xff] -inf
        %359 = vst [vmem:[#allocation2 + $0x1b8] sm:$0xff] -inf
        %360 = vst [vmem:[#allocation2 + $0x1c0] sm:$0xff] -inf
        %361 = vst [vmem:[#allocation2 + $0x1c8] sm:$0xff] -inf
        %362 = vst [vmem:[#allocation2 + $0x1d0] sm:$0xff] -inf
        %363 = vst [vmem:[#allocation2 + $0x1d8] sm:$0xff] -inf
        %364 = vst [vmem:[#allocation2 + $0x1e0] sm:$0xff] -inf
        %365 = vst [vmem:[#allocation2 + $0x1e8] sm:$0xff] -inf
        %366 = vst [vmem:[#allocation2 + $0x1f0] sm:$0xff] -inf
        %367 = vst [vmem:[#allocation2 + $0x1f8] sm:$0xff] -inf
        %368 = vst [vmem:[#allocation2 + $0x200] sm:$0xff] -inf
        %369 = vst [vmem:[#allocation2 + $0x208] sm:$0xff] -inf
        %370 = vst [vmem:[#allocation2 + $0x210] sm:$0xff] -inf
        %371 = vst [vmem:[#allocation2 + $0x218] sm:$0xff] -inf
        %372 = vst [vmem:[#allocation2 + $0x220] sm:$0xff] -inf
        %373 = vst [vmem:[#allocation2 + $0x228] sm:$0xff] -inf
        %374 = vst [vmem:[#allocation2 + $0x230] sm:$0xff] -inf
        %375 = vst [vmem:[#allocation2 + $0x238] sm:$0xff] -inf
        %376 = vst [vmem:[#allocation2 + $0x240] sm:$0xff] -inf
        %377 = vst [vmem:[#allocation2 + $0x248] sm:$0xff] -inf
        %378 = vst [vmem:[#allocation2 + $0x250] sm:$0xff] -inf
        %379 = vst [vmem:[#allocation2 + $0x258] sm:$0xff] -inf
        %380 = vst [vmem:[#allocation2 + $0x260] sm:$0xff] -inf
        %381 = vst [vmem:[#allocation2 + $0x268] sm:$0xff] -inf
        %382 = vst [vmem:[#allocation2 + $0x270] sm:$0xff] -inf
        %383 = vst [vmem:[#allocation2 + $0x278] sm:$0xff] -inf
        %384 = vst [vmem:[#allocation2 + $0x280] sm:$0xff] -inf
        %385 = vst [vmem:[#allocation2 + $0x288] sm:$0xff] -inf
        %386 = vst [vmem:[#allocation2 + $0x290] sm:$0xff] -inf
        %387 = vst [vmem:[#allocation2 + $0x298] sm:$0xff] -inf
        %388 = vst [vmem:[#allocation2 + $0x2a0] sm:$0xff] -inf
        %389 = vst [vmem:[#allocation2 + $0x2a8] sm:$0xff] -inf
        %390 = vst [vmem:[#allocation2 + $0x2b0] sm:$0xff] -inf
        %391 = vst [vmem:[#allocation2 + $0x2b8] sm:$0xff] -inf
        %392 = vst [vmem:[#allocation2 + $0x2c0] sm:$0xff] -inf
        %393 = vst [vmem:[#allocation2 + $0x2c8] sm:$0xff] -inf
        %394 = vst [vmem:[#allocation2 + $0x2d0] sm:$0xff] -inf
        %395 = vst [vmem:[#allocation2 + $0x2d8] sm:$0xff] -inf
        %396 = vst [vmem:[#allocation2 + $0x2e0] sm:$0xff] -inf
        %397 = vst [vmem:[#allocation2 + $0x2e8] sm:$0xff] -inf
        %398 = vst [vmem:[#allocation2 + $0x2f0] sm:$0xff] -inf
        %399 = vst [vmem:[#allocation2 + $0x2f8] sm:$0xff] -inf
        %400 = vst [vmem:[#allocation2 + $0x300] sm:$0xff] -inf
        %401 = vst [vmem:[#allocation2 + $0x308] sm:$0xff] -inf
        %402 = vst [vmem:[#allocation2 + $0x310] sm:$0xff] -inf
        %403 = vst [vmem:[#allocation2 + $0x318] sm:$0xff] -inf
        %404 = vst [vmem:[#allocation2 + $0x320] sm:$0xff] -inf
        %405 = vst [vmem:[#allocation2 + $0x328] sm:$0xff] -inf
        %406 = vst [vmem:[#allocation2 + $0x330] sm:$0xff] -inf
        %407 = vst [vmem:[#allocation2 + $0x338] sm:$0xff] -inf
        %408 = vst [vmem:[#allocation2 + $0x340] sm:$0xff] -inf
        %409 = vst [vmem:[#allocation2 + $0x348] sm:$0xff] -inf
        %410 = vst [vmem:[#allocation2 + $0x350] sm:$0xff] -inf
        %411 = vst [vmem:[#allocation2 + $0x358] sm:$0xff] -inf
        %412 = vst [vmem:[#allocation2 + $0x360] sm:$0xff] -inf
        %413 = vst [vmem:[#allocation2 + $0x368] sm:$0xff] -inf
        %414 = vst [vmem:[#allocation2 + $0x370] sm:$0xff] -inf
        %415 = vst [vmem:[#allocation2 + $0x378] sm:$0xff] -inf
        %416 = vst [vmem:[#allocation2 + $0x380] sm:$0xff] -inf
        %417 = vst [vmem:[#allocation2 + $0x388] sm:$0xff] -inf
        %418 = vst [vmem:[#allocation2 + $0x390] sm:$0xff] -inf
        %419 = vst [vmem:[#allocation2 + $0x398] sm:$0xff] -inf
        %420 = vst [vmem:[#allocation2 + $0x3a0] sm:$0xff] -inf
        %421 = vst [vmem:[#allocation2 + $0x3a8] sm:$0xff] -inf
        %422 = vst [vmem:[#allocation2 + $0x3b0] sm:$0xff] -inf
        %423 = vst [vmem:[#allocation2 + $0x3b8] sm:$0xff] -inf
        %424 = vst [vmem:[#allocation2 + $0x3c0] sm:$0xff] -inf
        %425 = vst [vmem:[#allocation2 + $0x3c8] sm:$0xff] -inf
        %426 = vst [vmem:[#allocation2 + $0x3d0] sm:$0xff] -inf
        %427 = vst [vmem:[#allocation2 + $0x3d8] sm:$0xff] -inf
        %428 = vst [vmem:[#allocation2 + $0x3e0] sm:$0xff] -inf
        %429 = vst [vmem:[#allocation2 + $0x3e8] sm:$0xff] -inf
        %430 = vst [vmem:[#allocation2 + $0x3f0] sm:$0xff] -inf
        %431 = vst [vmem:[#allocation2 + $0x3f8] sm:$0xff] -inf
      $region52: #{vae_forward.2} parent=47 // pred_fallthru
        _
      %v432 = vld [vmem:[%s293] sm:$0x7]
      %v433 = vld [vmem:[%s1] sm:$0xff]
      %v434 = vld [vmem:[%s1 + $0x8] sm:$0xff]
      %v435 = vld [vmem:[%s1 + $0x10] sm:$0xff]
      %v436 = vld [vmem:[%s1 + $0x18] sm:$0xff]
      %v437 = vld [vmem:[%s1 + $0x20] sm:$0xff]
      %v438 = vld [vmem:[%s1 + $0x28] sm:$0xff]
      %v439 = vld [vmem:[%s1 + $0x30] sm:$0xff]
      %v440 = vld [vmem:[%s1 + $0x38] sm:$0xff]
      %442 = vset.pattern.permute.xlu0 0
      %443 = vperm.xlu0 %442, %v433
      %v444 = vpop.permute.xlu0 %443
      %447 = vset.pattern.permute.xlu0 0
      %448 = vperm.xlu0 %447, %v434
      %v449 = vpop.permute.xlu0 %448
      %452 = vset.pattern.permute.xlu0 0
      %453 = vperm.xlu0 %452, %v435
      %v454 = vpop.permute.xlu0 %453
      %457 = vset.pattern.permute.xlu0 0
      %458 = vperm.xlu0 %457, %v436
      %v459 = vpop.permute.xlu0 %458
      %462 = vset.pattern.permute.xlu0 0
      %463 = vperm.xlu0 %462, %v437
      %v464 = vpop.permute.xlu0 %463
      %467 = vset.pattern.permute.xlu0 0
      %468 = vperm.xlu0 %467, %v438
      %v469 = vpop.permute.xlu0 %468
      %472 = vset.pattern.permute.xlu0 0
      %473 = vperm.xlu0 %472, %v439
      %v474 = vpop.permute.xlu0 %473
      %477 = vset.pattern.permute.xlu0 0
      %478 = vperm.xlu0 %477, %v440
      %v479 = vpop.permute.xlu0 %478
      %v481 = vlaneseq
      %v482 = vshrl.u32 %v481, 7
      %v483 = vsub.s32 0, %v482
      %v484 = vrot.slane %v432, %v483
      %v485 = vmul.f32 %v444, %v484
      %v486 = vmul.f32 %v449, %v484
      %v487 = vmul.f32 %v454, %v484
      %v488 = vmul.f32 %v459, %v484
      %v489 = vmul.f32 %v464, %v484
      %v490 = vmul.f32 %v469, %v484
      %v491 = vmul.f32 %v474, %v484
      %v492 = vmul.f32 %v479, %v484
      %s493 = scalar_lea.vmem %s1, 64
      %v494 = vld [vmem:[%s493] sm:$0xff]
      %v495 = vld [vmem:[%s493 + $0x8] sm:$0xff]
      %v496 = vld [vmem:[%s493 + $0x10] sm:$0xff]
      %v497 = vld [vmem:[%s493 + $0x18] sm:$0xff]
      %v498 = vld [vmem:[%s493 + $0x20] sm:$0xff]
      %v499 = vld [vmem:[%s493 + $0x28] sm:$0xff]
      %v500 = vld [vmem:[%s493 + $0x30] sm:$0xff]
      %v501 = vld [vmem:[%s493 + $0x38] sm:$0xff]
      %503 = vset.pattern.permute.xlu0 0
      %504 = vperm.xlu0 %503, %v494
      %v505 = vpop.permute.xlu0 %504
      %508 = vset.pattern.permute.xlu0 0
      %509 = vperm.xlu0 %508, %v495
      %v510 = vpop.permute.xlu0 %509
      %513 = vset.pattern.permute.xlu0 0
      %514 = vperm.xlu0 %513, %v496
      %v515 = vpop.permute.xlu0 %514
      %518 = vset.pattern.permute.xlu0 0
      %519 = vperm.xlu0 %518, %v497
      %v520 = vpop.permute.xlu0 %519
      %523 = vset.pattern.permute.xlu0 0
      %524 = vperm.xlu0 %523, %v498
      %v525 = vpop.permute.xlu0 %524
      %528 = vset.pattern.permute.xlu0 0
      %529 = vperm.xlu0 %528, %v499
      %v530 = vpop.permute.xlu0 %529
      %533 = vset.pattern.permute.xlu0 0
      %534 = vperm.xlu0 %533, %v500
      %v535 = vpop.permute.xlu0 %534
      %538 = vset.pattern.permute.xlu0 0
      %539 = vperm.xlu0 %538, %v501
      %v540 = vpop.permute.xlu0 %539
      %v542 = vlaneseq
      %v543 = vshrl.u32 %v542, 7
      %v544 = vsub.s32 1, %v543
      %v545 = vrot.slane %v432, %v544
      %v546 = vmul.f32 %v505, %v545
      %v547 = vmul.f32 %v510, %v545
      %v548 = vmul.f32 %v515, %v545
      %v549 = vmul.f32 %v520, %v545
      %v550 = vmul.f32 %v525, %v545
      %v551 = vmul.f32 %v530, %v545
      %v552 = vmul.f32 %v535, %v545
      %v553 = vmul.f32 %v540, %v545
      %v554 = vadd.f32 %v485, %v546
      %v555 = vadd.f32 %v486, %v547
      %v556 = vadd.f32 %v487, %v548
      %v557 = vadd.f32 %v488, %v549
      %v558 = vadd.f32 %v489, %v550
      %v559 = vadd.f32 %v490, %v551
      %v560 = vadd.f32 %v491, %v552
      %v561 = vadd.f32 %v492, %v553
      %s562 = scalar_lea.vmem %s1, 128
      %v563 = vld [vmem:[%s562] sm:$0xff]
      %v564 = vld [vmem:[%s562 + $0x8] sm:$0xff]
      %v565 = vld [vmem:[%s562 + $0x10] sm:$0xff]
      %v566 = vld [vmem:[%s562 + $0x18] sm:$0xff]
      %v567 = vld [vmem:[%s562 + $0x20] sm:$0xff]
      %v568 = vld [vmem:[%s562 + $0x28] sm:$0xff]
      %v569 = vld [vmem:[%s562 + $0x30] sm:$0xff]
      %v570 = vld [vmem:[%s562 + $0x38] sm:$0xff]
      %572 = vset.pattern.permute.xlu0 0
      %573 = vperm.xlu0 %572, %v563
      %v574 = vpop.permute.xlu0 %573
      %577 = vset.pattern.permute.xlu0 0
      %578 = vperm.xlu0 %577, %v564
      %v579 = vpop.permute.xlu0 %578
      %582 = vset.pattern.permute.xlu0 0
      %583 = vperm.xlu0 %582, %v565
      %v584 = vpop.permute.xlu0 %583
      %587 = vset.pattern.permute.xlu0 0
      %588 = vperm.xlu0 %587, %v566
      %v589 = vpop.permute.xlu0 %588
      %592 = vset.pattern.permute.xlu0 0
      %593 = vperm.xlu0 %592, %v567
      %v594 = vpop.permute.xlu0 %593
      %597 = vset.pattern.permute.xlu0 0
      %598 = vperm.xlu0 %597, %v568
      %v599 = vpop.permute.xlu0 %598
      %602 = vset.pattern.permute.xlu0 0
      %603 = vperm.xlu0 %602, %v569
      %v604 = vpop.permute.xlu0 %603
      %607 = vset.pattern.permute.xlu0 0
      %608 = vperm.xlu0 %607, %v570
      %v609 = vpop.permute.xlu0 %608
      %v611 = vlaneseq
      %v612 = vshrl.u32 %v611, 7
      %v613 = vsub.s32 2, %v612
      %v614 = vrot.slane %v432, %v613
      %v615 = vmul.f32 %v574, %v614
      %v616 = vmul.f32 %v579, %v614
      %v617 = vmul.f32 %v584, %v614
      %v618 = vmul.f32 %v589, %v614
      %v619 = vmul.f32 %v594, %v614
      %v620 = vmul.f32 %v599, %v614
      %v621 = vmul.f32 %v604, %v614
      %v622 = vmul.f32 %v609, %v614
      %v623 = vadd.f32 %v554, %v615
      %v624 = vadd.f32 %v555, %v616
      %v625 = vadd.f32 %v556, %v617
      %v626 = vadd.f32 %v557, %v618
      %v627 = vadd.f32 %v558, %v619
      %v628 = vadd.f32 %v559, %v620
      %v629 = vadd.f32 %v560, %v621
      %v630 = vadd.f32 %v561, %v622
      %v631 = vld [vmem:[%s2] sm:$0xff]
      %v632 = vld [vmem:[%s2 + $0x8] sm:$0xff]
      %v633 = vld [vmem:[%s2 + $0x10] sm:$0xff]
      %v634 = vld [vmem:[%s2 + $0x18] sm:$0xff]
      %v635 = vld [vmem:[%s2 + $0x20] sm:$0xff]
      %v636 = vld [vmem:[%s2 + $0x28] sm:$0xff]
      %v637 = vld [vmem:[%s2 + $0x30] sm:$0xff]
      %v638 = vld [vmem:[%s2 + $0x38] sm:$0xff]
      %640 = vset.pattern.permute.xlu0 0
      %641 = vperm.xlu0 %640, %v631
      %v642 = vpop.permute.xlu0 %641
      %645 = vset.pattern.permute.xlu0 0
      %646 = vperm.xlu0 %645, %v632
      %v647 = vpop.permute.xlu0 %646
      %650 = vset.pattern.permute.xlu0 0
      %651 = vperm.xlu0 %650, %v633
      %v652 = vpop.permute.xlu0 %651
      %655 = vset.pattern.permute.xlu0 0
      %656 = vperm.xlu0 %655, %v634
      %v657 = vpop.permute.xlu0 %656
      %660 = vset.pattern.permute.xlu0 0
      %661 = vperm.xlu0 %660, %v635
      %v662 = vpop.permute.xlu0 %661
      %665 = vset.pattern.permute.xlu0 0
      %666 = vperm.xlu0 %665, %v636
      %v667 = vpop.permute.xlu0 %666
      %670 = vset.pattern.permute.xlu0 0
      %671 = vperm.xlu0 %670, %v637
      %v672 = vpop.permute.xlu0 %671
      %675 = vset.pattern.permute.xlu0 0
      %676 = vperm.xlu0 %675, %v638
      %v677 = vpop.permute.xlu0 %676
      %v679 = vadd.f32 %v623, %v642
      %v680 = vadd.f32 %v624, %v647
      %v681 = vadd.f32 %v625, %v652
      %v682 = vadd.f32 %v626, %v657
      %v683 = vadd.f32 %v627, %v662
      %v684 = vadd.f32 %v628, %v667
      %v685 = vadd.f32 %v629, %v672
      %v686 = vadd.f32 %v630, %v677
      %v687 = vmax.f32 %v679, 0.0
      %v688 = vmax.f32 %v680, 0.0
      %v689 = vmax.f32 %v681, 0.0
      %v690 = vmax.f32 %v682, 0.0
      %v691 = vmax.f32 %v683, 0.0
      %v692 = vmax.f32 %v684, 0.0
      %v693 = vmax.f32 %v685, 0.0
      %v694 = vmax.f32 %v686, 0.0
      %v695 = vld [vmem:[%s3] sm:$0xf]
      %v696 = vld [vmem:[%s3 + $0x4] sm:$0xf]
      %v697 = vld [vmem:[%s3 + $0x8] sm:$0xf]
      %v698 = vld [vmem:[%s3 + $0xc] sm:$0xf]
      %v699 = vld [vmem:[%s3 + $0x10] sm:$0xf]
      %v700 = vld [vmem:[%s3 + $0x14] sm:$0xf]
      %v701 = vld [vmem:[%s3 + $0x18] sm:$0xf]
      %v702 = vld [vmem:[%s3 + $0x1c] sm:$0xf]
      %v703 = vld [vmem:[%s3 + $0x20] sm:$0xf]
      %v704 = vld [vmem:[%s3 + $0x24] sm:$0xf]
      %v705 = vld [vmem:[%s3 + $0x28] sm:$0xf]
      %v706 = vld [vmem:[%s3 + $0x2c] sm:$0xf]
      %v707 = vld [vmem:[%s3 + $0x30] sm:$0xf]
      %v708 = vld [vmem:[%s3 + $0x34] sm:$0xf]
      %v709 = vld [vmem:[%s3 + $0x38] sm:$0xf]
      %v710 = vld [vmem:[%s3 + $0x3c] sm:$0xf]
      %v711 = vpack.c.bf16 %v688, %v687
      %v712 = vpack.c.bf16 %v690, %v689
      %v713 = vpack.c.bf16 %v692, %v691
      %v714 = vpack.c.bf16 %v694, %v693
      %v715 = vld [vmem:[%s4] sm:$0xff]
      %v716 = vld [vmem:[%s4 + $0x8] sm:$0xff]
      %v717 = vld [vmem:[%s4 + $0x10] sm:$0xff]
      %v718 = vld [vmem:[%s4 + $0x18] sm:$0xff]
      %v719 = vld [vmem:[%s4 + $0x20] sm:$0xff]
      %v720 = vld [vmem:[%s4 + $0x28] sm:$0xff]
      %v721 = vld [vmem:[%s4 + $0x30] sm:$0xff]
      %v722 = vld [vmem:[%s4 + $0x38] sm:$0xff]
      %v723 = vld [vmem:[%s4 + $0x40] sm:$0xff]
      %v724 = vld [vmem:[%s4 + $0x48] sm:$0xff]
      %v725 = vld [vmem:[%s4 + $0x50] sm:$0xff]
      %v726 = vld [vmem:[%s4 + $0x58] sm:$0xff]
      %v727 = vld [vmem:[%s4 + $0x60] sm:$0xff]
      %v728 = vld [vmem:[%s4 + $0x68] sm:$0xff]
      %v729 = vld [vmem:[%s4 + $0x70] sm:$0xff]
      %v730 = vld [vmem:[%s4 + $0x78] sm:$0xff]
      %732 = vset.pattern.permute.xlu0 0
      %733 = vperm.xlu0 %732, %v715
      %v734 = vpop.permute.xlu0 %733
      %737 = vset.pattern.permute.xlu0 0
      %738 = vperm.xlu0 %737, %v716
      %v739 = vpop.permute.xlu0 %738
      %742 = vset.pattern.permute.xlu0 0
      %743 = vperm.xlu0 %742, %v717
      %v744 = vpop.permute.xlu0 %743
      %747 = vset.pattern.permute.xlu0 0
      %748 = vperm.xlu0 %747, %v718
      %v749 = vpop.permute.xlu0 %748
      %752 = vset.pattern.permute.xlu0 0
      %753 = vperm.xlu0 %752, %v719
      %v754 = vpop.permute.xlu0 %753
      %757 = vset.pattern.permute.xlu0 0
      %758 = vperm.xlu0 %757, %v720
      %v759 = vpop.permute.xlu0 %758
      %762 = vset.pattern.permute.xlu0 0
      %763 = vperm.xlu0 %762, %v721
      %v764 = vpop.permute.xlu0 %763
      %767 = vset.pattern.permute.xlu0 0
      %768 = vperm.xlu0 %767, %v722
      %v769 = vpop.permute.xlu0 %768
      %772 = vset.pattern.permute.xlu0 0
      %773 = vperm.xlu0 %772, %v723
      %v774 = vpop.permute.xlu0 %773
      %777 = vset.pattern.permute.xlu0 0
      %778 = vperm.xlu0 %777, %v724
      %v779 = vpop.permute.xlu0 %778
      %782 = vset.pattern.permute.xlu0 0
      %783 = vperm.xlu0 %782, %v725
      %v784 = vpop.permute.xlu0 %783
      %787 = vset.pattern.permute.xlu0 0
      %788 = vperm.xlu0 %787, %v726
      %v789 = vpop.permute.xlu0 %788
      %792 = vset.pattern.permute.xlu0 0
      %793 = vperm.xlu0 %792, %v727
      %v794 = vpop.permute.xlu0 %793
      %797 = vset.pattern.permute.xlu0 0
      %798 = vperm.xlu0 %797, %v728
      %v799 = vpop.permute.xlu0 %798
      %802 = vset.pattern.permute.xlu0 0
      %803 = vperm.xlu0 %802, %v729
      %v804 = vpop.permute.xlu0 %803
      %807 = vset.pattern.permute.xlu0 0
      %808 = vperm.xlu0 %807, %v730
      %v809 = vpop.permute.xlu0 %808
      %v827 = vunpack.c.l.b16 %v695
      %v828 = vunpack.c.l.b16 %v696
      %v829 = vunpack.c.l.b16 %v697
      %v830 = vunpack.c.l.b16 %v698
      %v831 = vunpack.c.l.b16 %v699
      %v832 = vunpack.c.l.b16 %v700
      %v833 = vunpack.c.l.b16 %v701
      %v834 = vunpack.c.l.b16 %v702
      %v835 = vunpack.c.l.b16 %v703
      %v836 = vunpack.c.l.b16 %v704
      %v837 = vunpack.c.l.b16 %v705
      %v838 = vunpack.c.l.b16 %v706
      %v839 = vunpack.c.l.b16 %v707
      %v840 = vunpack.c.l.b16 %v708
      %v841 = vunpack.c.l.b16 %v709
      %v842 = vunpack.c.l.b16 %v710
      %v843 = vpack.c.b16 %v828, %v827
      %v844 = vpack.c.b16 %v830, %v829
      %v845 = vpack.c.b16 %v832, %v831
      %v846 = vpack.c.b16 %v834, %v833
      %v847 = vpack.c.b16 %v836, %v835
      %v848 = vpack.c.b16 %v838, %v837
      %v849 = vpack.c.b16 %v840, %v839
      %v850 = vpack.c.b16 %v842, %v841
      %vm851 = vcmask 523264
      %v853 = vsel %vm851, %v843, 0
      %v856 = vsel %vm851, %v844, 0
      %v859 = vsel %vm851, %v845, 0
      %v862 = vsel %vm851, %v846, 0
      %v865 = vsel %vm851, %v847, 0
      %v868 = vsel %vm851, %v848, 0
      %v871 = vsel %vm851, %v849, 0
      %v874 = vsel %vm851, %v850, 0
      %876 = vmatprep.subr.bf16.mxu0 0
      %877 = vmatpush1.bf16.msra.mxu0 %v711
      %878 = vmatprep.subr.bf16.mxu0 0
      %879 = vmatpush1.bf16.msra.mxu0 %v712
      %880 = vmatprep.subr.bf16.mxu0 0
      %881 = vmatpush1.bf16.msra.mxu0 %v713
      %882 = vmatprep.subr.bf16.mxu0 0
      %883 = vmatpush1.bf16.msra.mxu0 %v714
      %884 = vmatprep.subr.bf16.mxu0 0
      %885 = vmatpush1.bf16.msra.mxu0 0
      %886 = vmatprep.subr.bf16.mxu0 0
      %887 = vmatpush1.bf16.msra.mxu0 0
      %888 = vmatprep.subr.bf16.mxu0 0
      %889 = vmatpush1.bf16.msra.mxu0 0
      %890 = vmatprep.subr.bf16.mxu0 0
      %891 = vmatpush1.bf16.msra.mxu0 0
      %892 = vmatprep.subr.bf16.mxu0 0
      %893 = vmatpush1.bf16.msra.mxu0 0
      %894 = vmatprep.subr.bf16.mxu0 0
      %895 = vmatpush1.bf16.msra.mxu0 0
      %896 = vmatprep.subr.bf16.mxu0 0
      %897 = vmatpush1.bf16.msra.mxu0 0
      %898 = vmatprep.subr.bf16.mxu0 0
      %899 = vmatpush1.bf16.msra.mxu0 0
      %900 = vmatprep.subr.bf16.mxu0 0
      %901 = vmatpush1.bf16.msra.mxu0 0
      %902 = vmatprep.subr.bf16.mxu0 0
      %903 = vmatpush1.bf16.msra.mxu0 0
      %904 = vmatprep.subr.bf16.mxu0 0
      %905 = vmatpush1.bf16.msra.mxu0 0
      %906 = vmatprep.subr.bf16.mxu0 0
      %907 = vmatpush1.bf16.msra.mxu0 0
      %908 = vmatprep.mubr.bf16.mxu0 0
      %909 = vmatmul.mubr.bf16.gmra.mrb[0].mxu0 %v853
      %v910 = vpop.f32.mrb[0].mxu0
      %v911 = vadd.f32 %v734, %v910
      %v912 = vpop.f32.mrb[0].mxu0
      %v913 = vpop.f32.mrb[0].mxu0
      %v914 = vadd.f32 %v739, %v913
      %v915 = vpop.f32.mrb[0].mxu0
      %916 = vmatprep.mubr.bf16.mxu0 0
      %917 = vmatmul.mubr.bf16.gmra.mrb[0].mxu0 %v856
      %v918 = vpop.f32.mrb[0].mxu0
      %v919 = vadd.f32 %v744, %v918
      %v920 = vpop.f32.mrb[0].mxu0
      %v921 = vpop.f32.mrb[0].mxu0
      %v922 = vadd.f32 %v749, %v921
      %v923 = vpop.f32.mrb[0].mxu0
      %924 = vmatprep.mubr.bf16.mxu0 0
      %925 = vmatmul.mubr.bf16.gmra.mrb[0].mxu0 %v859
      %v926 = vpop.f32.mrb[0].mxu0
      %v927 = vadd.f32 %v754, %v926
      %v928 = vpop.f32.mrb[0].mxu0
      %v929 = vpop.f32.mrb[0].mxu0
      %v930 = vadd.f32 %v759, %v929
      %v931 = vpop.f32.mrb[0].mxu0
      %932 = vmatprep.mubr.bf16.mxu0 0
      %933 = vmatmul.mubr.bf16.gmra.mrb[0].mxu0 %v862
      %v934 = vpop.f32.mrb[0].mxu0
      %v935 = vadd.f32 %v764, %v934
      %v936 = vpop.f32.mrb[0].mxu0
      %v937 = vpop.f32.mrb[0].mxu0
      %v938 = vadd.f32 %v769, %v937
      %v939 = vpop.f32.mrb[0].mxu0
      %940 = vmatprep.mubr.bf16.mxu0 0
      %941 = vmatmul.mubr.bf16.gmra.mrb[0].mxu0 %v865
      %v942 = vpop.f32.mrb[0].mxu0
      %v943 = vadd.f32 %v774, %v942
      %v944 = vpop.f32.mrb[0].mxu0
      %v945 = vpop.f32.mrb[0].mxu0
      %v946 = vadd.f32 %v779, %v945
      %v947 = vpop.f32.mrb[0].mxu0
      %948 = vmatprep.mubr.bf16.mxu0 0
      %949 = vmatmul.mubr.bf16.gmra.mrb[0].mxu0 %v868
      %v950 = vpop.f32.mrb[0].mxu0
      %v951 = vadd.f32 %v784, %v950
      %v952 = vpop.f32.mrb[0].mxu0
      %v953 = vpop.f32.mrb[0].mxu0
      %v954 = vadd.f32 %v789, %v953
      %v955 = vpop.f32.mrb[0].mxu0
      %956 = vmatprep.mubr.bf16.mxu0 0
      %957 = vmatmul.mubr.bf16.gmra.mrb[0].mxu0 %v871
      %v958 = vpop.f32.mrb[0].mxu0
      %v959 = vadd.f32 %v794, %v958
      %v960 = vpop.f32.mrb[0].mxu0
      %v961 = vpop.f32.mrb[0].mxu0
      %v962 = vadd.f32 %v799, %v961
      %v963 = vpop.f32.mrb[0].mxu0
      %964 = vmatprep.mubr.bf16.mxu0 0
      %965 = vmatmul.mubr.bf16.gmra.mrb[0].mxu0 %v874
      %v966 = vpop.f32.mrb[0].mxu0
      %v967 = vadd.f32 %v804, %v966
      %v968 = vpop.f32.mrb[0].mxu0
      %v969 = vpop.f32.mrb[0].mxu0
      %v970 = vadd.f32 %v809, %v969
      %v971 = vpop.f32.mrb[0].mxu0
      %972 = vdwg.mxu0
      %v973 = vmax.f32 %v911, 0.0
      %v974 = vmax.f32 %v914, 0.0
      %v975 = vmax.f32 %v919, 0.0
      %v976 = vmax.f32 %v922, 0.0
      %v977 = vmax.f32 %v927, 0.0
      %v978 = vmax.f32 %v930, 0.0
      %v979 = vmax.f32 %v935, 0.0
      %v980 = vmax.f32 %v938, 0.0
      %v981 = vmax.f32 %v943, 0.0
      %v982 = vmax.f32 %v946, 0.0
      %v983 = vmax.f32 %v951, 0.0
      %v984 = vmax.f32 %v954, 0.0
      %v985 = vmax.f32 %v959, 0.0
      %v986 = vmax.f32 %v962, 0.0
      %v987 = vmax.f32 %v967, 0.0
      %v988 = vmax.f32 %v970, 0.0
      %v989 = vld [vmem:[%s5] sm:$0xf]
      %v990 = vld [vmem:[%s5 + $0x4] sm:$0xf]
      %v991 = vld [vmem:[%s5 + $0x8] sm:$0xf]
      %v992 = vld [vmem:[%s5 + $0xc] sm:$0xf]
      %v993 = vld [vmem:[%s5 + $0x10] sm:$0xf]
      %v994 = vld [vmem:[%s5 + $0x14] sm:$0xf]
      %v995 = vld [vmem:[%s5 + $0x18] sm:$0xf]
      %v996 = vld [vmem:[%s5 + $0x1c] sm:$0xf]
      %v997 = vld [vmem:[%s5 + $0x20] sm:$0xf]
      %v998 = vld [vmem:[%s5 + $0x24] sm:$0xf]
      %v999 = vld [vmem:[%s5 + $0x28] sm:$0xf]
      %v1000 = vld [vmem:[%s5 + $0x2c] sm:$0xf]
      %v1001 = vld [vmem:[%s5 + $0x30] sm:$0xf]
      %v1002 = vld [vmem:[%s5 + $0x34] sm:$0xf]
      %v1003 = vld [vmem:[%s5 + $0x38] sm:$0xf]
      %v1004 = vld [vmem:[%s5 + $0x3c] sm:$0xf]
      %v1005 = vld [vmem:[%s5 + $0x40] sm:$0xf]
      %v1006 = vld [vmem:[%s5 + $0x44] sm:$0xf]
      %v1007 = vld [vmem:[%s5 + $0x48] sm:$0xf]
      %v1008 = vld [vmem:[%s5 + $0x4c] sm:$0xf]
      %v1009 = vld [vmem:[%s5 + $0x50] sm:$0xf]
      %v1010 = vld [vmem:[%s5 + $0x54] sm:$0xf]
      %v1011 = vld [vmem:[%s5 + $0x58] sm:$0xf]
      %v1012 = vld [vmem:[%s5 + $0x5c] sm:$0xf]
      %v1013 = vld [vmem:[%s5 + $0x60] sm:$0xf]
      %v1014 = vld [vmem:[%s5 + $0x64] sm:$0xf]
      %v1015 = vld [vmem:[%s5 + $0x68] sm:$0xf]
      %v1016 = vld [vmem:[%s5 + $0x6c] sm:$0xf]
      %v1017 = vld [vmem:[%s5 + $0x70] sm:$0xf]
      %v1018 = vld [vmem:[%s5 + $0x74] sm:$0xf]
      %v1019 = vld [vmem:[%s5 + $0x78] sm:$0xf]
      %v1020 = vld [vmem:[%s5 + $0x7c] sm:$0xf]
      %v1021 = vld [vmem:[%s5 + $0x80] sm:$0xf]
      %v1022 = vld [vmem:[%s5 + $0x84] sm:$0xf]
      %v1023 = vld [vmem:[%s5 + $0x88] sm:$0xf]
      %v1024 = vld [vmem:[%s5 + $0x8c] sm:$0xf]
      %v1025 = vld [vmem:[%s5 + $0x90] sm:$0xf]
      %v1026 = vld [vmem:[%s5 + $0x94] sm:$0xf]
      %v1027 = vld [vmem:[%s5 + $0x98] sm:$0xf]
      %v1028 = vld [vmem:[%s5 + $0x9c] sm:$0xf]
      %v1029 = vld [vmem:[%s5 + $0xa0] sm:$0xf]
      %v1030 = vld [vmem:[%s5 + $0xa4] sm:$0xf]
      %v1031 = vld [vmem:[%s5 + $0xa8] sm:$0xf]
      %v1032 = vld [vmem:[%s5 + $0xac] sm:$0xf]
      %v1033 = vld [vmem:[%s5 + $0xb0] sm:$0xf]
      %v1034 = vld [vmem:[%s5 + $0xb4] sm:$0xf]
      %v1035 = vld [vmem:[%s5 + $0xb8] sm:$0xf]
      %v1036 = vld [vmem:[%s5 + $0xbc] sm:$0xf]
      %v1037 = vld [vmem:[%s5 + $0xc0] sm:$0xf]
      %v1038 = vld [vmem:[%s5 + $0xc4] sm:$0xf]
      %v1039 = vld [vmem:[%s5 + $0xc8] sm:$0xf]
      %v1040 = vld [vmem:[%s5 + $0xcc] sm:$0xf]
      %v1041 = vld [vmem:[%s5 + $0xd0] sm:$0xf]
      %v1042 = vld [vmem:[%s5 + $0xd4] sm:$0xf]
      %v1043 = vld [vmem:[%s5 + $0xd8] sm:$0xf]
      %v1044 = vld [vmem:[%s5 + $0xdc] sm:$0xf]
      %v1045 = vld [vmem:[%s5 + $0xe0] sm:$0xf]
      %v1046 = vld [vmem:[%s5 + $0xe4] sm:$0xf]
      %v1047 = vld [vmem:[%s5 + $0xe8] sm:$0xf]
      %v1048 = vld [vmem:[%s5 + $0xec] sm:$0xf]
      %v1049 = vld [vmem:[%s5 + $0xf0] sm:$0xf]
      %v1050 = vld [vmem:[%s5 + $0xf4] sm:$0xf]
      %v1051 = vld [vmem:[%s5 + $0xf8] sm:$0xf]
      %v1052 = vld [vmem:[%s5 + $0xfc] sm:$0xf]
      %v1053 = vld [vmem:[%s5 + $0x100] sm:$0xf]
      %v1054 = vld [vmem:[%s5 + $0x104] sm:$0xf]
      %v1055 = vld [vmem:[%s5 + $0x108] sm:$0xf]
      %v1056 = vld [vmem:[%s5 + $0x10c] sm:$0xf]
      %v1057 = vld [vmem:[%s5 + $0x110] sm:$0xf]
      %v1058 = vld [vmem:[%s5 + $0x114] sm:$0xf]
      %v1059 = vld [vmem:[%s5 + $0x118] sm:$0xf]
      %v1060 = vld [vmem:[%s5 + $0x11c] sm:$0xf]
      %v1061 = vld [vmem:[%s5 + $0x120] sm:$0xf]
      %v1062 = vld [vmem:[%s5 + $0x124] sm:$0xf]
      %v1063 = vld [vmem:[%s5 + $0x128] sm:$0xf]
      %v1064 = vld [vmem:[%s5 + $0x12c] sm:$0xf]
      %v1065 = vld [vmem:[%s5 + $0x130] sm:$0xf]
      %v1066 = vld [vmem:[%s5 + $0x134] sm:$0xf]
      %v1067 = vld [vmem:[%s5 + $0x138] sm:$0xf]
      %v1068 = vld [vmem:[%s5 + $0x13c] sm:$0xf]
      %v1069 = vld [vmem:[%s5 + $0x140] sm:$0xf]
      %v1070 = vld [vmem:[%s5 + $0x144] sm:$0xf]
      %v1071 = vld [vmem:[%s5 + $0x148] sm:$0xf]
      %v1072 = vld [vmem:[%s5 + $0x14c] sm:$0xf]
      %v1073 = vld [vmem:[%s5 + $0x150] sm:$0xf]
      %v1074 = vld [vmem:[%s5 + $0x154] sm:$0xf]
      %v1075 = vld [vmem:[%s5 + $0x158] sm:$0xf]
      %v1076 = vld [vmem:[%s5 + $0x15c] sm:$0xf]
      %v1077 = vld [vmem:[%s5 + $0x160] sm:$0xf]
      %v1078 = vld [vmem:[%s5 + $0x164] sm:$0xf]
      %v1079 = vld [vmem:[%s5 + $0x168] sm:$0xf]
      %v1080 = vld [vmem:[%s5 + $0x16c] sm:$0xf]
      %v1081 = vld [vmem:[%s5 + $0x170] sm:$0xf]
      %v1082 = vld [vmem:[%s5 + $0x174] sm:$0xf]
      %v1083 = vld [vmem:[%s5 + $0x178] sm:$0xf]
      %v1084 = vld [vmem:[%s5 + $0x17c] sm:$0xf]
      %v1085 = vld [vmem:[%s5 + $0x180] sm:$0xf]
      %v1086 = vld [vmem:[%s5 + $0x184] sm:$0xf]
      %v1087 = vld [vmem:[%s5 + $0x188] sm:$0xf]
      %v1088 = vld [vmem:[%s5 + $0x18c] sm:$0xf]
      %v1089 = vld [vmem:[%s5 + $0x190] sm:$0xf]
      %v1090 = vld [vmem:[%s5 + $0x194] sm:$0xf]
      %v1091 = vld [vmem:[%s5 + $0x198] sm:$0xf]
      %v1092 = vld [vmem:[%s5 + $0x19c] sm:$0xf]
      %v1093 = vld [vmem:[%s5 + $0x1a0] sm:$0xf]
      %v1094 = vld [vmem:[%s5 + $0x1a4] sm:$0xf]
      %v1095 = vld [vmem:[%s5 + $0x1a8] sm:$0xf]
      %v1096 = vld [vmem:[%s5 + $0x1ac] sm:$0xf]
      %v1097 = vld [vmem:[%s5 + $0x1b0] sm:$0xf]
      %v1098 = vld [vmem:[%s5 + $0x1b4] sm:$0xf]
      %v1099 = vld [vmem:[%s5 + $0x1b8] sm:$0xf]
      %v1100 = vld [vmem:[%s5 + $0x1bc] sm:$0xf]
      %v1101 = vld [vmem:[%s5 + $0x1c0] sm:$0xf]
      %v1102 = vld [vmem:[%s5 + $0x1c4] sm:$0xf]
      %v1103 = vld [vmem:[%s5 + $0x1c8] sm:$0xf]
      %v1104 = vld [vmem:[%s5 + $0x1cc] sm:$0xf]
      %v1105 = vld [vmem:[%s5 + $0x1d0] sm:$0xf]
      %v1106 = vld [vmem:[%s5 + $0x1d4] sm:$0xf]
      %v1107 = vld [vmem:[%s5 + $0x1d8] sm:$0xf]
      %v1108 = vld [vmem:[%s5 + $0x1dc] sm:$0xf]
      %v1109 = vld [vmem:[%s5 + $0x1e0] sm:$0xf]
      %v1110 = vld [vmem:[%s5 + $0x1e4] sm:$0xf]
      %v1111 = vld [vmem:[%s5 + $0x1e8] sm:$0xf]
      %v1112 = vld [vmem:[%s5 + $0x1ec] sm:$0xf]
      %v1113 = vld [vmem:[%s5 + $0x1f0] sm:$0xf]
      %v1114 = vld [vmem:[%s5 + $0x1f4] sm:$0xf]
      %v1115 = vld [vmem:[%s5 + $0x1f8] sm:$0xf]
      %v1116 = vld [vmem:[%s5 + $0x1fc] sm:$0xf]
      %v1117 = vpack.c.bf16 %v974, %v973
      %v1118 = vpack.c.bf16 %v976, %v975
      %v1119 = vpack.c.bf16 %v978, %v977
      %v1120 = vpack.c.bf16 %v980, %v979
      %v1121 = vpack.c.bf16 %v982, %v981
      %v1122 = vpack.c.bf16 %v984, %v983
      %v1123 = vpack.c.bf16 %v986, %v985
      %v1124 = vpack.c.bf16 %v988, %v987
      %v1253 = vunpack.c.l.b16 %v989
      %v1254 = vunpack.c.l.b16 %v990
      %v1255 = vunpack.c.l.b16 %v991
      %v1256 = vunpack.c.l.b16 %v992
      %v1257 = vunpack.c.l.b16 %v993
      %v1258 = vunpack.c.l.b16 %v994
      %v1259 = vunpack.c.l.b16 %v995
      %v1260 = vunpack.c.l.b16 %v996
      %v1261 = vunpack.c.l.b16 %v997
      %v1262 = vunpack.c.l.b16 %v998
      %v1263 = vunpack.c.l.b16 %v999
      %v1264 = vunpack.c.l.b16 %v1000
      %v1265 = vunpack.c.l.b16 %v1001
      %v1266 = vunpack.c.l.b16 %v1002
      %v1267 = vunpack.c.l.b16 %v1003
      %v1268 = vunpack.c.l.b16 %v1004
      %v1269 = vunpack.c.l.b16 %v1005
      %v1270 = vunpack.c.l.b16 %v1006
      %v1271 = vunpack.c.l.b16 %v1007
      %v1272 = vunpack.c.l.b16 %v1008
      %v1273 = vunpack.c.l.b16 %v1009
      %v1274 = vunpack.c.l.b16 %v1010
      %v1275 = vunpack.c.l.b16 %v1011
      %v1276 = vunpack.c.l.b16 %v1012
      %v1277 = vunpack.c.l.b16 %v1013
      %v1278 = vunpack.c.l.b16 %v1014
      %v1279 = vunpack.c.l.b16 %v1015
      %v1280 = vunpack.c.l.b16 %v1016
      %v1281 = vunpack.c.l.b16 %v1017
      %v1282 = vunpack.c.l.b16 %v1018
      %v1283 = vunpack.c.l.b16 %v1019
      %v1284 = vunpack.c.l.b16 %v1020
      %v1285 = vunpack.c.l.b16 %v1021
      %v1286 = vunpack.c.l.b16 %v1022
      %v1287 = vunpack.c.l.b16 %v1023
      %v1288 = vunpack.c.l.b16 %v1024
      %v1289 = vunpack.c.l.b16 %v1025
      %v1290 = vunpack.c.l.b16 %v1026
      %v1291 = vunpack.c.l.b16 %v1027
      %v1292 = vunpack.c.l.b16 %v1028
      %v1293 = vunpack.c.l.b16 %v1029
      %v1294 = vunpack.c.l.b16 %v1030
      %v1295 = vunpack.c.l.b16 %v1031
      %v1296 = vunpack.c.l.b16 %v1032
      %v1297 = vunpack.c.l.b16 %v1033
      %v1298 = vunpack.c.l.b16 %v1034
      %v1299 = vunpack.c.l.b16 %v1035
      %v1300 = vunpack.c.l.b16 %v1036
      %v1301 = vunpack.c.l.b16 %v1037
      %v1302 = vunpack.c.l.b16 %v1038
      %v1303 = vunpack.c.l.b16 %v1039
      %v1304 = vunpack.c.l.b16 %v1040
      %v1305 = vunpack.c.l.b16 %v1041
      %v1306 = vunpack.c.l.b16 %v1042
      %v1307 = vunpack.c.l.b16 %v1043
      %v1308 = vunpack.c.l.b16 %v1044
      %v1309 = vunpack.c.l.b16 %v1045
      %v1310 = vunpack.c.l.b16 %v1046
      %v1311 = vunpack.c.l.b16 %v1047
      %v1312 = vunpack.c.l.b16 %v1048
      %v1313 = vunpack.c.l.b16 %v1049
      %v1314 = vunpack.c.l.b16 %v1050
      %v1315 = vunpack.c.l.b16 %v1051
      %v1316 = vunpack.c.l.b16 %v1052
      %v1317 = vunpack.c.l.b16 %v1053
      %v1318 = vunpack.c.l.b16 %v1054
      %v1319 = vunpack.c.l.b16 %v1055
      %v1320 = vunpack.c.l.b16 %v1056
      %v1321 = vunpack.c.l.b16 %v1057
      %v1322 = vunpack.c.l.b16 %v1058
      %v1323 = vunpack.c.l.b16 %v1059
      %v1324 = vunpack.c.l.b16 %v1060
      %v1325 = vunpack.c.l.b16 %v1061
      %v1326 = vunpack.c.l.b16 %v1062
      %v1327 = vunpack.c.l.b16 %v1063
      %v1328 = vunpack.c.l.b16 %v1064
      %v1329 = vunpack.c.l.b16 %v1065
      %v1330 = vunpack.c.l.b16 %v1066
      %v1331 = vunpack.c.l.b16 %v1067
      %v1332 = vunpack.c.l.b16 %v1068
      %v1333 = vunpack.c.l.b16 %v1069
      %v1334 = vunpack.c.l.b16 %v1070
      %v1335 = vunpack.c.l.b16 %v1071
      %v1336 = vunpack.c.l.b16 %v1072
      %v1337 = vunpack.c.l.b16 %v1073
      %v1338 = vunpack.c.l.b16 %v1074
      %v1339 = vunpack.c.l.b16 %v1075
      %v1340 = vunpack.c.l.b16 %v1076
      %v1341 = vunpack.c.l.b16 %v1077
      %v1342 = vunpack.c.l.b16 %v1078
      %v1343 = vunpack.c.l.b16 %v1079
      %v1344 = vunpack.c.l.b16 %v1080
      %v1345 = vunpack.c.l.b16 %v1081
      %v1346 = vunpack.c.l.b16 %v1082
      %v1347 = vunpack.c.l.b16 %v1083
      %v1348 = vunpack.c.l.b16 %v1084
      %v1349 = vunpack.c.l.b16 %v1085
      %v1350 = vunpack.c.l.b16 %v1086
      %v1351 = vunpack.c.l.b16 %v1087
      %v1352 = vunpack.c.l.b16 %v1088
      %v1353 = vunpack.c.l.b16 %v1089
      %v1354 = vunpack.c.l.b16 %v1090
      %v1355 = vunpack.c.l.b16 %v1091
      %v1356 = vunpack.c.l.b16 %v1092
      %v1357 = vunpack.c.l.b16 %v1093
      %v1358 = vunpack.c.l.b16 %v1094
      %v1359 = vunpack.c.l.b16 %v1095
      %v1360 = vunpack.c.l.b16 %v1096
      %v1361 = vunpack.c.l.b16 %v1097
      %v1362 = vunpack.c.l.b16 %v1098
      %v1363 = vunpack.c.l.b16 %v1099
      %v1364 = vunpack.c.l.b16 %v1100
      %v1365 = vunpack.c.l.b16 %v1101
      %v1366 = vunpack.c.l.b16 %v1102
      %v1367 = vunpack.c.l.b16 %v1103
      %v1368 = vunpack.c.l.b16 %v1104
      %v1369 = vunpack.c.l.b16 %v1105
      %v1370 = vunpack.c.l.b16 %v1106
      %v1371 = vunpack.c.l.b16 %v1107
      %v1372 = vunpack.c.l.b16 %v1108
      %v1373 = vunpack.c.l.b16 %v1109
      %v1374 = vunpack.c.l.b16 %v1110
      %v1375 = vunpack.c.l.b16 %v1111
      %v1376 = vunpack.c.l.b16 %v1112
      %v1377 = vunpack.c.l.b16 %v1113
      %v1378 = vunpack.c.l.b16 %v1114
      %v1379 = vunpack.c.l.b16 %v1115
      %v1380 = vunpack.c.l.b16 %v1116
      %v1381 = vpack.c.b16 %v1254, %v1253
      %v1382 = vpack.c.b16 %v1256, %v1255
      %v1383 = vpack.c.b16 %v1258, %v1257
      %v1384 = vpack.c.b16 %v1260, %v1259
      %v1385 = vpack.c.b16 %v1262, %v1261
      %v1386 = vpack.c.b16 %v1264, %v1263
      %v1387 = vpack.c.b16 %v1266, %v1265
      %v1388 = vpack.c.b16 %v1268, %v1267
      %v1389 = vpack.c.b16 %v1270, %v1269
      %v1390 = vpack.c.b16 %v1272, %v1271
      %v1391 = vpack.c.b16 %v1274, %v1273
      %v1392 = vpack.c.b16 %v1276, %v1275
      %v1393 = vpack.c.b16 %v1278, %v1277
      %v1394 = vpack.c.b16 %v1280, %v1279
      %v1395 = vpack.c.b16 %v1282, %v1281
      %v1396 = vpack.c.b16 %v1284, %v1283
      %v1397 = vpack.c.b16 %v1286, %v1285
      %v1398 = vpack.c.b16 %v1288, %v1287
      %v1399 = vpack.c.b16 %v1290, %v1289
      %v1400 = vpack.c.b16 %v1292, %v1291
      %v1401 = vpack.c.b16 %v1294, %v1293
      %v1402 = vpack.c.b16 %v1296, %v1295
      %v1403 = vpack.c.b16 %v1298, %v1297
      %v1404 = vpack.c.b16 %v1300, %v1299
      %v1405 = vpack.c.b16 %v1302, %v1301
      %v1406 = vpack.c.b16 %v1304, %v1303
      %v1407 = vpack.c.b16 %v1306, %v1305
      %v1408 = vpack.c.b16 %v1308, %v1307
      %v1409 = vpack.c.b16 %v1310, %v1309
      %v1410 = vpack.c.b16 %v1312, %v1311
      %v1411 = vpack.c.b16 %v1314, %v1313
      %v1412 = vpack.c.b16 %v1316, %v1315
      %v1413 = vpack.c.b16 %v1318, %v1317
      %v1414 = vpack.c.b16 %v1320, %v1319
      %v1415 = vpack.c.b16 %v1322, %v1321
      %v1416 = vpack.c.b16 %v1324, %v1323
      %v1417 = vpack.c.b16 %v1326, %v1325
      %v1418 = vpack.c.b16 %v1328, %v1327
      %v1419 = vpack.c.b16 %v1330, %v1329
      %v1420 = vpack.c.b16 %v1332, %v1331
      %v1421 = vpack.c.b16 %v1334, %v1333
      %v1422 = vpack.c.b16 %v1336, %v1335
      %v1423 = vpack.c.b16 %v1338, %v1337
      %v1424 = vpack.c.b16 %v1340, %v1339
      %v1425 = vpack.c.b16 %v1342, %v1341
      %v1426 = vpack.c.b16 %v1344, %v1343
      %v1427 = vpack.c.b16 %v1346, %v1345
      %v1428 = vpack.c.b16 %v1348, %v1347
      %v1429 = vpack.c.b16 %v1350, %v1349
      %v1430 = vpack.c.b16 %v1352, %v1351
      %v1431 = vpack.c.b16 %v1354, %v1353
      %v1432 = vpack.c.b16 %v1356, %v1355
      %v1433 = vpack.c.b16 %v1358, %v1357
      %v1434 = vpack.c.b16 %v1360, %v1359
      %v1435 = vpack.c.b16 %v1362, %v1361
      %v1436 = vpack.c.b16 %v1364, %v1363
      %v1437 = vpack.c.b16 %v1366, %v1365
      %v1438 = vpack.c.b16 %v1368, %v1367
      %v1439 = vpack.c.b16 %v1370, %v1369
      %v1440 = vpack.c.b16 %v1372, %v1371
      %v1441 = vpack.c.b16 %v1374, %v1373
      %v1442 = vpack.c.b16 %v1376, %v1375
      %v1443 = vpack.c.b16 %v1378, %v1377
      %v1444 = vpack.c.b16 %v1380, %v1379
      %1509 = vmatprep.subr.bf16.mxu0 0
      %1510 = vmatpush1.bf16.msra.mxu0 %v1117
      %1511 = vmatprep.subr.bf16.mxu0 0
      %1512 = vmatpush1.bf16.msra.mxu0 %v1118
      %1513 = vmatprep.subr.bf16.mxu0 0
      %1514 = vmatpush1.bf16.msra.mxu0 %v1119
      %1515 = vmatprep.subr.bf16.mxu0 0
      %1516 = vmatpush1.bf16.msra.mxu0 %v1120
      %1517 = vmatprep.subr.bf16.mxu0 0
      %1518 = vmatpush1.bf16.msra.mxu0 %v1121
      %1519 = vmatprep.subr.bf16.mxu0 0
      %1520 = vmatpush1.bf16.msra.mxu0 %v1122
      %1521 = vmatprep.subr.bf16.mxu0 0
      %1522 = vmatpush1.bf16.msra.mxu0 %v1123
      %1523 = vmatprep.subr.bf16.mxu0 0
      %1524 = vmatpush1.bf16.msra.mxu0 %v1124
      %1525 = vmatprep.subr.bf16.mxu0 0
      %1526 = vmatpush1.bf16.msra.mxu0 0
      %1527 = vmatprep.subr.bf16.mxu0 0
      %1528 = vmatpush1.bf16.msra.mxu0 0
      %1529 = vmatprep.subr.bf16.mxu0 0
      %1530 = vmatpush1.bf16.msra.mxu0 0
      %1531 = vmatprep.subr.bf16.mxu0 0
      %1532 = vmatpush1.bf16.msra.mxu0 0
      %1533 = vmatprep.subr.bf16.mxu0 0
      %1534 = vmatpush1.bf16.msra.mxu0 0
      %1535 = vmatprep.subr.bf16.mxu0 0
      %1536 = vmatpush1.bf16.msra.mxu0 0
      %1537 = vmatprep.subr.bf16.mxu0 0
      %1538 = vmatpush1.bf16.msra.mxu0 0
      %1539 = vmatprep.subr.bf16.mxu0 0
      %1540 = vmatpush1.bf16.msra.mxu0 0
      %1541 = vmatprep.mubr.bf16.mxu0 0
      %1542 = vmatmul.mubr.bf16.gmra.mrb[0].mxu0 %v1381
      %v1543 = vpop.f32.mrb[0].mxu0
      %v1544 = vadd.f32 0.0, %v1543
      %v1545 = vpop.f32.mrb[0].mxu0
      %v1546 = vpop.f32.mrb[0].mxu0
      %v1547 = vadd.f32 0.0, %v1546
      %v1548 = vpop.f32.mrb[0].mxu0
      %1549 = vmatprep.mubr.bf16.mxu0 0
      %1550 = vmatmul.mubr.bf16.gmra.mrb[0].mxu0 %v1382
      %v1551 = vpop.f32.mrb[0].mxu0
      %v1552 = vadd.f32 0.0, %v1551
      %v1553 = vpop.f32.mrb[0].mxu0
      %v1554 = vpop.f32.mrb[0].mxu0
      %v1555 = vadd.f32 0.0, %v1554
      %v1556 = vpop.f32.mrb[0].mxu0
      %1557 = vmatprep.mubr.bf16.mxu0 0
      %1558 = vmatmul.mubr.bf16.gmra.mrb[0].mxu0 %v1383
      %v1559 = vpop.f32.mrb[0].mxu0
      %v1560 = vadd.f32 0.0, %v1559
      %v1561 = vpop.f32.mrb[0].mxu0
      %v1562 = vpop.f32.mrb[0].mxu0
      %v1563 = vadd.f32 0.0, %v1562
      %v1564 = vpop.f32.mrb[0].mxu0
      %1565 = vmatprep.mubr.bf16.mxu0 0
      %1566 = vmatmul.mubr.bf16.gmra.mrb[0].mxu0 %v1384
      %v1567 = vpop.f32.mrb[0].mxu0
      %v1568 = vadd.f32 0.0, %v1567
      %v1569 = vpop.f32.mrb[0].mxu0
      %v1570 = vpop.f32.mrb[0].mxu0
      %v1571 = vadd.f32 0.0, %v1570
      %v1572 = vpop.f32.mrb[0].mxu0
      %1573 = vmatprep.mubr.bf16.mxu0 0
      %1574 = vmatmul.mubr.bf16.gmra.mrb[0].mxu0 %v1385
      %v1575 = vpop.f32.mrb[0].mxu0
      %v1576 = vadd.f32 0.0, %v1575
      %v1577 = vpop.f32.mrb[0].mxu0
      %v1578 = vpop.f32.mrb[0].mxu0
      %v1579 = vadd.f32 0.0, %v1578
      %v1580 = vpop.f32.mrb[0].mxu0
      %1581 = vmatprep.mubr.bf16.mxu0 0
      %1582 = vmatmul.mubr.bf16.gmra.mrb[0].mxu0 %v1386
      %v1583 = vpop.f32.mrb[0].mxu0
      %v1584 = vadd.f32 0.0, %v1583
      %v1585 = vpop.f32.mrb[0].mxu0
      %v1586 = vpop.f32.mrb[0].mxu0
      %v1587 = vadd.f32 0.0, %v1586
      %v1588 = vpop.f32.mrb[0].mxu0
      %1589 = vmatprep.mubr.bf16.mxu0 0
      %1590 = vmatmul.mubr.bf16.gmra.mrb[0].mxu0 %v1387
      %v1591 = vpop.f32.mrb[0].mxu0
      %v1592 = vadd.f32 0.0, %v1591
      %v1593 = vpop.f32.mrb[0].mxu0
      %v1594 = vpop.f32.mrb[0].mxu0
      %v1595 = vadd.f32 0.0, %v1594
      %v1596 = vpop.f32.mrb[0].mxu0
      %1597 = vmatprep.mubr.bf16.mxu0 0
      %1598 = vmatmul.mubr.bf16.gmra.mrb[0].mxu0 %v1388
      %v1599 = vpop.f32.mrb[0].mxu0
      %v1600 = vadd.f32 0.0, %v1599
      %v1601 = vpop.f32.mrb[0].mxu0
      %v1602 = vpop.f32.mrb[0].mxu0
      %v1603 = vadd.f32 0.0, %v1602
      %v1604 = vpop.f32.mrb[0].mxu0
      %1605 = vmatprep.mubr.bf16.mxu0 0
      %1606 = vmatmul.mubr.bf16.gmra.mrb[0].mxu0 %v1389
      %v1607 = vpop.f32.mrb[0].mxu0
      %v1608 = vadd.f32 0.0, %v1607
      %v1609 = vpop.f32.mrb[0].mxu0
      %v1610 = vpop.f32.mrb[0].mxu0
      %v1611 = vadd.f32 0.0, %v1610
      %v1612 = vpop.f32.mrb[0].mxu0
      %1613 = vmatprep.mubr.bf16.mxu0 0
      %1614 = vmatmul.mubr.bf16.gmra.mrb[0].mxu0 %v1390
      %v1615 = vpop.f32.mrb[0].mxu0
      %v1616 = vadd.f32 0.0, %v1615
      %v1617 = vpop.f32.mrb[0].mxu0
      %v1618 = vpop.f32.mrb[0].mxu0
      %v1619 = vadd.f32 0.0, %v1618
      %v1620 = vpop.f32.mrb[0].mxu0
      %1621 = vmatprep.mubr.bf16.mxu0 0
      %1622 = vmatmul.mubr.bf16.gmra.mrb[0].mxu0 %v1391
      %v1623 = vpop.f32.mrb[0].mxu0
      %v1624 = vadd.f32 0.0, %v1623
      %v1625 = vpop.f32.mrb[0].mxu0
      %v1626 = vpop.f32.mrb[0].mxu0
      %v1627 = vadd.f32 0.0, %v1626
      %v1628 = vpop.f32.mrb[0].mxu0
      %1629 = vmatprep.mubr.bf16.mxu0 0
      %1630 = vmatmul.mubr.bf16.gmra.mrb[0].mxu0 %v1392
      %v1631 = vpop.f32.mrb[0].mxu0
      %v1632 = vadd.f32 0.0, %v1631
      %v1633 = vpop.f32.mrb[0].mxu0
      %v1634 = vpop.f32.mrb[0].mxu0
      %v1635 = vadd.f32 0.0, %v1634
      %v1636 = vpop.f32.mrb[0].mxu0
      %1637 = vmatprep.mubr.bf16.mxu0 0
      %1638 = vmatmul.mubr.bf16.gmra.mrb[0].mxu0 %v1393
      %v1639 = vpop.f32.mrb[0].mxu0
      %v1640 = vadd.f32 0.0, %v1639
      %v1641 = vpop.f32.mrb[0].mxu0
      %v1642 = vpop.f32.mrb[0].mxu0
      %v1643 = vadd.f32 0.0, %v1642
      %v1644 = vpop.f32.mrb[0].mxu0
      %1645 = vmatprep.mubr.bf16.mxu0 0
      %1646 = vmatmul.mubr.bf16.gmra.mrb[0].mxu0 %v1394
      %v1647 = vpop.f32.mrb[0].mxu0
      %v1648 = vadd.f32 0.0, %v1647
      %v1649 = vpop.f32.mrb[0].mxu0
      %v1650 = vpop.f32.mrb[0].mxu0
      %v1651 = vadd.f32 0.0, %v1650
      %v1652 = vpop.f32.mrb[0].mxu0
      %1653 = vmatprep.mubr.bf16.mxu0 0
      %1654 = vmatmul.mubr.bf16.gmra.mrb[0].mxu0 %v1395
      %v1655 = vpop.f32.mrb[0].mxu0
      %v1656 = vadd.f32 0.0, %v1655
      %v1657 = vpop.f32.mrb[0].mxu0
      %v1658 = vpop.f32.mrb[0].mxu0
      %v1659 = vadd.f32 0.0, %v1658
      %v1660 = vpop.f32.mrb[0].mxu0
      %1661 = vmatprep.mubr.bf16.mxu0 0
      %1662 = vmatmul.mubr.bf16.gmra.mrb[0].mxu0 %v1396
      %v1663 = vpop.f32.mrb[0].mxu0
      %v1664 = vadd.f32 0.0, %v1663
      %v1665 = vpop.f32.mrb[0].mxu0
      %v1666 = vpop.f32.mrb[0].mxu0
      %v1667 = vadd.f32 0.0, %v1666
      %v1668 = vpop.f32.mrb[0].mxu0
      %1669 = vmatprep.mubr.bf16.mxu0 0
      %1670 = vmatmul.mubr.bf16.gmra.mrb[0].mxu0 %v1397
      %v1671 = vpop.f32.mrb[0].mxu0
      %v1672 = vadd.f32 0.0, %v1671
      %v1673 = vpop.f32.mrb[0].mxu0
      %v1674 = vpop.f32.mrb[0].mxu0
      %v1675 = vadd.f32 0.0, %v1674
      %v1676 = vpop.f32.mrb[0].mxu0
      %1677 = vmatprep.mubr.bf16.mxu0 0
      %1678 = vmatmul.mubr.bf16.gmra.mrb[0].mxu0 %v1398
      %v1679 = vpop.f32.mrb[0].mxu0
      %v1680 = vadd.f32 0.0, %v1679
      %v1681 = vpop.f32.mrb[0].mxu0
      %v1682 = vpop.f32.mrb[0].mxu0
      %v1683 = vadd.f32 0.0, %v1682
      %v1684 = vpop.f32.mrb[0].mxu0
      %1685 = vmatprep.mubr.bf16.mxu0 0
      %1686 = vmatmul.mubr.bf16.gmra.mrb[0].mxu0 %v1399
      %v1687 = vpop.f32.mrb[0].mxu0
      %v1688 = vadd.f32 0.0, %v1687
      %v1689 = vpop.f32.mrb[0].mxu0
      %v1690 = vpop.f32.mrb[0].mxu0
      %v1691 = vadd.f32 0.0, %v1690
      %v1692 = vpop.f32.mrb[0].mxu0
      %1693 = vmatprep.mubr.bf16.mxu0 0
      %1694 = vmatmul.mubr.bf16.gmra.mrb[0].mxu0 %v1400
      %v1695 = vpop.f32.mrb[0].mxu0
      %v1696 = vadd.f32 0.0, %v1695
      %v1697 = vpop.f32.mrb[0].mxu0
      %v1698 = vpop.f32.mrb[0].mxu0
      %v1699 = vadd.f32 0.0, %v1698
      %v1700 = vpop.f32.mrb[0].mxu0
      %1701 = vmatprep.mubr.bf16.mxu0 0
      %1702 = vmatmul.mubr.bf16.gmra.mrb[0].mxu0 %v1401
      %v1703 = vpop.f32.mrb[0].mxu0
      %v1704 = vadd.f32 0.0, %v1703
      %v1705 = vpop.f32.mrb[0].mxu0
      %v1706 = vpop.f32.mrb[0].mxu0
      %v1707 = vadd.f32 0.0, %v1706
      %v1708 = vpop.f32.mrb[0].mxu0
      %1709 = vmatprep.mubr.bf16.mxu0 0
      %1710 = vmatmul.mubr.bf16.gmra.mrb[0].mxu0 %v1402
      %v1711 = vpop.f32.mrb[0].mxu0
      %v1712 = vadd.f32 0.0, %v1711
      %v1713 = vpop.f32.mrb[0].mxu0
      %v1714 = vpop.f32.mrb[0].mxu0
      %v1715 = vadd.f32 0.0, %v1714
      %v1716 = vpop.f32.mrb[0].mxu0
      %1717 = vmatprep.mubr.bf16.mxu0 0
      %1718 = vmatmul.mubr.bf16.gmra.mrb[0].mxu0 %v1403
      %v1719 = vpop.f32.mrb[0].mxu0
      %v1720 = vadd.f32 0.0, %v1719
      %v1721 = vpop.f32.mrb[0].mxu0
      %v1722 = vpop.f32.mrb[0].mxu0
      %v1723 = vadd.f32 0.0, %v1722
      %v1724 = vpop.f32.mrb[0].mxu0
      %1725 = vmatprep.mubr.bf16.mxu0 0
      %1726 = vmatmul.mubr.bf16.gmra.mrb[0].mxu0 %v1404
      %v1727 = vpop.f32.mrb[0].mxu0
      %v1728 = vadd.f32 0.0, %v1727
      %v1729 = vpop.f32.mrb[0].mxu0
      %v1730 = vpop.f32.mrb[0].mxu0
      %v1731 = vadd.f32 0.0, %v1730
      %v1732 = vpop.f32.mrb[0].mxu0
      %1733 = vmatprep.mubr.bf16.mxu0 0
      %1734 = vmatmul.mubr.bf16.gmra.mrb[0].mxu0 %v1405
      %v1735 = vpop.f32.mrb[0].mxu0
      %v1736 = vadd.f32 0.0, %v1735
      %v1737 = vpop.f32.mrb[0].mxu0
      %v1738 = vpop.f32.mrb[0].mxu0
      %v1739 = vadd.f32 0.0, %v1738
      %v1740 = vpop.f32.mrb[0].mxu0
      %1741 = vmatprep.mubr.bf16.mxu0 0
      %1742 = vmatmul.mubr.bf16.gmra.mrb[0].mxu0 %v1406
      %v1743 = vpop.f32.mrb[0].mxu0
      %v1744 = vadd.f32 0.0, %v1743
      %v1745 = vpop.f32.mrb[0].mxu0
      %v1746 = vpop.f32.mrb[0].mxu0
      %v1747 = vadd.f32 0.0, %v1746
      %v1748 = vpop.f32.mrb[0].mxu0
      %1749 = vmatprep.mubr.bf16.mxu0 0
      %1750 = vmatmul.mubr.bf16.gmra.mrb[0].mxu0 %v1407
      %v1751 = vpop.f32.mrb[0].mxu0
      %v1752 = vadd.f32 0.0, %v1751
      %v1753 = vpop.f32.mrb[0].mxu0
      %v1754 = vpop.f32.mrb[0].mxu0
      %v1755 = vadd.f32 0.0, %v1754
      %v1756 = vpop.f32.mrb[0].mxu0
      %1757 = vmatprep.mubr.bf16.mxu0 0
      %1758 = vmatmul.mubr.bf16.gmra.mrb[0].mxu0 %v1408
      %v1759 = vpop.f32.mrb[0].mxu0
      %v1760 = vadd.f32 0.0, %v1759
      %v1761 = vpop.f32.mrb[0].mxu0
      %v1762 = vpop.f32.mrb[0].mxu0
      %v1763 = vadd.f32 0.0, %v1762
      %v1764 = vpop.f32.mrb[0].mxu0
      %1765 = vmatprep.mubr.bf16.mxu0 0
      %1766 = vmatmul.mubr.bf16.gmra.mrb[0].mxu0 %v1409
      %v1767 = vpop.f32.mrb[0].mxu0
      %v1768 = vadd.f32 0.0, %v1767
      %v1769 = vpop.f32.mrb[0].mxu0
      %v1770 = vpop.f32.mrb[0].mxu0
      %v1771 = vadd.f32 0.0, %v1770
      %v1772 = vpop.f32.mrb[0].mxu0
      %1773 = vmatprep.mubr.bf16.mxu0 0
      %1774 = vmatmul.mubr.bf16.gmra.mrb[0].mxu0 %v1410
      %v1775 = vpop.f32.mrb[0].mxu0
      %v1776 = vadd.f32 0.0, %v1775
      %v1777 = vpop.f32.mrb[0].mxu0
      %v1778 = vpop.f32.mrb[0].mxu0
      %v1779 = vadd.f32 0.0, %v1778
      %v1780 = vpop.f32.mrb[0].mxu0
      %1781 = vmatprep.mubr.bf16.mxu0 0
      %1782 = vmatmul.mubr.bf16.gmra.mrb[0].mxu0 %v1411
      %v1783 = vpop.f32.mrb[0].mxu0
      %v1784 = vadd.f32 0.0, %v1783
      %v1785 = vpop.f32.mrb[0].mxu0
      %v1786 = vpop.f32.mrb[0].mxu0
      %v1787 = vadd.f32 0.0, %v1786
      %v1788 = vpop.f32.mrb[0].mxu0
      %1789 = vmatprep.mubr.bf16.mxu0 0
      %1790 = vmatmul.mubr.bf16.gmra.mrb[0].mxu0 %v1412
      %v1791 = vpop.f32.mrb[0].mxu0
      %v1792 = vadd.f32 0.0, %v1791
      %v1793 = vpop.f32.mrb[0].mxu0
      %v1794 = vpop.f32.mrb[0].mxu0
      %v1795 = vadd.f32 0.0, %v1794
      %v1796 = vpop.f32.mrb[0].mxu0
      %1797 = vmatprep.mubr.bf16.mxu0 0
      %1798 = vmatmul.mubr.bf16.gmra.mrb[0].mxu0 %v1413
      %v1799 = vpop.f32.mrb[0].mxu0
      %v1800 = vadd.f32 0.0, %v1799
      %v1801 = vpop.f32.mrb[0].mxu0
      %v1802 = vpop.f32.mrb[0].mxu0
      %v1803 = vadd.f32 0.0, %v1802
      %v1804 = vpop.f32.mrb[0].mxu0
      %1805 = vmatprep.mubr.bf16.mxu0 0
      %1806 = vmatmul.mubr.bf16.gmra.mrb[0].mxu0 %v1414
      %v1807 = vpop.f32.mrb[0].mxu0
      %v1808 = vadd.f32 0.0, %v1807
      %v1809 = vpop.f32.mrb[0].mxu0
      %v1810 = vpop.f32.mrb[0].mxu0
      %v1811 = vadd.f32 0.0, %v1810
      %v1812 = vpop.f32.mrb[0].mxu0
      %1813 = vmatprep.mubr.bf16.mxu0 0
      %1814 = vmatmul.mubr.bf16.gmra.mrb[0].mxu0 %v1415
      %v1815 = vpop.f32.mrb[0].mxu0
      %v1816 = vadd.f32 0.0, %v1815
      %v1817 = vpop.f32.mrb[0].mxu0
      %v1818 = vpop.f32.mrb[0].mxu0
      %v1819 = vadd.f32 0.0, %v1818
      %v1820 = vpop.f32.mrb[0].mxu0
      %1821 = vmatprep.mubr.bf16.mxu0 0
      %1822 = vmatmul.mubr.bf16.gmra.mrb[0].mxu0 %v1416
      %v1823 = vpop.f32.mrb[0].mxu0
      %v1824 = vadd.f32 0.0, %v1823
      %v1825 = vpop.f32.mrb[0].mxu0
      %v1826 = vpop.f32.mrb[0].mxu0
      %v1827 = vadd.f32 0.0, %v1826
      %v1828 = vpop.f32.mrb[0].mxu0
      %1829 = vmatprep.mubr.bf16.mxu0 0
      %1830 = vmatmul.mubr.bf16.gmra.mrb[0].mxu0 %v1417
      %v1831 = vpop.f32.mrb[0].mxu0
      %v1832 = vadd.f32 0.0, %v1831
      %v1833 = vpop.f32.mrb[0].mxu0
      %v1834 = vpop.f32.mrb[0].mxu0
      %v1835 = vadd.f32 0.0, %v1834
      %v1836 = vpop.f32.mrb[0].mxu0
      %1837 = vmatprep.mubr.bf16.mxu0 0
      %1838 = vmatmul.mubr.bf16.gmra.mrb[0].mxu0 %v1418
      %v1839 = vpop.f32.mrb[0].mxu0
      %v1840 = vadd.f32 0.0, %v1839
      %v1841 = vpop.f32.mrb[0].mxu0
      %v1842 = vpop.f32.mrb[0].mxu0
      %v1843 = vadd.f32 0.0, %v1842
      %v1844 = vpop.f32.mrb[0].mxu0
      %1845 = vmatprep.mubr.bf16.mxu0 0
      %1846 = vmatmul.mubr.bf16.gmra.mrb[0].mxu0 %v1419
      %v1847 = vpop.f32.mrb[0].mxu0
      %v1848 = vadd.f32 0.0, %v1847
      %v1849 = vpop.f32.mrb[0].mxu0
      %v1850 = vpop.f32.mrb[0].mxu0
      %v1851 = vadd.f32 0.0, %v1850
      %v1852 = vpop.f32.mrb[0].mxu0
      %1853 = vmatprep.mubr.bf16.mxu0 0
      %1854 = vmatmul.mubr.bf16.gmra.mrb[0].mxu0 %v1420
      %v1855 = vpop.f32.mrb[0].mxu0
      %v1856 = vadd.f32 0.0, %v1855
      %v1857 = vpop.f32.mrb[0].mxu0
      %v1858 = vpop.f32.mrb[0].mxu0
      %v1859 = vadd.f32 0.0, %v1858
      %v1860 = vpop.f32.mrb[0].mxu0
      %1861 = vmatprep.mubr.bf16.mxu0 0
      %1862 = vmatmul.mubr.bf16.gmra.mrb[0].mxu0 %v1421
      %v1863 = vpop.f32.mrb[0].mxu0
      %v1864 = vadd.f32 0.0, %v1863
      %v1865 = vpop.f32.mrb[0].mxu0
      %v1866 = vpop.f32.mrb[0].mxu0
      %v1867 = vadd.f32 0.0, %v1866
      %v1868 = vpop.f32.mrb[0].mxu0
      %1869 = vmatprep.mubr.bf16.mxu0 0
      %1870 = vmatmul.mubr.bf16.gmra.mrb[0].mxu0 %v1422
      %v1871 = vpop.f32.mrb[0].mxu0
      %v1872 = vadd.f32 0.0, %v1871
      %v1873 = vpop.f32.mrb[0].mxu0
      %v1874 = vpop.f32.mrb[0].mxu0
      %v1875 = vadd.f32 0.0, %v1874
      %v1876 = vpop.f32.mrb[0].mxu0
      %1877 = vmatprep.mubr.bf16.mxu0 0
      %1878 = vmatmul.mubr.bf16.gmra.mrb[0].mxu0 %v1423
      %v1879 = vpop.f32.mrb[0].mxu0
      %v1880 = vadd.f32 0.0, %v1879
      %v1881 = vpop.f32.mrb[0].mxu0
      %v1882 = vpop.f32.mrb[0].mxu0
      %v1883 = vadd.f32 0.0, %v1882
      %v1884 = vpop.f32.mrb[0].mxu0
      %1885 = vmatprep.mubr.bf16.mxu0 0
      %1886 = vmatmul.mubr.bf16.gmra.mrb[0].mxu0 %v1424
      %v1887 = vpop.f32.mrb[0].mxu0
      %v1888 = vadd.f32 0.0, %v1887
      %v1889 = vpop.f32.mrb[0].mxu0
      %v1890 = vpop.f32.mrb[0].mxu0
      %v1891 = vadd.f32 0.0, %v1890
      %v1892 = vpop.f32.mrb[0].mxu0
      %1893 = vmatprep.mubr.bf16.mxu0 0
      %1894 = vmatmul.mubr.bf16.gmra.mrb[0].mxu0 %v1425
      %v1895 = vpop.f32.mrb[0].mxu0
      %v1896 = vadd.f32 0.0, %v1895
      %v1897 = vpop.f32.mrb[0].mxu0
      %v1898 = vpop.f32.mrb[0].mxu0
      %v1899 = vadd.f32 0.0, %v1898
      %v1900 = vpop.f32.mrb[0].mxu0
      %1901 = vmatprep.mubr.bf16.mxu0 0
      %1902 = vmatmul.mubr.bf16.gmra.mrb[0].mxu0 %v1426
      %v1903 = vpop.f32.mrb[0].mxu0
      %v1904 = vadd.f32 0.0, %v1903
      %v1905 = vpop.f32.mrb[0].mxu0
      %v1906 = vpop.f32.mrb[0].mxu0
      %v1907 = vadd.f32 0.0, %v1906
      %v1908 = vpop.f32.mrb[0].mxu0
      %1909 = vmatprep.mubr.bf16.mxu0 0
      %1910 = vmatmul.mubr.bf16.gmra.mrb[0].mxu0 %v1427
      %v1911 = vpop.f32.mrb[0].mxu0
      %v1912 = vadd.f32 0.0, %v1911
      %v1913 = vpop.f32.mrb[0].mxu0
      %v1914 = vpop.f32.mrb[0].mxu0
      %v1915 = vadd.f32 0.0, %v1914
      %v1916 = vpop.f32.mrb[0].mxu0
      %1917 = vmatprep.mubr.bf16.mxu0 0
      %1918 = vmatmul.mubr.bf16.gmra.mrb[0].mxu0 %v1428
      %v1919 = vpop.f32.mrb[0].mxu0
      %v1920 = vadd.f32 0.0, %v1919
      %v1921 = vpop.f32.mrb[0].mxu0
      %v1922 = vpop.f32.mrb[0].mxu0
      %v1923 = vadd.f32 0.0, %v1922
      %v1924 = vpop.f32.mrb[0].mxu0
      %1925 = vmatprep.mubr.bf16.mxu0 0
      %1926 = vmatmul.mubr.bf16.gmra.mrb[0].mxu0 %v1429
      %v1927 = vpop.f32.mrb[0].mxu0
      %v1928 = vadd.f32 0.0, %v1927
      %v1929 = vpop.f32.mrb[0].mxu0
      %v1930 = vpop.f32.mrb[0].mxu0
      %v1931 = vadd.f32 0.0, %v1930
      %v1932 = vpop.f32.mrb[0].mxu0
      %1933 = vmatprep.mubr.bf16.mxu0 0
      %1934 = vmatmul.mubr.bf16.gmra.mrb[0].mxu0 %v1430
      %v1935 = vpop.f32.mrb[0].mxu0
      %v1936 = vadd.f32 0.0, %v1935
      %v1937 = vpop.f32.mrb[0].mxu0
      %v1938 = vpop.f32.mrb[0].mxu0
      %v1939 = vadd.f32 0.0, %v1938
      %v1940 = vpop.f32.mrb[0].mxu0
      %1941 = vmatprep.mubr.bf16.mxu0 0
      %1942 = vmatmul.mubr.bf16.gmra.mrb[0].mxu0 %v1431
      %v1943 = vpop.f32.mrb[0].mxu0
      %v1944 = vadd.f32 0.0, %v1943
      %v1945 = vpop.f32.mrb[0].mxu0
      %v1946 = vpop.f32.mrb[0].mxu0
      %v1947 = vadd.f32 0.0, %v1946
      %v1948 = vpop.f32.mrb[0].mxu0
      %1949 = vmatprep.mubr.bf16.mxu0 0
      %1950 = vmatmul.mubr.bf16.gmra.mrb[0].mxu0 %v1432
      %v1951 = vpop.f32.mrb[0].mxu0
      %v1952 = vadd.f32 0.0, %v1951
      %v1953 = vpop.f32.mrb[0].mxu0
      %v1954 = vpop.f32.mrb[0].mxu0
      %v1955 = vadd.f32 0.0, %v1954
      %v1956 = vpop.f32.mrb[0].mxu0
      %1957 = vmatprep.mubr.bf16.mxu0 0
      %1958 = vmatmul.mubr.bf16.gmra.mrb[0].mxu0 %v1433
      %v1959 = vpop.f32.mrb[0].mxu0
      %v1960 = vadd.f32 0.0, %v1959
      %v1961 = vpop.f32.mrb[0].mxu0
      %v1962 = vpop.f32.mrb[0].mxu0
      %v1963 = vadd.f32 0.0, %v1962
      %v1964 = vpop.f32.mrb[0].mxu0
      %1965 = vmatprep.mubr.bf16.mxu0 0
      %1966 = vmatmul.mubr.bf16.gmra.mrb[0].mxu0 %v1434
      %v1967 = vpop.f32.mrb[0].mxu0
      %v1968 = vadd.f32 0.0, %v1967
      %v1969 = vpop.f32.mrb[0].mxu0
      %v1970 = vpop.f32.mrb[0].mxu0
      %v1971 = vadd.f32 0.0, %v1970
      %v1972 = vpop.f32.mrb[0].mxu0
      %1973 = vmatprep.mubr.bf16.mxu0 0
      %1974 = vmatmul.mubr.bf16.gmra.mrb[0].mxu0 %v1435
      %v1975 = vpop.f32.mrb[0].mxu0
      %v1976 = vadd.f32 0.0, %v1975
      %v1977 = vpop.f32.mrb[0].mxu0
      %v1978 = vpop.f32.mrb[0].mxu0
      %v1979 = vadd.f32 0.0, %v1978
      %v1980 = vpop.f32.mrb[0].mxu0
      %1981 = vmatprep.mubr.bf16.mxu0 0
      %1982 = vmatmul.mubr.bf16.gmra.mrb[0].mxu0 %v1436
      %v1983 = vpop.f32.mrb[0].mxu0
      %v1984 = vadd.f32 0.0, %v1983
      %v1985 = vpop.f32.mrb[0].mxu0
      %v1986 = vpop.f32.mrb[0].mxu0
      %v1987 = vadd.f32 0.0, %v1986
      %v1988 = vpop.f32.mrb[0].mxu0
      %1989 = vmatprep.mubr.bf16.mxu0 0
      %1990 = vmatmul.mubr.bf16.gmra.mrb[0].mxu0 %v1437
      %v1991 = vpop.f32.mrb[0].mxu0
      %v1992 = vadd.f32 0.0, %v1991
      %v1993 = vpop.f32.mrb[0].mxu0
      %v1994 = vpop.f32.mrb[0].mxu0
      %v1995 = vadd.f32 0.0, %v1994
      %v1996 = vpop.f32.mrb[0].mxu0
      %1997 = vmatprep.mubr.bf16.mxu0 0
      %1998 = vmatmul.mubr.bf16.gmra.mrb[0].mxu0 %v1438
      %v1999 = vpop.f32.mrb[0].mxu0
      %v2000 = vadd.f32 0.0, %v1999
      %v2001 = vpop.f32.mrb[0].mxu0
      %v2002 = vpop.f32.mrb[0].mxu0
      %v2003 = vadd.f32 0.0, %v2002
      %v2004 = vpop.f32.mrb[0].mxu0
      %2005 = vmatprep.mubr.bf16.mxu0 0
      %2006 = vmatmul.mubr.bf16.gmra.mrb[0].mxu0 %v1439
      %v2007 = vpop.f32.mrb[0].mxu0
      %v2008 = vadd.f32 0.0, %v2007
      %v2009 = vpop.f32.mrb[0].mxu0
      %v2010 = vpop.f32.mrb[0].mxu0
      %v2011 = vadd.f32 0.0, %v2010
      %v2012 = vpop.f32.mrb[0].mxu0
      %2013 = vmatprep.mubr.bf16.mxu0 0
      %2014 = vmatmul.mubr.bf16.gmra.mrb[0].mxu0 %v1440
      %v2015 = vpop.f32.mrb[0].mxu0
      %v2016 = vadd.f32 0.0, %v2015
      %v2017 = vpop.f32.mrb[0].mxu0
      %v2018 = vpop.f32.mrb[0].mxu0
      %v2019 = vadd.f32 0.0, %v2018
      %v2020 = vpop.f32.mrb[0].mxu0
      %2021 = vmatprep.mubr.bf16.mxu0 0
      %2022 = vmatmul.mubr.bf16.gmra.mrb[0].mxu0 %v1441
      %v2023 = vpop.f32.mrb[0].mxu0
      %v2024 = vadd.f32 0.0, %v2023
      %v2025 = vpop.f32.mrb[0].mxu0
      %v2026 = vpop.f32.mrb[0].mxu0
      %v2027 = vadd.f32 0.0, %v2026
      %v2028 = vpop.f32.mrb[0].mxu0
      %2029 = vmatprep.mubr.bf16.mxu0 0
      %2030 = vmatmul.mubr.bf16.gmra.mrb[0].mxu0 %v1442
      %v2031 = vpop.f32.mrb[0].mxu0
      %v2032 = vadd.f32 0.0, %v2031
      %v2033 = vpop.f32.mrb[0].mxu0
      %v2034 = vpop.f32.mrb[0].mxu0
      %v2035 = vadd.f32 0.0, %v2034
      %v2036 = vpop.f32.mrb[0].mxu0
      %2037 = vmatprep.mubr.bf16.mxu0 0
      %2038 = vmatmul.mubr.bf16.gmra.mrb[0].mxu0 %v1443
      %v2039 = vpop.f32.mrb[0].mxu0
      %v2040 = vadd.f32 0.0, %v2039
      %v2041 = vpop.f32.mrb[0].mxu0
      %v2042 = vpop.f32.mrb[0].mxu0
      %v2043 = vadd.f32 0.0, %v2042
      %v2044 = vpop.f32.mrb[0].mxu0
      %2045 = vmatprep.mubr.bf16.mxu0 0
      %2046 = vmatmul.mubr.bf16.gmra.mrb[0].mxu0 %v1444
      %v2047 = vpop.f32.mrb[0].mxu0
      %v2048 = vadd.f32 0.0, %v2047
      %v2049 = vpop.f32.mrb[0].mxu0
      %v2050 = vpop.f32.mrb[0].mxu0
      %v2051 = vadd.f32 0.0, %v2050
      %v2052 = vpop.f32.mrb[0].mxu0
      %2053 = vdwg.mxu0
      %v2054 = vld [vmem:[#allocation2] sm:$0xff]
      %v2055 = vld [vmem:[#allocation2 + $0x8] sm:$0xff]
      %v2056 = vld [vmem:[#allocation2 + $0x10] sm:$0xff]
      %v2057 = vld [vmem:[#allocation2 + $0x18] sm:$0xff]
      %v2058 = vld [vmem:[#allocation2 + $0x20] sm:$0xff]
      %v2059 = vld [vmem:[#allocation2 + $0x28] sm:$0xff]
      %v2060 = vld [vmem:[#allocation2 + $0x30] sm:$0xff]
      %v2061 = vld [vmem:[#allocation2 + $0x38] sm:$0xff]
      %v2062 = vld [vmem:[#allocation2 + $0x40] sm:$0xff]
      %v2063 = vld [vmem:[#allocation2 + $0x48] sm:$0xff]
      %v2064 = vld [vmem:[#allocation2 + $0x50] sm:$0xff]
      %v2065 = vld [vmem:[#allocation2 + $0x58] sm:$0xff]
      %v2066 = vld [vmem:[#allocation2 + $0x60] sm:$0xff]
      %v2067 = vld [vmem:[#allocation2 + $0x68] sm:$0xff]
      %v2068 = vld [vmem:[#allocation2 + $0x70] sm:$0xff]
      %v2069 = vld [vmem:[#allocation2 + $0x78] sm:$0xff]
      %v2070 = vld [vmem:[#allocation2 + $0x80] sm:$0xff]
      %v2071 = vld [vmem:[#allocation2 + $0x88] sm:$0xff]
      %v2072 = vld [vmem:[#allocation2 + $0x90] sm:$0xff]
      %v2073 = vld [vmem:[#allocation2 + $0x98] sm:$0xff]
      %v2074 = vld [vmem:[#allocation2 + $0xa0] sm:$0xff]
      %v2075 = vld [vmem:[#allocation2 + $0xa8] sm:$0xff]
      %v2076 = vld [vmem:[#allocation2 + $0xb0] sm:$0xff]
      %v2077 = vld [vmem:[#allocation2 + $0xb8] sm:$0xff]
      %v2078 = vld [vmem:[#allocation2 + $0xc0] sm:$0xff]
      %v2079 = vld [vmem:[#allocation2 + $0xc8] sm:$0xff]
      %v2080 = vld [vmem:[#allocation2 + $0xd0] sm:$0xff]
      %v2081 = vld [vmem:[#allocation2 + $0xd8] sm:$0xff]
      %v2082 = vld [vmem:[#allocation2 + $0xe0] sm:$0xff]
      %v2083 = vld [vmem:[#allocation2 + $0xe8] sm:$0xff]
      %v2084 = vld [vmem:[#allocation2 + $0xf0] sm:$0xff]
      %v2085 = vld [vmem:[#allocation2 + $0xf8] sm:$0xff]
      %v2086 = vld [vmem:[#allocation2 + $0x100] sm:$0xff]
      %v2087 = vld [vmem:[#allocation2 + $0x108] sm:$0xff]
      %v2088 = vld [vmem:[#allocation2 + $0x110] sm:$0xff]
      %v2089 = vld [vmem:[#allocation2 + $0x118] sm:$0xff]
      %v2090 = vld [vmem:[#allocation2 + $0x120] sm:$0xff]
      %v2091 = vld [vmem:[#allocation2 + $0x128] sm:$0xff]
      %v2092 = vld [vmem:[#allocation2 + $0x130] sm:$0xff]
      %v2093 = vld [vmem:[#allocation2 + $0x138] sm:$0xff]
      %v2094 = vld [vmem:[#allocation2 + $0x140] sm:$0xff]
      %v2095 = vld [vmem:[#allocation2 + $0x148] sm:$0xff]
      %v2096 = vld [vmem:[#allocation2 + $0x150] sm:$0xff]
      %v2097 = vld [vmem:[#allocation2 + $0x158] sm:$0xff]
      %v2098 = vld [vmem:[#allocation2 + $0x160] sm:$0xff]
      %v2099 = vld [vmem:[#allocation2 + $0x168] sm:$0xff]
      %v2100 = vld [vmem:[#allocation2 + $0x170] sm:$0xff]
      %v2101 = vld [vmem:[#allocation2 + $0x178] sm:$0xff]
      %v2102 = vld [vmem:[#allocation2 + $0x180] sm:$0xff]
      %v2103 = vld [vmem:[#allocation2 + $0x188] sm:$0xff]
      %v2104 = vld [vmem:[#allocation2 + $0x190] sm:$0xff]
      %v2105 = vld [vmem:[#allocation2 + $0x198] sm:$0xff]
      %v2106 = vld [vmem:[#allocation2 + $0x1a0] sm:$0xff]
      %v2107 = vld [vmem:[#allocation2 + $0x1a8] sm:$0xff]
      %v2108 = vld [vmem:[#allocation2 + $0x1b0] sm:$0xff]
      %v2109 = vld [vmem:[#allocation2 + $0x1b8] sm:$0xff]
      %v2110 = vld [vmem:[#allocation2 + $0x1c0] sm:$0xff]
      %v2111 = vld [vmem:[#allocation2 + $0x1c8] sm:$0xff]
      %v2112 = vld [vmem:[#allocation2 + $0x1d0] sm:$0xff]
      %v2113 = vld [vmem:[#allocation2 + $0x1d8] sm:$0xff]
      %v2114 = vld [vmem:[#allocation2 + $0x1e0] sm:$0xff]
      %v2115 = vld [vmem:[#allocation2 + $0x1e8] sm:$0xff]
      %v2116 = vld [vmem:[#allocation2 + $0x1f0] sm:$0xff]
      %v2117 = vld [vmem:[#allocation2 + $0x1f8] sm:$0xff]
      %v2118 = vld [vmem:[#allocation2 + $0x200] sm:$0xff]
      %v2119 = vld [vmem:[#allocation2 + $0x208] sm:$0xff]
      %v2120 = vld [vmem:[#allocation2 + $0x210] sm:$0xff]
      %v2121 = vld [vmem:[#allocation2 + $0x218] sm:$0xff]
      %v2122 = vld [vmem:[#allocation2 + $0x220] sm:$0xff]
      %v2123 = vld [vmem:[#allocation2 + $0x228] sm:$0xff]
      %v2124 = vld [vmem:[#allocation2 + $0x230] sm:$0xff]
      %v2125 = vld [vmem:[#allocation2 + $0x238] sm:$0xff]
      %v2126 = vld [vmem:[#allocation2 + $0x240] sm:$0xff]
      %v2127 = vld [vmem:[#allocation2 + $0x248] sm:$0xff]
      %v2128 = vld [vmem:[#allocation2 + $0x250] sm:$0xff]
      %v2129 = vld [vmem:[#allocation2 + $0x258] sm:$0xff]
      %v2130 = vld [vmem:[#allocation2 + $0x260] sm:$0xff]
      %v2131 = vld [vmem:[#allocation2 + $0x268] sm:$0xff]
      %v2132 = vld [vmem:[#allocation2 + $0x270] sm:$0xff]
      %v2133 = vld [vmem:[#allocation2 + $0x278] sm:$0xff]
      %v2134 = vld [vmem:[#allocation2 + $0x280] sm:$0xff]
      %v2135 = vld [vmem:[#allocation2 + $0x288] sm:$0xff]
      %v2136 = vld [vmem:[#allocation2 + $0x290] sm:$0xff]
      %v2137 = vld [vmem:[#allocation2 + $0x298] sm:$0xff]
      %v2138 = vld [vmem:[#allocation2 + $0x2a0] sm:$0xff]
      %v2139 = vld [vmem:[#allocation2 + $0x2a8] sm:$0xff]
      %v2140 = vld [vmem:[#allocation2 + $0x2b0] sm:$0xff]
      %v2141 = vld [vmem:[#allocation2 + $0x2b8] sm:$0xff]
      %v2142 = vld [vmem:[#allocation2 + $0x2c0] sm:$0xff]
      %v2143 = vld [vmem:[#allocation2 + $0x2c8] sm:$0xff]
      %v2144 = vld [vmem:[#allocation2 + $0x2d0] sm:$0xff]
      %v2145 = vld [vmem:[#allocation2 + $0x2d8] sm:$0xff]
      %v2146 = vld [vmem:[#allocation2 + $0x2e0] sm:$0xff]
      %v2147 = vld [vmem:[#allocation2 + $0x2e8] sm:$0xff]
      %v2148 = vld [vmem:[#allocation2 + $0x2f0] sm:$0xff]
      %v2149 = vld [vmem:[#allocation2 + $0x2f8] sm:$0xff]
      %v2150 = vld [vmem:[#allocation2 + $0x300] sm:$0xff]
      %v2151 = vld [vmem:[#allocation2 + $0x308] sm:$0xff]
      %v2152 = vld [vmem:[#allocation2 + $0x310] sm:$0xff]
      %v2153 = vld [vmem:[#allocation2 + $0x318] sm:$0xff]
      %v2154 = vld [vmem:[#allocation2 + $0x320] sm:$0xff]
      %v2155 = vld [vmem:[#allocation2 + $0x328] sm:$0xff]
      %v2156 = vld [vmem:[#allocation2 + $0x330] sm:$0xff]
      %v2157 = vld [vmem:[#allocation2 + $0x338] sm:$0xff]
      %v2158 = vld [vmem:[#allocation2 + $0x340] sm:$0xff]
      %v2159 = vld [vmem:[#allocation2 + $0x348] sm:$0xff]
      %v2160 = vld [vmem:[#allocation2 + $0x350] sm:$0xff]
      %v2161 = vld [vmem:[#allocation2 + $0x358] sm:$0xff]
      %v2162 = vld [vmem:[#allocation2 + $0x360] sm:$0xff]
      %v2163 = vld [vmem:[#allocation2 + $0x368] sm:$0xff]
      %v2164 = vld [vmem:[#allocation2 + $0x370] sm:$0xff]
      %v2165 = vld [vmem:[#allocation2 + $0x378] sm:$0xff]
      %v2166 = vld [vmem:[#allocation2 + $0x380] sm:$0xff]
      %v2167 = vld [vmem:[#allocation2 + $0x388] sm:$0xff]
      %v2168 = vld [vmem:[#allocation2 + $0x390] sm:$0xff]
      %v2169 = vld [vmem:[#allocation2 + $0x398] sm:$0xff]
      %v2170 = vld [vmem:[#allocation2 + $0x3a0] sm:$0xff]
      %v2171 = vld [vmem:[#allocation2 + $0x3a8] sm:$0xff]
      %v2172 = vld [vmem:[#allocation2 + $0x3b0] sm:$0xff]
      %v2173 = vld [vmem:[#allocation2 + $0x3b8] sm:$0xff]
      %v2174 = vld [vmem:[#allocation2 + $0x3c0] sm:$0xff]
      %v2175 = vld [vmem:[#allocation2 + $0x3c8] sm:$0xff]
      %v2176 = vld [vmem:[#allocation2 + $0x3d0] sm:$0xff]
      %v2177 = vld [vmem:[#allocation2 + $0x3d8] sm:$0xff]
      %v2178 = vld [vmem:[#allocation2 + $0x3e0] sm:$0xff]
      %v2179 = vld [vmem:[#allocation2 + $0x3e8] sm:$0xff]
      %v2180 = vld [vmem:[#allocation2 + $0x3f0] sm:$0xff]
      %v2181 = vld [vmem:[#allocation2 + $0x3f8] sm:$0xff]
      %v2182 = vmax.f32 %v2054, %v1544
      %v2183 = vmax.f32 %v2055, %v1547
      %v2184 = vmax.f32 %v2056, %v1552
      %v2185 = vmax.f32 %v2057, %v1555
      %v2186 = vmax.f32 %v2058, %v1560
      %v2187 = vmax.f32 %v2059, %v1563
      %v2188 = vmax.f32 %v2060, %v1568
      %v2189 = vmax.f32 %v2061, %v1571
      %v2190 = vmax.f32 %v2062, %v1576
      %v2191 = vmax.f32 %v2063, %v1579
      %v2192 = vmax.f32 %v2064, %v1584
      %v2193 = vmax.f32 %v2065, %v1587
      %v2194 = vmax.f32 %v2066, %v1592
      %v2195 = vmax.f32 %v2067, %v1595
      %v2196 = vmax.f32 %v2068, %v1600
      %v2197 = vmax.f32 %v2069, %v1603
      %v2198 = vmax.f32 %v2070, %v1608
      %v2199 = vmax.f32 %v2071, %v1611
      %v2200 = vmax.f32 %v2072, %v1616
      %v2201 = vmax.f32 %v2073, %v1619
      %v2202 = vmax.f32 %v2074, %v1624
      %v2203 = vmax.f32 %v2075, %v1627
      %v2204 = vmax.f32 %v2076, %v1632
      %v2205 = vmax.f32 %v2077, %v1635
      %v2206 = vmax.f32 %v2078, %v1640
      %v2207 = vmax.f32 %v2079, %v1643
      %v2208 = vmax.f32 %v2080, %v1648
      %v2209 = vmax.f32 %v2081, %v1651
      %v2210 = vmax.f32 %v2082, %v1656
      %v2211 = vmax.f32 %v2083, %v1659
      %v2212 = vmax.f32 %v2084, %v1664
      %v2213 = vmax.f32 %v2085, %v1667
      %v2214 = vmax.f32 %v2086, %v1672
      %v2215 = vmax.f32 %v2087, %v1675
      %v2216 = vmax.f32 %v2088, %v1680
      %v2217 = vmax.f32 %v2089, %v1683
      %v2218 = vmax.f32 %v2090, %v1688
      %v2219 = vmax.f32 %v2091, %v1691
      %v2220 = vmax.f32 %v2092, %v1696
      %v2221 = vmax.f32 %v2093, %v1699
      %v2222 = vmax.f32 %v2094, %v1704
      %v2223 = vmax.f32 %v2095, %v1707
      %v2224 = vmax.f32 %v2096, %v1712
      %v2225 = vmax.f32 %v2097, %v1715
      %v2226 = vmax.f32 %v2098, %v1720
      %v2227 = vmax.f32 %v2099, %v1723
      %v2228 = vmax.f32 %v2100, %v1728
      %v2229 = vmax.f32 %v2101, %v1731
      %v2230 = vmax.f32 %v2102, %v1736
      %v2231 = vmax.f32 %v2103, %v1739
      %v2232 = vmax.f32 %v2104, %v1744
      %v2233 = vmax.f32 %v2105, %v1747
      %v2234 = vmax.f32 %v2106, %v1752
      %v2235 = vmax.f32 %v2107, %v1755
      %v2236 = vmax.f32 %v2108, %v1760
      %v2237 = vmax.f32 %v2109, %v1763
      %v2238 = vmax.f32 %v2110, %v1768
      %v2239 = vmax.f32 %v2111, %v1771
      %v2240 = vmax.f32 %v2112, %v1776
      %v2241 = vmax.f32 %v2113, %v1779
      %v2242 = vmax.f32 %v2114, %v1784
      %v2243 = vmax.f32 %v2115, %v1787
      %v2244 = vmax.f32 %v2116, %v1792
      %v2245 = vmax.f32 %v2117, %v1795
      %v2246 = vmax.f32 %v2118, %v1800
      %v2247 = vmax.f32 %v2119, %v1803
      %v2248 = vmax.f32 %v2120, %v1808
      %v2249 = vmax.f32 %v2121, %v1811
      %v2250 = vmax.f32 %v2122, %v1816
      %v2251 = vmax.f32 %v2123, %v1819
      %v2252 = vmax.f32 %v2124, %v1824
      %v2253 = vmax.f32 %v2125, %v1827
      %v2254 = vmax.f32 %v2126, %v1832
      %v2255 = vmax.f32 %v2127, %v1835
      %v2256 = vmax.f32 %v2128, %v1840
      %v2257 = vmax.f32 %v2129, %v1843
      %v2258 = vmax.f32 %v2130, %v1848
      %v2259 = vmax.f32 %v2131, %v1851
      %v2260 = vmax.f32 %v2132, %v1856
      %v2261 = vmax.f32 %v2133, %v1859
      %v2262 = vmax.f32 %v2134, %v1864
      %v2263 = vmax.f32 %v2135, %v1867
      %v2264 = vmax.f32 %v2136, %v1872
      %v2265 = vmax.f32 %v2137, %v1875
      %v2266 = vmax.f32 %v2138, %v1880
      %v2267 = vmax.f32 %v2139, %v1883
      %v2268 = vmax.f32 %v2140, %v1888
      %v2269 = vmax.f32 %v2141, %v1891
      %v2270 = vmax.f32 %v2142, %v1896
      %v2271 = vmax.f32 %v2143, %v1899
      %v2272 = vmax.f32 %v2144, %v1904
      %v2273 = vmax.f32 %v2145, %v1907
      %v2274 = vmax.f32 %v2146, %v1912
      %v2275 = vmax.f32 %v2147, %v1915
      %v2276 = vmax.f32 %v2148, %v1920
      %v2277 = vmax.f32 %v2149, %v1923
      %v2278 = vmax.f32 %v2150, %v1928
      %v2279 = vmax.f32 %v2151, %v1931
      %v2280 = vmax.f32 %v2152, %v1936
      %v2281 = vmax.f32 %v2153, %v1939
      %v2282 = vmax.f32 %v2154, %v1944
      %v2283 = vmax.f32 %v2155, %v1947
      %v2284 = vmax.f32 %v2156, %v1952
      %v2285 = vmax.f32 %v2157, %v1955
      %v2286 = vmax.f32 %v2158, %v1960
      %v2287 = vmax.f32 %v2159, %v1963
      %v2288 = vmax.f32 %v2160, %v1968
      %v2289 = vmax.f32 %v2161, %v1971
      %v2290 = vmax.f32 %v2162, %v1976
      %v2291 = vmax.f32 %v2163, %v1979
      %v2292 = vmax.f32 %v2164, %v1984
      %v2293 = vmax.f32 %v2165, %v1987
      %v2294 = vmax.f32 %v2166, %v1992
      %v2295 = vmax.f32 %v2167, %v1995
      %v2296 = vmax.f32 %v2168, %v2000
      %v2297 = vmax.f32 %v2169, %v2003
      %v2298 = vmax.f32 %v2170, %v2008
      %v2299 = vmax.f32 %v2171, %v2011
      %v2300 = vmax.f32 %v2172, %v2016
      %v2301 = vmax.f32 %v2173, %v2019
      %v2302 = vmax.f32 %v2174, %v2024
      %v2303 = vmax.f32 %v2175, %v2027
      %v2304 = vmax.f32 %v2176, %v2032
      %v2305 = vmax.f32 %v2177, %v2035
      %v2306 = vmax.f32 %v2178, %v2040
      %v2307 = vmax.f32 %v2179, %v2043
      %v2308 = vmax.f32 %v2180, %v2048
      %v2309 = vmax.f32 %v2181, %v2051
      %2310 = vst [vmem:[#allocation2] sm:$0xff] %v2182
      %2311 = vst [vmem:[#allocation2 + $0x8] sm:$0xff] %v2183
      %2312 = vst [vmem:[#allocation2 + $0x10] sm:$0xff] %v2184
      %2313 = vst [vmem:[#allocation2 + $0x18] sm:$0xff] %v2185
      %2314 = vst [vmem:[#allocation2 + $0x20] sm:$0xff] %v2186
      %2315 = vst [vmem:[#allocation2 + $0x28] sm:$0xff] %v2187
      %2316 = vst [vmem:[#allocation2 + $0x30] sm:$0xff] %v2188
      %2317 = vst [vmem:[#allocation2 + $0x38] sm:$0xff] %v2189
      %2318 = vst [vmem:[#allocation2 + $0x40] sm:$0xff] %v2190
      %2319 = vst [vmem:[#allocation2 + $0x48] sm:$0xff] %v2191
      %2320 = vst [vmem:[#allocation2 + $0x50] sm:$0xff] %v2192
      %2321 = vst [vmem:[#allocation2 + $0x58] sm:$0xff] %v2193
      %2322 = vst [vmem:[#allocation2 + $0x60] sm:$0xff] %v2194
      %2323 = vst [vmem:[#allocation2 + $0x68] sm:$0xff] %v2195
      %2324 = vst [vmem:[#allocation2 + $0x70] sm:$0xff] %v2196
      %2325 = vst [vmem:[#allocation2 + $0x78] sm:$0xff] %v2197
      %2326 = vst [vmem:[#allocation2 + $0x80] sm:$0xff] %v2198
      %2327 = vst [vmem:[#allocation2 + $0x88] sm:$0xff] %v2199
      %2328 = vst [vmem:[#allocation2 + $0x90] sm:$0xff] %v2200
      %2329 = vst [vmem:[#allocation2 + $0x98] sm:$0xff] %v2201
      %2330 = vst [vmem:[#allocation2 + $0xa0] sm:$0xff] %v2202
      %2331 = vst [vmem:[#allocation2 + $0xa8] sm:$0xff] %v2203
      %2332 = vst [vmem:[#allocation2 + $0xb0] sm:$0xff] %v2204
      %2333 = vst [vmem:[#allocation2 + $0xb8] sm:$0xff] %v2205
      %2334 = vst [vmem:[#allocation2 + $0xc0] sm:$0xff] %v2206
      %2335 = vst [vmem:[#allocation2 + $0xc8] sm:$0xff] %v2207
      %2336 = vst [vmem:[#allocation2 + $0xd0] sm:$0xff] %v2208
      %2337 = vst [vmem:[#allocation2 + $0xd8] sm:$0xff] %v2209
      %2338 = vst [vmem:[#allocation2 + $0xe0] sm:$0xff] %v2210
      %2339 = vst [vmem:[#allocation2 + $0xe8] sm:$0xff] %v2211
      %2340 = vst [vmem:[#allocation2 + $0xf0] sm:$0xff] %v2212
      %2341 = vst [vmem:[#allocation2 + $0xf8] sm:$0xff] %v2213
      %2342 = vst [vmem:[#allocation2 + $0x100] sm:$0xff] %v2214
      %2343 = vst [vmem:[#allocation2 + $0x108] sm:$0xff] %v2215
      %2344 = vst [vmem:[#allocation2 + $0x110] sm:$0xff] %v2216
      %2345 = vst [vmem:[#allocation2 + $0x118] sm:$0xff] %v2217
      %2346 = vst [vmem:[#allocation2 + $0x120] sm:$0xff] %v2218
      %2347 = vst [vmem:[#allocation2 + $0x128] sm:$0xff] %v2219
      %2348 = vst [vmem:[#allocation2 + $0x130] sm:$0xff] %v2220
      %2349 = vst [vmem:[#allocation2 + $0x138] sm:$0xff] %v2221
      %2350 = vst [vmem:[#allocation2 + $0x140] sm:$0xff] %v2222
      %2351 = vst [vmem:[#allocation2 + $0x148] sm:$0xff] %v2223
      %2352 = vst [vmem:[#allocation2 + $0x150] sm:$0xff] %v2224
      %2353 = vst [vmem:[#allocation2 + $0x158] sm:$0xff] %v2225
      %2354 = vst [vmem:[#allocation2 + $0x160] sm:$0xff] %v2226
      %2355 = vst [vmem:[#allocation2 + $0x168] sm:$0xff] %v2227
      %2356 = vst [vmem:[#allocation2 + $0x170] sm:$0xff] %v2228
      %2357 = vst [vmem:[#allocation2 + $0x178] sm:$0xff] %v2229
      %2358 = vst [vmem:[#allocation2 + $0x180] sm:$0xff] %v2230
      %2359 = vst [vmem:[#allocation2 + $0x188] sm:$0xff] %v2231
      %2360 = vst [vmem:[#allocation2 + $0x190] sm:$0xff] %v2232
      %2361 = vst [vmem:[#allocation2 + $0x198] sm:$0xff] %v2233
      %2362 = vst [vmem:[#allocation2 + $0x1a0] sm:$0xff] %v2234
      %2363 = vst [vmem:[#allocation2 + $0x1a8] sm:$0xff] %v2235
      %2364 = vst [vmem:[#allocation2 + $0x1b0] sm:$0xff] %v2236
      %2365 = vst [vmem:[#allocation2 + $0x1b8] sm:$0xff] %v2237
      %2366 = vst [vmem:[#allocation2 + $0x1c0] sm:$0xff] %v2238
      %2367 = vst [vmem:[#allocation2 + $0x1c8] sm:$0xff] %v2239
      %2368 = vst [vmem:[#allocation2 + $0x1d0] sm:$0xff] %v2240
      %2369 = vst [vmem:[#allocation2 + $0x1d8] sm:$0xff] %v2241
      %2370 = vst [vmem:[#allocation2 + $0x1e0] sm:$0xff] %v2242
      %2371 = vst [vmem:[#allocation2 + $0x1e8] sm:$0xff] %v2243
      %2372 = vst [vmem:[#allocation2 + $0x1f0] sm:$0xff] %v2244
      %2373 = vst [vmem:[#allocation2 + $0x1f8] sm:$0xff] %v2245
      %2374 = vst [vmem:[#allocation2 + $0x200] sm:$0xff] %v2246
      %2375 = vst [vmem:[#allocation2 + $0x208] sm:$0xff] %v2247
      %2376 = vst [vmem:[#allocation2 + $0x210] sm:$0xff] %v2248
      %2377 = vst [vmem:[#allocation2 + $0x218] sm:$0xff] %v2249
      %2378 = vst [vmem:[#allocation2 + $0x220] sm:$0xff] %v2250
      %2379 = vst [vmem:[#allocation2 + $0x228] sm:$0xff] %v2251
      %2380 = vst [vmem:[#allocation2 + $0x230] sm:$0xff] %v2252
      %2381 = vst [vmem:[#allocation2 + $0x238] sm:$0xff] %v2253
      %2382 = vst [vmem:[#allocation2 + $0x240] sm:$0xff] %v2254
      %2383 = vst [vmem:[#allocation2 + $0x248] sm:$0xff] %v2255
      %2384 = vst [vmem:[#allocation2 + $0x250] sm:$0xff] %v2256
      %2385 = vst [vmem:[#allocation2 + $0x258] sm:$0xff] %v2257
      %2386 = vst [vmem:[#allocation2 + $0x260] sm:$0xff] %v2258
      %2387 = vst [vmem:[#allocation2 + $0x268] sm:$0xff] %v2259
      %2388 = vst [vmem:[#allocation2 + $0x270] sm:$0xff] %v2260
      %2389 = vst [vmem:[#allocation2 + $0x278] sm:$0xff] %v2261
      %2390 = vst [vmem:[#allocation2 + $0x280] sm:$0xff] %v2262
      %2391 = vst [vmem:[#allocation2 + $0x288] sm:$0xff] %v2263
      %2392 = vst [vmem:[#allocation2 + $0x290] sm:$0xff] %v2264
      %2393 = vst [vmem:[#allocation2 + $0x298] sm:$0xff] %v2265
      %2394 = vst [vmem:[#allocation2 + $0x2a0] sm:$0xff] %v2266
      %2395 = vst [vmem:[#allocation2 + $0x2a8] sm:$0xff] %v2267
      %2396 = vst [vmem:[#allocation2 + $0x2b0] sm:$0xff] %v2268
      %2397 = vst [vmem:[#allocation2 + $0x2b8] sm:$0xff] %v2269
      %2398 = vst [vmem:[#allocation2 + $0x2c0] sm:$0xff] %v2270
      %2399 = vst [vmem:[#allocation2 + $0x2c8] sm:$0xff] %v2271
      %2400 = vst [vmem:[#allocation2 + $0x2d0] sm:$0xff] %v2272
      %2401 = vst [vmem:[#allocation2 + $0x2d8] sm:$0xff] %v2273
      %2402 = vst [vmem:[#allocation2 + $0x2e0] sm:$0xff] %v2274
      %2403 = vst [vmem:[#allocation2 + $0x2e8] sm:$0xff] %v2275
      %2404 = vst [vmem:[#allocation2 + $0x2f0] sm:$0xff] %v2276
      %2405 = vst [vmem:[#allocation2 + $0x2f8] sm:$0xff] %v2277
      %2406 = vst [vmem:[#allocation2 + $0x300] sm:$0xff] %v2278
      %2407 = vst [vmem:[#allocation2 + $0x308] sm:$0xff] %v2279
      %2408 = vst [vmem:[#allocation2 + $0x310] sm:$0xff] %v2280
      %2409 = vst [vmem:[#allocation2 + $0x318] sm:$0xff] %v2281
      %2410 = vst [vmem:[#allocation2 + $0x320] sm:$0xff] %v2282
      %2411 = vst [vmem:[#allocation2 + $0x328] sm:$0xff] %v2283
      %2412 = vst [vmem:[#allocation2 + $0x330] sm:$0xff] %v2284
      %2413 = vst [vmem:[#allocation2 + $0x338] sm:$0xff] %v2285
      %2414 = vst [vmem:[#allocation2 + $0x340] sm:$0xff] %v2286
      %2415 = vst [vmem:[#allocation2 + $0x348] sm:$0xff] %v2287
      %2416 = vst [vmem:[#allocation2 + $0x350] sm:$0xff] %v2288
      %2417 = vst [vmem:[#allocation2 + $0x358] sm:$0xff] %v2289
      %2418 = vst [vmem:[#allocation2 + $0x360] sm:$0xff] %v2290
      %2419 = vst [vmem:[#allocation2 + $0x368] sm:$0xff] %v2291
      %2420 = vst [vmem:[#allocation2 + $0x370] sm:$0xff] %v2292
      %2421 = vst [vmem:[#allocation2 + $0x378] sm:$0xff] %v2293
      %2422 = vst [vmem:[#allocation2 + $0x380] sm:$0xff] %v2294
      %2423 = vst [vmem:[#allocation2 + $0x388] sm:$0xff] %v2295
      %2424 = vst [vmem:[#allocation2 + $0x390] sm:$0xff] %v2296
      %2425 = vst [vmem:[#allocation2 + $0x398] sm:$0xff] %v2297
      %2426 = vst [vmem:[#allocation2 + $0x3a0] sm:$0xff] %v2298
      %2427 = vst [vmem:[#allocation2 + $0x3a8] sm:$0xff] %v2299
      %2428 = vst [vmem:[#allocation2 + $0x3b0] sm:$0xff] %v2300
      %2429 = vst [vmem:[#allocation2 + $0x3b8] sm:$0xff] %v2301
      %2430 = vst [vmem:[#allocation2 + $0x3c0] sm:$0xff] %v2302
      %2431 = vst [vmem:[#allocation2 + $0x3c8] sm:$0xff] %v2303
      %2432 = vst [vmem:[#allocation2 + $0x3d0] sm:$0xff] %v2304
      %2433 = vst [vmem:[#allocation2 + $0x3d8] sm:$0xff] %v2305
      %2434 = vst [vmem:[#allocation2 + $0x3e0] sm:$0xff] %v2306
      %2435 = vst [vmem:[#allocation2 + $0x3e8] sm:$0xff] %v2307
      %2436 = vst [vmem:[#allocation2 + $0x3f0] sm:$0xff] %v2308
      %2437 = vst [vmem:[#allocation2 + $0x3f8] sm:$0xff] %v2309
      // Predicated region
      $region53: #{vae_forward.2} parent=47 // pred_check
        %p2438 = pneg %p300
      $region54: #{vae_forward.2} parent=47 // pred_check_branch
        %2440 = sbr.rel (%p2438) target = $region56
      $region55: #{vae_forward.2} parent=47 // pred_region
        %v2441 = vld [vmem:[#allocation2] sm:$0xff]
        %v2442 = vld [vmem:[#allocation2 + $0x8] sm:$0xff]
        %v2443 = vld [vmem:[#allocation2 + $0x10] sm:$0xff]
        %v2444 = vld [vmem:[#allocation2 + $0x18] sm:$0xff]
        %v2445 = vld [vmem:[#allocation2 + $0x20] sm:$0xff]
        %v2446 = vld [vmem:[#allocation2 + $0x28] sm:$0xff]
        %v2447 = vld [vmem:[#allocation2 + $0x30] sm:$0xff]
        %v2448 = vld [vmem:[#allocation2 + $0x38] sm:$0xff]
        %v2449 = vld [vmem:[#allocation2 + $0x40] sm:$0xff]
        %v2450 = vld [vmem:[#allocation2 + $0x48] sm:$0xff]
        %v2451 = vld [vmem:[#allocation2 + $0x50] sm:$0xff]
        %v2452 = vld [vmem:[#allocation2 + $0x58] sm:$0xff]
        %v2453 = vld [vmem:[#allocation2 + $0x60] sm:$0xff]
        %v2454 = vld [vmem:[#allocation2 + $0x68] sm:$0xff]
        %v2455 = vld [vmem:[#allocation2 + $0x70] sm:$0xff]
        %v2456 = vld [vmem:[#allocation2 + $0x78] sm:$0xff]
        %v2457 = vld [vmem:[#allocation2 + $0x80] sm:$0xff]
        %v2458 = vld [vmem:[#allocation2 + $0x88] sm:$0xff]
        %v2459 = vld [vmem:[#allocation2 + $0x90] sm:$0xff]
        %v2460 = vld [vmem:[#allocation2 + $0x98] sm:$0xff]
        %v2461 = vld [vmem:[#allocation2 + $0xa0] sm:$0xff]
        %v2462 = vld [vmem:[#allocation2 + $0xa8] sm:$0xff]
        %v2463 = vld [vmem:[#allocation2 + $0xb0] sm:$0xff]
        %v2464 = vld [vmem:[#allocation2 + $0xb8] sm:$0xff]
        %v2465 = vld [vmem:[#allocation2 + $0xc0] sm:$0xff]
        %v2466 = vld [vmem:[#allocation2 + $0xc8] sm:$0xff]
        %v2467 = vld [vmem:[#allocation2 + $0xd0] sm:$0xff]
        %v2468 = vld [vmem:[#allocation2 + $0xd8] sm:$0xff]
        %v2469 = vld [vmem:[#allocation2 + $0xe0] sm:$0xff]
        %v2470 = vld [vmem:[#allocation2 + $0xe8] sm:$0xff]
        %v2471 = vld [vmem:[#allocation2 + $0xf0] sm:$0xff]
        %v2472 = vld [vmem:[#allocation2 + $0xf8] sm:$0xff]
        %v2473 = vld [vmem:[#allocation2 + $0x100] sm:$0xff]
        %v2474 = vld [vmem:[#allocation2 + $0x108] sm:$0xff]
        %v2475 = vld [vmem:[#allocation2 + $0x110] sm:$0xff]
        %v2476 = vld [vmem:[#allocation2 + $0x118] sm:$0xff]
        %v2477 = vld [vmem:[#allocation2 + $0x120] sm:$0xff]
        %v2478 = vld [vmem:[#allocation2 + $0x128] sm:$0xff]
        %v2479 = vld [vmem:[#allocation2 + $0x130] sm:$0xff]
        %v2480 = vld [vmem:[#allocation2 + $0x138] sm:$0xff]
        %v2481 = vld [vmem:[#allocation2 + $0x140] sm:$0xff]
        %v2482 = vld [vmem:[#allocation2 + $0x148] sm:$0xff]
        %v2483 = vld [vmem:[#allocation2 + $0x150] sm:$0xff]
        %v2484 = vld [vmem:[#allocation2 + $0x158] sm:$0xff]
        %v2485 = vld [vmem:[#allocation2 + $0x160] sm:$0xff]
        %v2486 = vld [vmem:[#allocation2 + $0x168] sm:$0xff]
        %v2487 = vld [vmem:[#allocation2 + $0x170] sm:$0xff]
        %v2488 = vld [vmem:[#allocation2 + $0x178] sm:$0xff]
        %v2489 = vld [vmem:[#allocation2 + $0x180] sm:$0xff]
        %v2490 = vld [vmem:[#allocation2 + $0x188] sm:$0xff]
        %v2491 = vld [vmem:[#allocation2 + $0x190] sm:$0xff]
        %v2492 = vld [vmem:[#allocation2 + $0x198] sm:$0xff]
        %v2493 = vld [vmem:[#allocation2 + $0x1a0] sm:$0xff]
        %v2494 = vld [vmem:[#allocation2 + $0x1a8] sm:$0xff]
        %v2495 = vld [vmem:[#allocation2 + $0x1b0] sm:$0xff]
        %v2496 = vld [vmem:[#allocation2 + $0x1b8] sm:$0xff]
        %v2497 = vld [vmem:[#allocation2 + $0x1c0] sm:$0xff]
        %v2498 = vld [vmem:[#allocation2 + $0x1c8] sm:$0xff]
        %v2499 = vld [vmem:[#allocation2 + $0x1d0] sm:$0xff]
        %v2500 = vld [vmem:[#allocation2 + $0x1d8] sm:$0xff]
        %v2501 = vld [vmem:[#allocation2 + $0x1e0] sm:$0xff]
        %v2502 = vld [vmem:[#allocation2 + $0x1e8] sm:$0xff]
        %v2503 = vld [vmem:[#allocation2 + $0x1f0] sm:$0xff]
        %v2504 = vld [vmem:[#allocation2 + $0x1f8] sm:$0xff]
        %v2505 = vld [vmem:[#allocation2 + $0x200] sm:$0xff]
        %v2506 = vld [vmem:[#allocation2 + $0x208] sm:$0xff]
        %v2507 = vld [vmem:[#allocation2 + $0x210] sm:$0xff]
        %v2508 = vld [vmem:[#allocation2 + $0x218] sm:$0xff]
        %v2509 = vld [vmem:[#allocation2 + $0x220] sm:$0xff]
        %v2510 = vld [vmem:[#allocation2 + $0x228] sm:$0xff]
        %v2511 = vld [vmem:[#allocation2 + $0x230] sm:$0xff]
        %v2512 = vld [vmem:[#allocation2 + $0x238] sm:$0xff]
        %v2513 = vld [vmem:[#allocation2 + $0x240] sm:$0xff]
        %v2514 = vld [vmem:[#allocation2 + $0x248] sm:$0xff]
        %v2515 = vld [vmem:[#allocation2 + $0x250] sm:$0xff]
        %v2516 = vld [vmem:[#allocation2 + $0x258] sm:$0xff]
        %v2517 = vld [vmem:[#allocation2 + $0x260] sm:$0xff]
        %v2518 = vld [vmem:[#allocation2 + $0x268] sm:$0xff]
        %v2519 = vld [vmem:[#allocation2 + $0x270] sm:$0xff]
        %v2520 = vld [vmem:[#allocation2 + $0x278] sm:$0xff]
        %v2521 = vld [vmem:[#allocation2 + $0x280] sm:$0xff]
        %v2522 = vld [vmem:[#allocation2 + $0x288] sm:$0xff]
        %v2523 = vld [vmem:[#allocation2 + $0x290] sm:$0xff]
        %v2524 = vld [vmem:[#allocation2 + $0x298] sm:$0xff]
        %v2525 = vld [vmem:[#allocation2 + $0x2a0] sm:$0xff]
        %v2526 = vld [vmem:[#allocation2 + $0x2a8] sm:$0xff]
        %v2527 = vld [vmem:[#allocation2 + $0x2b0] sm:$0xff]
        %v2528 = vld [vmem:[#allocation2 + $0x2b8] sm:$0xff]
        %v2529 = vld [vmem:[#allocation2 + $0x2c0] sm:$0xff]
        %v2530 = vld [vmem:[#allocation2 + $0x2c8] sm:$0xff]
        %v2531 = vld [vmem:[#allocation2 + $0x2d0] sm:$0xff]
        %v2532 = vld [vmem:[#allocation2 + $0x2d8] sm:$0xff]
        %v2533 = vld [vmem:[#allocation2 + $0x2e0] sm:$0xff]
        %v2534 = vld [vmem:[#allocation2 + $0x2e8] sm:$0xff]
        %v2535 = vld [vmem:[#allocation2 + $0x2f0] sm:$0xff]
        %v2536 = vld [vmem:[#allocation2 + $0x2f8] sm:$0xff]
        %v2537 = vld [vmem:[#allocation2 + $0x300] sm:$0xff]
        %v2538 = vld [vmem:[#allocation2 + $0x308] sm:$0xff]
        %v2539 = vld [vmem:[#allocation2 + $0x310] sm:$0xff]
        %v2540 = vld [vmem:[#allocation2 + $0x318] sm:$0xff]
        %v2541 = vld [vmem:[#allocation2 + $0x320] sm:$0xff]
        %v2542 = vld [vmem:[#allocation2 + $0x328] sm:$0xff]
        %v2543 = vld [vmem:[#allocation2 + $0x330] sm:$0xff]
        %v2544 = vld [vmem:[#allocation2 + $0x338] sm:$0xff]
        %v2545 = vld [vmem:[#allocation2 + $0x340] sm:$0xff]
        %v2546 = vld [vmem:[#allocation2 + $0x348] sm:$0xff]
        %v2547 = vld [vmem:[#allocation2 + $0x350] sm:$0xff]
        %v2548 = vld [vmem:[#allocation2 + $0x358] sm:$0xff]
        %v2549 = vld [vmem:[#allocation2 + $0x360] sm:$0xff]
        %v2550 = vld [vmem:[#allocation2 + $0x368] sm:$0xff]
        %v2551 = vld [vmem:[#allocation2 + $0x370] sm:$0xff]
        %v2552 = vld [vmem:[#allocation2 + $0x378] sm:$0xff]
        %v2553 = vld [vmem:[#allocation2 + $0x380] sm:$0xff]
        %v2554 = vld [vmem:[#allocation2 + $0x388] sm:$0xff]
        %v2555 = vld [vmem:[#allocation2 + $0x390] sm:$0xff]
        %v2556 = vld [vmem:[#allocation2 + $0x398] sm:$0xff]
        %v2557 = vld [vmem:[#allocation2 + $0x3a0] sm:$0xff]
        %v2558 = vld [vmem:[#allocation2 + $0x3a8] sm:$0xff]
        %v2559 = vld [vmem:[#allocation2 + $0x3b0] sm:$0xff]
        %v2560 = vld [vmem:[#allocation2 + $0x3b8] sm:$0xff]
        %v2561 = vld [vmem:[#allocation2 + $0x3c0] sm:$0xff]
        %v2562 = vld [vmem:[#allocation2 + $0x3c8] sm:$0xff]
        %v2563 = vld [vmem:[#allocation2 + $0x3d0] sm:$0xff]
        %v2564 = vld [vmem:[#allocation2 + $0x3d8] sm:$0xff]
        %v2565 = vld [vmem:[#allocation2 + $0x3e0] sm:$0xff]
        %v2566 = vld [vmem:[#allocation2 + $0x3e8] sm:$0xff]
        %v2567 = vld [vmem:[#allocation2 + $0x3f0] sm:$0xff]
        %v2568 = vld [vmem:[#allocation2 + $0x3f8] sm:$0xff]
        %2569 = vmax.xlane.f32.xlu0 %v2441
        %v2570 = vpop.xlane.xlu0 %2569
        %2571 = vmax.xlane.f32.xlu0 %v2442
        %v2572 = vpop.xlane.xlu0 %2571
        %2573 = vmax.xlane.f32.xlu0 %v2443
        %v2574 = vpop.xlane.xlu0 %2573
        %2575 = vmax.xlane.f32.xlu0 %v2444
        %v2576 = vpop.xlane.xlu0 %2575
        %2577 = vmax.xlane.f32.xlu0 %v2445
        %v2578 = vpop.xlane.xlu0 %2577
        %2579 = vmax.xlane.f32.xlu0 %v2446
        %v2580 = vpop.xlane.xlu0 %2579
        %2581 = vmax.xlane.f32.xlu0 %v2447
        %v2582 = vpop.xlane.xlu0 %2581
        %2583 = vmax.xlane.f32.xlu0 %v2448
        %v2584 = vpop.xlane.xlu0 %2583
        %2585 = vmax.xlane.f32.xlu0 %v2449
        %v2586 = vpop.xlane.xlu0 %2585
        %2587 = vmax.xlane.f32.xlu0 %v2450
        %v2588 = vpop.xlane.xlu0 %2587
        %2589 = vmax.xlane.f32.xlu0 %v2451
        %v2590 = vpop.xlane.xlu0 %2589
        %2591 = vmax.xlane.f32.xlu0 %v2452
        %v2592 = vpop.xlane.xlu0 %2591
        %2593 = vmax.xlane.f32.xlu0 %v2453
        %v2594 = vpop.xlane.xlu0 %2593
        %2595 = vmax.xlane.f32.xlu0 %v2454
        %v2596 = vpop.xlane.xlu0 %2595
        %2597 = vmax.xlane.f32.xlu0 %v2455
        %v2598 = vpop.xlane.xlu0 %2597
        %2599 = vmax.xlane.f32.xlu0 %v2456
        %v2600 = vpop.xlane.xlu0 %2599
        %2601 = vmax.xlane.f32.xlu0 %v2457
        %v2602 = vpop.xlane.xlu0 %2601
        %2603 = vmax.xlane.f32.xlu0 %v2458
        %v2604 = vpop.xlane.xlu0 %2603
        %2605 = vmax.xlane.f32.xlu0 %v2459
        %v2606 = vpop.xlane.xlu0 %2605
        %2607 = vmax.xlane.f32.xlu0 %v2460
        %v2608 = vpop.xlane.xlu0 %2607
        %2609 = vmax.xlane.f32.xlu0 %v2461
        %v2610 = vpop.xlane.xlu0 %2609
        %2611 = vmax.xlane.f32.xlu0 %v2462
        %v2612 = vpop.xlane.xlu0 %2611
        %2613 = vmax.xlane.f32.xlu0 %v2463
        %v2614 = vpop.xlane.xlu0 %2613
        %2615 = vmax.xlane.f32.xlu0 %v2464
        %v2616 = vpop.xlane.xlu0 %2615
        %2617 = vmax.xlane.f32.xlu0 %v2465
        %v2618 = vpop.xlane.xlu0 %2617
        %2619 = vmax.xlane.f32.xlu0 %v2466
        %v2620 = vpop.xlane.xlu0 %2619
        %2621 = vmax.xlane.f32.xlu0 %v2467
        %v2622 = vpop.xlane.xlu0 %2621
        %2623 = vmax.xlane.f32.xlu0 %v2468
        %v2624 = vpop.xlane.xlu0 %2623
        %2625 = vmax.xlane.f32.xlu0 %v2469
        %v2626 = vpop.xlane.xlu0 %2625
        %2627 = vmax.xlane.f32.xlu0 %v2470
        %v2628 = vpop.xlane.xlu0 %2627
        %2629 = vmax.xlane.f32.xlu0 %v2471
        %v2630 = vpop.xlane.xlu0 %2629
        %2631 = vmax.xlane.f32.xlu0 %v2472
        %v2632 = vpop.xlane.xlu0 %2631
        %2633 = vmax.xlane.f32.xlu0 %v2473
        %v2634 = vpop.xlane.xlu0 %2633
        %2635 = vmax.xlane.f32.xlu0 %v2474
        %v2636 = vpop.xlane.xlu0 %2635
        %2637 = vmax.xlane.f32.xlu0 %v2475
        %v2638 = vpop.xlane.xlu0 %2637
        %2639 = vmax.xlane.f32.xlu0 %v2476
        %v2640 = vpop.xlane.xlu0 %2639
        %2641 = vmax.xlane.f32.xlu0 %v2477
        %v2642 = vpop.xlane.xlu0 %2641
        %2643 = vmax.xlane.f32.xlu0 %v2478
        %v2644 = vpop.xlane.xlu0 %2643
        %2645 = vmax.xlane.f32.xlu0 %v2479
        %v2646 = vpop.xlane.xlu0 %2645
        %2647 = vmax.xlane.f32.xlu0 %v2480
        %v2648 = vpop.xlane.xlu0 %2647
        %2649 = vmax.xlane.f32.xlu0 %v2481
        %v2650 = vpop.xlane.xlu0 %2649
        %2651 = vmax.xlane.f32.xlu0 %v2482
        %v2652 = vpop.xlane.xlu0 %2651
        %2653 = vmax.xlane.f32.xlu0 %v2483
        %v2654 = vpop.xlane.xlu0 %2653
        %2655 = vmax.xlane.f32.xlu0 %v2484
        %v2656 = vpop.xlane.xlu0 %2655
        %2657 = vmax.xlane.f32.xlu0 %v2485
        %v2658 = vpop.xlane.xlu0 %2657
        %2659 = vmax.xlane.f32.xlu0 %v2486
        %v2660 = vpop.xlane.xlu0 %2659
        %2661 = vmax.xlane.f32.xlu0 %v2487
        %v2662 = vpop.xlane.xlu0 %2661
        %2663 = vmax.xlane.f32.xlu0 %v2488
        %v2664 = vpop.xlane.xlu0 %2663
        %2665 = vmax.xlane.f32.xlu0 %v2489
        %v2666 = vpop.xlane.xlu0 %2665
        %2667 = vmax.xlane.f32.xlu0 %v2490
        %v2668 = vpop.xlane.xlu0 %2667
        %2669 = vmax.xlane.f32.xlu0 %v2491
        %v2670 = vpop.xlane.xlu0 %2669
        %2671 = vmax.xlane.f32.xlu0 %v2492
        %v2672 = vpop.xlane.xlu0 %2671
        %2673 = vmax.xlane.f32.xlu0 %v2493
        %v2674 = vpop.xlane.xlu0 %2673
        %2675 = vmax.xlane.f32.xlu0 %v2494
        %v2676 = vpop.xlane.xlu0 %2675
        %2677 = vmax.xlane.f32.xlu0 %v2495
        %v2678 = vpop.xlane.xlu0 %2677
        %2679 = vmax.xlane.f32.xlu0 %v2496
        %v2680 = vpop.xlane.xlu0 %2679
        %2681 = vmax.xlane.f32.xlu0 %v2497
        %v2682 = vpop.xlane.xlu0 %2681
        %2683 = vmax.xlane.f32.xlu0 %v2498
        %v2684 = vpop.xlane.xlu0 %2683
        %2685 = vmax.xlane.f32.xlu0 %v2499
        %v2686 = vpop.xlane.xlu0 %2685
        %2687 = vmax.xlane.f32.xlu0 %v2500
        %v2688 = vpop.xlane.xlu0 %2687
        %2689 = vmax.xlane.f32.xlu0 %v2501
        %v2690 = vpop.xlane.xlu0 %2689
        %2691 = vmax.xlane.f32.xlu0 %v2502
        %v2692 = vpop.xlane.xlu0 %2691
        %2693 = vmax.xlane.f32.xlu0 %v2503
        %v2694 = vpop.xlane.xlu0 %2693
        %2695 = vmax.xlane.f32.xlu0 %v2504
        %v2696 = vpop.xlane.xlu0 %2695
        %2697 = vmax.xlane.f32.xlu0 %v2505
        %v2698 = vpop.xlane.xlu0 %2697
        %2699 = vmax.xlane.f32.xlu0 %v2506
        %v2700 = vpop.xlane.xlu0 %2699
        %2701 = vmax.xlane.f32.xlu0 %v2507
        %v2702 = vpop.xlane.xlu0 %2701
        %2703 = vmax.xlane.f32.xlu0 %v2508
        %v2704 = vpop.xlane.xlu0 %2703
        %2705 = vmax.xlane.f32.xlu0 %v2509
        %v2706 = vpop.xlane.xlu0 %2705
        %2707 = vmax.xlane.f32.xlu0 %v2510
        %v2708 = vpop.xlane.xlu0 %2707
        %2709 = vmax.xlane.f32.xlu0 %v2511
        %v2710 = vpop.xlane.xlu0 %2709
        %2711 = vmax.xlane.f32.xlu0 %v2512
        %v2712 = vpop.xlane.xlu0 %2711
        %2713 = vmax.xlane.f32.xlu0 %v2513
        %v2714 = vpop.xlane.xlu0 %2713
        %2715 = vmax.xlane.f32.xlu0 %v2514
        %v2716 = vpop.xlane.xlu0 %2715
        %2717 = vmax.xlane.f32.xlu0 %v2515
        %v2718 = vpop.xlane.xlu0 %2717
        %2719 = vmax.xlane.f32.xlu0 %v2516
        %v2720 = vpop.xlane.xlu0 %2719
        %2721 = vmax.xlane.f32.xlu0 %v2517
        %v2722 = vpop.xlane.xlu0 %2721
        %2723 = vmax.xlane.f32.xlu0 %v2518
        %v2724 = vpop.xlane.xlu0 %2723
        %2725 = vmax.xlane.f32.xlu0 %v2519
        %v2726 = vpop.xlane.xlu0 %2725
        %2727 = vmax.xlane.f32.xlu0 %v2520
        %v2728 = vpop.xlane.xlu0 %2727
        %2729 = vmax.xlane.f32.xlu0 %v2521
        %v2730 = vpop.xlane.xlu0 %2729
        %2731 = vmax.xlane.f32.xlu0 %v2522
        %v2732 = vpop.xlane.xlu0 %2731
        %2733 = vmax.xlane.f32.xlu0 %v2523
        %v2734 = vpop.xlane.xlu0 %2733
        %2735 = vmax.xlane.f32.xlu0 %v2524
        %v2736 = vpop.xlane.xlu0 %2735
        %2737 = vmax.xlane.f32.xlu0 %v2525
        %v2738 = vpop.xlane.xlu0 %2737
        %2739 = vmax.xlane.f32.xlu0 %v2526
        %v2740 = vpop.xlane.xlu0 %2739
        %2741 = vmax.xlane.f32.xlu0 %v2527
        %v2742 = vpop.xlane.xlu0 %2741
        %2743 = vmax.xlane.f32.xlu0 %v2528
        %v2744 = vpop.xlane.xlu0 %2743
        %2745 = vmax.xlane.f32.xlu0 %v2529
        %v2746 = vpop.xlane.xlu0 %2745
        %2747 = vmax.xlane.f32.xlu0 %v2530
        %v2748 = vpop.xlane.xlu0 %2747
        %2749 = vmax.xlane.f32.xlu0 %v2531
        %v2750 = vpop.xlane.xlu0 %2749
        %2751 = vmax.xlane.f32.xlu0 %v2532
        %v2752 = vpop.xlane.xlu0 %2751
        %2753 = vmax.xlane.f32.xlu0 %v2533
        %v2754 = vpop.xlane.xlu0 %2753
        %2755 = vmax.xlane.f32.xlu0 %v2534
        %v2756 = vpop.xlane.xlu0 %2755
        %2757 = vmax.xlane.f32.xlu0 %v2535
        %v2758 = vpop.xlane.xlu0 %2757
        %2759 = vmax.xlane.f32.xlu0 %v2536
        %v2760 = vpop.xlane.xlu0 %2759
        %2761 = vmax.xlane.f32.xlu0 %v2537
        %v2762 = vpop.xlane.xlu0 %2761
        %2763 = vmax.xlane.f32.xlu0 %v2538
        %v2764 = vpop.xlane.xlu0 %2763
        %2765 = vmax.xlane.f32.xlu0 %v2539
        %v2766 = vpop.xlane.xlu0 %2765
        %2767 = vmax.xlane.f32.xlu0 %v2540
        %v2768 = vpop.xlane.xlu0 %2767
        %2769 = vmax.xlane.f32.xlu0 %v2541
        %v2770 = vpop.xlane.xlu0 %2769
        %2771 = vmax.xlane.f32.xlu0 %v2542
        %v2772 = vpop.xlane.xlu0 %2771
        %2773 = vmax.xlane.f32.xlu0 %v2543
        %v2774 = vpop.xlane.xlu0 %2773
        %2775 = vmax.xlane.f32.xlu0 %v2544
        %v2776 = vpop.xlane.xlu0 %2775
        %2777 = vmax.xlane.f32.xlu0 %v2545
        %v2778 = vpop.xlane.xlu0 %2777
        %2779 = vmax.xlane.f32.xlu0 %v2546
        %v2780 = vpop.xlane.xlu0 %2779
        %2781 = vmax.xlane.f32.xlu0 %v2547
        %v2782 = vpop.xlane.xlu0 %2781
        %2783 = vmax.xlane.f32.xlu0 %v2548
        %v2784 = vpop.xlane.xlu0 %2783
        %2785 = vmax.xlane.f32.xlu0 %v2549
        %v2786 = vpop.xlane.xlu0 %2785
        %2787 = vmax.xlane.f32.xlu0 %v2550
        %v2788 = vpop.xlane.xlu0 %2787
        %2789 = vmax.xlane.f32.xlu0 %v2551
        %v2790 = vpop.xlane.xlu0 %2789
        %2791 = vmax.xlane.f32.xlu0 %v2552
        %v2792 = vpop.xlane.xlu0 %2791
        %2793 = vmax.xlane.f32.xlu0 %v2553
        %v2794 = vpop.xlane.xlu0 %2793
        %2795 = vmax.xlane.f32.xlu0 %v2554
        %v2796 = vpop.xlane.xlu0 %2795
        %2797 = vmax.xlane.f32.xlu0 %v2555
        %v2798 = vpop.xlane.xlu0 %2797
        %2799 = vmax.xlane.f32.xlu0 %v2556
        %v2800 = vpop.xlane.xlu0 %2799
        %2801 = vmax.xlane.f32.xlu0 %v2557
        %v2802 = vpop.xlane.xlu0 %2801
        %2803 = vmax.xlane.f32.xlu0 %v2558
        %v2804 = vpop.xlane.xlu0 %2803
        %2805 = vmax.xlane.f32.xlu0 %v2559
        %v2806 = vpop.xlane.xlu0 %2805
        %2807 = vmax.xlane.f32.xlu0 %v2560
        %v2808 = vpop.xlane.xlu0 %2807
        %2809 = vmax.xlane.f32.xlu0 %v2561
        %v2810 = vpop.xlane.xlu0 %2809
        %2811 = vmax.xlane.f32.xlu0 %v2562
        %v2812 = vpop.xlane.xlu0 %2811
        %2813 = vmax.xlane.f32.xlu0 %v2563
        %v2814 = vpop.xlane.xlu0 %2813
        %2815 = vmax.xlane.f32.xlu0 %v2564
        %v2816 = vpop.xlane.xlu0 %2815
        %2817 = vmax.xlane.f32.xlu0 %v2565
        %v2818 = vpop.xlane.xlu0 %2817
        %2819 = vmax.xlane.f32.xlu0 %v2566
        %v2820 = vpop.xlane.xlu0 %2819
        %2821 = vmax.xlane.f32.xlu0 %v2567
        %v2822 = vpop.xlane.xlu0 %2821
        %2823 = vmax.xlane.f32.xlu0 %v2568
        %v2824 = vpop.xlane.xlu0 %2823
        %v2825 = vld [vmem:[%s6] sm:$0xff]
        %v2826 = vld [vmem:[%s6 + $0x8] sm:$0xff]
        %v2827 = vld [vmem:[%s6 + $0x10] sm:$0xff]
        %v2828 = vld [vmem:[%s6 + $0x18] sm:$0xff]
        %v2829 = vld [vmem:[%s6 + $0x20] sm:$0xff]
        %v2830 = vld [vmem:[%s6 + $0x28] sm:$0xff]
        %v2831 = vld [vmem:[%s6 + $0x30] sm:$0xff]
        %v2832 = vld [vmem:[%s6 + $0x38] sm:$0xff]
        %v2833 = vld [vmem:[%s6 + $0x40] sm:$0xff]
        %v2834 = vld [vmem:[%s6 + $0x48] sm:$0xff]
        %v2835 = vld [vmem:[%s6 + $0x50] sm:$0xff]
        %v2836 = vld [vmem:[%s6 + $0x58] sm:$0xff]
        %v2837 = vld [vmem:[%s6 + $0x60] sm:$0xff]
        %v2838 = vld [vmem:[%s6 + $0x68] sm:$0xff]
        %v2839 = vld [vmem:[%s6 + $0x70] sm:$0xff]
        %v2840 = vld [vmem:[%s6 + $0x78] sm:$0xff]
        %v2841 = vld [vmem:[%s6 + $0x80] sm:$0xff]
        %v2842 = vld [vmem:[%s6 + $0x88] sm:$0xff]
        %v2843 = vld [vmem:[%s6 + $0x90] sm:$0xff]
        %v2844 = vld [vmem:[%s6 + $0x98] sm:$0xff]
        %v2845 = vld [vmem:[%s6 + $0xa0] sm:$0xff]
        %v2846 = vld [vmem:[%s6 + $0xa8] sm:$0xff]
        %v2847 = vld [vmem:[%s6 + $0xb0] sm:$0xff]
        %v2848 = vld [vmem:[%s6 + $0xb8] sm:$0xff]
        %v2849 = vld [vmem:[%s6 + $0xc0] sm:$0xff]
        %v2850 = vld [vmem:[%s6 + $0xc8] sm:$0xff]
        %v2851 = vld [vmem:[%s6 + $0xd0] sm:$0xff]
        %v2852 = vld [vmem:[%s6 + $0xd8] sm:$0xff]
        %v2853 = vld [vmem:[%s6 + $0xe0] sm:$0xff]
        %v2854 = vld [vmem:[%s6 + $0xe8] sm:$0xff]
        %v2855 = vld [vmem:[%s6 + $0xf0] sm:$0xff]
        %v2856 = vld [vmem:[%s6 + $0xf8] sm:$0xff]
        %v2857 = vld [vmem:[%s6 + $0x100] sm:$0xff]
        %v2858 = vld [vmem:[%s6 + $0x108] sm:$0xff]
        %v2859 = vld [vmem:[%s6 + $0x110] sm:$0xff]
        %v2860 = vld [vmem:[%s6 + $0x118] sm:$0xff]
        %v2861 = vld [vmem:[%s6 + $0x120] sm:$0xff]
        %v2862 = vld [vmem:[%s6 + $0x128] sm:$0xff]
        %v2863 = vld [vmem:[%s6 + $0x130] sm:$0xff]
        %v2864 = vld [vmem:[%s6 + $0x138] sm:$0xff]
        %v2865 = vld [vmem:[%s6 + $0x140] sm:$0xff]
        %v2866 = vld [vmem:[%s6 + $0x148] sm:$0xff]
        %v2867 = vld [vmem:[%s6 + $0x150] sm:$0xff]
        %v2868 = vld [vmem:[%s6 + $0x158] sm:$0xff]
        %v2869 = vld [vmem:[%s6 + $0x160] sm:$0xff]
        %v2870 = vld [vmem:[%s6 + $0x168] sm:$0xff]
        %v2871 = vld [vmem:[%s6 + $0x170] sm:$0xff]
        %v2872 = vld [vmem:[%s6 + $0x178] sm:$0xff]
        %v2873 = vld [vmem:[%s6 + $0x180] sm:$0xff]
        %v2874 = vld [vmem:[%s6 + $0x188] sm:$0xff]
        %v2875 = vld [vmem:[%s6 + $0x190] sm:$0xff]
        %v2876 = vld [vmem:[%s6 + $0x198] sm:$0xff]
        %v2877 = vld [vmem:[%s6 + $0x1a0] sm:$0xff]
        %v2878 = vld [vmem:[%s6 + $0x1a8] sm:$0xff]
        %v2879 = vld [vmem:[%s6 + $0x1b0] sm:$0xff]
        %v2880 = vld [vmem:[%s6 + $0x1b8] sm:$0xff]
        %v2881 = vld [vmem:[%s6 + $0x1c0] sm:$0xff]
        %v2882 = vld [vmem:[%s6 + $0x1c8] sm:$0xff]
        %v2883 = vld [vmem:[%s6 + $0x1d0] sm:$0xff]
        %v2884 = vld [vmem:[%s6 + $0x1d8] sm:$0xff]
        %v2885 = vld [vmem:[%s6 + $0x1e0] sm:$0xff]
        %v2886 = vld [vmem:[%s6 + $0x1e8] sm:$0xff]
        %v2887 = vld [vmem:[%s6 + $0x1f0] sm:$0xff]
        %v2888 = vld [vmem:[%s6 + $0x1f8] sm:$0xff]
        %v2889 = vld [vmem:[%s6 + $0x200] sm:$0xff]
        %v2890 = vld [vmem:[%s6 + $0x208] sm:$0xff]
        %v2891 = vld [vmem:[%s6 + $0x210] sm:$0xff]
        %v2892 = vld [vmem:[%s6 + $0x218] sm:$0xff]
        %v2893 = vld [vmem:[%s6 + $0x220] sm:$0xff]
        %v2894 = vld [vmem:[%s6 + $0x228] sm:$0xff]
        %v2895 = vld [vmem:[%s6 + $0x230] sm:$0xff]
        %v2896 = vld [vmem:[%s6 + $0x238] sm:$0xff]
        %v2897 = vld [vmem:[%s6 + $0x240] sm:$0xff]
        %v2898 = vld [vmem:[%s6 + $0x248] sm:$0xff]
        %v2899 = vld [vmem:[%s6 + $0x250] sm:$0xff]
        %v2900 = vld [vmem:[%s6 + $0x258] sm:$0xff]
        %v2901 = vld [vmem:[%s6 + $0x260] sm:$0xff]
        %v2902 = vld [vmem:[%s6 + $0x268] sm:$0xff]
        %v2903 = vld [vmem:[%s6 + $0x270] sm:$0xff]
        %v2904 = vld [vmem:[%s6 + $0x278] sm:$0xff]
        %v2905 = vld [vmem:[%s6 + $0x280] sm:$0xff]
        %v2906 = vld [vmem:[%s6 + $0x288] sm:$0xff]
        %v2907 = vld [vmem:[%s6 + $0x290] sm:$0xff]
        %v2908 = vld [vmem:[%s6 + $0x298] sm:$0xff]
        %v2909 = vld [vmem:[%s6 + $0x2a0] sm:$0xff]
        %v2910 = vld [vmem:[%s6 + $0x2a8] sm:$0xff]
        %v2911 = vld [vmem:[%s6 + $0x2b0] sm:$0xff]
        %v2912 = vld [vmem:[%s6 + $0x2b8] sm:$0xff]
        %v2913 = vld [vmem:[%s6 + $0x2c0] sm:$0xff]
        %v2914 = vld [vmem:[%s6 + $0x2c8] sm:$0xff]
        %v2915 = vld [vmem:[%s6 + $0x2d0] sm:$0xff]
        %v2916 = vld [vmem:[%s6 + $0x2d8] sm:$0xff]
        %v2917 = vld [vmem:[%s6 + $0x2e0] sm:$0xff]
        %v2918 = vld [vmem:[%s6 + $0x2e8] sm:$0xff]
        %v2919 = vld [vmem:[%s6 + $0x2f0] sm:$0xff]
        %v2920 = vld [vmem:[%s6 + $0x2f8] sm:$0xff]
        %v2921 = vld [vmem:[%s6 + $0x300] sm:$0xff]
        %v2922 = vld [vmem:[%s6 + $0x308] sm:$0xff]
        %v2923 = vld [vmem:[%s6 + $0x310] sm:$0xff]
        %v2924 = vld [vmem:[%s6 + $0x318] sm:$0xff]
        %v2925 = vld [vmem:[%s6 + $0x320] sm:$0xff]
        %v2926 = vld [vmem:[%s6 + $0x328] sm:$0xff]
        %v2927 = vld [vmem:[%s6 + $0x330] sm:$0xff]
        %v2928 = vld [vmem:[%s6 + $0x338] sm:$0xff]
        %v2929 = vld [vmem:[%s6 + $0x340] sm:$0xff]
        %v2930 = vld [vmem:[%s6 + $0x348] sm:$0xff]
        %v2931 = vld [vmem:[%s6 + $0x350] sm:$0xff]
        %v2932 = vld [vmem:[%s6 + $0x358] sm:$0xff]
        %v2933 = vld [vmem:[%s6 + $0x360] sm:$0xff]
        %v2934 = vld [vmem:[%s6 + $0x368] sm:$0xff]
        %v2935 = vld [vmem:[%s6 + $0x370] sm:$0xff]
        %v2936 = vld [vmem:[%s6 + $0x378] sm:$0xff]
        %v2937 = vld [vmem:[%s6 + $0x380] sm:$0xff]
        %v2938 = vld [vmem:[%s6 + $0x388] sm:$0xff]
        %v2939 = vld [vmem:[%s6 + $0x390] sm:$0xff]
        %v2940 = vld [vmem:[%s6 + $0x398] sm:$0xff]
        %v2941 = vld [vmem:[%s6 + $0x3a0] sm:$0xff]
        %v2942 = vld [vmem:[%s6 + $0x3a8] sm:$0xff]
        %v2943 = vld [vmem:[%s6 + $0x3b0] sm:$0xff]
        %v2944 = vld [vmem:[%s6 + $0x3b8] sm:$0xff]
        %v2945 = vld [vmem:[%s6 + $0x3c0] sm:$0xff]
        %v2946 = vld [vmem:[%s6 + $0x3c8] sm:$0xff]
        %v2947 = vld [vmem:[%s6 + $0x3d0] sm:$0xff]
        %v2948 = vld [vmem:[%s6 + $0x3d8] sm:$0xff]
        %v2949 = vld [vmem:[%s6 + $0x3e0] sm:$0xff]
        %v2950 = vld [vmem:[%s6 + $0x3e8] sm:$0xff]
        %v2951 = vld [vmem:[%s6 + $0x3f0] sm:$0xff]
        %v2952 = vld [vmem:[%s6 + $0x3f8] sm:$0xff]
        %v2953 = vadd.f32 %v2570, %v2825
        %v2954 = vadd.f32 %v2572, %v2826
        %v2955 = vadd.f32 %v2574, %v2827
        %v2956 = vadd.f32 %v2576, %v2828
        %v2957 = vadd.f32 %v2578, %v2829
        %v2958 = vadd.f32 %v2580, %v2830
        %v2959 = vadd.f32 %v2582, %v2831
        %v2960 = vadd.f32 %v2584, %v2832
        %v2961 = vadd.f32 %v2586, %v2833
        %v2962 = vadd.f32 %v2588, %v2834
        %v2963 = vadd.f32 %v2590, %v2835
        %v2964 = vadd.f32 %v2592, %v2836
        %v2965 = vadd.f32 %v2594, %v2837
        %v2966 = vadd.f32 %v2596, %v2838
        %v2967 = vadd.f32 %v2598, %v2839
        %v2968 = vadd.f32 %v2600, %v2840
        %v2969 = vadd.f32 %v2602, %v2841
        %v2970 = vadd.f32 %v2604, %v2842
        %v2971 = vadd.f32 %v2606, %v2843
        %v2972 = vadd.f32 %v2608, %v2844
        %v2973 = vadd.f32 %v2610, %v2845
        %v2974 = vadd.f32 %v2612, %v2846
        %v2975 = vadd.f32 %v2614, %v2847
        %v2976 = vadd.f32 %v2616, %v2848
        %v2977 = vadd.f32 %v2618, %v2849
        %v2978 = vadd.f32 %v2620, %v2850
        %v2979 = vadd.f32 %v2622, %v2851
        %v2980 = vadd.f32 %v2624, %v2852
        %v2981 = vadd.f32 %v2626, %v2853
        %v2982 = vadd.f32 %v2628, %v2854
        %v2983 = vadd.f32 %v2630, %v2855
        %v2984 = vadd.f32 %v2632, %v2856
        %v2985 = vadd.f32 %v2634, %v2857
        %v2986 = vadd.f32 %v2636, %v2858
        %v2987 = vadd.f32 %v2638, %v2859
        %v2988 = vadd.f32 %v2640, %v2860
        %v2989 = vadd.f32 %v2642, %v2861
        %v2990 = vadd.f32 %v2644, %v2862
        %v2991 = vadd.f32 %v2646, %v2863
        %v2992 = vadd.f32 %v2648, %v2864
        %v2993 = vadd.f32 %v2650, %v2865
        %v2994 = vadd.f32 %v2652, %v2866
        %v2995 = vadd.f32 %v2654, %v2867
        %v2996 = vadd.f32 %v2656, %v2868
        %v2997 = vadd.f32 %v2658, %v2869
        %v2998 = vadd.f32 %v2660, %v2870
        %v2999 = vadd.f32 %v2662, %v2871
        %v3000 = vadd.f32 %v2664, %v2872
        %v3001 = vadd.f32 %v2666, %v2873
        %v3002 = vadd.f32 %v2668, %v2874
        %v3003 = vadd.f32 %v2670, %v2875
        %v3004 = vadd.f32 %v2672, %v2876
        %v3005 = vadd.f32 %v2674, %v2877
        %v3006 = vadd.f32 %v2676, %v2878
        %v3007 = vadd.f32 %v2678, %v2879
        %v3008 = vadd.f32 %v2680, %v2880
        %v3009 = vadd.f32 %v2682, %v2881
        %v3010 = vadd.f32 %v2684, %v2882
        %v3011 = vadd.f32 %v2686, %v2883
        %v3012 = vadd.f32 %v2688, %v2884
        %v3013 = vadd.f32 %v2690, %v2885
        %v3014 = vadd.f32 %v2692, %v2886
        %v3015 = vadd.f32 %v2694, %v2887
        %v3016 = vadd.f32 %v2696, %v2888
        %v3017 = vadd.f32 %v2698, %v2889
        %v3018 = vadd.f32 %v2700, %v2890
        %v3019 = vadd.f32 %v2702, %v2891
        %v3020 = vadd.f32 %v2704, %v2892
        %v3021 = vadd.f32 %v2706, %v2893
        %v3022 = vadd.f32 %v2708, %v2894
        %v3023 = vadd.f32 %v2710, %v2895
        %v3024 = vadd.f32 %v2712, %v2896
        %v3025 = vadd.f32 %v2714, %v2897
        %v3026 = vadd.f32 %v2716, %v2898
        %v3027 = vadd.f32 %v2718, %v2899
        %v3028 = vadd.f32 %v2720, %v2900
        %v3029 = vadd.f32 %v2722, %v2901
        %v3030 = vadd.f32 %v2724, %v2902
        %v3031 = vadd.f32 %v2726, %v2903
        %v3032 = vadd.f32 %v2728, %v2904
        %v3033 = vadd.f32 %v2730, %v2905
        %v3034 = vadd.f32 %v2732, %v2906
        %v3035 = vadd.f32 %v2734, %v2907
        %v3036 = vadd.f32 %v2736, %v2908
        %v3037 = vadd.f32 %v2738, %v2909
        %v3038 = vadd.f32 %v2740, %v2910
        %v3039 = vadd.f32 %v2742, %v2911
        %v3040 = vadd.f32 %v2744, %v2912
        %v3041 = vadd.f32 %v2746, %v2913
        %v3042 = vadd.f32 %v2748, %v2914
        %v3043 = vadd.f32 %v2750, %v2915
        %v3044 = vadd.f32 %v2752, %v2916
        %v3045 = vadd.f32 %v2754, %v2917
        %v3046 = vadd.f32 %v2756, %v2918
        %v3047 = vadd.f32 %v2758, %v2919
        %v3048 = vadd.f32 %v2760, %v2920
        %v3049 = vadd.f32 %v2762, %v2921
        %v3050 = vadd.f32 %v2764, %v2922
        %v3051 = vadd.f32 %v2766, %v2923
        %v3052 = vadd.f32 %v2768, %v2924
        %v3053 = vadd.f32 %v2770, %v2925
        %v3054 = vadd.f32 %v2772, %v2926
        %v3055 = vadd.f32 %v2774, %v2927
        %v3056 = vadd.f32 %v2776, %v2928
        %v3057 = vadd.f32 %v2778, %v2929
        %v3058 = vadd.f32 %v2780, %v2930
        %v3059 = vadd.f32 %v2782, %v2931
        %v3060 = vadd.f32 %v2784, %v2932
        %v3061 = vadd.f32 %v2786, %v2933
        %v3062 = vadd.f32 %v2788, %v2934
        %v3063 = vadd.f32 %v2790, %v2935
        %v3064 = vadd.f32 %v2792, %v2936
        %v3065 = vadd.f32 %v2794, %v2937
        %v3066 = vadd.f32 %v2796, %v2938
        %v3067 = vadd.f32 %v2798, %v2939
        %v3068 = vadd.f32 %v2800, %v2940
        %v3069 = vadd.f32 %v2802, %v2941
        %v3070 = vadd.f32 %v2804, %v2942
        %v3071 = vadd.f32 %v2806, %v2943
        %v3072 = vadd.f32 %v2808, %v2944
        %v3073 = vadd.f32 %v2810, %v2945
        %v3074 = vadd.f32 %v2812, %v2946
        %v3075 = vadd.f32 %v2814, %v2947
        %v3076 = vadd.f32 %v2816, %v2948
        %v3077 = vadd.f32 %v2818, %v2949
        %v3078 = vadd.f32 %v2820, %v2950
        %v3079 = vadd.f32 %v2822, %v2951
        %v3080 = vadd.f32 %v2824, %v2952
        %vm3081 = vcmask 7168
        %3082 = vst.msk [vmem:[%s298] sm:$0xff] %vm3081, %v2953
        %3083 = vst.msk [vmem:[%s298 + $0x8] sm:$0xff] %vm3081, %v2954
        %3084 = vst.msk [vmem:[%s298 + $0x10] sm:$0xff] %vm3081, %v2955
        %3085 = vst.msk [vmem:[%s298 + $0x18] sm:$0xff] %vm3081, %v2956
        %3086 = vst.msk [vmem:[%s298 + $0x20] sm:$0xff] %vm3081, %v2957
        %3087 = vst.msk [vmem:[%s298 + $0x28] sm:$0xff] %vm3081, %v2958
        %3088 = vst.msk [vmem:[%s298 + $0x30] sm:$0xff] %vm3081, %v2959
        %3089 = vst.msk [vmem:[%s298 + $0x38] sm:$0xff] %vm3081, %v2960
        %3090 = vst.msk [vmem:[%s298 + $0x40] sm:$0xff] %vm3081, %v2961
        %3091 = vst.msk [vmem:[%s298 + $0x48] sm:$0xff] %vm3081, %v2962
        %3092 = vst.msk [vmem:[%s298 + $0x50] sm:$0xff] %vm3081, %v2963
        %3093 = vst.msk [vmem:[%s298 + $0x58] sm:$0xff] %vm3081, %v2964
        %3094 = vst.msk [vmem:[%s298 + $0x60] sm:$0xff] %vm3081, %v2965
        %3095 = vst.msk [vmem:[%s298 + $0x68] sm:$0xff] %vm3081, %v2966
        %3096 = vst.msk [vmem:[%s298 + $0x70] sm:$0xff] %vm3081, %v2967
        %3097 = vst.msk [vmem:[%s298 + $0x78] sm:$0xff] %vm3081, %v2968
        %3098 = vst.msk [vmem:[%s298 + $0x80] sm:$0xff] %vm3081, %v2969
        %3099 = vst.msk [vmem:[%s298 + $0x88] sm:$0xff] %vm3081, %v2970
        %3100 = vst.msk [vmem:[%s298 + $0x90] sm:$0xff] %vm3081, %v2971
        %3101 = vst.msk [vmem:[%s298 + $0x98] sm:$0xff] %vm3081, %v2972
        %3102 = vst.msk [vmem:[%s298 + $0xa0] sm:$0xff] %vm3081, %v2973
        %3103 = vst.msk [vmem:[%s298 + $0xa8] sm:$0xff] %vm3081, %v2974
        %3104 = vst.msk [vmem:[%s298 + $0xb0] sm:$0xff] %vm3081, %v2975
        %3105 = vst.msk [vmem:[%s298 + $0xb8] sm:$0xff] %vm3081, %v2976
        %3106 = vst.msk [vmem:[%s298 + $0xc0] sm:$0xff] %vm3081, %v2977
        %3107 = vst.msk [vmem:[%s298 + $0xc8] sm:$0xff] %vm3081, %v2978
        %3108 = vst.msk [vmem:[%s298 + $0xd0] sm:$0xff] %vm3081, %v2979
        %3109 = vst.msk [vmem:[%s298 + $0xd8] sm:$0xff] %vm3081, %v2980
        %3110 = vst.msk [vmem:[%s298 + $0xe0] sm:$0xff] %vm3081, %v2981
        %3111 = vst.msk [vmem:[%s298 + $0xe8] sm:$0xff] %vm3081, %v2982
        %3112 = vst.msk [vmem:[%s298 + $0xf0] sm:$0xff] %vm3081, %v2983
        %3113 = vst.msk [vmem:[%s298 + $0xf8] sm:$0xff] %vm3081, %v2984
        %3114 = vst.msk [vmem:[%s298 + $0x100] sm:$0xff] %vm3081, %v2985
        %3115 = vst.msk [vmem:[%s298 + $0x108] sm:$0xff] %vm3081, %v2986
        %3116 = vst.msk [vmem:[%s298 + $0x110] sm:$0xff] %vm3081, %v2987
        %3117 = vst.msk [vmem:[%s298 + $0x118] sm:$0xff] %vm3081, %v2988
        %3118 = vst.msk [vmem:[%s298 + $0x120] sm:$0xff] %vm3081, %v2989
        %3119 = vst.msk [vmem:[%s298 + $0x128] sm:$0xff] %vm3081, %v2990
        %3120 = vst.msk [vmem:[%s298 + $0x130] sm:$0xff] %vm3081, %v2991
        %3121 = vst.msk [vmem:[%s298 + $0x138] sm:$0xff] %vm3081, %v2992
        %3122 = vst.msk [vmem:[%s298 + $0x140] sm:$0xff] %vm3081, %v2993
        %3123 = vst.msk [vmem:[%s298 + $0x148] sm:$0xff] %vm3081, %v2994
        %3124 = vst.msk [vmem:[%s298 + $0x150] sm:$0xff] %vm3081, %v2995
        %3125 = vst.msk [vmem:[%s298 + $0x158] sm:$0xff] %vm3081, %v2996
        %3126 = vst.msk [vmem:[%s298 + $0x160] sm:$0xff] %vm3081, %v2997
        %3127 = vst.msk [vmem:[%s298 + $0x168] sm:$0xff] %vm3081, %v2998
        %3128 = vst.msk [vmem:[%s298 + $0x170] sm:$0xff] %vm3081, %v2999
        %3129 = vst.msk [vmem:[%s298 + $0x178] sm:$0xff] %vm3081, %v3000
        %3130 = vst.msk [vmem:[%s298 + $0x180] sm:$0xff] %vm3081, %v3001
        %3131 = vst.msk [vmem:[%s298 + $0x188] sm:$0xff] %vm3081, %v3002
        %3132 = vst.msk [vmem:[%s298 + $0x190] sm:$0xff] %vm3081, %v3003
        %3133 = vst.msk [vmem:[%s298 + $0x198] sm:$0xff] %vm3081, %v3004
        %3134 = vst.msk [vmem:[%s298 + $0x1a0] sm:$0xff] %vm3081, %v3005
        %3135 = vst.msk [vmem:[%s298 + $0x1a8] sm:$0xff] %vm3081, %v3006
        %3136 = vst.msk [vmem:[%s298 + $0x1b0] sm:$0xff] %vm3081, %v3007
        %3137 = vst.msk [vmem:[%s298 + $0x1b8] sm:$0xff] %vm3081, %v3008
        %3138 = vst.msk [vmem:[%s298 + $0x1c0] sm:$0xff] %vm3081, %v3009
        %3139 = vst.msk [vmem:[%s298 + $0x1c8] sm:$0xff] %vm3081, %v3010
        %3140 = vst.msk [vmem:[%s298 + $0x1d0] sm:$0xff] %vm3081, %v3011
        %3141 = vst.msk [vmem:[%s298 + $0x1d8] sm:$0xff] %vm3081, %v3012
        %3142 = vst.msk [vmem:[%s298 + $0x1e0] sm:$0xff] %vm3081, %v3013
        %3143 = vst.msk [vmem:[%s298 + $0x1e8] sm:$0xff] %vm3081, %v3014
        %3144 = vst.msk [vmem:[%s298 + $0x1f0] sm:$0xff] %vm3081, %v3015
        %3145 = vst.msk [vmem:[%s298 + $0x1f8] sm:$0xff] %vm3081, %v3016
        %3146 = vst.msk [vmem:[%s298 + $0x200] sm:$0xff] %vm3081, %v3017
        %3147 = vst.msk [vmem:[%s298 + $0x208] sm:$0xff] %vm3081, %v3018
        %3148 = vst.msk [vmem:[%s298 + $0x210] sm:$0xff] %vm3081, %v3019
        %3149 = vst.msk [vmem:[%s298 + $0x218] sm:$0xff] %vm3081, %v3020
        %3150 = vst.msk [vmem:[%s298 + $0x220] sm:$0xff] %vm3081, %v3021
        %3151 = vst.msk [vmem:[%s298 + $0x228] sm:$0xff] %vm3081, %v3022
        %3152 = vst.msk [vmem:[%s298 + $0x230] sm:$0xff] %vm3081, %v3023
        %3153 = vst.msk [vmem:[%s298 + $0x238] sm:$0xff] %vm3081, %v3024
        %3154 = vst.msk [vmem:[%s298 + $0x240] sm:$0xff] %vm3081, %v3025
        %3155 = vst.msk [vmem:[%s298 + $0x248] sm:$0xff] %vm3081, %v3026
        %3156 = vst.msk [vmem:[%s298 + $0x250] sm:$0xff] %vm3081, %v3027
        %3157 = vst.msk [vmem:[%s298 + $0x258] sm:$0xff] %vm3081, %v3028
        %3158 = vst.msk [vmem:[%s298 + $0x260] sm:$0xff] %vm3081, %v3029
        %3159 = vst.msk [vmem:[%s298 + $0x268] sm:$0xff] %vm3081, %v3030
        %3160 = vst.msk [vmem:[%s298 + $0x270] sm:$0xff] %vm3081, %v3031
        %3161 = vst.msk [vmem:[%s298 + $0x278] sm:$0xff] %vm3081, %v3032
        %3162 = vst.msk [vmem:[%s298 + $0x280] sm:$0xff] %vm3081, %v3033
        %3163 = vst.msk [vmem:[%s298 + $0x288] sm:$0xff] %vm3081, %v3034
        %3164 = vst.msk [vmem:[%s298 + $0x290] sm:$0xff] %vm3081, %v3035
        %3165 = vst.msk [vmem:[%s298 + $0x298] sm:$0xff] %vm3081, %v3036
        %3166 = vst.msk [vmem:[%s298 + $0x2a0] sm:$0xff] %vm3081, %v3037
        %3167 = vst.msk [vmem:[%s298 + $0x2a8] sm:$0xff] %vm3081, %v3038
        %3168 = vst.msk [vmem:[%s298 + $0x2b0] sm:$0xff] %vm3081, %v3039
        %3169 = vst.msk [vmem:[%s298 + $0x2b8] sm:$0xff] %vm3081, %v3040
        %3170 = vst.msk [vmem:[%s298 + $0x2c0] sm:$0xff] %vm3081, %v3041
        %3171 = vst.msk [vmem:[%s298 + $0x2c8] sm:$0xff] %vm3081, %v3042
        %3172 = vst.msk [vmem:[%s298 + $0x2d0] sm:$0xff] %vm3081, %v3043
        %3173 = vst.msk [vmem:[%s298 + $0x2d8] sm:$0xff] %vm3081, %v3044
        %3174 = vst.msk [vmem:[%s298 + $0x2e0] sm:$0xff] %vm3081, %v3045
        %3175 = vst.msk [vmem:[%s298 + $0x2e8] sm:$0xff] %vm3081, %v3046
        %3176 = vst.msk [vmem:[%s298 + $0x2f0] sm:$0xff] %vm3081, %v3047
        %3177 = vst.msk [vmem:[%s298 + $0x2f8] sm:$0xff] %vm3081, %v3048
        %3178 = vst.msk [vmem:[%s298 + $0x300] sm:$0xff] %vm3081, %v3049
        %3179 = vst.msk [vmem:[%s298 + $0x308] sm:$0xff] %vm3081, %v3050
        %3180 = vst.msk [vmem:[%s298 + $0x310] sm:$0xff] %vm3081, %v3051
        %3181 = vst.msk [vmem:[%s298 + $0x318] sm:$0xff] %vm3081, %v3052
        %3182 = vst.msk [vmem:[%s298 + $0x320] sm:$0xff] %vm3081, %v3053
        %3183 = vst.msk [vmem:[%s298 + $0x328] sm:$0xff] %vm3081, %v3054
        %3184 = vst.msk [vmem:[%s298 + $0x330] sm:$0xff] %vm3081, %v3055
        %3185 = vst.msk [vmem:[%s298 + $0x338] sm:$0xff] %vm3081, %v3056
        %3186 = vst.msk [vmem:[%s298 + $0x340] sm:$0xff] %vm3081, %v3057
        %3187 = vst.msk [vmem:[%s298 + $0x348] sm:$0xff] %vm3081, %v3058
        %3188 = vst.msk [vmem:[%s298 + $0x350] sm:$0xff] %vm3081, %v3059
        %3189 = vst.msk [vmem:[%s298 + $0x358] sm:$0xff] %vm3081, %v3060
        %3190 = vst.msk [vmem:[%s298 + $0x360] sm:$0xff] %vm3081, %v3061
        %3191 = vst.msk [vmem:[%s298 + $0x368] sm:$0xff] %vm3081, %v3062
        %3192 = vst.msk [vmem:[%s298 + $0x370] sm:$0xff] %vm3081, %v3063
        %3193 = vst.msk [vmem:[%s298 + $0x378] sm:$0xff] %vm3081, %v3064
        %3194 = vst.msk [vmem:[%s298 + $0x380] sm:$0xff] %vm3081, %v3065
        %3195 = vst.msk [vmem:[%s298 + $0x388] sm:$0xff] %vm3081, %v3066
        %3196 = vst.msk [vmem:[%s298 + $0x390] sm:$0xff] %vm3081, %v3067
        %3197 = vst.msk [vmem:[%s298 + $0x398] sm:$0xff] %vm3081, %v3068
        %3198 = vst.msk [vmem:[%s298 + $0x3a0] sm:$0xff] %vm3081, %v3069
        %3199 = vst.msk [vmem:[%s298 + $0x3a8] sm:$0xff] %vm3081, %v3070
        %3200 = vst.msk [vmem:[%s298 + $0x3b0] sm:$0xff] %vm3081, %v3071
        %3201 = vst.msk [vmem:[%s298 + $0x3b8] sm:$0xff] %vm3081, %v3072
        %3202 = vst.msk [vmem:[%s298 + $0x3c0] sm:$0xff] %vm3081, %v3073
        %3203 = vst.msk [vmem:[%s298 + $0x3c8] sm:$0xff] %vm3081, %v3074
        %3204 = vst.msk [vmem:[%s298 + $0x3d0] sm:$0xff] %vm3081, %v3075
        %3205 = vst.msk [vmem:[%s298 + $0x3d8] sm:$0xff] %vm3081, %v3076
        %3206 = vst.msk [vmem:[%s298 + $0x3e0] sm:$0xff] %vm3081, %v3077
        %3207 = vst.msk [vmem:[%s298 + $0x3e8] sm:$0xff] %vm3081, %v3078
        %3208 = vst.msk [vmem:[%s298 + $0x3f0] sm:$0xff] %vm3081, %v3079
        %3209 = vst.msk [vmem:[%s298 + $0x3f8] sm:$0xff] %vm3081, %v3080
      $region56: #{vae_forward.2} parent=47 // pred_fallthru
        _
      %p3210 = scmp.lt.s32.totalorder %s22, 1
      %s3211 = scalar_select %p3210, %s22, 1
      %s3212 = smul.addr %s3211, 128
      %s3213 = smul.addr %s3212, 8
      %s3214 = scalar_lea.vmem %s7, %s3213
      // Predicated region
      $region57: #{vae_forward.2} parent=47 // pred_check
        %p3215 = pneg %p202
      $region58: #{vae_forward.2} parent=47 // pred_check_branch
        %3217 = sbr.rel (%p3215) target = $region60
      $region59: #{vae_forward.2} parent=47 // pred_region
        _
      $region60: #{vae_forward.2} parent=47 // pred_fallthru
        _
    $region48: #{vae_forward.2} parent=5 // pred_fallthru
      _
    %p3218 = scmp.le.s32.totalorder 2, %s13
    // Predicated region
    $region61: #{vae_forward.2} parent=5 // pred_check
      %p3219 = pneg %p3218
    $region62: #{vae_forward.2} parent=5 // pred_check_branch
      %3221 = sbr.rel (%p3219) target = $region64
    $region63: #{vae_forward.2} parent=5 // pred_region
      %s3222 = ssub.s32 %s13, 2
      // Predicated region
      $region65: #{vae_forward.2} parent=63 // pred_check
        %p3223 = pneg %p208
      $region66: #{vae_forward.2} parent=63 // pred_check_branch
        %3225 = sbr.rel (%p3223) target = $region68
      $region67: #{vae_forward.2} parent=63 // pred_region
        %p3226 = scmp.lt.s32.totalorder %s24, 1
        %s3227 = scalar_select %p3226, %s24, 1
        %s3228 = smul.addr %s3227, 128
        %s3229 = smul.addr %s3228, 8
        %s3230 = scalar_lea.vmem %s7, %s3229
      $region68: #{vae_forward.2} parent=63 // pred_fallthru
        _
    $region64: #{vae_forward.2} parent=5 // pred_fallthru
      _
  $region6: #{vae_forward.2} parent=0 // loop_footer
    %s17 = sadd.s32 1, %s13
  $region7: #{vae_forward.2} parent=0 // loop_footer_branch
    %12 = sbr.rel target = $region3
  $region8: #{vae_forward.2} parent=0 // loop_exit
    _

// kernel: vae_forward.3
$region0: #{vae_forward.3}
  #allocation0 [shape = 'u32[]', space=smem, size = 0x4, offset = 0x4, fixed_abs, tag = 'smem constant byte address 0x4 - core index']
  #allocation1 [shape = 'u32[144,128]{1,0:T(1,128)}', space=vmem, size = 0x12000, scoped, tag = 'internal scratch']
  %s0 = inlined_call_operand.vmem [shape: f32[8,1024], index: 0, kind: input, shape index: {}]
  %s1 = inlined_call_operand.vmem [shape: f32[8,128], index: 1, kind: input, shape index: {}]
  %s2 = inlined_call_operand.vmem [shape: bf16[1024,512], index: 2, kind: input, shape index: {}]
  %s3 = inlined_call_operand.vmem [shape: f32[1,512], index: 3, kind: input, shape index: {}]
  %s4 = inlined_call_operand.vmem [shape: bf16[512,256], index: 4, kind: input, shape index: {}]
  %s5 = inlined_call_operand.vmem [shape: f32[1,256], index: 5, kind: input, shape index: {}]
  %s6 = inlined_call_operand.vmem [shape: bf16[256,128], index: 6, kind: input, shape index: {}]
  %s7 = inlined_call_operand.vmem [shape: f32[1,128], index: 7, kind: input, shape index: {}]
  %s8 = inlined_call_operand.vmem [shape: bf16[128,128], index: 8, kind: input, shape index: {}]
  %s9 = inlined_call_operand.vmem [shape: f32[1,128], index: 9, kind: input, shape index: {}]
  %s10 = inlined_call_operand.vmem [shape: bf16[128,128], index: 10, kind: input, shape index: {}]
  %s11 = inlined_call_operand.vmem [shape: f32[1,128], index: 11, kind: input, shape index: {}]
  %s12 = inlined_call_operand.vmem [shape: bf16[128,128], index: 12, kind: input, shape index: {}]
  %s13 = inlined_call_operand.vmem [shape: f32[1,128], index: 13, kind: input, shape index: {}]
  %s14 = inlined_call_operand.vmem [shape: bf16[128,256], index: 14, kind: input, shape index: {}]
  %s15 = inlined_call_operand.vmem [shape: f32[1,256], index: 15, kind: input, shape index: {}]
  %s16 = inlined_call_operand.vmem [shape: bf16[256,512], index: 16, kind: input, shape index: {}]
  %s17 = inlined_call_operand.vmem [shape: f32[1,512], index: 17, kind: input, shape index: {}]
  %s18 = inlined_call_operand.vmem [shape: bf16[512,1024], index: 18, kind: input, shape index: {}]
  %s19 = inlined_call_operand.vmem [shape: f32[1,1024], index: 19, kind: input, shape index: {}]
  %s20 = inlined_call_operand.vmem [shape: bf16[1024,256], index: 20, kind: input, shape index: {}]
  %s21 = inlined_call_operand.vmem [shape: f32[1,256], index: 21, kind: input, shape index: {}]
  %s22 = inlined_call_operand.vmem [shape: f32[8,256], index: 22, kind: output, shape index: {0}]
  %s23 = inlined_call_operand.vmem [shape: f32[8,128], index: 23, kind: output, shape index: {1}]
  %s24 = inlined_call_operand.vmem [shape: f32[8,128], index: 24, kind: output, shape index: {2}]
  %25 = xla_tuple %s22, %s23, %s24
  %s26 = sld [smem:[#allocation0]]
  $region114: #{vae_forward.3} parent=0
    _
  %s28 = ssub.s32 1, %s26
  %s29 = scalar_select 0, %s28, %s26
  // Predicated region
  $region2: #{vae_forward.3} parent=0 // pred_check
    _
  $region3: #{vae_forward.3} parent=0 // pred_check_branch
    %31 = sbr.rel (0) target = $region5
  $region4: #{vae_forward.3} parent=0 // pred_region
    _
  $region5: #{vae_forward.3} parent=0 // pred_fallthru
    _
  // Predicated region
  $region6: #{vae_forward.3} parent=0 // pred_check
    _
  $region7: #{vae_forward.3} parent=0 // pred_check_branch
    %33 = sbr.rel (0) target = $region9
  $region8: #{vae_forward.3} parent=0 // pred_region
    _
  $region9: #{vae_forward.3} parent=0 // pred_fallthru
    _
  // Predicated region
  $region10: #{vae_forward.3} parent=0 // pred_check
    _
  $region11: #{vae_forward.3} parent=0 // pred_check_branch
    %35 = sbr.rel (0) target = $region13
  $region12: #{vae_forward.3} parent=0 // pred_region
    _
  $region13: #{vae_forward.3} parent=0 // pred_fallthru
    _
  // Predicated region
  $region14: #{vae_forward.3} parent=0 // pred_check
    _
  $region15: #{vae_forward.3} parent=0 // pred_check_branch
    %37 = sbr.rel (0) target = $region17
  $region16: #{vae_forward.3} parent=0 // pred_region
    _
  $region17: #{vae_forward.3} parent=0 // pred_fallthru
    _
  // Predicated region
  $region18: #{vae_forward.3} parent=0 // pred_check
    _
  $region19: #{vae_forward.3} parent=0 // pred_check_branch
    %39 = sbr.rel (0) target = $region21
  $region20: #{vae_forward.3} parent=0 // pred_region
    _
  $region21: #{vae_forward.3} parent=0 // pred_fallthru
    _
  // Predicated region
  $region22: #{vae_forward.3} parent=0 // pred_check
    _
  $region23: #{vae_forward.3} parent=0 // pred_check_branch
    %41 = sbr.rel (0) target = $region25
  $region24: #{vae_forward.3} parent=0 // pred_region
    _
  $region25: #{vae_forward.3} parent=0 // pred_fallthru
    _
  // Predicated region
  $region26: #{vae_forward.3} parent=0 // pred_check
    _
  $region27: #{vae_forward.3} parent=0 // pred_check_branch
    %43 = sbr.rel (0) target = $region29
  $region28: #{vae_forward.3} parent=0 // pred_region
    _
  $region29: #{vae_forward.3} parent=0 // pred_fallthru
    _
  // Predicated region
  $region30: #{vae_forward.3} parent=0 // pred_check
    _
  $region31: #{vae_forward.3} parent=0 // pred_check_branch
    %45 = sbr.rel (0) target = $region33
  $region32: #{vae_forward.3} parent=0 // pred_region
    _
  $region33: #{vae_forward.3} parent=0 // pred_fallthru
    _
  // Predicated region
  $region34: #{vae_forward.3} parent=0 // pred_check
    _
  $region35: #{vae_forward.3} parent=0 // pred_check_branch
    %47 = sbr.rel (0) target = $region37
  $region36: #{vae_forward.3} parent=0 // pred_region
    _
  $region37: #{vae_forward.3} parent=0 // pred_fallthru
    _
  // Predicated region
  $region38: #{vae_forward.3} parent=0 // pred_check
    _
  $region39: #{vae_forward.3} parent=0 // pred_check_branch
    %49 = sbr.rel (0) target = $region41
  $region40: #{vae_forward.3} parent=0 // pred_region
    _
  $region41: #{vae_forward.3} parent=0 // pred_fallthru
    _
  // Predicated region
  $region42: #{vae_forward.3} parent=0 // pred_check
    _
  $region43: #{vae_forward.3} parent=0 // pred_check_branch
    %51 = sbr.rel (0) target = $region45
  $region44: #{vae_forward.3} parent=0 // pred_region
    _
  $region45: #{vae_forward.3} parent=0 // pred_fallthru
    _
  // Predicated region
  $region46: #{vae_forward.3} parent=0 // pred_check
    _
  $region47: #{vae_forward.3} parent=0 // pred_check_branch
    %53 = sbr.rel (0) target = $region49
  $region48: #{vae_forward.3} parent=0 // pred_region
    _
  $region49: #{vae_forward.3} parent=0 // pred_fallthru
    _
  // Predicated region
  $region50: #{vae_forward.3} parent=0 // pred_check
    _
  $region51: #{vae_forward.3} parent=0 // pred_check_branch
    %55 = sbr.rel (0) target = $region53
  $region52: #{vae_forward.3} parent=0 // pred_region
    _
  $region53: #{vae_forward.3} parent=0 // pred_fallthru
    _
  // Predicated region
  $region54: #{vae_forward.3} parent=0 // pred_check
    _
  $region55: #{vae_forward.3} parent=0 // pred_check_branch
    %57 = sbr.rel (0) target = $region57
  $region56: #{vae_forward.3} parent=0 // pred_region
    _
  $region57: #{vae_forward.3} parent=0 // pred_fallthru
    _
  // Predicated region
  $region58: #{vae_forward.3} parent=0 // pred_check
    _
  $region59: #{vae_forward.3} parent=0 // pred_check_branch
    %59 = sbr.rel (0) target = $region61
  $region60: #{vae_forward.3} parent=0 // pred_region
    _
  $region61: #{vae_forward.3} parent=0 // pred_fallthru
    _
  // Predicated region
  $region62: #{vae_forward.3} parent=0 // pred_check
    _
  $region63: #{vae_forward.3} parent=0 // pred_check_branch
    %61 = sbr.rel (0) target = $region65
  $region64: #{vae_forward.3} parent=0 // pred_region
    _
  $region65: #{vae_forward.3} parent=0 // pred_fallthru
    _
  // Predicated region
  $region66: #{vae_forward.3} parent=0 // pred_check
    _
  $region67: #{vae_forward.3} parent=0 // pred_check_branch
    %63 = sbr.rel (0) target = $region69
  $region68: #{vae_forward.3} parent=0 // pred_region
    _
  $region69: #{vae_forward.3} parent=0 // pred_fallthru
    _
  // Predicated region
  $region70: #{vae_forward.3} parent=0 // pred_check
    _
  $region71: #{vae_forward.3} parent=0 // pred_check_branch
    %65 = sbr.rel (0) target = $region73
  $region72: #{vae_forward.3} parent=0 // pred_region
    _
  $region73: #{vae_forward.3} parent=0 // pred_fallthru
    _
  // Predicated region
  $region74: #{vae_forward.3} parent=0 // pred_check
    _
  $region75: #{vae_forward.3} parent=0 // pred_check_branch
    %67 = sbr.rel (0) target = $region77
  $region76: #{vae_forward.3} parent=0 // pred_region
    _
  $region77: #{vae_forward.3} parent=0 // pred_fallthru
    _
  // Predicated region
  $region78: #{vae_forward.3} parent=0 // pred_check
    _
  $region79: #{vae_forward.3} parent=0 // pred_check_branch
    %69 = sbr.rel (0) target = $region81
  $region80: #{vae_forward.3} parent=0 // pred_region
    _
  $region81: #{vae_forward.3} parent=0 // pred_fallthru
    _
  // Predicated region
  $region82: #{vae_forward.3} parent=0 // pred_check
    _
  $region83: #{vae_forward.3} parent=0 // pred_check_branch
    %71 = sbr.rel (0) target = $region85
  $region84: #{vae_forward.3} parent=0 // pred_region
    _
  $region85: #{vae_forward.3} parent=0 // pred_fallthru
    _
  // Predicated region
  $region86: #{vae_forward.3} parent=0 // pred_check
    _
  $region87: #{vae_forward.3} parent=0 // pred_check_branch
    %73 = sbr.rel (0) target = $region89
  $region88: #{vae_forward.3} parent=0 // pred_region
    _
  $region89: #{vae_forward.3} parent=0 // pred_fallthru
    _
  %v75 = vld [vmem:[%s0] sm:$0xff]
  %v76 = vld [vmem:[%s0 + $0x8] sm:$0xff]
  %v77 = vld [vmem:[%s0 + $0x10] sm:$0xff]
  %v78 = vld [vmem:[%s0 + $0x18] sm:$0xff]
  %v79 = vld [vmem:[%s0 + $0x20] sm:$0xff]
  %v80 = vld [vmem:[%s0 + $0x28] sm:$0xff]
  %v81 = vld [vmem:[%s0 + $0x30] sm:$0xff]
  %v82 = vld [vmem:[%s0 + $0x38] sm:$0xff]
  %v83 = vpack.c.bf16 %v75, %v75
  %v84 = vpack.c.bf16 %v76, %v76
  %v85 = vpack.c.bf16 %v77, %v77
  %v86 = vpack.c.bf16 %v78, %v78
  %v87 = vpack.c.bf16 %v79, %v79
  %v88 = vpack.c.bf16 %v80, %v80
  %v89 = vpack.c.bf16 %v81, %v81
  %v90 = vpack.c.bf16 %v82, %v82
  %v91 = vld [vmem:[%s2] sm:$0xff]
  %v92 = vld [vmem:[%s2 + $0x8] sm:$0xff]
  %v93 = vld [vmem:[%s2 + $0x10] sm:$0xff]
  %v94 = vld [vmem:[%s2 + $0x18] sm:$0xff]
  %v95 = vld [vmem:[%s2 + $0x20] sm:$0xff]
  %v96 = vld [vmem:[%s2 + $0x28] sm:$0xff]
  %v97 = vld [vmem:[%s2 + $0x30] sm:$0xff]
  %v98 = vld [vmem:[%s2 + $0x38] sm:$0xff]
  %v99 = vld [vmem:[%s2 + $0x40] sm:$0xff]
  %v100 = vld [vmem:[%s2 + $0x48] sm:$0xff]
  %v101 = vld [vmem:[%s2 + $0x50] sm:$0xff]
  %v102 = vld [vmem:[%s2 + $0x58] sm:$0xff]
  %v103 = vld [vmem:[%s2 + $0x60] sm:$0xff]
  %v104 = vld [vmem:[%s2 + $0x68] sm:$0xff]
  %v105 = vld [vmem:[%s2 + $0x70] sm:$0xff]
  %v106 = vld [vmem:[%s2 + $0x78] sm:$0xff]
  %v107 = vld [vmem:[%s2 + $0x80] sm:$0xff]
  %v108 = vld [vmem:[%s2 + $0x88] sm:$0xff]
  %v109 = vld [vmem:[%s2 + $0x90] sm:$0xff]
  %v110 = vld [vmem:[%s2 + $0x98] sm:$0xff]
  %v111 = vld [vmem:[%s2 + $0xa0] sm:$0xff]
  %v112 = vld [vmem:[%s2 + $0xa8] sm:$0xff]
  %v113 = vld [vmem:[%s2 + $0xb0] sm:$0xff]
  %v114 = vld [vmem:[%s2 + $0xb8] sm:$0xff]
  %v115 = vld [vmem:[%s2 + $0xc0] sm:$0xff]
  %v116 = vld [vmem:[%s2 + $0xc8] sm:$0xff]
  %v117 = vld [vmem:[%s2 + $0xd0] sm:$0xff]
  %v118 = vld [vmem:[%s2 + $0xd8] sm:$0xff]
  %v119 = vld [vmem:[%s2 + $0xe0] sm:$0xff]
  %v120 = vld [vmem:[%s2 + $0xe8] sm:$0xff]
  %v121 = vld [vmem:[%s2 + $0xf0] sm:$0xff]
  %v122 = vld [vmem:[%s2 + $0xf8] sm:$0xff]
  %v123 = vld [vmem:[%s2 + $0x100] sm:$0xff]
  %v124 = vld [vmem:[%s2 + $0x108] sm:$0xff]
  %v125 = vld [vmem:[%s2 + $0x110] sm:$0xff]
  %v126 = vld [vmem:[%s2 + $0x118] sm:$0xff]
  %v127 = vld [vmem:[%s2 + $0x120] sm:$0xff]
  %v128 = vld [vmem:[%s2 + $0x128] sm:$0xff]
  %v129 = vld [vmem:[%s2 + $0x130] sm:$0xff]
  %v130 = vld [vmem:[%s2 + $0x138] sm:$0xff]
  %v131 = vld [vmem:[%s2 + $0x140] sm:$0xff]
  %v132 = vld [vmem:[%s2 + $0x148] sm:$0xff]
  %v133 = vld [vmem:[%s2 + $0x150] sm:$0xff]
  %v134 = vld [vmem:[%s2 + $0x158] sm:$0xff]
  %v135 = vld [vmem:[%s2 + $0x160] sm:$0xff]
  %v136 = vld [vmem:[%s2 + $0x168] sm:$0xff]
  %v137 = vld [vmem:[%s2 + $0x170] sm:$0xff]
  %v138 = vld [vmem:[%s2 + $0x178] sm:$0xff]
  %v139 = vld [vmem:[%s2 + $0x180] sm:$0xff]
  %v140 = vld [vmem:[%s2 + $0x188] sm:$0xff]
  %v141 = vld [vmem:[%s2 + $0x190] sm:$0xff]
  %v142 = vld [vmem:[%s2 + $0x198] sm:$0xff]
  %v143 = vld [vmem:[%s2 + $0x1a0] sm:$0xff]
  %v144 = vld [vmem:[%s2 + $0x1a8] sm:$0xff]
  %v145 = vld [vmem:[%s2 + $0x1b0] sm:$0xff]
  %v146 = vld [vmem:[%s2 + $0x1b8] sm:$0xff]
  %v147 = vld [vmem:[%s2 + $0x1c0] sm:$0xff]
  %v148 = vld [vmem:[%s2 + $0x1c8] sm:$0xff]
  %v149 = vld [vmem:[%s2 + $0x1d0] sm:$0xff]
  %v150 = vld [vmem:[%s2 + $0x1d8] sm:$0xff]
  %v151 = vld [vmem:[%s2 + $0x1e0] sm:$0xff]
  %v152 = vld [vmem:[%s2 + $0x1e8] sm:$0xff]
  %v153 = vld [vmem:[%s2 + $0x1f0] sm:$0xff]
  %v154 = vld [vmem:[%s2 + $0x1f8] sm:$0xff]
  %v155 = vld [vmem:[%s2 + $0x200] sm:$0xff]
  %v156 = vld [vmem:[%s2 + $0x208] sm:$0xff]
  %v157 = vld [vmem:[%s2 + $0x210] sm:$0xff]
  %v158 = vld [vmem:[%s2 + $0x218] sm:$0xff]
  %v159 = vld [vmem:[%s2 + $0x220] sm:$0xff]
  %v160 = vld [vmem:[%s2 + $0x228] sm:$0xff]
  %v161 = vld [vmem:[%s2 + $0x230] sm:$0xff]
  %v162 = vld [vmem:[%s2 + $0x238] sm:$0xff]
  %v163 = vld [vmem:[%s2 + $0x240] sm:$0xff]
  %v164 = vld [vmem:[%s2 + $0x248] sm:$0xff]
  %v165 = vld [vmem:[%s2 + $0x250] sm:$0xff]
  %v166 = vld [vmem:[%s2 + $0x258] sm:$0xff]
  %v167 = vld [vmem:[%s2 + $0x260] sm:$0xff]
  %v168 = vld [vmem:[%s2 + $0x268] sm:$0xff]
  %v169 = vld [vmem:[%s2 + $0x270] sm:$0xff]
  %v170 = vld [vmem:[%s2 + $0x278] sm:$0xff]
  %v171 = vld [vmem:[%s2 + $0x280] sm:$0xff]
  %v172 = vld [vmem:[%s2 + $0x288] sm:$0xff]
  %v173 = vld [vmem:[%s2 + $0x290] sm:$0xff]
  %v174 = vld [vmem:[%s2 + $0x298] sm:$0xff]
  %v175 = vld [vmem:[%s2 + $0x2a0] sm:$0xff]
  %v176 = vld [vmem:[%s2 + $0x2a8] sm:$0xff]
  %v177 = vld [vmem:[%s2 + $0x2b0] sm:$0xff]
  %v178 = vld [vmem:[%s2 + $0x2b8] sm:$0xff]
  %v179 = vld [vmem:[%s2 + $0x2c0] sm:$0xff]
  %v180 = vld [vmem:[%s2 + $0x2c8] sm:$0xff]
  %v181 = vld [vmem:[%s2 + $0x2d0] sm:$0xff]
  %v182 = vld [vmem:[%s2 + $0x2d8] sm:$0xff]
  %v183 = vld [vmem:[%s2 + $0x2e0] sm:$0xff]
  %v184 = vld [vmem:[%s2 + $0x2e8] sm:$0xff]
  %v185 = vld [vmem:[%s2 + $0x2f0] sm:$0xff]
  %v186 = vld [vmem:[%s2 + $0x2f8] sm:$0xff]
  %v187 = vld [vmem:[%s2 + $0x300] sm:$0xff]
  %v188 = vld [vmem:[%s2 + $0x308] sm:$0xff]
  %v189 = vld [vmem:[%s2 + $0x310] sm:$0xff]
  %v190 = vld [vmem:[%s2 + $0x318] sm:$0xff]
  %v191 = vld [vmem:[%s2 + $0x320] sm:$0xff]
  %v192 = vld [vmem:[%s2 + $0x328] sm:$0xff]
  %v193 = vld [vmem:[%s2 + $0x330] sm:$0xff]
  %v194 = vld [vmem:[%s2 + $0x338] sm:$0xff]
  %v195 = vld [vmem:[%s2 + $0x340] sm:$0xff]
  %v196 = vld [vmem:[%s2 + $0x348] sm:$0xff]
  %v197 = vld [vmem:[%s2 + $0x350] sm:$0xff]
  %v198 = vld [vmem:[%s2 + $0x358] sm:$0xff]
  %v199 = vld [vmem:[%s2 + $0x360] sm:$0xff]
  %v200 = vld [vmem:[%s2 + $0x368] sm:$0xff]
  %v201 = vld [vmem:[%s2 + $0x370] sm:$0xff]
  %v202 = vld [vmem:[%s2 + $0x378] sm:$0xff]
  %v203 = vld [vmem:[%s2 + $0x380] sm:$0xff]
  %v204 = vld [vmem:[%s2 + $0x388] sm:$0xff]
  %v205 = vld [vmem:[%s2 + $0x390] sm:$0xff]
  %v206 = vld [vmem:[%s2 + $0x398] sm:$0xff]
  %v207 = vld [vmem:[%s2 + $0x3a0] sm:$0xff]
  %v208 = vld [vmem:[%s2 + $0x3a8] sm:$0xff]
  %v209 = vld [vmem:[%s2 + $0x3b0] sm:$0xff]
  %v210 = vld [vmem:[%s2 + $0x3b8] sm:$0xff]
  %v211 = vld [vmem:[%s2 + $0x3c0] sm:$0xff]
  %v212 = vld [vmem:[%s2 + $0x3c8] sm:$0xff]
  %v213 = vld [vmem:[%s2 + $0x3d0] sm:$0xff]
  %v214 = vld [vmem:[%s2 + $0x3d8] sm:$0xff]
  %v215 = vld [vmem:[%s2 + $0x3e0] sm:$0xff]
  %v216 = vld [vmem:[%s2 + $0x3e8] sm:$0xff]
  %v217 = vld [vmem:[%s2 + $0x3f0] sm:$0xff]
  %v218 = vld [vmem:[%s2 + $0x3f8] sm:$0xff]
  %v219 = vld [vmem:[%s2 + $0x400] sm:$0xff]
  %v220 = vld [vmem:[%s2 + $0x408] sm:$0xff]
  %v221 = vld [vmem:[%s2 + $0x410] sm:$0xff]
  %v222 = vld [vmem:[%s2 + $0x418] sm:$0xff]
  %v223 = vld [vmem:[%s2 + $0x420] sm:$0xff]
  %v224 = vld [vmem:[%s2 + $0x428] sm:$0xff]
  %v225 = vld [vmem:[%s2 + $0x430] sm:$0xff]
  %v226 = vld [vmem:[%s2 + $0x438] sm:$0xff]
  %v227 = vld [vmem:[%s2 + $0x440] sm:$0xff]
  %v228 = vld [vmem:[%s2 + $0x448] sm:$0xff]
  %v229 = vld [vmem:[%s2 + $0x450] sm:$0xff]
  %v230 = vld [vmem:[%s2 + $0x458] sm:$0xff]
  %v231 = vld [vmem:[%s2 + $0x460] sm:$0xff]
  %v232 = vld [vmem:[%s2 + $0x468] sm:$0xff]
  %v233 = vld [vmem:[%s2 + $0x470] sm:$0xff]
  %v234 = vld [vmem:[%s2 + $0x478] sm:$0xff]
  %v235 = vld [vmem:[%s2 + $0x480] sm:$0xff]
  %v236 = vld [vmem:[%s2 + $0x488] sm:$0xff]
  %v237 = vld [vmem:[%s2 + $0x490] sm:$0xff]
  %v238 = vld [vmem:[%s2 + $0x498] sm:$0xff]
  %v239 = vld [vmem:[%s2 + $0x4a0] sm:$0xff]
  %v240 = vld [vmem:[%s2 + $0x4a8] sm:$0xff]
  %v241 = vld [vmem:[%s2 + $0x4b0] sm:$0xff]
  %v242 = vld [vmem:[%s2 + $0x4b8] sm:$0xff]
  %v243 = vld [vmem:[%s2 + $0x4c0] sm:$0xff]
  %v244 = vld [vmem:[%s2 + $0x4c8] sm:$0xff]
  %v245 = vld [vmem:[%s2 + $0x4d0] sm:$0xff]
  %v246 = vld [vmem:[%s2 + $0x4d8] sm:$0xff]
  %v247 = vld [vmem:[%s2 + $0x4e0] sm:$0xff]
  %v248 = vld [vmem:[%s2 + $0x4e8] sm:$0xff]
  %v249 = vld [vmem:[%s2 + $0x4f0] sm:$0xff]
  %v250 = vld [vmem:[%s2 + $0x4f8] sm:$0xff]
  %v251 = vld [vmem:[%s2 + $0x500] sm:$0xff]
  %v252 = vld [vmem:[%s2 + $0x508] sm:$0xff]
  %v253 = vld [vmem:[%s2 + $0x510] sm:$0xff]
  %v254 = vld [vmem:[%s2 + $0x518] sm:$0xff]
  %v255 = vld [vmem:[%s2 + $0x520] sm:$0xff]
  %v256 = vld [vmem:[%s2 + $0x528] sm:$0xff]
  %v257 = vld [vmem:[%s2 + $0x530] sm:$0xff]
  %v258 = vld [vmem:[%s2 + $0x538] sm:$0xff]
  %v259 = vld [vmem:[%s2 + $0x540] sm:$0xff]
  %v260 = vld [vmem:[%s2 + $0x548] sm:$0xff]
  %v261 = vld [vmem:[%s2 + $0x550] sm:$0xff]
  %v262 = vld [vmem:[%s2 + $0x558] sm:$0xff]
  %v263 = vld [vmem:[%s2 + $0x560] sm:$0xff]
  %v264 = vld [vmem:[%s2 + $0x568] sm:$0xff]
  %v265 = vld [vmem:[%s2 + $0x570] sm:$0xff]
  %v266 = vld [vmem:[%s2 + $0x578] sm:$0xff]
  %v267 = vld [vmem:[%s2 + $0x580] sm:$0xff]
  %v268 = vld [vmem:[%s2 + $0x588] sm:$0xff]
  %v269 = vld [vmem:[%s2 + $0x590] sm:$0xff]
  %v270 = vld [vmem:[%s2 + $0x598] sm:$0xff]
  %v271 = vld [vmem:[%s2 + $0x5a0] sm:$0xff]
  %v272 = vld [vmem:[%s2 + $0x5a8] sm:$0xff]
  %v273 = vld [vmem:[%s2 + $0x5b0] sm:$0xff]
  %v274 = vld [vmem:[%s2 + $0x5b8] sm:$0xff]
  %v275 = vld [vmem:[%s2 + $0x5c0] sm:$0xff]
  %v276 = vld [vmem:[%s2 + $0x5c8] sm:$0xff]
  %v277 = vld [vmem:[%s2 + $0x5d0] sm:$0xff]
  %v278 = vld [vmem:[%s2 + $0x5d8] sm:$0xff]
  %v279 = vld [vmem:[%s2 + $0x5e0] sm:$0xff]
  %v280 = vld [vmem:[%s2 + $0x5e8] sm:$0xff]
  %v281 = vld [vmem:[%s2 + $0x5f0] sm:$0xff]
  %v282 = vld [vmem:[%s2 + $0x5f8] sm:$0xff]
  %v283 = vld [vmem:[%s2 + $0x600] sm:$0xff]
  %v284 = vld [vmem:[%s2 + $0x608] sm:$0xff]
  %v285 = vld [vmem:[%s2 + $0x610] sm:$0xff]
  %v286 = vld [vmem:[%s2 + $0x618] sm:$0xff]
  %v287 = vld [vmem:[%s2 + $0x620] sm:$0xff]
  %v288 = vld [vmem:[%s2 + $0x628] sm:$0xff]
  %v289 = vld [vmem:[%s2 + $0x630] sm:$0xff]
  %v290 = vld [vmem:[%s2 + $0x638] sm:$0xff]
  %v291 = vld [vmem:[%s2 + $0x640] sm:$0xff]
  %v292 = vld [vmem:[%s2 + $0x648] sm:$0xff]
  %v293 = vld [vmem:[%s2 + $0x650] sm:$0xff]
  %v294 = vld [vmem:[%s2 + $0x658] sm:$0xff]
  %v295 = vld [vmem:[%s2 + $0x660] sm:$0xff]
  %v296 = vld [vmem:[%s2 + $0x668] sm:$0xff]
  %v297 = vld [vmem:[%s2 + $0x670] sm:$0xff]
  %v298 = vld [vmem:[%s2 + $0x678] sm:$0xff]
  %v299 = vld [vmem:[%s2 + $0x680] sm:$0xff]
  %v300 = vld [vmem:[%s2 + $0x688] sm:$0xff]
  %v301 = vld [vmem:[%s2 + $0x690] sm:$0xff]
  %v302 = vld [vmem:[%s2 + $0x698] sm:$0xff]
  %v303 = vld [vmem:[%s2 + $0x6a0] sm:$0xff]
  %v304 = vld [vmem:[%s2 + $0x6a8] sm:$0xff]
  %v305 = vld [vmem:[%s2 + $0x6b0] sm:$0xff]
  %v306 = vld [vmem:[%s2 + $0x6b8] sm:$0xff]
  %v307 = vld [vmem:[%s2 + $0x6c0] sm:$0xff]
  %v308 = vld [vmem:[%s2 + $0x6c8] sm:$0xff]
  %v309 = vld [vmem:[%s2 + $0x6d0] sm:$0xff]
  %v310 = vld [vmem:[%s2 + $0x6d8] sm:$0xff]
  %v311 = vld [vmem:[%s2 + $0x6e0] sm:$0xff]
  %v312 = vld [vmem:[%s2 + $0x6e8] sm:$0xff]
  %v313 = vld [vmem:[%s2 + $0x6f0] sm:$0xff]
  %v314 = vld [vmem:[%s2 + $0x6f8] sm:$0xff]
  %v315 = vld [vmem:[%s2 + $0x700] sm:$0xff]
  %v316 = vld [vmem:[%s2 + $0x708] sm:$0xff]
  %v317 = vld [vmem:[%s2 + $0x710] sm:$0xff]
  %v318 = vld [vmem:[%s2 + $0x718] sm:$0xff]
  %v319 = vld [vmem:[%s2 + $0x720] sm:$0xff]
  %v320 = vld [vmem:[%s2 + $0x728] sm:$0xff]
  %v321 = vld [vmem:[%s2 + $0x730] sm:$0xff]
  %v322 = vld [vmem:[%s2 + $0x738] sm:$0xff]
  %v323 = vld [vmem:[%s2 + $0x740] sm:$0xff]
  %v324 = vld [vmem:[%s2 + $0x748] sm:$0xff]
  %v325 = vld [vmem:[%s2 + $0x750] sm:$0xff]
  %v326 = vld [vmem:[%s2 + $0x758] sm:$0xff]
  %v327 = vld [vmem:[%s2 + $0x760] sm:$0xff]
  %v328 = vld [vmem:[%s2 + $0x768] sm:$0xff]
  %v329 = vld [vmem:[%s2 + $0x770] sm:$0xff]
  %v330 = vld [vmem:[%s2 + $0x778] sm:$0xff]
  %v331 = vld [vmem:[%s2 + $0x780] sm:$0xff]
  %v332 = vld [vmem:[%s2 + $0x788] sm:$0xff]
  %v333 = vld [vmem:[%s2 + $0x790] sm:$0xff]
  %v334 = vld [vmem:[%s2 + $0x798] sm:$0xff]
  %v335 = vld [vmem:[%s2 + $0x7a0] sm:$0xff]
  %v336 = vld [vmem:[%s2 + $0x7a8] sm:$0xff]
  %v337 = vld [vmem:[%s2 + $0x7b0] sm:$0xff]
  %v338 = vld [vmem:[%s2 + $0x7b8] sm:$0xff]
  %v339 = vld [vmem:[%s2 + $0x7c0] sm:$0xff]
  %v340 = vld [vmem:[%s2 + $0x7c8] sm:$0xff]
  %v341 = vld [vmem:[%s2 + $0x7d0] sm:$0xff]
  %v342 = vld [vmem:[%s2 + $0x7d8] sm:$0xff]
  %v343 = vld [vmem:[%s2 + $0x7e0] sm:$0xff]
  %v344 = vld [vmem:[%s2 + $0x7e8] sm:$0xff]
  %v345 = vld [vmem:[%s2 + $0x7f0] sm:$0xff]
  %v346 = vld [vmem:[%s2 + $0x7f8] sm:$0xff]
  %v347 = vld [vmem:[%s3] sm:$0xf]
  %v349 = vlaneseq
  %v350 = vshrl.u32 %v349, 7
  %v351 = vsub.s32 0, %v350
  %v352 = vrot.slane %v347, %v351
  %v353 = vlaneseq
  %v354 = vshrl.u32 %v353, 7
  %v355 = vsub.s32 1, %v354
  %v356 = vrot.slane %v347, %v355
  %v357 = vlaneseq
  %v358 = vshrl.u32 %v357, 7
  %v359 = vsub.s32 2, %v358
  %v360 = vrot.slane %v347, %v359
  %v361 = vlaneseq
  %v362 = vshrl.u32 %v361, 7
  %v363 = vsub.s32 3, %v362
  %v364 = vrot.slane %v347, %v363
  %v625 = vunpack.c.l.b16 %v91
  %v626 = vunpack.c.h.b16 %v91
  %v627 = vunpack.c.l.b16 %v92
  %v628 = vunpack.c.h.b16 %v92
  %v629 = vunpack.c.l.b16 %v93
  %v630 = vunpack.c.h.b16 %v93
  %v631 = vunpack.c.l.b16 %v94
  %v632 = vunpack.c.h.b16 %v94
  %v633 = vunpack.c.l.b16 %v95
  %v634 = vunpack.c.h.b16 %v95
  %v635 = vunpack.c.l.b16 %v96
  %v636 = vunpack.c.h.b16 %v96
  %v637 = vunpack.c.l.b16 %v97
  %v638 = vunpack.c.h.b16 %v97
  %v639 = vunpack.c.l.b16 %v98
  %v640 = vunpack.c.h.b16 %v98
  %v641 = vunpack.c.l.b16 %v99
  %v642 = vunpack.c.h.b16 %v99
  %v643 = vunpack.c.l.b16 %v100
  %v644 = vunpack.c.h.b16 %v100
  %v645 = vunpack.c.l.b16 %v101
  %v646 = vunpack.c.h.b16 %v101
  %v647 = vunpack.c.l.b16 %v102
  %v648 = vunpack.c.h.b16 %v102
  %v649 = vunpack.c.l.b16 %v103
  %v650 = vunpack.c.h.b16 %v103
  %v651 = vunpack.c.l.b16 %v104
  %v652 = vunpack.c.h.b16 %v104
  %v653 = vunpack.c.l.b16 %v105
  %v654 = vunpack.c.h.b16 %v105
  %v655 = vunpack.c.l.b16 %v106
  %v656 = vunpack.c.h.b16 %v106
  %v657 = vunpack.c.l.b16 %v107
  %v658 = vunpack.c.h.b16 %v107
  %v659 = vunpack.c.l.b16 %v108
  %v660 = vunpack.c.h.b16 %v108
  %v661 = vunpack.c.l.b16 %v109
  %v662 = vunpack.c.h.b16 %v109
  %v663 = vunpack.c.l.b16 %v110
  %v664 = vunpack.c.h.b16 %v110
  %v665 = vunpack.c.l.b16 %v111
  %v666 = vunpack.c.h.b16 %v111
  %v667 = vunpack.c.l.b16 %v112
  %v668 = vunpack.c.h.b16 %v112
  %v669 = vunpack.c.l.b16 %v113
  %v670 = vunpack.c.h.b16 %v113
  %v671 = vunpack.c.l.b16 %v114
  %v672 = vunpack.c.h.b16 %v114
  %v673 = vunpack.c.l.b16 %v115
  %v674 = vunpack.c.h.b16 %v115
  %v675 = vunpack.c.l.b16 %v116
  %v676 = vunpack.c.h.b16 %v116
  %v677 = vunpack.c.l.b16 %v117
  %v678 = vunpack.c.h.b16 %v117
  %v679 = vunpack.c.l.b16 %v118
  %v680 = vunpack.c.h.b16 %v118
  %v681 = vunpack.c.l.b16 %v119
  %v682 = vunpack.c.h.b16 %v119
  %v683 = vunpack.c.l.b16 %v120
  %v684 = vunpack.c.h.b16 %v120
  %v685 = vunpack.c.l.b16 %v121
  %v686 = vunpack.c.h.b16 %v121
  %v687 = vunpack.c.l.b16 %v122
  %v688 = vunpack.c.h.b16 %v122
  %v689 = vunpack.c.l.b16 %v123
  %v690 = vunpack.c.h.b16 %v123
  %v691 = vunpack.c.l.b16 %v124
  %v692 = vunpack.c.h.b16 %v124
  %v693 = vunpack.c.l.b16 %v125
  %v694 = vunpack.c.h.b16 %v125
  %v695 = vunpack.c.l.b16 %v126
  %v696 = vunpack.c.h.b16 %v126
  %v697 = vunpack.c.l.b16 %v127
  %v698 = vunpack.c.h.b16 %v127
  %v699 = vunpack.c.l.b16 %v128
  %v700 = vunpack.c.h.b16 %v128
  %v701 = vunpack.c.l.b16 %v129
  %v702 = vunpack.c.h.b16 %v129
  %v703 = vunpack.c.l.b16 %v130
  %v704 = vunpack.c.h.b16 %v130
  %v705 = vunpack.c.l.b16 %v131
  %v706 = vunpack.c.h.b16 %v131
  %v707 = vunpack.c.l.b16 %v132
  %v708 = vunpack.c.h.b16 %v132
  %v709 = vunpack.c.l.b16 %v133
  %v710 = vunpack.c.h.b16 %v133
  %v711 = vunpack.c.l.b16 %v134
  %v712 = vunpack.c.h.b16 %v134
  %v713 = vunpack.c.l.b16 %v135
  %v714 = vunpack.c.h.b16 %v135
  %v715 = vunpack.c.l.b16 %v136
  %v716 = vunpack.c.h.b16 %v136
  %v717 = vunpack.c.l.b16 %v137
  %v718 = vunpack.c.h.b16 %v137
  %v719 = vunpack.c.l.b16 %v138
  %v720 = vunpack.c.h.b16 %v138
  %v721 = vunpack.c.l.b16 %v139
  %v722 = vunpack.c.h.b16 %v139
  %v723 = vunpack.c.l.b16 %v140
  %v724 = vunpack.c.h.b16 %v140
  %v725 = vunpack.c.l.b16 %v141
  %v726 = vunpack.c.h.b16 %v141
  %v727 = vunpack.c.l.b16 %v142
  %v728 = vunpack.c.h.b16 %v142
  %v729 = vunpack.c.l.b16 %v143
  %v730 = vunpack.c.h.b16 %v143
  %v731 = vunpack.c.l.b16 %v144
  %v732 = vunpack.c.h.b16 %v144
  %v733 = vunpack.c.l.b16 %v145
  %v734 = vunpack.c.h.b16 %v145
  %v735 = vunpack.c.l.b16 %v146
  %v736 = vunpack.c.h.b16 %v146
  %v737 = vunpack.c.l.b16 %v147
  %v738 = vunpack.c.h.b16 %v147
  %v739 = vunpack.c.l.b16 %v148
  %v740 = vunpack.c.h.b16 %v148
  %v741 = vunpack.c.l.b16 %v149
  %v742 = vunpack.c.h.b16 %v149
  %v743 = vunpack.c.l.b16 %v150
  %v744 = vunpack.c.h.b16 %v150
  %v745 = vunpack.c.l.b16 %v151
  %v746 = vunpack.c.h.b16 %v151
  %v747 = vunpack.c.l.b16 %v152
  %v748 = vunpack.c.h.b16 %v152
  %v749 = vunpack.c.l.b16 %v153
  %v750 = vunpack.c.h.b16 %v153
  %v751 = vunpack.c.l.b16 %v154
  %v752 = vunpack.c.h.b16 %v154
  %v753 = vunpack.c.l.b16 %v155
  %v754 = vunpack.c.h.b16 %v155
  %v755 = vunpack.c.l.b16 %v156
  %v756 = vunpack.c.h.b16 %v156
  %v757 = vunpack.c.l.b16 %v157
  %v758 = vunpack.c.h.b16 %v157
  %v759 = vunpack.c.l.b16 %v158
  %v760 = vunpack.c.h.b16 %v158
  %v761 = vunpack.c.l.b16 %v159
  %v762 = vunpack.c.h.b16 %v159
  %v763 = vunpack.c.l.b16 %v160
  %v764 = vunpack.c.h.b16 %v160
  %v765 = vunpack.c.l.b16 %v161
  %v766 = vunpack.c.h.b16 %v161
  %v767 = vunpack.c.l.b16 %v162
  %v768 = vunpack.c.h.b16 %v162
  %v769 = vunpack.c.l.b16 %v163
  %v770 = vunpack.c.h.b16 %v163
  %v771 = vunpack.c.l.b16 %v164
  %v772 = vunpack.c.h.b16 %v164
  %v773 = vunpack.c.l.b16 %v165
  %v774 = vunpack.c.h.b16 %v165
  %v775 = vunpack.c.l.b16 %v166
  %v776 = vunpack.c.h.b16 %v166
  %v777 = vunpack.c.l.b16 %v167
  %v778 = vunpack.c.h.b16 %v167
  %v779 = vunpack.c.l.b16 %v168
  %v780 = vunpack.c.h.b16 %v168
  %v781 = vunpack.c.l.b16 %v169
  %v782 = vunpack.c.h.b16 %v169
  %v783 = vunpack.c.l.b16 %v170
  %v784 = vunpack.c.h.b16 %v170
  %v785 = vunpack.c.l.b16 %v171
  %v786 = vunpack.c.h.b16 %v171
  %v787 = vunpack.c.l.b16 %v172
  %v788 = vunpack.c.h.b16 %v172
  %v789 = vunpack.c.l.b16 %v173
  %v790 = vunpack.c.h.b16 %v173
  %v791 = vunpack.c.l.b16 %v174
  %v792 = vunpack.c.h.b16 %v174
  %v793 = vunpack.c.l.b16 %v175
  %v794 = vunpack.c.h.b16 %v175
  %v795 = vunpack.c.l.b16 %v176
  %v796 = vunpack.c.h.b16 %v176
  %v797 = vunpack.c.l.b16 %v177
  %v798 = vunpack.c.h.b16 %v177
  %v799 = vunpack.c.l.b16 %v178
  %v800 = vunpack.c.h.b16 %v178
  %v801 = vunpack.c.l.b16 %v179
  %v802 = vunpack.c.h.b16 %v179
  %v803 = vunpack.c.l.b16 %v180
  %v804 = vunpack.c.h.b16 %v180
  %v805 = vunpack.c.l.b16 %v181
  %v806 = vunpack.c.h.b16 %v181
  %v807 = vunpack.c.l.b16 %v182
  %v808 = vunpack.c.h.b16 %v182
  %v809 = vunpack.c.l.b16 %v183
  %v810 = vunpack.c.h.b16 %v183
  %v811 = vunpack.c.l.b16 %v184
  %v812 = vunpack.c.h.b16 %v184
  %v813 = vunpack.c.l.b16 %v185
  %v814 = vunpack.c.h.b16 %v185
  %v815 = vunpack.c.l.b16 %v186
  %v816 = vunpack.c.h.b16 %v186
  %v817 = vunpack.c.l.b16 %v187
  %v818 = vunpack.c.h.b16 %v187
  %v819 = vunpack.c.l.b16 %v188
  %v820 = vunpack.c.h.b16 %v188
  %v821 = vunpack.c.l.b16 %v189
  %v822 = vunpack.c.h.b16 %v189
  %v823 = vunpack.c.l.b16 %v190
  %v824 = vunpack.c.h.b16 %v190
  %v825 = vunpack.c.l.b16 %v191
  %v826 = vunpack.c.h.b16 %v191
  %v827 = vunpack.c.l.b16 %v192
  %v828 = vunpack.c.h.b16 %v192
  %v829 = vunpack.c.l.b16 %v193
  %v830 = vunpack.c.h.b16 %v193
  %v831 = vunpack.c.l.b16 %v194
  %v832 = vunpack.c.h.b16 %v194
  %v833 = vunpack.c.l.b16 %v195
  %v834 = vunpack.c.h.b16 %v195
  %v835 = vunpack.c.l.b16 %v196
  %v836 = vunpack.c.h.b16 %v196
  %v837 = vunpack.c.l.b16 %v197
  %v838 = vunpack.c.h.b16 %v197
  %v839 = vunpack.c.l.b16 %v198
  %v840 = vunpack.c.h.b16 %v198
  %v841 = vunpack.c.l.b16 %v199
  %v842 = vunpack.c.h.b16 %v199
  %v843 = vunpack.c.l.b16 %v200
  %v844 = vunpack.c.h.b16 %v200
  %v845 = vunpack.c.l.b16 %v201
  %v846 = vunpack.c.h.b16 %v201
  %v847 = vunpack.c.l.b16 %v202
  %v848 = vunpack.c.h.b16 %v202
  %v849 = vunpack.c.l.b16 %v203
  %v850 = vunpack.c.h.b16 %v203
  %v851 = vunpack.c.l.b16 %v204
  %v852 = vunpack.c.h.b16 %v204
  %v853 = vunpack.c.l.b16 %v205
  %v854 = vunpack.c.h.b16 %v205
  %v855 = vunpack.c.l.b16 %v206
  %v856 = vunpack.c.h.b16 %v206
  %v857 = vunpack.c.l.b16 %v207
  %v858 = vunpack.c.h.b16 %v207
  %v859 = vunpack.c.l.b16 %v208
  %v860 = vunpack.c.h.b16 %v208
  %v861 = vunpack.c.l.b16 %v209
  %v862 = vunpack.c.h.b16 %v209
  %v863 = vunpack.c.l.b16 %v210
  %v864 = vunpack.c.h.b16 %v210
  %v865 = vunpack.c.l.b16 %v211
  %v866 = vunpack.c.h.b16 %v211
  %v867 = vunpack.c.l.b16 %v212
  %v868 = vunpack.c.h.b16 %v212
  %v869 = vunpack.c.l.b16 %v213
  %v870 = vunpack.c.h.b16 %v213
  %v871 = vunpack.c.l.b16 %v214
  %v872 = vunpack.c.h.b16 %v214
  %v873 = vunpack.c.l.b16 %v215
  %v874 = vunpack.c.h.b16 %v215
  %v875 = vunpack.c.l.b16 %v216
  %v876 = vunpack.c.h.b16 %v216
  %v877 = vunpack.c.l.b16 %v217
  %v878 = vunpack.c.h.b16 %v217
  %v879 = vunpack.c.l.b16 %v218
  %v880 = vunpack.c.h.b16 %v218
  %v881 = vunpack.c.l.b16 %v219
  %v882 = vunpack.c.h.b16 %v219
  %v883 = vunpack.c.l.b16 %v220
  %v884 = vunpack.c.h.b16 %v220
  %v885 = vunpack.c.l.b16 %v221
  %v886 = vunpack.c.h.b16 %v221
  %v887 = vunpack.c.l.b16 %v222
  %v888 = vunpack.c.h.b16 %v222
  %v889 = vunpack.c.l.b16 %v223
  %v890 = vunpack.c.h.b16 %v223
  %v891 = vunpack.c.l.b16 %v224
  %v892 = vunpack.c.h.b16 %v224
  %v893 = vunpack.c.l.b16 %v225
  %v894 = vunpack.c.h.b16 %v225
  %v895 = vunpack.c.l.b16 %v226
  %v896 = vunpack.c.h.b16 %v226
  %v897 = vunpack.c.l.b16 %v227
  %v898 = vunpack.c.h.b16 %v227
  %v899 = vunpack.c.l.b16 %v228
  %v900 = vunpack.c.h.b16 %v228
  %v901 = vunpack.c.l.b16 %v229
  %v902 = vunpack.c.h.b16 %v229
  %v903 = vunpack.c.l.b16 %v230
  %v904 = vunpack.c.h.b16 %v230
  %v905 = vunpack.c.l.b16 %v231
  %v906 = vunpack.c.h.b16 %v231
  %v907 = vunpack.c.l.b16 %v232
  %v908 = vunpack.c.h.b16 %v232
  %v909 = vunpack.c.l.b16 %v233
  %v910 = vunpack.c.h.b16 %v233
  %v911 = vunpack.c.l.b16 %v234
  %v912 = vunpack.c.h.b16 %v234
  %v913 = vunpack.c.l.b16 %v235
  %v914 = vunpack.c.h.b16 %v235
  %v915 = vunpack.c.l.b16 %v236
  %v916 = vunpack.c.h.b16 %v236
  %v917 = vunpack.c.l.b16 %v237
  %v918 = vunpack.c.h.b16 %v237
  %v919 = vunpack.c.l.b16 %v238
  %v920 = vunpack.c.h.b16 %v238
  %v921 = vunpack.c.l.b16 %v239
  %v922 = vunpack.c.h.b16 %v239
  %v923 = vunpack.c.l.b16 %v240
  %v924 = vunpack.c.h.b16 %v240
  %v925 = vunpack.c.l.b16 %v241
  %v926 = vunpack.c.h.b16 %v241
  %v927 = vunpack.c.l.b16 %v242
  %v928 = vunpack.c.h.b16 %v242
  %v929 = vunpack.c.l.b16 %v243
  %v930 = vunpack.c.h.b16 %v243
  %v931 = vunpack.c.l.b16 %v244
  %v932 = vunpack.c.h.b16 %v244
  %v933 = vunpack.c.l.b16 %v245
  %v934 = vunpack.c.h.b16 %v245
  %v935 = vunpack.c.l.b16 %v246
  %v936 = vunpack.c.h.b16 %v246
  %v937 = vunpack.c.l.b16 %v247
  %v938 = vunpack.c.h.b16 %v247
  %v939 = vunpack.c.l.b16 %v248
  %v940 = vunpack.c.h.b16 %v248
  %v941 = vunpack.c.l.b16 %v249
  %v942 = vunpack.c.h.b16 %v249
  %v943 = vunpack.c.l.b16 %v250
  %v944 = vunpack.c.h.b16 %v250
  %v945 = vunpack.c.l.b16 %v251
  %v946 = vunpack.c.h.b16 %v251
  %v947 = vunpack.c.l.b16 %v252
  %v948 = vunpack.c.h.b16 %v252
  %v949 = vunpack.c.l.b16 %v253
  %v950 = vunpack.c.h.b16 %v253
  %v951 = vunpack.c.l.b16 %v254
  %v952 = vunpack.c.h.b16 %v254
  %v953 = vunpack.c.l.b16 %v255
  %v954 = vunpack.c.h.b16 %v255
  %v955 = vunpack.c.l.b16 %v256
  %v956 = vunpack.c.h.b16 %v256
  %v957 = vunpack.c.l.b16 %v257
  %v958 = vunpack.c.h.b16 %v257
  %v959 = vunpack.c.l.b16 %v258
  %v960 = vunpack.c.h.b16 %v258
  %v961 = vunpack.c.l.b16 %v259
  %v962 = vunpack.c.h.b16 %v259
  %v963 = vunpack.c.l.b16 %v260
  %v964 = vunpack.c.h.b16 %v260
  %v965 = vunpack.c.l.b16 %v261
  %v966 = vunpack.c.h.b16 %v261
  %v967 = vunpack.c.l.b16 %v262
  %v968 = vunpack.c.h.b16 %v262
  %v969 = vunpack.c.l.b16 %v263
  %v970 = vunpack.c.h.b16 %v263
  %v971 = vunpack.c.l.b16 %v264
  %v972 = vunpack.c.h.b16 %v264
  %v973 = vunpack.c.l.b16 %v265
  %v974 = vunpack.c.h.b16 %v265
  %v975 = vunpack.c.l.b16 %v266
  %v976 = vunpack.c.h.b16 %v266
  %v977 = vunpack.c.l.b16 %v267
  %v978 = vunpack.c.h.b16 %v267
  %v979 = vunpack.c.l.b16 %v268
  %v980 = vunpack.c.h.b16 %v268
  %v981 = vunpack.c.l.b16 %v269
  %v982 = vunpack.c.h.b16 %v269
  %v983 = vunpack.c.l.b16 %v270
  %v984 = vunpack.c.h.b16 %v270
  %v985 = vunpack.c.l.b16 %v271
  %v986 = vunpack.c.h.b16 %v271
  %v987 = vunpack.c.l.b16 %v272
  %v988 = vunpack.c.h.b16 %v272
  %v989 = vunpack.c.l.b16 %v273
  %v990 = vunpack.c.h.b16 %v273
  %v991 = vunpack.c.l.b16 %v274
  %v992 = vunpack.c.h.b16 %v274
  %v993 = vunpack.c.l.b16 %v275
  %v994 = vunpack.c.h.b16 %v275
  %v995 = vunpack.c.l.b16 %v276
  %v996 = vunpack.c.h.b16 %v276
  %v997 = vunpack.c.l.b16 %v277
  %v998 = vunpack.c.h.b16 %v277
  %v999 = vunpack.c.l.b16 %v278
  %v1000 = vunpack.c.h.b16 %v278
  %v1001 = vunpack.c.l.b16 %v279
  %v1002 = vunpack.c.h.b16 %v279
  %v1003 = vunpack.c.l.b16 %v280
  %v1004 = vunpack.c.h.b16 %v280
  %v1005 = vunpack.c.l.b16 %v281
  %v1006 = vunpack.c.h.b16 %v281
  %v1007 = vunpack.c.l.b16 %v282
  %v1008 = vunpack.c.h.b16 %v282
  %v1009 = vunpack.c.l.b16 %v283
  %v1010 = vunpack.c.h.b16 %v283
  %v1011 = vunpack.c.l.b16 %v284
  %v1012 = vunpack.c.h.b16 %v284
  %v1013 = vunpack.c.l.b16 %v285
  %v1014 = vunpack.c.h.b16 %v285
  %v1015 = vunpack.c.l.b16 %v286
  %v1016 = vunpack.c.h.b16 %v286
  %v1017 = vunpack.c.l.b16 %v287
  %v1018 = vunpack.c.h.b16 %v287
  %v1019 = vunpack.c.l.b16 %v288
  %v1020 = vunpack.c.h.b16 %v288
  %v1021 = vunpack.c.l.b16 %v289
  %v1022 = vunpack.c.h.b16 %v289
  %v1023 = vunpack.c.l.b16 %v290
  %v1024 = vunpack.c.h.b16 %v290
  %v1025 = vunpack.c.l.b16 %v291
  %v1026 = vunpack.c.h.b16 %v291
  %v1027 = vunpack.c.l.b16 %v292
  %v1028 = vunpack.c.h.b16 %v292
  %v1029 = vunpack.c.l.b16 %v293
  %v1030 = vunpack.c.h.b16 %v293
  %v1031 = vunpack.c.l.b16 %v294
  %v1032 = vunpack.c.h.b16 %v294
  %v1033 = vunpack.c.l.b16 %v295
  %v1034 = vunpack.c.h.b16 %v295
  %v1035 = vunpack.c.l.b16 %v296
  %v1036 = vunpack.c.h.b16 %v296
  %v1037 = vunpack.c.l.b16 %v297
  %v1038 = vunpack.c.h.b16 %v297
  %v1039 = vunpack.c.l.b16 %v298
  %v1040 = vunpack.c.h.b16 %v298
  %v1041 = vunpack.c.l.b16 %v299
  %v1042 = vunpack.c.h.b16 %v299
  %v1043 = vunpack.c.l.b16 %v300
  %v1044 = vunpack.c.h.b16 %v300
  %v1045 = vunpack.c.l.b16 %v301
  %v1046 = vunpack.c.h.b16 %v301
  %v1047 = vunpack.c.l.b16 %v302
  %v1048 = vunpack.c.h.b16 %v302
  %v1049 = vunpack.c.l.b16 %v303
  %v1050 = vunpack.c.h.b16 %v303
  %v1051 = vunpack.c.l.b16 %v304
  %v1052 = vunpack.c.h.b16 %v304
  %v1053 = vunpack.c.l.b16 %v305
  %v1054 = vunpack.c.h.b16 %v305
  %v1055 = vunpack.c.l.b16 %v306
  %v1056 = vunpack.c.h.b16 %v306
  %v1057 = vunpack.c.l.b16 %v307
  %v1058 = vunpack.c.h.b16 %v307
  %v1059 = vunpack.c.l.b16 %v308
  %v1060 = vunpack.c.h.b16 %v308
  %v1061 = vunpack.c.l.b16 %v309
  %v1062 = vunpack.c.h.b16 %v309
  %v1063 = vunpack.c.l.b16 %v310
  %v1064 = vunpack.c.h.b16 %v310
  %v1065 = vunpack.c.l.b16 %v311
  %v1066 = vunpack.c.h.b16 %v311
  %v1067 = vunpack.c.l.b16 %v312
  %v1068 = vunpack.c.h.b16 %v312
  %v1069 = vunpack.c.l.b16 %v313
  %v1070 = vunpack.c.h.b16 %v313
  %v1071 = vunpack.c.l.b16 %v314
  %v1072 = vunpack.c.h.b16 %v314
  %v1073 = vunpack.c.l.b16 %v315
  %v1074 = vunpack.c.h.b16 %v315
  %v1075 = vunpack.c.l.b16 %v316
  %v1076 = vunpack.c.h.b16 %v316
  %v1077 = vunpack.c.l.b16 %v317
  %v1078 = vunpack.c.h.b16 %v317
  %v1079 = vunpack.c.l.b16 %v318
  %v1080 = vunpack.c.h.b16 %v318
  %v1081 = vunpack.c.l.b16 %v319
  %v1082 = vunpack.c.h.b16 %v319
  %v1083 = vunpack.c.l.b16 %v320
  %v1084 = vunpack.c.h.b16 %v320
  %v1085 = vunpack.c.l.b16 %v321
  %v1086 = vunpack.c.h.b16 %v321
  %v1087 = vunpack.c.l.b16 %v322
  %v1088 = vunpack.c.h.b16 %v322
  %v1089 = vunpack.c.l.b16 %v323
  %v1090 = vunpack.c.h.b16 %v323
  %v1091 = vunpack.c.l.b16 %v324
  %v1092 = vunpack.c.h.b16 %v324
  %v1093 = vunpack.c.l.b16 %v325
  %v1094 = vunpack.c.h.b16 %v325
  %v1095 = vunpack.c.l.b16 %v326
  %v1096 = vunpack.c.h.b16 %v326
  %v1097 = vunpack.c.l.b16 %v327
  %v1098 = vunpack.c.h.b16 %v327
  %v1099 = vunpack.c.l.b16 %v328
  %v1100 = vunpack.c.h.b16 %v328
  %v1101 = vunpack.c.l.b16 %v329
  %v1102 = vunpack.c.h.b16 %v329
  %v1103 = vunpack.c.l.b16 %v330
  %v1104 = vunpack.c.h.b16 %v330
  %v1105 = vunpack.c.l.b16 %v331
  %v1106 = vunpack.c.h.b16 %v331
  %v1107 = vunpack.c.l.b16 %v332
  %v1108 = vunpack.c.h.b16 %v332
  %v1109 = vunpack.c.l.b16 %v333
  %v1110 = vunpack.c.h.b16 %v333
  %v1111 = vunpack.c.l.b16 %v334
  %v1112 = vunpack.c.h.b16 %v334
  %v1113 = vunpack.c.l.b16 %v335
  %v1114 = vunpack.c.h.b16 %v335
  %v1115 = vunpack.c.l.b16 %v336
  %v1116 = vunpack.c.h.b16 %v336
  %v1117 = vunpack.c.l.b16 %v337
  %v1118 = vunpack.c.h.b16 %v337
  %v1119 = vunpack.c.l.b16 %v338
  %v1120 = vunpack.c.h.b16 %v338
  %v1121 = vunpack.c.l.b16 %v339
  %v1122 = vunpack.c.h.b16 %v339
  %v1123 = vunpack.c.l.b16 %v340
  %v1124 = vunpack.c.h.b16 %v340
  %v1125 = vunpack.c.l.b16 %v341
  %v1126 = vunpack.c.h.b16 %v341
  %v1127 = vunpack.c.l.b16 %v342
  %v1128 = vunpack.c.h.b16 %v342
  %v1129 = vunpack.c.l.b16 %v343
  %v1130 = vunpack.c.h.b16 %v343
  %v1131 = vunpack.c.l.b16 %v344
  %v1132 = vunpack.c.h.b16 %v344
  %v1133 = vunpack.c.l.b16 %v345
  %v1134 = vunpack.c.h.b16 %v345
  %v1135 = vunpack.c.l.b16 %v346
  %v1136 = vunpack.c.h.b16 %v346
  %v1137 = vpack.c.b16 %v629, %v625
  %v1138 = vpack.c.b16 %v630, %v626
  %v1139 = vpack.c.b16 %v631, %v627
  %v1140 = vpack.c.b16 %v632, %v628
  %v1141 = vpack.c.b16 %v637, %v633
  %v1142 = vpack.c.b16 %v638, %v634
  %v1143 = vpack.c.b16 %v639, %v635
  %v1144 = vpack.c.b16 %v640, %v636
  %v1145 = vpack.c.b16 %v645, %v641
  %v1146 = vpack.c.b16 %v646, %v642
  %v1147 = vpack.c.b16 %v647, %v643
  %v1148 = vpack.c.b16 %v648, %v644
  %v1149 = vpack.c.b16 %v653, %v649
  %v1150 = vpack.c.b16 %v654, %v650
  %v1151 = vpack.c.b16 %v655, %v651
  %v1152 = vpack.c.b16 %v656, %v652
  %v1153 = vpack.c.b16 %v661, %v657
  %v1154 = vpack.c.b16 %v662, %v658
  %v1155 = vpack.c.b16 %v663, %v659
  %v1156 = vpack.c.b16 %v664, %v660
  %v1157 = vpack.c.b16 %v669, %v665
  %v1158 = vpack.c.b16 %v670, %v666
  %v1159 = vpack.c.b16 %v671, %v667
  %v1160 = vpack.c.b16 %v672, %v668
  %v1161 = vpack.c.b16 %v677, %v673
  %v1162 = vpack.c.b16 %v678, %v674
  %v1163 = vpack.c.b16 %v679, %v675
  %v1164 = vpack.c.b16 %v680, %v676
  %v1165 = vpack.c.b16 %v685, %v681
  %v1166 = vpack.c.b16 %v686, %v682
  %v1167 = vpack.c.b16 %v687, %v683
  %v1168 = vpack.c.b16 %v688, %v684
  %v1169 = vpack.c.b16 %v693, %v689
  %v1170 = vpack.c.b16 %v694, %v690
  %v1171 = vpack.c.b16 %v695, %v691
  %v1172 = vpack.c.b16 %v696, %v692
  %v1173 = vpack.c.b16 %v701, %v697
  %v1174 = vpack.c.b16 %v702, %v698
  %v1175 = vpack.c.b16 %v703, %v699
  %v1176 = vpack.c.b16 %v704, %v700
  %v1177 = vpack.c.b16 %v709, %v705
  %v1178 = vpack.c.b16 %v710, %v706
  %v1179 = vpack.c.b16 %v711, %v707
  %v1180 = vpack.c.b16 %v712, %v708
  %v1181 = vpack.c.b16 %v717, %v713
  %v1182 = vpack.c.b16 %v718, %v714
  %v1183 = vpack.c.b16 %v719, %v715
  %v1184 = vpack.c.b16 %v720, %v716
  %v1185 = vpack.c.b16 %v725, %v721
  %v1186 = vpack.c.b16 %v726, %v722
  %v1187 = vpack.c.b16 %v727, %v723
  %v1188 = vpack.c.b16 %v728, %v724
  %v1189 = vpack.c.b16 %v733, %v729
  %v1190 = vpack.c.b16 %v734, %v730
  %v1191 = vpack.c.b16 %v735, %v731
  %v1192 = vpack.c.b16 %v736, %v732
  %v1193 = vpack.c.b16 %v741, %v737
  %v1194 = vpack.c.b16 %v742, %v738
  %v1195 = vpack.c.b16 %v743, %v739
  %v1196 = vpack.c.b16 %v744, %v740
  %v1197 = vpack.c.b16 %v749, %v745
  %v1198 = vpack.c.b16 %v750, %v746
  %v1199 = vpack.c.b16 %v751, %v747
  %v1200 = vpack.c.b16 %v752, %v748
  %v1201 = vpack.c.b16 %v757, %v753
  %v1202 = vpack.c.b16 %v758, %v754
  %v1203 = vpack.c.b16 %v759, %v755
  %v1204 = vpack.c.b16 %v760, %v756
  %v1205 = vpack.c.b16 %v765, %v761
  %v1206 = vpack.c.b16 %v766, %v762
  %v1207 = vpack.c.b16 %v767, %v763
  %v1208 = vpack.c.b16 %v768, %v764
  %v1209 = vpack.c.b16 %v773, %v769
  %v1210 = vpack.c.b16 %v774, %v770
  %v1211 = vpack.c.b16 %v775, %v771
  %v1212 = vpack.c.b16 %v776, %v772
  %v1213 = vpack.c.b16 %v781, %v777
  %v1214 = vpack.c.b16 %v782, %v778
  %v1215 = vpack.c.b16 %v783, %v779
  %v1216 = vpack.c.b16 %v784, %v780
  %v1217 = vpack.c.b16 %v789, %v785
  %v1218 = vpack.c.b16 %v790, %v786
  %v1219 = vpack.c.b16 %v791, %v787
  %v1220 = vpack.c.b16 %v792, %v788
  %v1221 = vpack.c.b16 %v797, %v793
  %v1222 = vpack.c.b16 %v798, %v794
  %v1223 = vpack.c.b16 %v799, %v795
  %v1224 = vpack.c.b16 %v800, %v796
  %v1225 = vpack.c.b16 %v805, %v801
  %v1226 = vpack.c.b16 %v806, %v802
  %v1227 = vpack.c.b16 %v807, %v803
  %v1228 = vpack.c.b16 %v808, %v804
  %v1229 = vpack.c.b16 %v813, %v809
  %v1230 = vpack.c.b16 %v814, %v810
  %v1231 = vpack.c.b16 %v815, %v811
  %v1232 = vpack.c.b16 %v816, %v812
  %v1233 = vpack.c.b16 %v821, %v817
  %v1234 = vpack.c.b16 %v822, %v818
  %v1235 = vpack.c.b16 %v823, %v819
  %v1236 = vpack.c.b16 %v824, %v820
  %v1237 = vpack.c.b16 %v829, %v825
  %v1238 = vpack.c.b16 %v830, %v826
  %v1239 = vpack.c.b16 %v831, %v827
  %v1240 = vpack.c.b16 %v832, %v828
  %v1241 = vpack.c.b16 %v837, %v833
  %v1242 = vpack.c.b16 %v838, %v834
  %v1243 = vpack.c.b16 %v839, %v835
  %v1244 = vpack.c.b16 %v840, %v836
  %v1245 = vpack.c.b16 %v845, %v841
  %v1246 = vpack.c.b16 %v846, %v842
  %v1247 = vpack.c.b16 %v847, %v843
  %v1248 = vpack.c.b16 %v848, %v844
  %v1249 = vpack.c.b16 %v853, %v849
  %v1250 = vpack.c.b16 %v854, %v850
  %v1251 = vpack.c.b16 %v855, %v851
  %v1252 = vpack.c.b16 %v856, %v852
  %v1253 = vpack.c.b16 %v861, %v857
  %v1254 = vpack.c.b16 %v862, %v858
  %v1255 = vpack.c.b16 %v863, %v859
  %v1256 = vpack.c.b16 %v864, %v860
  %v1257 = vpack.c.b16 %v869, %v865
  %v1258 = vpack.c.b16 %v870, %v866
  %v1259 = vpack.c.b16 %v871, %v867
  %v1260 = vpack.c.b16 %v872, %v868
  %v1261 = vpack.c.b16 %v877, %v873
  %v1262 = vpack.c.b16 %v878, %v874
  %v1263 = vpack.c.b16 %v879, %v875
  %v1264 = vpack.c.b16 %v880, %v876
  %v1265 = vpack.c.b16 %v885, %v881
  %v1266 = vpack.c.b16 %v886, %v882
  %v1267 = vpack.c.b16 %v887, %v883
  %v1268 = vpack.c.b16 %v888, %v884
  %v1269 = vpack.c.b16 %v893, %v889
  %v1270 = vpack.c.b16 %v894, %v890
  %v1271 = vpack.c.b16 %v895, %v891
  %v1272 = vpack.c.b16 %v896, %v892
  %v1273 = vpack.c.b16 %v901, %v897
  %v1274 = vpack.c.b16 %v902, %v898
  %v1275 = vpack.c.b16 %v903, %v899
  %v1276 = vpack.c.b16 %v904, %v900
  %v1277 = vpack.c.b16 %v909, %v905
  %v1278 = vpack.c.b16 %v910, %v906
  %v1279 = vpack.c.b16 %v911, %v907
  %v1280 = vpack.c.b16 %v912, %v908
  %v1281 = vpack.c.b16 %v917, %v913
  %v1282 = vpack.c.b16 %v918, %v914
  %v1283 = vpack.c.b16 %v919, %v915
  %v1284 = vpack.c.b16 %v920, %v916
  %v1285 = vpack.c.b16 %v925, %v921
  %v1286 = vpack.c.b16 %v926, %v922
  %v1287 = vpack.c.b16 %v927, %v923
  %v1288 = vpack.c.b16 %v928, %v924
  %v1289 = vpack.c.b16 %v933, %v929
  %v1290 = vpack.c.b16 %v934, %v930
  %v1291 = vpack.c.b16 %v935, %v931
  %v1292 = vpack.c.b16 %v936, %v932
  %v1293 = vpack.c.b16 %v941, %v937
  %v1294 = vpack.c.b16 %v942, %v938
  %v1295 = vpack.c.b16 %v943, %v939
  %v1296 = vpack.c.b16 %v944, %v940
  %v1297 = vpack.c.b16 %v949, %v945
  %v1298 = vpack.c.b16 %v950, %v946
  %v1299 = vpack.c.b16 %v951, %v947
  %v1300 = vpack.c.b16 %v952, %v948
  %v1301 = vpack.c.b16 %v957, %v953
  %v1302 = vpack.c.b16 %v958, %v954
  %v1303 = vpack.c.b16 %v959, %v955
  %v1304 = vpack.c.b16 %v960, %v956
  %v1305 = vpack.c.b16 %v965, %v961
  %v1306 = vpack.c.b16 %v966, %v962
  %v1307 = vpack.c.b16 %v967, %v963
  %v1308 = vpack.c.b16 %v968, %v964
  %v1309 = vpack.c.b16 %v973, %v969
  %v1310 = vpack.c.b16 %v974, %v970
  %v1311 = vpack.c.b16 %v975, %v971
  %v1312 = vpack.c.b16 %v976, %v972
  %v1313 = vpack.c.b16 %v981, %v977
  %v1314 = vpack.c.b16 %v982, %v978
  %v1315 = vpack.c.b16 %v983, %v979
  %v1316 = vpack.c.b16 %v984, %v980
  %v1317 = vpack.c.b16 %v989, %v985
  %v1318 = vpack.c.b16 %v990, %v986
  %v1319 = vpack.c.b16 %v991, %v987
  %v1320 = vpack.c.b16 %v992, %v988
  %v1321 = vpack.c.b16 %v997, %v993
  %v1322 = vpack.c.b16 %v998, %v994
  %v1323 = vpack.c.b16 %v999, %v995
  %v1324 = vpack.c.b16 %v1000, %v996
  %v1325 = vpack.c.b16 %v1005, %v1001
  %v1326 = vpack.c.b16 %v1006, %v1002
  %v1327 = vpack.c.b16 %v1007, %v1003
  %v1328 = vpack.c.b16 %v1008, %v1004
  %v1329 = vpack.c.b16 %v1013, %v1009
  %v1330 = vpack.c.b16 %v1014, %v1010
  %v1331 = vpack.c.b16 %v1015, %v1011
  %v1332 = vpack.c.b16 %v1016, %v1012
  %v1333 = vpack.c.b16 %v1021, %v1017
  %v1334 = vpack.c.b16 %v1022, %v1018
  %v1335 = vpack.c.b16 %v1023, %v1019
  %v1336 = vpack.c.b16 %v1024, %v1020
  %v1337 = vpack.c.b16 %v1029, %v1025
  %v1338 = vpack.c.b16 %v1030, %v1026
  %v1339 = vpack.c.b16 %v1031, %v1027
  %v1340 = vpack.c.b16 %v1032, %v1028
  %v1341 = vpack.c.b16 %v1037, %v1033
  %v1342 = vpack.c.b16 %v1038, %v1034
  %v1343 = vpack.c.b16 %v1039, %v1035
  %v1344 = vpack.c.b16 %v1040, %v1036
  %v1345 = vpack.c.b16 %v1045, %v1041
  %v1346 = vpack.c.b16 %v1046, %v1042
  %v1347 = vpack.c.b16 %v1047, %v1043
  %v1348 = vpack.c.b16 %v1048, %v1044
  %v1349 = vpack.c.b16 %v1053, %v1049
  %v1350 = vpack.c.b16 %v1054, %v1050
  %v1351 = vpack.c.b16 %v1055, %v1051
  %v1352 = vpack.c.b16 %v1056, %v1052
  %v1353 = vpack.c.b16 %v1061, %v1057
  %v1354 = vpack.c.b16 %v1062, %v1058
  %v1355 = vpack.c.b16 %v1063, %v1059
  %v1356 = vpack.c.b16 %v1064, %v1060
  %v1357 = vpack.c.b16 %v1069, %v1065
  %v1358 = vpack.c.b16 %v1070, %v1066
  %v1359 = vpack.c.b16 %v1071, %v1067
  %v1360 = vpack.c.b16 %v1072, %v1068
  %v1361 = vpack.c.b16 %v1077, %v1073
  %v1362 = vpack.c.b16 %v1078, %v1074
  %v1363 = vpack.c.b16 %v1079, %v1075
  %v1364 = vpack.c.b16 %v1080, %v1076
  %v1365 = vpack.c.b16 %v1085, %v1081
  %v1366 = vpack.c.b16 %v1086, %v1082
  %v1367 = vpack.c.b16 %v1087, %v1083
  %v1368 = vpack.c.b16 %v1088, %v1084
  %v1369 = vpack.c.b16 %v1093, %v1089
  %v1370 = vpack.c.b16 %v1094, %v1090
  %v1371 = vpack.c.b16 %v1095, %v1091
  %v1372 = vpack.c.b16 %v1096, %v1092
  %v1373 = vpack.c.b16 %v1101, %v1097
  %v1374 = vpack.c.b16 %v1102, %v1098
  %v1375 = vpack.c.b16 %v1103, %v1099
  %v1376 = vpack.c.b16 %v1104, %v1100
  %v1377 = vpack.c.b16 %v1109, %v1105
  %v1378 = vpack.c.b16 %v1110, %v1106
  %v1379 = vpack.c.b16 %v1111, %v1107
  %v1380 = vpack.c.b16 %v1112, %v1108
  %v1381 = vpack.c.b16 %v1117, %v1113
  %v1382 = vpack.c.b16 %v1118, %v1114
  %v1383 = vpack.c.b16 %v1119, %v1115
  %v1384 = vpack.c.b16 %v1120, %v1116
  %v1385 = vpack.c.b16 %v1125, %v1121
  %v1386 = vpack.c.b16 %v1126, %v1122
  %v1387 = vpack.c.b16 %v1127, %v1123
  %v1388 = vpack.c.b16 %v1128, %v1124
  %v1389 = vpack.c.b16 %v1133, %v1129
  %v1390 = vpack.c.b16 %v1134, %v1130
  %v1391 = vpack.c.b16 %v1135, %v1131
  %v1392 = vpack.c.b16 %v1136, %v1132
  %1649 = vmatprep.subr.bf16.mxu0 %v1138
  %1650 = vmatpush1.bf16.msra.mxu0 %v1137
  %1651 = vmatprep.subr.bf16.mxu0 %v1142
  %1652 = vmatpush1.bf16.msra.mxu0 %v1141
  %1653 = vmatprep.subr.bf16.mxu0 %v1146
  %1654 = vmatpush1.bf16.msra.mxu0 %v1145
  %1655 = vmatprep.subr.bf16.mxu0 %v1150
  %1656 = vmatpush1.bf16.msra.mxu0 %v1149
  %1657 = vmatprep.subr.bf16.mxu0 %v1154
  %1658 = vmatpush1.bf16.msra.mxu0 %v1153
  %1659 = vmatprep.subr.bf16.mxu0 %v1158
  %1660 = vmatpush1.bf16.msra.mxu0 %v1157
  %1661 = vmatprep.subr.bf16.mxu0 %v1162
  %1662 = vmatpush1.bf16.msra.mxu0 %v1161
  %1663 = vmatprep.subr.bf16.mxu0 %v1166
  %1664 = vmatpush1.bf16.msra.mxu0 %v1165
  %1665 = vmatprep.subr.bf16.mxu0 %v1170
  %1666 = vmatpush1.bf16.msra.mxu0 %v1169
  %1667 = vmatprep.subr.bf16.mxu0 %v1174
  %1668 = vmatpush1.bf16.msra.mxu0 %v1173
  %1669 = vmatprep.subr.bf16.mxu0 %v1178
  %1670 = vmatpush1.bf16.msra.mxu0 %v1177
  %1671 = vmatprep.subr.bf16.mxu0 %v1182
  %1672 = vmatpush1.bf16.msra.mxu0 %v1181
  %1673 = vmatprep.subr.bf16.mxu0 %v1186
  %1674 = vmatpush1.bf16.msra.mxu0 %v1185
  %1675 = vmatprep.subr.bf16.mxu0 %v1190
  %1676 = vmatpush1.bf16.msra.mxu0 %v1189
  %1677 = vmatprep.subr.bf16.mxu0 %v1194
  %1678 = vmatpush1.bf16.msra.mxu0 %v1193
  %1679 = vmatprep.subr.bf16.mxu0 %v1198
  %1680 = vmatpush1.bf16.msra.mxu0 %v1197
  %1681 = vmatprep.mubr.bf16.mxu0 %v84
  %1682 = vmatmul.mubr.bf16.gmra.mrb[0].mxu0 %v83
  %v1683 = vpop.f32.mrb[0].mxu0
  %v1684 = vadd.f32 %v352, %v1683
  %v1685 = vpop.f32.mrb[0].mxu0
  %v1686 = vadd.f32 %v356, %v1685
  %v1687 = vpop.f32.mrb[0].mxu0
  %v1688 = vpop.f32.mrb[0].mxu0
  %1689 = vdwg.mxu0
  %1690 = vmatprep.subr.bf16.mxu0 %v1202
  %1691 = vmatpush1.bf16.msra.mxu0 %v1201
  %1692 = vmatprep.subr.bf16.mxu0 %v1206
  %1693 = vmatpush1.bf16.msra.mxu0 %v1205
  %1694 = vmatprep.subr.bf16.mxu0 %v1210
  %1695 = vmatpush1.bf16.msra.mxu0 %v1209
  %1696 = vmatprep.subr.bf16.mxu0 %v1214
  %1697 = vmatpush1.bf16.msra.mxu0 %v1213
  %1698 = vmatprep.subr.bf16.mxu0 %v1218
  %1699 = vmatpush1.bf16.msra.mxu0 %v1217
  %1700 = vmatprep.subr.bf16.mxu0 %v1222
  %1701 = vmatpush1.bf16.msra.mxu0 %v1221
  %1702 = vmatprep.subr.bf16.mxu0 %v1226
  %1703 = vmatpush1.bf16.msra.mxu0 %v1225
  %1704 = vmatprep.subr.bf16.mxu0 %v1230
  %1705 = vmatpush1.bf16.msra.mxu0 %v1229
  %1706 = vmatprep.subr.bf16.mxu0 %v1234
  %1707 = vmatpush1.bf16.msra.mxu0 %v1233
  %1708 = vmatprep.subr.bf16.mxu0 %v1238
  %1709 = vmatpush1.bf16.msra.mxu0 %v1237
  %1710 = vmatprep.subr.bf16.mxu0 %v1242
  %1711 = vmatpush1.bf16.msra.mxu0 %v1241
  %1712 = vmatprep.subr.bf16.mxu0 %v1246
  %1713 = vmatpush1.bf16.msra.mxu0 %v1245
  %1714 = vmatprep.subr.bf16.mxu0 %v1250
  %1715 = vmatpush1.bf16.msra.mxu0 %v1249
  %1716 = vmatprep.subr.bf16.mxu0 %v1254
  %1717 = vmatpush1.bf16.msra.mxu0 %v1253
  %1718 = vmatprep.subr.bf16.mxu0 %v1258
  %1719 = vmatpush1.bf16.msra.mxu0 %v1257
  %1720 = vmatprep.subr.bf16.mxu0 %v1262
  %1721 = vmatpush1.bf16.msra.mxu0 %v1261
  %1722 = vmatprep.mubr.bf16.mxu0 %v86
  %1723 = vmatmul.mubr.bf16.gmra.mrb[0].mxu0 %v85
  %v1724 = vpop.f32.mrb[0].mxu0
  %v1725 = vadd.f32 %v1684, %v1724
  %v1726 = vpop.f32.mrb[0].mxu0
  %v1727 = vadd.f32 %v1686, %v1726
  %v1728 = vpop.f32.mrb[0].mxu0
  %v1729 = vpop.f32.mrb[0].mxu0
  %1730 = vdwg.mxu0
  %1731 = vmatprep.subr.bf16.mxu0 %v1266
  %1732 = vmatpush1.bf16.msra.mxu0 %v1265
  %1733 = vmatprep.subr.bf16.mxu0 %v1270
  %1734 = vmatpush1.bf16.msra.mxu0 %v1269
  %1735 = vmatprep.subr.bf16.mxu0 %v1274
  %1736 = vmatpush1.bf16.msra.mxu0 %v1273
  %1737 = vmatprep.subr.bf16.mxu0 %v1278
  %1738 = vmatpush1.bf16.msra.mxu0 %v1277
  %1739 = vmatprep.subr.bf16.mxu0 %v1282
  %1740 = vmatpush1.bf16.msra.mxu0 %v1281
  %1741 = vmatprep.subr.bf16.mxu0 %v1286
  %1742 = vmatpush1.bf16.msra.mxu0 %v1285
  %1743 = vmatprep.subr.bf16.mxu0 %v1290
  %1744 = vmatpush1.bf16.msra.mxu0 %v1289
  %1745 = vmatprep.subr.bf16.mxu0 %v1294
  %1746 = vmatpush1.bf16.msra.mxu0 %v1293
  %1747 = vmatprep.subr.bf16.mxu0 %v1298
  %1748 = vmatpush1.bf16.msra.mxu0 %v1297
  %1749 = vmatprep.subr.bf16.mxu0 %v1302
  %1750 = vmatpush1.bf16.msra.mxu0 %v1301
  %1751 = vmatprep.subr.bf16.mxu0 %v1306
  %1752 = vmatpush1.bf16.msra.mxu0 %v1305
  %1753 = vmatprep.subr.bf16.mxu0 %v1310
  %1754 = vmatpush1.bf16.msra.mxu0 %v1309
  %1755 = vmatprep.subr.bf16.mxu0 %v1314
  %1756 = vmatpush1.bf16.msra.mxu0 %v1313
  %1757 = vmatprep.subr.bf16.mxu0 %v1318
  %1758 = vmatpush1.bf16.msra.mxu0 %v1317
  %1759 = vmatprep.subr.bf16.mxu0 %v1322
  %1760 = vmatpush1.bf16.msra.mxu0 %v1321
  %1761 = vmatprep.subr.bf16.mxu0 %v1326
  %1762 = vmatpush1.bf16.msra.mxu0 %v1325
  %1763 = vmatprep.mubr.bf16.mxu0 %v88
  %1764 = vmatmul.mubr.bf16.gmra.mrb[0].mxu0 %v87
  %v1765 = vpop.f32.mrb[0].mxu0
  %v1766 = vadd.f32 %v1725, %v1765
  %v1767 = vpop.f32.mrb[0].mxu0
  %v1768 = vadd.f32 %v1727, %v1767
  %v1769 = vpop.f32.mrb[0].mxu0
  %v1770 = vpop.f32.mrb[0].mxu0
  %1771 = vdwg.mxu0
  %1772 = vmatprep.subr.bf16.mxu0 %v1330
  %1773 = vmatpush1.bf16.msra.mxu0 %v1329
  %1774 = vmatprep.subr.bf16.mxu0 %v1334
  %1775 = vmatpush1.bf16.msra.mxu0 %v1333
  %1776 = vmatprep.subr.bf16.mxu0 %v1338
  %1777 = vmatpush1.bf16.msra.mxu0 %v1337
  %1778 = vmatprep.subr.bf16.mxu0 %v1342
  %1779 = vmatpush1.bf16.msra.mxu0 %v1341
  %1780 = vmatprep.subr.bf16.mxu0 %v1346
  %1781 = vmatpush1.bf16.msra.mxu0 %v1345
  %1782 = vmatprep.subr.bf16.mxu0 %v1350
  %1783 = vmatpush1.bf16.msra.mxu0 %v1349
  %1784 = vmatprep.subr.bf16.mxu0 %v1354
  %1785 = vmatpush1.bf16.msra.mxu0 %v1353
  %1786 = vmatprep.subr.bf16.mxu0 %v1358
  %1787 = vmatpush1.bf16.msra.mxu0 %v1357
  %1788 = vmatprep.subr.bf16.mxu0 %v1362
  %1789 = vmatpush1.bf16.msra.mxu0 %v1361
  %1790 = vmatprep.subr.bf16.mxu0 %v1366
  %1791 = vmatpush1.bf16.msra.mxu0 %v1365
  %1792 = vmatprep.subr.bf16.mxu0 %v1370
  %1793 = vmatpush1.bf16.msra.mxu0 %v1369
  %1794 = vmatprep.subr.bf16.mxu0 %v1374
  %1795 = vmatpush1.bf16.msra.mxu0 %v1373
  %1796 = vmatprep.subr.bf16.mxu0 %v1378
  %1797 = vmatpush1.bf16.msra.mxu0 %v1377
  %1798 = vmatprep.subr.bf16.mxu0 %v1382
  %1799 = vmatpush1.bf16.msra.mxu0 %v1381
  %1800 = vmatprep.subr.bf16.mxu0 %v1386
  %1801 = vmatpush1.bf16.msra.mxu0 %v1385
  %1802 = vmatprep.subr.bf16.mxu0 %v1390
  %1803 = vmatpush1.bf16.msra.mxu0 %v1389
  %1804 = vmatprep.mubr.bf16.mxu0 %v90
  %1805 = vmatmul.mubr.bf16.gmra.mrb[0].mxu0 %v89
  %v1806 = vpop.f32.mrb[0].mxu0
  %v1807 = vadd.f32 %v1766, %v1806
  %v1808 = vpop.f32.mrb[0].mxu0
  %v1809 = vadd.f32 %v1768, %v1808
  %v1810 = vpop.f32.mrb[0].mxu0
  %v1811 = vpop.f32.mrb[0].mxu0
  %1812 = vdwg.mxu0
  %1813 = vmatprep.subr.bf16.mxu0 %v1140
  %1814 = vmatpush1.bf16.msra.mxu0 %v1139
  %1815 = vmatprep.subr.bf16.mxu0 %v1144
  %1816 = vmatpush1.bf16.msra.mxu0 %v1143
  %1817 = vmatprep.subr.bf16.mxu0 %v1148
  %1818 = vmatpush1.bf16.msra.mxu0 %v1147
  %1819 = vmatprep.subr.bf16.mxu0 %v1152
  %1820 = vmatpush1.bf16.msra.mxu0 %v1151
  %1821 = vmatprep.subr.bf16.mxu0 %v1156
  %1822 = vmatpush1.bf16.msra.mxu0 %v1155
  %1823 = vmatprep.subr.bf16.mxu0 %v1160
  %1824 = vmatpush1.bf16.msra.mxu0 %v1159
  %1825 = vmatprep.subr.bf16.mxu0 %v1164
  %1826 = vmatpush1.bf16.msra.mxu0 %v1163
  %1827 = vmatprep.subr.bf16.mxu0 %v1168
  %1828 = vmatpush1.bf16.msra.mxu0 %v1167
  %1829 = vmatprep.subr.bf16.mxu0 %v1172
  %1830 = vmatpush1.bf16.msra.mxu0 %v1171
  %1831 = vmatprep.subr.bf16.mxu0 %v1176
  %1832 = vmatpush1.bf16.msra.mxu0 %v1175
  %1833 = vmatprep.subr.bf16.mxu0 %v1180
  %1834 = vmatpush1.bf16.msra.mxu0 %v1179
  %1835 = vmatprep.subr.bf16.mxu0 %v1184
  %1836 = vmatpush1.bf16.msra.mxu0 %v1183
  %1837 = vmatprep.subr.bf16.mxu0 %v1188
  %1838 = vmatpush1.bf16.msra.mxu0 %v1187
  %1839 = vmatprep.subr.bf16.mxu0 %v1192
  %1840 = vmatpush1.bf16.msra.mxu0 %v1191
  %1841 = vmatprep.subr.bf16.mxu0 %v1196
  %1842 = vmatpush1.bf16.msra.mxu0 %v1195
  %1843 = vmatprep.subr.bf16.mxu0 %v1200
  %1844 = vmatpush1.bf16.msra.mxu0 %v1199
  %1845 = vmatprep.mubr.bf16.mxu0 %v84
  %1846 = vmatmul.mubr.bf16.gmra.mrb[0].mxu0 %v83
  %v1847 = vpop.f32.mrb[0].mxu0
  %v1848 = vadd.f32 %v360, %v1847
  %v1849 = vpop.f32.mrb[0].mxu0
  %v1850 = vadd.f32 %v364, %v1849
  %v1851 = vpop.f32.mrb[0].mxu0
  %v1852 = vpop.f32.mrb[0].mxu0
  %1853 = vdwg.mxu0
  %1854 = vmatprep.subr.bf16.mxu0 %v1204
  %1855 = vmatpush1.bf16.msra.mxu0 %v1203
  %1856 = vmatprep.subr.bf16.mxu0 %v1208
  %1857 = vmatpush1.bf16.msra.mxu0 %v1207
  %1858 = vmatprep.subr.bf16.mxu0 %v1212
  %1859 = vmatpush1.bf16.msra.mxu0 %v1211
  %1860 = vmatprep.subr.bf16.mxu0 %v1216
  %1861 = vmatpush1.bf16.msra.mxu0 %v1215
  %1862 = vmatprep.subr.bf16.mxu0 %v1220
  %1863 = vmatpush1.bf16.msra.mxu0 %v1219
  %1864 = vmatprep.subr.bf16.mxu0 %v1224
  %1865 = vmatpush1.bf16.msra.mxu0 %v1223
  %1866 = vmatprep.subr.bf16.mxu0 %v1228
  %1867 = vmatpush1.bf16.msra.mxu0 %v1227
  %1868 = vmatprep.subr.bf16.mxu0 %v1232
  %1869 = vmatpush1.bf16.msra.mxu0 %v1231
  %1870 = vmatprep.subr.bf16.mxu0 %v1236
  %1871 = vmatpush1.bf16.msra.mxu0 %v1235
  %1872 = vmatprep.subr.bf16.mxu0 %v1240
  %1873 = vmatpush1.bf16.msra.mxu0 %v1239
  %1874 = vmatprep.subr.bf16.mxu0 %v1244
  %1875 = vmatpush1.bf16.msra.mxu0 %v1243
  %1876 = vmatprep.subr.bf16.mxu0 %v1248
  %1877 = vmatpush1.bf16.msra.mxu0 %v1247
  %1878 = vmatprep.subr.bf16.mxu0 %v1252
  %1879 = vmatpush1.bf16.msra.mxu0 %v1251
  %1880 = vmatprep.subr.bf16.mxu0 %v1256
  %1881 = vmatpush1.bf16.msra.mxu0 %v1255
  %1882 = vmatprep.subr.bf16.mxu0 %v1260
  %1883 = vmatpush1.bf16.msra.mxu0 %v1259
  %1884 = vmatprep.subr.bf16.mxu0 %v1264
  %1885 = vmatpush1.bf16.msra.mxu0 %v1263
  %1886 = vmatprep.mubr.bf16.mxu0 %v86
  %1887 = vmatmul.mubr.bf16.gmra.mrb[0].mxu0 %v85
  %v1888 = vpop.f32.mrb[0].mxu0
  %v1889 = vadd.f32 %v1848, %v1888
  %v1890 = vpop.f32.mrb[0].mxu0
  %v1891 = vadd.f32 %v1850, %v1890
  %v1892 = vpop.f32.mrb[0].mxu0
  %v1893 = vpop.f32.mrb[0].mxu0
  %1894 = vdwg.mxu0
  %1895 = vmatprep.subr.bf16.mxu0 %v1268
  %1896 = vmatpush1.bf16.msra.mxu0 %v1267
  %1897 = vmatprep.subr.bf16.mxu0 %v1272
  %1898 = vmatpush1.bf16.msra.mxu0 %v1271
  %1899 = vmatprep.subr.bf16.mxu0 %v1276
  %1900 = vmatpush1.bf16.msra.mxu0 %v1275
  %1901 = vmatprep.subr.bf16.mxu0 %v1280
  %1902 = vmatpush1.bf16.msra.mxu0 %v1279
  %1903 = vmatprep.subr.bf16.mxu0 %v1284
  %1904 = vmatpush1.bf16.msra.mxu0 %v1283
  %1905 = vmatprep.subr.bf16.mxu0 %v1288
  %1906 = vmatpush1.bf16.msra.mxu0 %v1287
  %1907 = vmatprep.subr.bf16.mxu0 %v1292
  %1908 = vmatpush1.bf16.msra.mxu0 %v1291
  %1909 = vmatprep.subr.bf16.mxu0 %v1296
  %1910 = vmatpush1.bf16.msra.mxu0 %v1295
  %1911 = vmatprep.subr.bf16.mxu0 %v1300
  %1912 = vmatpush1.bf16.msra.mxu0 %v1299
  %1913 = vmatprep.subr.bf16.mxu0 %v1304
  %1914 = vmatpush1.bf16.msra.mxu0 %v1303
  %1915 = vmatprep.subr.bf16.mxu0 %v1308
  %1916 = vmatpush1.bf16.msra.mxu0 %v1307
  %1917 = vmatprep.subr.bf16.mxu0 %v1312
  %1918 = vmatpush1.bf16.msra.mxu0 %v1311
  %1919 = vmatprep.subr.bf16.mxu0 %v1316
  %1920 = vmatpush1.bf16.msra.mxu0 %v1315
  %1921 = vmatprep.subr.bf16.mxu0 %v1320
  %1922 = vmatpush1.bf16.msra.mxu0 %v1319
  %1923 = vmatprep.subr.bf16.mxu0 %v1324
  %1924 = vmatpush1.bf16.msra.mxu0 %v1323
  %1925 = vmatprep.subr.bf16.mxu0 %v1328
  %1926 = vmatpush1.bf16.msra.mxu0 %v1327
  %1927 = vmatprep.mubr.bf16.mxu0 %v88
  %1928 = vmatmul.mubr.bf16.gmra.mrb[0].mxu0 %v87
  %v1929 = vpop.f32.mrb[0].mxu0
  %v1930 = vadd.f32 %v1889, %v1929
  %v1931 = vpop.f32.mrb[0].mxu0
  %v1932 = vadd.f32 %v1891, %v1931
  %v1933 = vpop.f32.mrb[0].mxu0
  %v1934 = vpop.f32.mrb[0].mxu0
  %1935 = vdwg.mxu0
  %1936 = vmatprep.subr.bf16.mxu0 %v1332
  %1937 = vmatpush1.bf16.msra.mxu0 %v1331
  %1938 = vmatprep.subr.bf16.mxu0 %v1336
  %1939 = vmatpush1.bf16.msra.mxu0 %v1335
  %1940 = vmatprep.subr.bf16.mxu0 %v1340
  %1941 = vmatpush1.bf16.msra.mxu0 %v1339
  %1942 = vmatprep.subr.bf16.mxu0 %v1344
  %1943 = vmatpush1.bf16.msra.mxu0 %v1343
  %1944 = vmatprep.subr.bf16.mxu0 %v1348
  %1945 = vmatpush1.bf16.msra.mxu0 %v1347
  %1946 = vmatprep.subr.bf16.mxu0 %v1352
  %1947 = vmatpush1.bf16.msra.mxu0 %v1351
  %1948 = vmatprep.subr.bf16.mxu0 %v1356
  %1949 = vmatpush1.bf16.msra.mxu0 %v1355
  %1950 = vmatprep.subr.bf16.mxu0 %v1360
  %1951 = vmatpush1.bf16.msra.mxu0 %v1359
  %1952 = vmatprep.subr.bf16.mxu0 %v1364
  %1953 = vmatpush1.bf16.msra.mxu0 %v1363
  %1954 = vmatprep.subr.bf16.mxu0 %v1368
  %1955 = vmatpush1.bf16.msra.mxu0 %v1367
  %1956 = vmatprep.subr.bf16.mxu0 %v1372
  %1957 = vmatpush1.bf16.msra.mxu0 %v1371
  %1958 = vmatprep.subr.bf16.mxu0 %v1376
  %1959 = vmatpush1.bf16.msra.mxu0 %v1375
  %1960 = vmatprep.subr.bf16.mxu0 %v1380
  %1961 = vmatpush1.bf16.msra.mxu0 %v1379
  %1962 = vmatprep.subr.bf16.mxu0 %v1384
  %1963 = vmatpush1.bf16.msra.mxu0 %v1383
  %1964 = vmatprep.subr.bf16.mxu0 %v1388
  %1965 = vmatpush1.bf16.msra.mxu0 %v1387
  %1966 = vmatprep.subr.bf16.mxu0 %v1392
  %1967 = vmatpush1.bf16.msra.mxu0 %v1391
  %1968 = vmatprep.mubr.bf16.mxu0 %v90
  %1969 = vmatmul.mubr.bf16.gmra.mrb[0].mxu0 %v89
  %v1970 = vpop.f32.mrb[0].mxu0
  %v1971 = vadd.f32 %v1930, %v1970
  %v1972 = vpop.f32.mrb[0].mxu0
  %v1973 = vadd.f32 %v1932, %v1972
  %v1974 = vpop.f32.mrb[0].mxu0
  %v1975 = vpop.f32.mrb[0].mxu0
  %1976 = vdwg.mxu0
  %v1977 = vmax.f32 %v1807, 0.0
  %v1978 = vmax.f32 %v1809, 0.0
  %v1979 = vmax.f32 %v1971, 0.0
  %v1980 = vmax.f32 %v1973, 0.0
  %v1981 = vpack.c.bf16 %v1977, %v1977
  %v1982 = vpack.c.bf16 %v1978, %v1978
  %v1983 = vpack.c.bf16 %v1979, %v1979
  %v1984 = vpack.c.bf16 %v1980, %v1980
  %v1985 = vld [vmem:[%s4] sm:$0xff]
  %v1986 = vld [vmem:[%s4 + $0x8] sm:$0xff]
  %v1987 = vld [vmem:[%s4 + $0x10] sm:$0xff]
  %v1988 = vld [vmem:[%s4 + $0x18] sm:$0xff]
  %v1989 = vld [vmem:[%s4 + $0x20] sm:$0xff]
  %v1990 = vld [vmem:[%s4 + $0x28] sm:$0xff]
  %v1991 = vld [vmem:[%s4 + $0x30] sm:$0xff]
  %v1992 = vld [vmem:[%s4 + $0x38] sm:$0xff]
  %v1993 = vld [vmem:[%s4 + $0x40] sm:$0xff]
  %v1994 = vld [vmem:[%s4 + $0x48] sm:$0xff]
  %v1995 = vld [vmem:[%s4 + $0x50] sm:$0xff]
  %v1996 = vld [vmem:[%s4 + $0x58] sm:$0xff]
  %v1997 = vld [vmem:[%s4 + $0x60] sm:$0xff]
  %v1998 = vld [vmem:[%s4 + $0x68] sm:$0xff]
  %v1999 = vld [vmem:[%s4 + $0x70] sm:$0xff]
  %v2000 = vld [vmem:[%s4 + $0x78] sm:$0xff]
  %v2001 = vld [vmem:[%s4 + $0x80] sm:$0xff]
  %v2002 = vld [vmem:[%s4 + $0x88] sm:$0xff]
  %v2003 = vld [vmem:[%s4 + $0x90] sm:$0xff]
  %v2004 = vld [vmem:[%s4 + $0x98] sm:$0xff]
  %v2005 = vld [vmem:[%s4 + $0xa0] sm:$0xff]
  %v2006 = vld [vmem:[%s4 + $0xa8] sm:$0xff]
  %v2007 = vld [vmem:[%s4 + $0xb0] sm:$0xff]
  %v2008 = vld [vmem:[%s4 + $0xb8] sm:$0xff]
  %v2009 = vld [vmem:[%s4 + $0xc0] sm:$0xff]
  %v2010 = vld [vmem:[%s4 + $0xc8] sm:$0xff]
  %v2011 = vld [vmem:[%s4 + $0xd0] sm:$0xff]
  %v2012 = vld [vmem:[%s4 + $0xd8] sm:$0xff]
  %v2013 = vld [vmem:[%s4 + $0xe0] sm:$0xff]
  %v2014 = vld [vmem:[%s4 + $0xe8] sm:$0xff]
  %v2015 = vld [vmem:[%s4 + $0xf0] sm:$0xff]
  %v2016 = vld [vmem:[%s4 + $0xf8] sm:$0xff]
  %v2017 = vld [vmem:[%s4 + $0x100] sm:$0xff]
  %v2018 = vld [vmem:[%s4 + $0x108] sm:$0xff]
  %v2019 = vld [vmem:[%s4 + $0x110] sm:$0xff]
  %v2020 = vld [vmem:[%s4 + $0x118] sm:$0xff]
  %v2021 = vld [vmem:[%s4 + $0x120] sm:$0xff]
  %v2022 = vld [vmem:[%s4 + $0x128] sm:$0xff]
  %v2023 = vld [vmem:[%s4 + $0x130] sm:$0xff]
  %v2024 = vld [vmem:[%s4 + $0x138] sm:$0xff]
  %v2025 = vld [vmem:[%s4 + $0x140] sm:$0xff]
  %v2026 = vld [vmem:[%s4 + $0x148] sm:$0xff]
  %v2027 = vld [vmem:[%s4 + $0x150] sm:$0xff]
  %v2028 = vld [vmem:[%s4 + $0x158] sm:$0xff]
  %v2029 = vld [vmem:[%s4 + $0x160] sm:$0xff]
  %v2030 = vld [vmem:[%s4 + $0x168] sm:$0xff]
  %v2031 = vld [vmem:[%s4 + $0x170] sm:$0xff]
  %v2032 = vld [vmem:[%s4 + $0x178] sm:$0xff]
  %v2033 = vld [vmem:[%s4 + $0x180] sm:$0xff]
  %v2034 = vld [vmem:[%s4 + $0x188] sm:$0xff]
  %v2035 = vld [vmem:[%s4 + $0x190] sm:$0xff]
  %v2036 = vld [vmem:[%s4 + $0x198] sm:$0xff]
  %v2037 = vld [vmem:[%s4 + $0x1a0] sm:$0xff]
  %v2038 = vld [vmem:[%s4 + $0x1a8] sm:$0xff]
  %v2039 = vld [vmem:[%s4 + $0x1b0] sm:$0xff]
  %v2040 = vld [vmem:[%s4 + $0x1b8] sm:$0xff]
  %v2041 = vld [vmem:[%s4 + $0x1c0] sm:$0xff]
  %v2042 = vld [vmem:[%s4 + $0x1c8] sm:$0xff]
  %v2043 = vld [vmem:[%s4 + $0x1d0] sm:$0xff]
  %v2044 = vld [vmem:[%s4 + $0x1d8] sm:$0xff]
  %v2045 = vld [vmem:[%s4 + $0x1e0] sm:$0xff]
  %v2046 = vld [vmem:[%s4 + $0x1e8] sm:$0xff]
  %v2047 = vld [vmem:[%s4 + $0x1f0] sm:$0xff]
  %v2048 = vld [vmem:[%s4 + $0x1f8] sm:$0xff]
  %v2049 = vld [vmem:[%s5] sm:$0x3]
  %v2051 = vlaneseq
  %v2052 = vshrl.u32 %v2051, 7
  %v2053 = vsub.s32 0, %v2052
  %v2054 = vrot.slane %v2049, %v2053
  %v2055 = vlaneseq
  %v2056 = vshrl.u32 %v2055, 7
  %v2057 = vsub.s32 1, %v2056
  %v2058 = vrot.slane %v2049, %v2057
  %v2125 = vunpack.c.l.b16 %v1985
  %v2126 = vunpack.c.h.b16 %v1985
  %v2127 = vunpack.c.l.b16 %v1986
  %v2128 = vunpack.c.h.b16 %v1986
  %v2129 = vunpack.c.l.b16 %v1987
  %v2130 = vunpack.c.h.b16 %v1987
  %v2131 = vunpack.c.l.b16 %v1988
  %v2132 = vunpack.c.h.b16 %v1988
  %v2133 = vunpack.c.l.b16 %v1989
  %v2134 = vunpack.c.h.b16 %v1989
  %v2135 = vunpack.c.l.b16 %v1990
  %v2136 = vunpack.c.h.b16 %v1990
  %v2137 = vunpack.c.l.b16 %v1991
  %v2138 = vunpack.c.h.b16 %v1991
  %v2139 = vunpack.c.l.b16 %v1992
  %v2140 = vunpack.c.h.b16 %v1992
  %v2141 = vunpack.c.l.b16 %v1993
  %v2142 = vunpack.c.h.b16 %v1993
  %v2143 = vunpack.c.l.b16 %v1994
  %v2144 = vunpack.c.h.b16 %v1994
  %v2145 = vunpack.c.l.b16 %v1995
  %v2146 = vunpack.c.h.b16 %v1995
  %v2147 = vunpack.c.l.b16 %v1996
  %v2148 = vunpack.c.h.b16 %v1996
  %v2149 = vunpack.c.l.b16 %v1997
  %v2150 = vunpack.c.h.b16 %v1997
  %v2151 = vunpack.c.l.b16 %v1998
  %v2152 = vunpack.c.h.b16 %v1998
  %v2153 = vunpack.c.l.b16 %v1999
  %v2154 = vunpack.c.h.b16 %v1999
  %v2155 = vunpack.c.l.b16 %v2000
  %v2156 = vunpack.c.h.b16 %v2000
  %v2157 = vunpack.c.l.b16 %v2001
  %v2158 = vunpack.c.h.b16 %v2001
  %v2159 = vunpack.c.l.b16 %v2002
  %v2160 = vunpack.c.h.b16 %v2002
  %v2161 = vunpack.c.l.b16 %v2003
  %v2162 = vunpack.c.h.b16 %v2003
  %v2163 = vunpack.c.l.b16 %v2004
  %v2164 = vunpack.c.h.b16 %v2004
  %v2165 = vunpack.c.l.b16 %v2005
  %v2166 = vunpack.c.h.b16 %v2005
  %v2167 = vunpack.c.l.b16 %v2006
  %v2168 = vunpack.c.h.b16 %v2006
  %v2169 = vunpack.c.l.b16 %v2007
  %v2170 = vunpack.c.h.b16 %v2007
  %v2171 = vunpack.c.l.b16 %v2008
  %v2172 = vunpack.c.h.b16 %v2008
  %v2173 = vunpack.c.l.b16 %v2009
  %v2174 = vunpack.c.h.b16 %v2009
  %v2175 = vunpack.c.l.b16 %v2010
  %v2176 = vunpack.c.h.b16 %v2010
  %v2177 = vunpack.c.l.b16 %v2011
  %v2178 = vunpack.c.h.b16 %v2011
  %v2179 = vunpack.c.l.b16 %v2012
  %v2180 = vunpack.c.h.b16 %v2012
  %v2181 = vunpack.c.l.b16 %v2013
  %v2182 = vunpack.c.h.b16 %v2013
  %v2183 = vunpack.c.l.b16 %v2014
  %v2184 = vunpack.c.h.b16 %v2014
  %v2185 = vunpack.c.l.b16 %v2015
  %v2186 = vunpack.c.h.b16 %v2015
  %v2187 = vunpack.c.l.b16 %v2016
  %v2188 = vunpack.c.h.b16 %v2016
  %v2189 = vunpack.c.l.b16 %v2017
  %v2190 = vunpack.c.h.b16 %v2017
  %v2191 = vunpack.c.l.b16 %v2018
  %v2192 = vunpack.c.h.b16 %v2018
  %v2193 = vunpack.c.l.b16 %v2019
  %v2194 = vunpack.c.h.b16 %v2019
  %v2195 = vunpack.c.l.b16 %v2020
  %v2196 = vunpack.c.h.b16 %v2020
  %v2197 = vunpack.c.l.b16 %v2021
  %v2198 = vunpack.c.h.b16 %v2021
  %v2199 = vunpack.c.l.b16 %v2022
  %v2200 = vunpack.c.h.b16 %v2022
  %v2201 = vunpack.c.l.b16 %v2023
  %v2202 = vunpack.c.h.b16 %v2023
  %v2203 = vunpack.c.l.b16 %v2024
  %v2204 = vunpack.c.h.b16 %v2024
  %v2205 = vunpack.c.l.b16 %v2025
  %v2206 = vunpack.c.h.b16 %v2025
  %v2207 = vunpack.c.l.b16 %v2026
  %v2208 = vunpack.c.h.b16 %v2026
  %v2209 = vunpack.c.l.b16 %v2027
  %v2210 = vunpack.c.h.b16 %v2027
  %v2211 = vunpack.c.l.b16 %v2028
  %v2212 = vunpack.c.h.b16 %v2028
  %v2213 = vunpack.c.l.b16 %v2029
  %v2214 = vunpack.c.h.b16 %v2029
  %v2215 = vunpack.c.l.b16 %v2030
  %v2216 = vunpack.c.h.b16 %v2030
  %v2217 = vunpack.c.l.b16 %v2031
  %v2218 = vunpack.c.h.b16 %v2031
  %v2219 = vunpack.c.l.b16 %v2032
  %v2220 = vunpack.c.h.b16 %v2032
  %v2221 = vunpack.c.l.b16 %v2033
  %v2222 = vunpack.c.h.b16 %v2033
  %v2223 = vunpack.c.l.b16 %v2034
  %v2224 = vunpack.c.h.b16 %v2034
  %v2225 = vunpack.c.l.b16 %v2035
  %v2226 = vunpack.c.h.b16 %v2035
  %v2227 = vunpack.c.l.b16 %v2036
  %v2228 = vunpack.c.h.b16 %v2036
  %v2229 = vunpack.c.l.b16 %v2037
  %v2230 = vunpack.c.h.b16 %v2037
  %v2231 = vunpack.c.l.b16 %v2038
  %v2232 = vunpack.c.h.b16 %v2038
  %v2233 = vunpack.c.l.b16 %v2039
  %v2234 = vunpack.c.h.b16 %v2039
  %v2235 = vunpack.c.l.b16 %v2040
  %v2236 = vunpack.c.h.b16 %v2040
  %v2237 = vunpack.c.l.b16 %v2041
  %v2238 = vunpack.c.h.b16 %v2041
  %v2239 = vunpack.c.l.b16 %v2042
  %v2240 = vunpack.c.h.b16 %v2042
  %v2241 = vunpack.c.l.b16 %v2043
  %v2242 = vunpack.c.h.b16 %v2043
  %v2243 = vunpack.c.l.b16 %v2044
  %v2244 = vunpack.c.h.b16 %v2044
  %v2245 = vunpack.c.l.b16 %v2045
  %v2246 = vunpack.c.h.b16 %v2045
  %v2247 = vunpack.c.l.b16 %v2046
  %v2248 = vunpack.c.h.b16 %v2046
  %v2249 = vunpack.c.l.b16 %v2047
  %v2250 = vunpack.c.h.b16 %v2047
  %v2251 = vunpack.c.l.b16 %v2048
  %v2252 = vunpack.c.h.b16 %v2048
  %v2253 = vpack.c.b16 %v2127, %v2125
  %v2254 = vpack.c.b16 %v2128, %v2126
  %v2255 = vpack.c.b16 %v2131, %v2129
  %v2256 = vpack.c.b16 %v2132, %v2130
  %v2257 = vpack.c.b16 %v2135, %v2133
  %v2258 = vpack.c.b16 %v2136, %v2134
  %v2259 = vpack.c.b16 %v2139, %v2137
  %v2260 = vpack.c.b16 %v2140, %v2138
  %v2261 = vpack.c.b16 %v2143, %v2141
  %v2262 = vpack.c.b16 %v2144, %v2142
  %v2263 = vpack.c.b16 %v2147, %v2145
  %v2264 = vpack.c.b16 %v2148, %v2146
  %v2265 = vpack.c.b16 %v2151, %v2149
  %v2266 = vpack.c.b16 %v2152, %v2150
  %v2267 = vpack.c.b16 %v2155, %v2153
  %v2268 = vpack.c.b16 %v2156, %v2154
  %v2269 = vpack.c.b16 %v2159, %v2157
  %v2270 = vpack.c.b16 %v2160, %v2158
  %v2271 = vpack.c.b16 %v2163, %v2161
  %v2272 = vpack.c.b16 %v2164, %v2162
  %v2273 = vpack.c.b16 %v2167, %v2165
  %v2274 = vpack.c.b16 %v2168, %v2166
  %v2275 = vpack.c.b16 %v2171, %v2169
  %v2276 = vpack.c.b16 %v2172, %v2170
  %v2277 = vpack.c.b16 %v2175, %v2173
  %v2278 = vpack.c.b16 %v2176, %v2174
  %v2279 = vpack.c.b16 %v2179, %v2177
  %v2280 = vpack.c.b16 %v2180, %v2178
  %v2281 = vpack.c.b16 %v2183, %v2181
  %v2282 = vpack.c.b16 %v2184, %v2182
  %v2283 = vpack.c.b16 %v2187, %v2185
  %v2284 = vpack.c.b16 %v2188, %v2186
  %v2285 = vpack.c.b16 %v2191, %v2189
  %v2286 = vpack.c.b16 %v2192, %v2190
  %v2287 = vpack.c.b16 %v2195, %v2193
  %v2288 = vpack.c.b16 %v2196, %v2194
  %v2289 = vpack.c.b16 %v2199, %v2197
  %v2290 = vpack.c.b16 %v2200, %v2198
  %v2291 = vpack.c.b16 %v2203, %v2201
  %v2292 = vpack.c.b16 %v2204, %v2202
  %v2293 = vpack.c.b16 %v2207, %v2205
  %v2294 = vpack.c.b16 %v2208, %v2206
  %v2295 = vpack.c.b16 %v2211, %v2209
  %v2296 = vpack.c.b16 %v2212, %v2210
  %v2297 = vpack.c.b16 %v2215, %v2213
  %v2298 = vpack.c.b16 %v2216, %v2214
  %v2299 = vpack.c.b16 %v2219, %v2217
  %v2300 = vpack.c.b16 %v2220, %v2218
  %v2301 = vpack.c.b16 %v2223, %v2221
  %v2302 = vpack.c.b16 %v2224, %v2222
  %v2303 = vpack.c.b16 %v2227, %v2225
  %v2304 = vpack.c.b16 %v2228, %v2226
  %v2305 = vpack.c.b16 %v2231, %v2229
  %v2306 = vpack.c.b16 %v2232, %v2230
  %v2307 = vpack.c.b16 %v2235, %v2233
  %v2308 = vpack.c.b16 %v2236, %v2234
  %v2309 = vpack.c.b16 %v2239, %v2237
  %v2310 = vpack.c.b16 %v2240, %v2238
  %v2311 = vpack.c.b16 %v2243, %v2241
  %v2312 = vpack.c.b16 %v2244, %v2242
  %v2313 = vpack.c.b16 %v2247, %v2245
  %v2314 = vpack.c.b16 %v2248, %v2246
  %v2315 = vpack.c.b16 %v2251, %v2249
  %v2316 = vpack.c.b16 %v2252, %v2250
  %2381 = vmatprep.subr.bf16.mxu0 %v2254
  %2382 = vmatpush1.bf16.msra.mxu0 %v2253
  %2383 = vmatprep.subr.bf16.mxu0 %v2256
  %2384 = vmatpush1.bf16.msra.mxu0 %v2255
  %2385 = vmatprep.subr.bf16.mxu0 %v2258
  %2386 = vmatpush1.bf16.msra.mxu0 %v2257
  %2387 = vmatprep.subr.bf16.mxu0 %v2260
  %2388 = vmatpush1.bf16.msra.mxu0 %v2259
  %2389 = vmatprep.subr.bf16.mxu0 %v2262
  %2390 = vmatpush1.bf16.msra.mxu0 %v2261
  %2391 = vmatprep.subr.bf16.mxu0 %v2264
  %2392 = vmatpush1.bf16.msra.mxu0 %v2263
  %2393 = vmatprep.subr.bf16.mxu0 %v2266
  %2394 = vmatpush1.bf16.msra.mxu0 %v2265
  %2395 = vmatprep.subr.bf16.mxu0 %v2268
  %2396 = vmatpush1.bf16.msra.mxu0 %v2267
  %2397 = vmatprep.subr.bf16.mxu0 %v2270
  %2398 = vmatpush1.bf16.msra.mxu0 %v2269
  %2399 = vmatprep.subr.bf16.mxu0 %v2272
  %2400 = vmatpush1.bf16.msra.mxu0 %v2271
  %2401 = vmatprep.subr.bf16.mxu0 %v2274
  %2402 = vmatpush1.bf16.msra.mxu0 %v2273
  %2403 = vmatprep.subr.bf16.mxu0 %v2276
  %2404 = vmatpush1.bf16.msra.mxu0 %v2275
  %2405 = vmatprep.subr.bf16.mxu0 %v2278
  %2406 = vmatpush1.bf16.msra.mxu0 %v2277
  %2407 = vmatprep.subr.bf16.mxu0 %v2280
  %2408 = vmatpush1.bf16.msra.mxu0 %v2279
  %2409 = vmatprep.subr.bf16.mxu0 %v2282
  %2410 = vmatpush1.bf16.msra.mxu0 %v2281
  %2411 = vmatprep.subr.bf16.mxu0 %v2284
  %2412 = vmatpush1.bf16.msra.mxu0 %v2283
  %2413 = vmatprep.mubr.bf16.mxu0 %v1982
  %2414 = vmatmul.mubr.bf16.gmra.mrb[0].mxu0 %v1981
  %v2415 = vpop.f32.mrb[0].mxu0
  %v2416 = vadd.f32 %v2054, %v2415
  %v2417 = vpop.f32.mrb[0].mxu0
  %v2418 = vadd.f32 %v2058, %v2417
  %v2419 = vpop.f32.mrb[0].mxu0
  %v2420 = vpop.f32.mrb[0].mxu0
  %2421 = vdwg.mxu0
  %2422 = vmatprep.subr.bf16.mxu0 %v2286
  %2423 = vmatpush1.bf16.msra.mxu0 %v2285
  %2424 = vmatprep.subr.bf16.mxu0 %v2288
  %2425 = vmatpush1.bf16.msra.mxu0 %v2287
  %2426 = vmatprep.subr.bf16.mxu0 %v2290
  %2427 = vmatpush1.bf16.msra.mxu0 %v2289
  %2428 = vmatprep.subr.bf16.mxu0 %v2292
  %2429 = vmatpush1.bf16.msra.mxu0 %v2291
  %2430 = vmatprep.subr.bf16.mxu0 %v2294
  %2431 = vmatpush1.bf16.msra.mxu0 %v2293
  %2432 = vmatprep.subr.bf16.mxu0 %v2296
  %2433 = vmatpush1.bf16.msra.mxu0 %v2295
  %2434 = vmatprep.subr.bf16.mxu0 %v2298
  %2435 = vmatpush1.bf16.msra.mxu0 %v2297
  %2436 = vmatprep.subr.bf16.mxu0 %v2300
  %2437 = vmatpush1.bf16.msra.mxu0 %v2299
  %2438 = vmatprep.subr.bf16.mxu0 %v2302
  %2439 = vmatpush1.bf16.msra.mxu0 %v2301
  %2440 = vmatprep.subr.bf16.mxu0 %v2304
  %2441 = vmatpush1.bf16.msra.mxu0 %v2303
  %2442 = vmatprep.subr.bf16.mxu0 %v2306
  %2443 = vmatpush1.bf16.msra.mxu0 %v2305
  %2444 = vmatprep.subr.bf16.mxu0 %v2308
  %2445 = vmatpush1.bf16.msra.mxu0 %v2307
  %2446 = vmatprep.subr.bf16.mxu0 %v2310
  %2447 = vmatpush1.bf16.msra.mxu0 %v2309
  %2448 = vmatprep.subr.bf16.mxu0 %v2312
  %2449 = vmatpush1.bf16.msra.mxu0 %v2311
  %2450 = vmatprep.subr.bf16.mxu0 %v2314
  %2451 = vmatpush1.bf16.msra.mxu0 %v2313
  %2452 = vmatprep.subr.bf16.mxu0 %v2316
  %2453 = vmatpush1.bf16.msra.mxu0 %v2315
  %2454 = vmatprep.mubr.bf16.mxu0 %v1984
  %2455 = vmatmul.mubr.bf16.gmra.mrb[0].mxu0 %v1983
  %v2456 = vpop.f32.mrb[0].mxu0
  %v2457 = vadd.f32 %v2416, %v2456
  %v2458 = vpop.f32.mrb[0].mxu0
  %v2459 = vadd.f32 %v2418, %v2458
  %v2460 = vpop.f32.mrb[0].mxu0
  %v2461 = vpop.f32.mrb[0].mxu0
  %2462 = vdwg.mxu0
  %v2463 = vmax.f32 %v2457, 0.0
  %v2464 = vmax.f32 %v2459, 0.0
  %v2465 = vpack.c.bf16 %v2463, %v2463
  %v2466 = vpack.c.bf16 %v2464, %v2464
  %v2467 = vld [vmem:[%s6] sm:$0xf]
  %v2468 = vld [vmem:[%s6 + $0x4] sm:$0xf]
  %v2469 = vld [vmem:[%s6 + $0x8] sm:$0xf]
  %v2470 = vld [vmem:[%s6 + $0xc] sm:$0xf]
  %v2471 = vld [vmem:[%s6 + $0x10] sm:$0xf]
  %v2472 = vld [vmem:[%s6 + $0x14] sm:$0xf]
  %v2473 = vld [vmem:[%s6 + $0x18] sm:$0xf]
  %v2474 = vld [vmem:[%s6 + $0x1c] sm:$0xf]
  %v2475 = vld [vmem:[%s6 + $0x20] sm:$0xf]
  %v2476 = vld [vmem:[%s6 + $0x24] sm:$0xf]
  %v2477 = vld [vmem:[%s6 + $0x28] sm:$0xf]
  %v2478 = vld [vmem:[%s6 + $0x2c] sm:$0xf]
  %v2479 = vld [vmem:[%s6 + $0x30] sm:$0xf]
  %v2480 = vld [vmem:[%s6 + $0x34] sm:$0xf]
  %v2481 = vld [vmem:[%s6 + $0x38] sm:$0xf]
  %v2482 = vld [vmem:[%s6 + $0x3c] sm:$0xf]
  %v2483 = vld [vmem:[%s6 + $0x40] sm:$0xf]
  %v2484 = vld [vmem:[%s6 + $0x44] sm:$0xf]
  %v2485 = vld [vmem:[%s6 + $0x48] sm:$0xf]
  %v2486 = vld [vmem:[%s6 + $0x4c] sm:$0xf]
  %v2487 = vld [vmem:[%s6 + $0x50] sm:$0xf]
  %v2488 = vld [vmem:[%s6 + $0x54] sm:$0xf]
  %v2489 = vld [vmem:[%s6 + $0x58] sm:$0xf]
  %v2490 = vld [vmem:[%s6 + $0x5c] sm:$0xf]
  %v2491 = vld [vmem:[%s6 + $0x60] sm:$0xf]
  %v2492 = vld [vmem:[%s6 + $0x64] sm:$0xf]
  %v2493 = vld [vmem:[%s6 + $0x68] sm:$0xf]
  %v2494 = vld [vmem:[%s6 + $0x6c] sm:$0xf]
  %v2495 = vld [vmem:[%s6 + $0x70] sm:$0xf]
  %v2496 = vld [vmem:[%s6 + $0x74] sm:$0xf]
  %v2497 = vld [vmem:[%s6 + $0x78] sm:$0xf]
  %v2498 = vld [vmem:[%s6 + $0x7c] sm:$0xf]
  %v2499 = vld [vmem:[%s7] sm:$0x1]
  %v2501 = vlaneseq
  %v2502 = vshrl.u32 %v2501, 7
  %v2503 = vsub.s32 0, %v2502
  %v2504 = vrot.slane %v2499, %v2503
  %v2538 = vunpack.c.l.b16 %v2467
  %v2539 = vunpack.c.l.b16 %v2468
  %v2540 = vunpack.c.l.b16 %v2469
  %v2541 = vunpack.c.l.b16 %v2470
  %v2542 = vunpack.c.l.b16 %v2471
  %v2543 = vunpack.c.l.b16 %v2472
  %v2544 = vunpack.c.l.b16 %v2473
  %v2545 = vunpack.c.l.b16 %v2474
  %v2546 = vunpack.c.l.b16 %v2475
  %v2547 = vunpack.c.l.b16 %v2476
  %v2548 = vunpack.c.l.b16 %v2477
  %v2549 = vunpack.c.l.b16 %v2478
  %v2550 = vunpack.c.l.b16 %v2479
  %v2551 = vunpack.c.l.b16 %v2480
  %v2552 = vunpack.c.l.b16 %v2481
  %v2553 = vunpack.c.l.b16 %v2482
  %v2554 = vunpack.c.l.b16 %v2483
  %v2555 = vunpack.c.l.b16 %v2484
  %v2556 = vunpack.c.l.b16 %v2485
  %v2557 = vunpack.c.l.b16 %v2486
  %v2558 = vunpack.c.l.b16 %v2487
  %v2559 = vunpack.c.l.b16 %v2488
  %v2560 = vunpack.c.l.b16 %v2489
  %v2561 = vunpack.c.l.b16 %v2490
  %v2562 = vunpack.c.l.b16 %v2491
  %v2563 = vunpack.c.l.b16 %v2492
  %v2564 = vunpack.c.l.b16 %v2493
  %v2565 = vunpack.c.l.b16 %v2494
  %v2566 = vunpack.c.l.b16 %v2495
  %v2567 = vunpack.c.l.b16 %v2496
  %v2568 = vunpack.c.l.b16 %v2497
  %v2569 = vunpack.c.l.b16 %v2498
  %v2570 = vpack.c.b16 %v2539, %v2538
  %v2571 = vpack.c.b16 %v2541, %v2540
  %v2572 = vpack.c.b16 %v2543, %v2542
  %v2573 = vpack.c.b16 %v2545, %v2544
  %v2574 = vpack.c.b16 %v2547, %v2546
  %v2575 = vpack.c.b16 %v2549, %v2548
  %v2576 = vpack.c.b16 %v2551, %v2550
  %v2577 = vpack.c.b16 %v2553, %v2552
  %v2578 = vpack.c.b16 %v2555, %v2554
  %v2579 = vpack.c.b16 %v2557, %v2556
  %v2580 = vpack.c.b16 %v2559, %v2558
  %v2581 = vpack.c.b16 %v2561, %v2560
  %v2582 = vpack.c.b16 %v2563, %v2562
  %v2583 = vpack.c.b16 %v2565, %v2564
  %v2584 = vpack.c.b16 %v2567, %v2566
  %v2585 = vpack.c.b16 %v2569, %v2568
  %2602 = vmatprep.subr.bf16.mxu0 0
  %2603 = vmatpush1.bf16.msra.mxu0 %v2570
  %2604 = vmatprep.subr.bf16.mxu0 0
  %2605 = vmatpush1.bf16.msra.mxu0 %v2571
  %2606 = vmatprep.subr.bf16.mxu0 0
  %2607 = vmatpush1.bf16.msra.mxu0 %v2572
  %2608 = vmatprep.subr.bf16.mxu0 0
  %2609 = vmatpush1.bf16.msra.mxu0 %v2573
  %2610 = vmatprep.subr.bf16.mxu0 0
  %2611 = vmatpush1.bf16.msra.mxu0 %v2574
  %2612 = vmatprep.subr.bf16.mxu0 0
  %2613 = vmatpush1.bf16.msra.mxu0 %v2575
  %2614 = vmatprep.subr.bf16.mxu0 0
  %2615 = vmatpush1.bf16.msra.mxu0 %v2576
  %2616 = vmatprep.subr.bf16.mxu0 0
  %2617 = vmatpush1.bf16.msra.mxu0 %v2577
  %2618 = vmatprep.subr.bf16.mxu0 0
  %2619 = vmatpush1.bf16.msra.mxu0 %v2578
  %2620 = vmatprep.subr.bf16.mxu0 0
  %2621 = vmatpush1.bf16.msra.mxu0 %v2579
  %2622 = vmatprep.subr.bf16.mxu0 0
  %2623 = vmatpush1.bf16.msra.mxu0 %v2580
  %2624 = vmatprep.subr.bf16.mxu0 0
  %2625 = vmatpush1.bf16.msra.mxu0 %v2581
  %2626 = vmatprep.subr.bf16.mxu0 0
  %2627 = vmatpush1.bf16.msra.mxu0 %v2582
  %2628 = vmatprep.subr.bf16.mxu0 0
  %2629 = vmatpush1.bf16.msra.mxu0 %v2583
  %2630 = vmatprep.subr.bf16.mxu0 0
  %2631 = vmatpush1.bf16.msra.mxu0 %v2584
  %2632 = vmatprep.subr.bf16.mxu0 0
  %2633 = vmatpush1.bf16.msra.mxu0 %v2585
  %2634 = vmatprep.mubr.bf16.mxu0 %v2466
  %2635 = vmatmul.mubr.bf16.gmra.mrb[0].mxu0 %v2465
  %v2636 = vpop.f32.mrb[0].mxu0
  %v2637 = vadd.f32 %v2504, %v2636
  %v2638 = vpop.f32.mrb[0].mxu0
  %v2639 = vpop.f32.mrb[0].mxu0
  %v2640 = vpop.f32.mrb[0].mxu0
  %2641 = vdwg.mxu0
  %v2642 = vpack.c.bf16 %v2637, %v2637
  %v2643 = vld [vmem:[%s8] sm:$0xf]
  %v2644 = vld [vmem:[%s8 + $0x4] sm:$0xf]
  %v2645 = vld [vmem:[%s8 + $0x8] sm:$0xf]
  %v2646 = vld [vmem:[%s8 + $0xc] sm:$0xf]
  %v2647 = vld [vmem:[%s8 + $0x10] sm:$0xf]
  %v2648 = vld [vmem:[%s8 + $0x14] sm:$0xf]
  %v2649 = vld [vmem:[%s8 + $0x18] sm:$0xf]
  %v2650 = vld [vmem:[%s8 + $0x1c] sm:$0xf]
  %v2651 = vld [vmem:[%s8 + $0x20] sm:$0xf]
  %v2652 = vld [vmem:[%s8 + $0x24] sm:$0xf]
  %v2653 = vld [vmem:[%s8 + $0x28] sm:$0xf]
  %v2654 = vld [vmem:[%s8 + $0x2c] sm:$0xf]
  %v2655 = vld [vmem:[%s8 + $0x30] sm:$0xf]
  %v2656 = vld [vmem:[%s8 + $0x34] sm:$0xf]
  %v2657 = vld [vmem:[%s8 + $0x38] sm:$0xf]
  %v2658 = vld [vmem:[%s8 + $0x3c] sm:$0xf]
  %v2659 = vld [vmem:[%s9] sm:$0x1]
  %v2661 = vlaneseq
  %v2662 = vshrl.u32 %v2661, 7
  %v2663 = vsub.s32 0, %v2662
  %v2664 = vrot.slane %v2659, %v2663
  %v2682 = vunpack.c.l.b16 %v2643
  %v2683 = vunpack.c.l.b16 %v2644
  %v2684 = vunpack.c.l.b16 %v2645
  %v2685 = vunpack.c.l.b16 %v2646
  %v2686 = vunpack.c.l.b16 %v2647
  %v2687 = vunpack.c.l.b16 %v2648
  %v2688 = vunpack.c.l.b16 %v2649
  %v2689 = vunpack.c.l.b16 %v2650
  %v2690 = vunpack.c.l.b16 %v2651
  %v2691 = vunpack.c.l.b16 %v2652
  %v2692 = vunpack.c.l.b16 %v2653
  %v2693 = vunpack.c.l.b16 %v2654
  %v2694 = vunpack.c.l.b16 %v2655
  %v2695 = vunpack.c.l.b16 %v2656
  %v2696 = vunpack.c.l.b16 %v2657
  %v2697 = vunpack.c.l.b16 %v2658
  %v2698 = vpack.c.b16 %v2683, %v2682
  %v2699 = vpack.c.b16 %v2685, %v2684
  %v2700 = vpack.c.b16 %v2687, %v2686
  %v2701 = vpack.c.b16 %v2689, %v2688
  %v2702 = vpack.c.b16 %v2691, %v2690
  %v2703 = vpack.c.b16 %v2693, %v2692
  %v2704 = vpack.c.b16 %v2695, %v2694
  %v2705 = vpack.c.b16 %v2697, %v2696
  %2714 = vmatprep.subr.bf16.mxu0 0
  %2715 = vmatpush1.bf16.msra.mxu0 %v2698
  %2716 = vmatprep.subr.bf16.mxu0 0
  %2717 = vmatpush1.bf16.msra.mxu0 %v2699
  %2718 = vmatprep.subr.bf16.mxu0 0
  %2719 = vmatpush1.bf16.msra.mxu0 %v2700
  %2720 = vmatprep.subr.bf16.mxu0 0
  %2721 = vmatpush1.bf16.msra.mxu0 %v2701
  %2722 = vmatprep.subr.bf16.mxu0 0
  %2723 = vmatpush1.bf16.msra.mxu0 %v2702
  %2724 = vmatprep.subr.bf16.mxu0 0
  %2725 = vmatpush1.bf16.msra.mxu0 %v2703
  %2726 = vmatprep.subr.bf16.mxu0 0
  %2727 = vmatpush1.bf16.msra.mxu0 %v2704
  %2728 = vmatprep.subr.bf16.mxu0 0
  %2729 = vmatpush1.bf16.msra.mxu0 %v2705
  %2730 = vmatprep.subr.bf16.mxu0 0
  %2731 = vmatpush1.bf16.msra.mxu0 0
  %2732 = vmatprep.subr.bf16.mxu0 0
  %2733 = vmatpush1.bf16.msra.mxu0 0
  %2734 = vmatprep.subr.bf16.mxu0 0
  %2735 = vmatpush1.bf16.msra.mxu0 0
  %2736 = vmatprep.subr.bf16.mxu0 0
  %2737 = vmatpush1.bf16.msra.mxu0 0
  %2738 = vmatprep.subr.bf16.mxu0 0
  %2739 = vmatpush1.bf16.msra.mxu0 0
  %2740 = vmatprep.subr.bf16.mxu0 0
  %2741 = vmatpush1.bf16.msra.mxu0 0
  %2742 = vmatprep.subr.bf16.mxu0 0
  %2743 = vmatpush1.bf16.msra.mxu0 0
  %2744 = vmatprep.subr.bf16.mxu0 0
  %2745 = vmatpush1.bf16.msra.mxu0 0
  %2746 = vmatprep.mubr.bf16.mxu0 0
  %2747 = vmatmul.mubr.bf16.gmra.mrb[0].mxu0 %v2642
  %v2748 = vpop.f32.mrb[0].mxu0
  %v2749 = vadd.f32 %v2664, %v2748
  %v2750 = vpop.f32.mrb[0].mxu0
  %v2751 = vpop.f32.mrb[0].mxu0
  %v2752 = vpop.f32.mrb[0].mxu0
  %2753 = vdwg.mxu0
  %v2754 = vxor.u32 %v2749, 2147483648
  %v2755 = vmul.f32 %v2754, 1.442695
  %v2756 = vpow.pop %v2755
  %v2757 = vadd.f32 %v2756, 1.0
  %v2758 = vrcp.pop %v2757
  %v2759 = vmul.f32 1.0, %v2758
  %v2760 = vld [vmem:[%s10] sm:$0xf]
  %v2761 = vld [vmem:[%s10 + $0x4] sm:$0xf]
  %v2762 = vld [vmem:[%s10 + $0x8] sm:$0xf]
  %v2763 = vld [vmem:[%s10 + $0xc] sm:$0xf]
  %v2764 = vld [vmem:[%s10 + $0x10] sm:$0xf]
  %v2765 = vld [vmem:[%s10 + $0x14] sm:$0xf]
  %v2766 = vld [vmem:[%s10 + $0x18] sm:$0xf]
  %v2767 = vld [vmem:[%s10 + $0x1c] sm:$0xf]
  %v2768 = vld [vmem:[%s10 + $0x20] sm:$0xf]
  %v2769 = vld [vmem:[%s10 + $0x24] sm:$0xf]
  %v2770 = vld [vmem:[%s10 + $0x28] sm:$0xf]
  %v2771 = vld [vmem:[%s10 + $0x2c] sm:$0xf]
  %v2772 = vld [vmem:[%s10 + $0x30] sm:$0xf]
  %v2773 = vld [vmem:[%s10 + $0x34] sm:$0xf]
  %v2774 = vld [vmem:[%s10 + $0x38] sm:$0xf]
  %v2775 = vld [vmem:[%s10 + $0x3c] sm:$0xf]
  %v2776 = vld [vmem:[%s11] sm:$0x1]
  %v2778 = vlaneseq
  %v2779 = vshrl.u32 %v2778, 7
  %v2780 = vsub.s32 0, %v2779
  %v2781 = vrot.slane %v2776, %v2780
  %v2799 = vunpack.c.l.b16 %v2760
  %v2800 = vunpack.c.l.b16 %v2761
  %v2801 = vunpack.c.l.b16 %v2762
  %v2802 = vunpack.c.l.b16 %v2763
  %v2803 = vunpack.c.l.b16 %v2764
  %v2804 = vunpack.c.l.b16 %v2765
  %v2805 = vunpack.c.l.b16 %v2766
  %v2806 = vunpack.c.l.b16 %v2767
  %v2807 = vunpack.c.l.b16 %v2768
  %v2808 = vunpack.c.l.b16 %v2769
  %v2809 = vunpack.c.l.b16 %v2770
  %v2810 = vunpack.c.l.b16 %v2771
  %v2811 = vunpack.c.l.b16 %v2772
  %v2812 = vunpack.c.l.b16 %v2773
  %v2813 = vunpack.c.l.b16 %v2774
  %v2814 = vunpack.c.l.b16 %v2775
  %v2815 = vpack.c.b16 %v2800, %v2799
  %v2816 = vpack.c.b16 %v2802, %v2801
  %v2817 = vpack.c.b16 %v2804, %v2803
  %v2818 = vpack.c.b16 %v2806, %v2805
  %v2819 = vpack.c.b16 %v2808, %v2807
  %v2820 = vpack.c.b16 %v2810, %v2809
  %v2821 = vpack.c.b16 %v2812, %v2811
  %v2822 = vpack.c.b16 %v2814, %v2813
  %2831 = vmatprep.subr.bf16.mxu0 0
  %2832 = vmatpush1.bf16.msra.mxu0 %v2815
  %2833 = vmatprep.subr.bf16.mxu0 0
  %2834 = vmatpush1.bf16.msra.mxu0 %v2816
  %2835 = vmatprep.subr.bf16.mxu0 0
  %2836 = vmatpush1.bf16.msra.mxu0 %v2817
  %2837 = vmatprep.subr.bf16.mxu0 0
  %2838 = vmatpush1.bf16.msra.mxu0 %v2818
  %2839 = vmatprep.subr.bf16.mxu0 0
  %2840 = vmatpush1.bf16.msra.mxu0 %v2819
  %2841 = vmatprep.subr.bf16.mxu0 0
  %2842 = vmatpush1.bf16.msra.mxu0 %v2820
  %2843 = vmatprep.subr.bf16.mxu0 0
  %2844 = vmatpush1.bf16.msra.mxu0 %v2821
  %2845 = vmatprep.subr.bf16.mxu0 0
  %2846 = vmatpush1.bf16.msra.mxu0 %v2822
  %2847 = vmatprep.subr.bf16.mxu0 0
  %2848 = vmatpush1.bf16.msra.mxu0 0
  %2849 = vmatprep.subr.bf16.mxu0 0
  %2850 = vmatpush1.bf16.msra.mxu0 0
  %2851 = vmatprep.subr.bf16.mxu0 0
  %2852 = vmatpush1.bf16.msra.mxu0 0
  %2853 = vmatprep.subr.bf16.mxu0 0
  %2854 = vmatpush1.bf16.msra.mxu0 0
  %2855 = vmatprep.subr.bf16.mxu0 0
  %2856 = vmatpush1.bf16.msra.mxu0 0
  %2857 = vmatprep.subr.bf16.mxu0 0
  %2858 = vmatpush1.bf16.msra.mxu0 0
  %2859 = vmatprep.subr.bf16.mxu0 0
  %2860 = vmatpush1.bf16.msra.mxu0 0
  %2861 = vmatprep.subr.bf16.mxu0 0
  %2862 = vmatpush1.bf16.msra.mxu0 0
  %2863 = vmatprep.mubr.bf16.mxu0 0
  %2864 = vmatmul.mubr.bf16.gmra.mrb[0].mxu0 %v2642
  %v2865 = vpop.f32.mrb[0].mxu0
  %v2866 = vadd.f32 %v2781, %v2865
  %v2867 = vpop.f32.mrb[0].mxu0
  %v2868 = vpop.f32.mrb[0].mxu0
  %v2869 = vpop.f32.mrb[0].mxu0
  %2870 = vdwg.mxu0
  %v2871 = vmax.f32 %v2866, 0.0
  %v2872 = vld [vmem:[%s1] sm:$0xff]
  %v2873 = vmul.f32 %v2871, 0.5
  %v2874 = vmul.f32 %v2873, 1.442695
  %v2875 = vpow.pop %v2874
  %v2876 = vmul.f32 %v2872, %v2875
  %v2877 = vadd.f32 %v2759, %v2876
  %v2878 = vpack.c.bf16 %v2877, %v2877
  %v2879 = vld [vmem:[%s12] sm:$0xf]
  %v2880 = vld [vmem:[%s12 + $0x4] sm:$0xf]
  %v2881 = vld [vmem:[%s12 + $0x8] sm:$0xf]
  %v2882 = vld [vmem:[%s12 + $0xc] sm:$0xf]
  %v2883 = vld [vmem:[%s12 + $0x10] sm:$0xf]
  %v2884 = vld [vmem:[%s12 + $0x14] sm:$0xf]
  %v2885 = vld [vmem:[%s12 + $0x18] sm:$0xf]
  %v2886 = vld [vmem:[%s12 + $0x1c] sm:$0xf]
  %v2887 = vld [vmem:[%s12 + $0x20] sm:$0xf]
  %v2888 = vld [vmem:[%s12 + $0x24] sm:$0xf]
  %v2889 = vld [vmem:[%s12 + $0x28] sm:$0xf]
  %v2890 = vld [vmem:[%s12 + $0x2c] sm:$0xf]
  %v2891 = vld [vmem:[%s12 + $0x30] sm:$0xf]
  %v2892 = vld [vmem:[%s12 + $0x34] sm:$0xf]
  %v2893 = vld [vmem:[%s12 + $0x38] sm:$0xf]
  %v2894 = vld [vmem:[%s12 + $0x3c] sm:$0xf]
  %v2895 = vld [vmem:[%s13] sm:$0x1]
  %v2897 = vlaneseq
  %v2898 = vshrl.u32 %v2897, 7
  %v2899 = vsub.s32 0, %v2898
  %v2900 = vrot.slane %v2895, %v2899
  %v2918 = vunpack.c.l.b16 %v2879
  %v2919 = vunpack.c.l.b16 %v2880
  %v2920 = vunpack.c.l.b16 %v2881
  %v2921 = vunpack.c.l.b16 %v2882
  %v2922 = vunpack.c.l.b16 %v2883
  %v2923 = vunpack.c.l.b16 %v2884
  %v2924 = vunpack.c.l.b16 %v2885
  %v2925 = vunpack.c.l.b16 %v2886
  %v2926 = vunpack.c.l.b16 %v2887
  %v2927 = vunpack.c.l.b16 %v2888
  %v2928 = vunpack.c.l.b16 %v2889
  %v2929 = vunpack.c.l.b16 %v2890
  %v2930 = vunpack.c.l.b16 %v2891
  %v2931 = vunpack.c.l.b16 %v2892
  %v2932 = vunpack.c.l.b16 %v2893
  %v2933 = vunpack.c.l.b16 %v2894
  %v2934 = vpack.c.b16 %v2919, %v2918
  %v2935 = vpack.c.b16 %v2921, %v2920
  %v2936 = vpack.c.b16 %v2923, %v2922
  %v2937 = vpack.c.b16 %v2925, %v2924
  %v2938 = vpack.c.b16 %v2927, %v2926
  %v2939 = vpack.c.b16 %v2929, %v2928
  %v2940 = vpack.c.b16 %v2931, %v2930
  %v2941 = vpack.c.b16 %v2933, %v2932
  %2950 = vmatprep.subr.bf16.mxu0 0
  %2951 = vmatpush1.bf16.msra.mxu0 %v2934
  %2952 = vmatprep.subr.bf16.mxu0 0
  %2953 = vmatpush1.bf16.msra.mxu0 %v2935
  %2954 = vmatprep.subr.bf16.mxu0 0
  %2955 = vmatpush1.bf16.msra.mxu0 %v2936
  %2956 = vmatprep.subr.bf16.mxu0 0
  %2957 = vmatpush1.bf16.msra.mxu0 %v2937
  %2958 = vmatprep.subr.bf16.mxu0 0
  %2959 = vmatpush1.bf16.msra.mxu0 %v2938
  %2960 = vmatprep.subr.bf16.mxu0 0
  %2961 = vmatpush1.bf16.msra.mxu0 %v2939
  %2962 = vmatprep.subr.bf16.mxu0 0
  %2963 = vmatpush1.bf16.msra.mxu0 %v2940
  %2964 = vmatprep.subr.bf16.mxu0 0
  %2965 = vmatpush1.bf16.msra.mxu0 %v2941
  %2966 = vmatprep.subr.bf16.mxu0 0
  %2967 = vmatpush1.bf16.msra.mxu0 0
  %2968 = vmatprep.subr.bf16.mxu0 0
  %2969 = vmatpush1.bf16.msra.mxu0 0
  %2970 = vmatprep.subr.bf16.mxu0 0
  %2971 = vmatpush1.bf16.msra.mxu0 0
  %2972 = vmatprep.subr.bf16.mxu0 0
  %2973 = vmatpush1.bf16.msra.mxu0 0
  %2974 = vmatprep.subr.bf16.mxu0 0
  %2975 = vmatpush1.bf16.msra.mxu0 0
  %2976 = vmatprep.subr.bf16.mxu0 0
  %2977 = vmatpush1.bf16.msra.mxu0 0
  %2978 = vmatprep.subr.bf16.mxu0 0
  %2979 = vmatpush1.bf16.msra.mxu0 0
  %2980 = vmatprep.subr.bf16.mxu0 0
  %2981 = vmatpush1.bf16.msra.mxu0 0
  %2982 = vmatprep.mubr.bf16.mxu0 0
  %2983 = vmatmul.mubr.bf16.gmra.mrb[0].mxu0 %v2878
  %v2984 = vpop.f32.mrb[0].mxu0
  %v2985 = vadd.f32 %v2900, %v2984
  %v2986 = vpop.f32.mrb[0].mxu0
  %v2987 = vpop.f32.mrb[0].mxu0
  %v2988 = vpop.f32.mrb[0].mxu0
  %2989 = vdwg.mxu0
  %v2990 = vmax.f32 %v2985, 0.0
  %v2991 = vpack.c.bf16 %v2990, %v2990
  %v2992 = vld [vmem:[%s14] sm:$0xff]
  %v2993 = vld [vmem:[%s14 + $0x8] sm:$0xff]
  %v2994 = vld [vmem:[%s14 + $0x10] sm:$0xff]
  %v2995 = vld [vmem:[%s14 + $0x18] sm:$0xff]
  %v2996 = vld [vmem:[%s14 + $0x20] sm:$0xff]
  %v2997 = vld [vmem:[%s14 + $0x28] sm:$0xff]
  %v2998 = vld [vmem:[%s14 + $0x30] sm:$0xff]
  %v2999 = vld [vmem:[%s14 + $0x38] sm:$0xff]
  %v3000 = vld [vmem:[%s14 + $0x40] sm:$0xff]
  %v3001 = vld [vmem:[%s14 + $0x48] sm:$0xff]
  %v3002 = vld [vmem:[%s14 + $0x50] sm:$0xff]
  %v3003 = vld [vmem:[%s14 + $0x58] sm:$0xff]
  %v3004 = vld [vmem:[%s14 + $0x60] sm:$0xff]
  %v3005 = vld [vmem:[%s14 + $0x68] sm:$0xff]
  %v3006 = vld [vmem:[%s14 + $0x70] sm:$0xff]
  %v3007 = vld [vmem:[%s14 + $0x78] sm:$0xff]
  %v3008 = vld [vmem:[%s15] sm:$0x3]
  %v3010 = vlaneseq
  %v3011 = vshrl.u32 %v3010, 7
  %v3012 = vsub.s32 0, %v3011
  %v3013 = vrot.slane %v3008, %v3012
  %v3014 = vlaneseq
  %v3015 = vshrl.u32 %v3014, 7
  %v3016 = vsub.s32 1, %v3015
  %v3017 = vrot.slane %v3008, %v3016
  %v3036 = vunpack.c.l.b16 %v2992
  %v3037 = vunpack.c.h.b16 %v2992
  %v3038 = vunpack.c.l.b16 %v2993
  %v3039 = vunpack.c.h.b16 %v2993
  %v3040 = vunpack.c.l.b16 %v2994
  %v3041 = vunpack.c.h.b16 %v2994
  %v3042 = vunpack.c.l.b16 %v2995
  %v3043 = vunpack.c.h.b16 %v2995
  %v3044 = vunpack.c.l.b16 %v2996
  %v3045 = vunpack.c.h.b16 %v2996
  %v3046 = vunpack.c.l.b16 %v2997
  %v3047 = vunpack.c.h.b16 %v2997
  %v3048 = vunpack.c.l.b16 %v2998
  %v3049 = vunpack.c.h.b16 %v2998
  %v3050 = vunpack.c.l.b16 %v2999
  %v3051 = vunpack.c.h.b16 %v2999
  %v3052 = vunpack.c.l.b16 %v3000
  %v3053 = vunpack.c.h.b16 %v3000
  %v3054 = vunpack.c.l.b16 %v3001
  %v3055 = vunpack.c.h.b16 %v3001
  %v3056 = vunpack.c.l.b16 %v3002
  %v3057 = vunpack.c.h.b16 %v3002
  %v3058 = vunpack.c.l.b16 %v3003
  %v3059 = vunpack.c.h.b16 %v3003
  %v3060 = vunpack.c.l.b16 %v3004
  %v3061 = vunpack.c.h.b16 %v3004
  %v3062 = vunpack.c.l.b16 %v3005
  %v3063 = vunpack.c.h.b16 %v3005
  %v3064 = vunpack.c.l.b16 %v3006
  %v3065 = vunpack.c.h.b16 %v3006
  %v3066 = vunpack.c.l.b16 %v3007
  %v3067 = vunpack.c.h.b16 %v3007
  %v3068 = vpack.c.b16 %v3038, %v3036
  %v3069 = vpack.c.b16 %v3039, %v3037
  %v3070 = vpack.c.b16 %v3042, %v3040
  %v3071 = vpack.c.b16 %v3043, %v3041
  %v3072 = vpack.c.b16 %v3046, %v3044
  %v3073 = vpack.c.b16 %v3047, %v3045
  %v3074 = vpack.c.b16 %v3050, %v3048
  %v3075 = vpack.c.b16 %v3051, %v3049
  %v3076 = vpack.c.b16 %v3054, %v3052
  %v3077 = vpack.c.b16 %v3055, %v3053
  %v3078 = vpack.c.b16 %v3058, %v3056
  %v3079 = vpack.c.b16 %v3059, %v3057
  %v3080 = vpack.c.b16 %v3062, %v3060
  %v3081 = vpack.c.b16 %v3063, %v3061
  %v3082 = vpack.c.b16 %v3066, %v3064
  %v3083 = vpack.c.b16 %v3067, %v3065
  %3100 = vmatprep.subr.bf16.mxu0 %v3069
  %3101 = vmatpush1.bf16.msra.mxu0 %v3068
  %3102 = vmatprep.subr.bf16.mxu0 %v3071
  %3103 = vmatpush1.bf16.msra.mxu0 %v3070
  %3104 = vmatprep.subr.bf16.mxu0 %v3073
  %3105 = vmatpush1.bf16.msra.mxu0 %v3072
  %3106 = vmatprep.subr.bf16.mxu0 %v3075
  %3107 = vmatpush1.bf16.msra.mxu0 %v3074
  %3108 = vmatprep.subr.bf16.mxu0 %v3077
  %3109 = vmatpush1.bf16.msra.mxu0 %v3076
  %3110 = vmatprep.subr.bf16.mxu0 %v3079
  %3111 = vmatpush1.bf16.msra.mxu0 %v3078
  %3112 = vmatprep.subr.bf16.mxu0 %v3081
  %3113 = vmatpush1.bf16.msra.mxu0 %v3080
  %3114 = vmatprep.subr.bf16.mxu0 %v3083
  %3115 = vmatpush1.bf16.msra.mxu0 %v3082
  %3116 = vmatprep.subr.bf16.mxu0 0
  %3117 = vmatpush1.bf16.msra.mxu0 0
  %3118 = vmatprep.subr.bf16.mxu0 0
  %3119 = vmatpush1.bf16.msra.mxu0 0
  %3120 = vmatprep.subr.bf16.mxu0 0
  %3121 = vmatpush1.bf16.msra.mxu0 0
  %3122 = vmatprep.subr.bf16.mxu0 0
  %3123 = vmatpush1.bf16.msra.mxu0 0
  %3124 = vmatprep.subr.bf16.mxu0 0
  %3125 = vmatpush1.bf16.msra.mxu0 0
  %3126 = vmatprep.subr.bf16.mxu0 0
  %3127 = vmatpush1.bf16.msra.mxu0 0
  %3128 = vmatprep.subr.bf16.mxu0 0
  %3129 = vmatpush1.bf16.msra.mxu0 0
  %3130 = vmatprep.subr.bf16.mxu0 0
  %3131 = vmatpush1.bf16.msra.mxu0 0
  %3132 = vmatprep.mubr.bf16.mxu0 0
  %3133 = vmatmul.mubr.bf16.gmra.mrb[0].mxu0 %v2991
  %v3134 = vpop.f32.mrb[0].mxu0
  %v3135 = vadd.f32 %v3013, %v3134
  %v3136 = vpop.f32.mrb[0].mxu0
  %v3137 = vadd.f32 %v3017, %v3136
  %v3138 = vpop.f32.mrb[0].mxu0
  %v3139 = vpop.f32.mrb[0].mxu0
  %3140 = vdwg.mxu0
  %v3141 = vmax.f32 %v3135, 0.0
  %v3142 = vmax.f32 %v3137, 0.0
  %v3143 = vpack.c.bf16 %v3141, %v3141
  %v3144 = vpack.c.bf16 %v3142, %v3142
  %v3145 = vld [vmem:[%s16] sm:$0xff]
  %v3146 = vld [vmem:[%s16 + $0x8] sm:$0xff]
  %v3147 = vld [vmem:[%s16 + $0x10] sm:$0xff]
  %v3148 = vld [vmem:[%s16 + $0x18] sm:$0xff]
  %v3149 = vld [vmem:[%s16 + $0x20] sm:$0xff]
  %v3150 = vld [vmem:[%s16 + $0x28] sm:$0xff]
  %v3151 = vld [vmem:[%s16 + $0x30] sm:$0xff]
  %v3152 = vld [vmem:[%s16 + $0x38] sm:$0xff]
  %v3153 = vld [vmem:[%s16 + $0x40] sm:$0xff]
  %v3154 = vld [vmem:[%s16 + $0x48] sm:$0xff]
  %v3155 = vld [vmem:[%s16 + $0x50] sm:$0xff]
  %v3156 = vld [vmem:[%s16 + $0x58] sm:$0xff]
  %v3157 = vld [vmem:[%s16 + $0x60] sm:$0xff]
  %v3158 = vld [vmem:[%s16 + $0x68] sm:$0xff]
  %v3159 = vld [vmem:[%s16 + $0x70] sm:$0xff]
  %v3160 = vld [vmem:[%s16 + $0x78] sm:$0xff]
  %v3161 = vld [vmem:[%s16 + $0x80] sm:$0xff]
  %v3162 = vld [vmem:[%s16 + $0x88] sm:$0xff]
  %v3163 = vld [vmem:[%s16 + $0x90] sm:$0xff]
  %v3164 = vld [vmem:[%s16 + $0x98] sm:$0xff]
  %v3165 = vld [vmem:[%s16 + $0xa0] sm:$0xff]
  %v3166 = vld [vmem:[%s16 + $0xa8] sm:$0xff]
  %v3167 = vld [vmem:[%s16 + $0xb0] sm:$0xff]
  %v3168 = vld [vmem:[%s16 + $0xb8] sm:$0xff]
  %v3169 = vld [vmem:[%s16 + $0xc0] sm:$0xff]
  %v3170 = vld [vmem:[%s16 + $0xc8] sm:$0xff]
  %v3171 = vld [vmem:[%s16 + $0xd0] sm:$0xff]
  %v3172 = vld [vmem:[%s16 + $0xd8] sm:$0xff]
  %v3173 = vld [vmem:[%s16 + $0xe0] sm:$0xff]
  %v3174 = vld [vmem:[%s16 + $0xe8] sm:$0xff]
  %v3175 = vld [vmem:[%s16 + $0xf0] sm:$0xff]
  %v3176 = vld [vmem:[%s16 + $0xf8] sm:$0xff]
  %v3177 = vld [vmem:[%s16 + $0x100] sm:$0xff]
  %v3178 = vld [vmem:[%s16 + $0x108] sm:$0xff]
  %v3179 = vld [vmem:[%s16 + $0x110] sm:$0xff]
  %v3180 = vld [vmem:[%s16 + $0x118] sm:$0xff]
  %v3181 = vld [vmem:[%s16 + $0x120] sm:$0xff]
  %v3182 = vld [vmem:[%s16 + $0x128] sm:$0xff]
  %v3183 = vld [vmem:[%s16 + $0x130] sm:$0xff]
  %v3184 = vld [vmem:[%s16 + $0x138] sm:$0xff]
  %v3185 = vld [vmem:[%s16 + $0x140] sm:$0xff]
  %v3186 = vld [vmem:[%s16 + $0x148] sm:$0xff]
  %v3187 = vld [vmem:[%s16 + $0x150] sm:$0xff]
  %v3188 = vld [vmem:[%s16 + $0x158] sm:$0xff]
  %v3189 = vld [vmem:[%s16 + $0x160] sm:$0xff]
  %v3190 = vld [vmem:[%s16 + $0x168] sm:$0xff]
  %v3191 = vld [vmem:[%s16 + $0x170] sm:$0xff]
  %v3192 = vld [vmem:[%s16 + $0x178] sm:$0xff]
  %v3193 = vld [vmem:[%s16 + $0x180] sm:$0xff]
  %v3194 = vld [vmem:[%s16 + $0x188] sm:$0xff]
  %v3195 = vld [vmem:[%s16 + $0x190] sm:$0xff]
  %v3196 = vld [vmem:[%s16 + $0x198] sm:$0xff]
  %v3197 = vld [vmem:[%s16 + $0x1a0] sm:$0xff]
  %v3198 = vld [vmem:[%s16 + $0x1a8] sm:$0xff]
  %v3199 = vld [vmem:[%s16 + $0x1b0] sm:$0xff]
  %v3200 = vld [vmem:[%s16 + $0x1b8] sm:$0xff]
  %v3201 = vld [vmem:[%s16 + $0x1c0] sm:$0xff]
  %v3202 = vld [vmem:[%s16 + $0x1c8] sm:$0xff]
  %v3203 = vld [vmem:[%s16 + $0x1d0] sm:$0xff]
  %v3204 = vld [vmem:[%s16 + $0x1d8] sm:$0xff]
  %v3205 = vld [vmem:[%s16 + $0x1e0] sm:$0xff]
  %v3206 = vld [vmem:[%s16 + $0x1e8] sm:$0xff]
  %v3207 = vld [vmem:[%s16 + $0x1f0] sm:$0xff]
  %v3208 = vld [vmem:[%s16 + $0x1f8] sm:$0xff]
  %v3209 = vld [vmem:[%s17] sm:$0xf]
  %v3211 = vlaneseq
  %v3212 = vshrl.u32 %v3211, 7
  %v3213 = vsub.s32 0, %v3212
  %v3214 = vrot.slane %v3209, %v3213
  %v3215 = vlaneseq
  %v3216 = vshrl.u32 %v3215, 7
  %v3217 = vsub.s32 1, %v3216
  %v3218 = vrot.slane %v3209, %v3217
  %v3219 = vlaneseq
  %v3220 = vshrl.u32 %v3219, 7
  %v3221 = vsub.s32 2, %v3220
  %v3222 = vrot.slane %v3209, %v3221
  %v3223 = vlaneseq
  %v3224 = vshrl.u32 %v3223, 7
  %v3225 = vsub.s32 3, %v3224
  %v3226 = vrot.slane %v3209, %v3225
  %v3295 = vunpack.c.l.b16 %v3145
  %v3296 = vunpack.c.h.b16 %v3145
  %v3297 = vunpack.c.l.b16 %v3146
  %v3298 = vunpack.c.h.b16 %v3146
  %v3299 = vunpack.c.l.b16 %v3147
  %v3300 = vunpack.c.h.b16 %v3147
  %v3301 = vunpack.c.l.b16 %v3148
  %v3302 = vunpack.c.h.b16 %v3148
  %v3303 = vunpack.c.l.b16 %v3149
  %v3304 = vunpack.c.h.b16 %v3149
  %v3305 = vunpack.c.l.b16 %v3150
  %v3306 = vunpack.c.h.b16 %v3150
  %v3307 = vunpack.c.l.b16 %v3151
  %v3308 = vunpack.c.h.b16 %v3151
  %v3309 = vunpack.c.l.b16 %v3152
  %v3310 = vunpack.c.h.b16 %v3152
  %v3311 = vunpack.c.l.b16 %v3153
  %v3312 = vunpack.c.h.b16 %v3153
  %v3313 = vunpack.c.l.b16 %v3154
  %v3314 = vunpack.c.h.b16 %v3154
  %v3315 = vunpack.c.l.b16 %v3155
  %v3316 = vunpack.c.h.b16 %v3155
  %v3317 = vunpack.c.l.b16 %v3156
  %v3318 = vunpack.c.h.b16 %v3156
  %v3319 = vunpack.c.l.b16 %v3157
  %v3320 = vunpack.c.h.b16 %v3157
  %v3321 = vunpack.c.l.b16 %v3158
  %v3322 = vunpack.c.h.b16 %v3158
  %v3323 = vunpack.c.l.b16 %v3159
  %v3324 = vunpack.c.h.b16 %v3159
  %v3325 = vunpack.c.l.b16 %v3160
  %v3326 = vunpack.c.h.b16 %v3160
  %v3327 = vunpack.c.l.b16 %v3161
  %v3328 = vunpack.c.h.b16 %v3161
  %v3329 = vunpack.c.l.b16 %v3162
  %v3330 = vunpack.c.h.b16 %v3162
  %v3331 = vunpack.c.l.b16 %v3163
  %v3332 = vunpack.c.h.b16 %v3163
  %v3333 = vunpack.c.l.b16 %v3164
  %v3334 = vunpack.c.h.b16 %v3164
  %v3335 = vunpack.c.l.b16 %v3165
  %v3336 = vunpack.c.h.b16 %v3165
  %v3337 = vunpack.c.l.b16 %v3166
  %v3338 = vunpack.c.h.b16 %v3166
  %v3339 = vunpack.c.l.b16 %v3167
  %v3340 = vunpack.c.h.b16 %v3167
  %v3341 = vunpack.c.l.b16 %v3168
  %v3342 = vunpack.c.h.b16 %v3168
  %v3343 = vunpack.c.l.b16 %v3169
  %v3344 = vunpack.c.h.b16 %v3169
  %v3345 = vunpack.c.l.b16 %v3170
  %v3346 = vunpack.c.h.b16 %v3170
  %v3347 = vunpack.c.l.b16 %v3171
  %v3348 = vunpack.c.h.b16 %v3171
  %v3349 = vunpack.c.l.b16 %v3172
  %v3350 = vunpack.c.h.b16 %v3172
  %v3351 = vunpack.c.l.b16 %v3173
  %v3352 = vunpack.c.h.b16 %v3173
  %v3353 = vunpack.c.l.b16 %v3174
  %v3354 = vunpack.c.h.b16 %v3174
  %v3355 = vunpack.c.l.b16 %v3175
  %v3356 = vunpack.c.h.b16 %v3175
  %v3357 = vunpack.c.l.b16 %v3176
  %v3358 = vunpack.c.h.b16 %v3176
  %v3359 = vunpack.c.l.b16 %v3177
  %v3360 = vunpack.c.h.b16 %v3177
  %v3361 = vunpack.c.l.b16 %v3178
  %v3362 = vunpack.c.h.b16 %v3178
  %v3363 = vunpack.c.l.b16 %v3179
  %v3364 = vunpack.c.h.b16 %v3179
  %v3365 = vunpack.c.l.b16 %v3180
  %v3366 = vunpack.c.h.b16 %v3180
  %v3367 = vunpack.c.l.b16 %v3181
  %v3368 = vunpack.c.h.b16 %v3181
  %v3369 = vunpack.c.l.b16 %v3182
  %v3370 = vunpack.c.h.b16 %v3182
  %v3371 = vunpack.c.l.b16 %v3183
  %v3372 = vunpack.c.h.b16 %v3183
  %v3373 = vunpack.c.l.b16 %v3184
  %v3374 = vunpack.c.h.b16 %v3184
  %v3375 = vunpack.c.l.b16 %v3185
  %v3376 = vunpack.c.h.b16 %v3185
  %v3377 = vunpack.c.l.b16 %v3186
  %v3378 = vunpack.c.h.b16 %v3186
  %v3379 = vunpack.c.l.b16 %v3187
  %v3380 = vunpack.c.h.b16 %v3187
  %v3381 = vunpack.c.l.b16 %v3188
  %v3382 = vunpack.c.h.b16 %v3188
  %v3383 = vunpack.c.l.b16 %v3189
  %v3384 = vunpack.c.h.b16 %v3189
  %v3385 = vunpack.c.l.b16 %v3190
  %v3386 = vunpack.c.h.b16 %v3190
  %v3387 = vunpack.c.l.b16 %v3191
  %v3388 = vunpack.c.h.b16 %v3191
  %v3389 = vunpack.c.l.b16 %v3192
  %v3390 = vunpack.c.h.b16 %v3192
  %v3391 = vunpack.c.l.b16 %v3193
  %v3392 = vunpack.c.h.b16 %v3193
  %v3393 = vunpack.c.l.b16 %v3194
  %v3394 = vunpack.c.h.b16 %v3194
  %v3395 = vunpack.c.l.b16 %v3195
  %v3396 = vunpack.c.h.b16 %v3195
  %v3397 = vunpack.c.l.b16 %v3196
  %v3398 = vunpack.c.h.b16 %v3196
  %v3399 = vunpack.c.l.b16 %v3197
  %v3400 = vunpack.c.h.b16 %v3197
  %v3401 = vunpack.c.l.b16 %v3198
  %v3402 = vunpack.c.h.b16 %v3198
  %v3403 = vunpack.c.l.b16 %v3199
  %v3404 = vunpack.c.h.b16 %v3199
  %v3405 = vunpack.c.l.b16 %v3200
  %v3406 = vunpack.c.h.b16 %v3200
  %v3407 = vunpack.c.l.b16 %v3201
  %v3408 = vunpack.c.h.b16 %v3201
  %v3409 = vunpack.c.l.b16 %v3202
  %v3410 = vunpack.c.h.b16 %v3202
  %v3411 = vunpack.c.l.b16 %v3203
  %v3412 = vunpack.c.h.b16 %v3203
  %v3413 = vunpack.c.l.b16 %v3204
  %v3414 = vunpack.c.h.b16 %v3204
  %v3415 = vunpack.c.l.b16 %v3205
  %v3416 = vunpack.c.h.b16 %v3205
  %v3417 = vunpack.c.l.b16 %v3206
  %v3418 = vunpack.c.h.b16 %v3206
  %v3419 = vunpack.c.l.b16 %v3207
  %v3420 = vunpack.c.h.b16 %v3207
  %v3421 = vunpack.c.l.b16 %v3208
  %v3422 = vunpack.c.h.b16 %v3208
  %v3423 = vpack.c.b16 %v3299, %v3295
  %v3424 = vpack.c.b16 %v3300, %v3296
  %v3425 = vpack.c.b16 %v3301, %v3297
  %v3426 = vpack.c.b16 %v3302, %v3298
  %v3427 = vpack.c.b16 %v3307, %v3303
  %v3428 = vpack.c.b16 %v3308, %v3304
  %v3429 = vpack.c.b16 %v3309, %v3305
  %v3430 = vpack.c.b16 %v3310, %v3306
  %v3431 = vpack.c.b16 %v3315, %v3311
  %v3432 = vpack.c.b16 %v3316, %v3312
  %v3433 = vpack.c.b16 %v3317, %v3313
  %v3434 = vpack.c.b16 %v3318, %v3314
  %v3435 = vpack.c.b16 %v3323, %v3319
  %v3436 = vpack.c.b16 %v3324, %v3320
  %v3437 = vpack.c.b16 %v3325, %v3321
  %v3438 = vpack.c.b16 %v3326, %v3322
  %v3439 = vpack.c.b16 %v3331, %v3327
  %v3440 = vpack.c.b16 %v3332, %v3328
  %v3441 = vpack.c.b16 %v3333, %v3329
  %v3442 = vpack.c.b16 %v3334, %v3330
  %v3443 = vpack.c.b16 %v3339, %v3335
  %v3444 = vpack.c.b16 %v3340, %v3336
  %v3445 = vpack.c.b16 %v3341, %v3337
  %v3446 = vpack.c.b16 %v3342, %v3338
  %v3447 = vpack.c.b16 %v3347, %v3343
  %v3448 = vpack.c.b16 %v3348, %v3344
  %v3449 = vpack.c.b16 %v3349, %v3345
  %v3450 = vpack.c.b16 %v3350, %v3346
  %v3451 = vpack.c.b16 %v3355, %v3351
  %v3452 = vpack.c.b16 %v3356, %v3352
  %v3453 = vpack.c.b16 %v3357, %v3353
  %v3454 = vpack.c.b16 %v3358, %v3354
  %v3455 = vpack.c.b16 %v3363, %v3359
  %v3456 = vpack.c.b16 %v3364, %v3360
  %v3457 = vpack.c.b16 %v3365, %v3361
  %v3458 = vpack.c.b16 %v3366, %v3362
  %v3459 = vpack.c.b16 %v3371, %v3367
  %v3460 = vpack.c.b16 %v3372, %v3368
  %v3461 = vpack.c.b16 %v3373, %v3369
  %v3462 = vpack.c.b16 %v3374, %v3370
  %v3463 = vpack.c.b16 %v3379, %v3375
  %v3464 = vpack.c.b16 %v3380, %v3376
  %v3465 = vpack.c.b16 %v3381, %v3377
  %v3466 = vpack.c.b16 %v3382, %v3378
  %v3467 = vpack.c.b16 %v3387, %v3383
  %v3468 = vpack.c.b16 %v3388, %v3384
  %v3469 = vpack.c.b16 %v3389, %v3385
  %v3470 = vpack.c.b16 %v3390, %v3386
  %v3471 = vpack.c.b16 %v3395, %v3391
  %v3472 = vpack.c.b16 %v3396, %v3392
  %v3473 = vpack.c.b16 %v3397, %v3393
  %v3474 = vpack.c.b16 %v3398, %v3394
  %v3475 = vpack.c.b16 %v3403, %v3399
  %v3476 = vpack.c.b16 %v3404, %v3400
  %v3477 = vpack.c.b16 %v3405, %v3401
  %v3478 = vpack.c.b16 %v3406, %v3402
  %v3479 = vpack.c.b16 %v3411, %v3407
  %v3480 = vpack.c.b16 %v3412, %v3408
  %v3481 = vpack.c.b16 %v3413, %v3409
  %v3482 = vpack.c.b16 %v3414, %v3410
  %v3483 = vpack.c.b16 %v3419, %v3415
  %v3484 = vpack.c.b16 %v3420, %v3416
  %v3485 = vpack.c.b16 %v3421, %v3417
  %v3486 = vpack.c.b16 %v3422, %v3418
  %3551 = vmatprep.subr.bf16.mxu0 %v3424
  %3552 = vmatpush1.bf16.msra.mxu0 %v3423
  %3553 = vmatprep.subr.bf16.mxu0 %v3428
  %3554 = vmatpush1.bf16.msra.mxu0 %v3427
  %3555 = vmatprep.subr.bf16.mxu0 %v3432
  %3556 = vmatpush1.bf16.msra.mxu0 %v3431
  %3557 = vmatprep.subr.bf16.mxu0 %v3436
  %3558 = vmatpush1.bf16.msra.mxu0 %v3435
  %3559 = vmatprep.subr.bf16.mxu0 %v3440
  %3560 = vmatpush1.bf16.msra.mxu0 %v3439
  %3561 = vmatprep.subr.bf16.mxu0 %v3444
  %3562 = vmatpush1.bf16.msra.mxu0 %v3443
  %3563 = vmatprep.subr.bf16.mxu0 %v3448
  %3564 = vmatpush1.bf16.msra.mxu0 %v3447
  %3565 = vmatprep.subr.bf16.mxu0 %v3452
  %3566 = vmatpush1.bf16.msra.mxu0 %v3451
  %3567 = vmatprep.subr.bf16.mxu0 %v3456
  %3568 = vmatpush1.bf16.msra.mxu0 %v3455
  %3569 = vmatprep.subr.bf16.mxu0 %v3460
  %3570 = vmatpush1.bf16.msra.mxu0 %v3459
  %3571 = vmatprep.subr.bf16.mxu0 %v3464
  %3572 = vmatpush1.bf16.msra.mxu0 %v3463
  %3573 = vmatprep.subr.bf16.mxu0 %v3468
  %3574 = vmatpush1.bf16.msra.mxu0 %v3467
  %3575 = vmatprep.subr.bf16.mxu0 %v3472
  %3576 = vmatpush1.bf16.msra.mxu0 %v3471
  %3577 = vmatprep.subr.bf16.mxu0 %v3476
  %3578 = vmatpush1.bf16.msra.mxu0 %v3475
  %3579 = vmatprep.subr.bf16.mxu0 %v3480
  %3580 = vmatpush1.bf16.msra.mxu0 %v3479
  %3581 = vmatprep.subr.bf16.mxu0 %v3484
  %3582 = vmatpush1.bf16.msra.mxu0 %v3483
  %3583 = vmatprep.mubr.bf16.mxu0 %v3144
  %3584 = vmatmul.mubr.bf16.gmra.mrb[0].mxu0 %v3143
  %v3585 = vpop.f32.mrb[0].mxu0
  %v3586 = vadd.f32 %v3214, %v3585
  %v3587 = vpop.f32.mrb[0].mxu0
  %v3588 = vadd.f32 %v3218, %v3587
  %v3589 = vpop.f32.mrb[0].mxu0
  %v3590 = vpop.f32.mrb[0].mxu0
  %3591 = vdwg.mxu0
  %3592 = vmatprep.subr.bf16.mxu0 %v3426
  %3593 = vmatpush1.bf16.msra.mxu0 %v3425
  %3594 = vmatprep.subr.bf16.mxu0 %v3430
  %3595 = vmatpush1.bf16.msra.mxu0 %v3429
  %3596 = vmatprep.subr.bf16.mxu0 %v3434
  %3597 = vmatpush1.bf16.msra.mxu0 %v3433
  %3598 = vmatprep.subr.bf16.mxu0 %v3438
  %3599 = vmatpush1.bf16.msra.mxu0 %v3437
  %3600 = vmatprep.subr.bf16.mxu0 %v3442
  %3601 = vmatpush1.bf16.msra.mxu0 %v3441
  %3602 = vmatprep.subr.bf16.mxu0 %v3446
  %3603 = vmatpush1.bf16.msra.mxu0 %v3445
  %3604 = vmatprep.subr.bf16.mxu0 %v3450
  %3605 = vmatpush1.bf16.msra.mxu0 %v3449
  %3606 = vmatprep.subr.bf16.mxu0 %v3454
  %3607 = vmatpush1.bf16.msra.mxu0 %v3453
  %3608 = vmatprep.subr.bf16.mxu0 %v3458
  %3609 = vmatpush1.bf16.msra.mxu0 %v3457
  %3610 = vmatprep.subr.bf16.mxu0 %v3462
  %3611 = vmatpush1.bf16.msra.mxu0 %v3461
  %3612 = vmatprep.subr.bf16.mxu0 %v3466
  %3613 = vmatpush1.bf16.msra.mxu0 %v3465
  %3614 = vmatprep.subr.bf16.mxu0 %v3470
  %3615 = vmatpush1.bf16.msra.mxu0 %v3469
  %3616 = vmatprep.subr.bf16.mxu0 %v3474
  %3617 = vmatpush1.bf16.msra.mxu0 %v3473
  %3618 = vmatprep.subr.bf16.mxu0 %v3478
  %3619 = vmatpush1.bf16.msra.mxu0 %v3477
  %3620 = vmatprep.subr.bf16.mxu0 %v3482
  %3621 = vmatpush1.bf16.msra.mxu0 %v3481
  %3622 = vmatprep.subr.bf16.mxu0 %v3486
  %3623 = vmatpush1.bf16.msra.mxu0 %v3485
  %3624 = vmatprep.mubr.bf16.mxu0 %v3144
  %3625 = vmatmul.mubr.bf16.gmra.mrb[0].mxu0 %v3143
  %v3626 = vpop.f32.mrb[0].mxu0
  %v3627 = vadd.f32 %v3222, %v3626
  %v3628 = vpop.f32.mrb[0].mxu0
  %v3629 = vadd.f32 %v3226, %v3628
  %v3630 = vpop.f32.mrb[0].mxu0
  %v3631 = vpop.f32.mrb[0].mxu0
  %3632 = vdwg.mxu0
  %v3633 = vmax.f32 %v3586, 0.0
  %v3634 = vmax.f32 %v3588, 0.0
  %v3635 = vmax.f32 %v3627, 0.0
  %v3636 = vmax.f32 %v3629, 0.0
  %v3637 = vpack.c.bf16 %v3633, %v3633
  %v3638 = vpack.c.bf16 %v3634, %v3634
  %v3639 = vpack.c.bf16 %v3635, %v3635
  %v3640 = vpack.c.bf16 %v3636, %v3636
  %v3641 = vld [vmem:[%s18] sm:$0xff]
  %v3642 = vld [vmem:[%s18 + $0x8] sm:$0xff]
  %v3643 = vld [vmem:[%s18 + $0x10] sm:$0xff]
  %v3644 = vld [vmem:[%s18 + $0x18] sm:$0xff]
  %v3645 = vld [vmem:[%s18 + $0x20] sm:$0xff]
  %v3646 = vld [vmem:[%s18 + $0x28] sm:$0xff]
  %v3647 = vld [vmem:[%s18 + $0x30] sm:$0xff]
  %v3648 = vld [vmem:[%s18 + $0x38] sm:$0xff]
  %v3649 = vld [vmem:[%s18 + $0x40] sm:$0xff]
  %v3650 = vld [vmem:[%s18 + $0x48] sm:$0xff]
  %v3651 = vld [vmem:[%s18 + $0x50] sm:$0xff]
  %v3652 = vld [vmem:[%s18 + $0x58] sm:$0xff]
  %v3653 = vld [vmem:[%s18 + $0x60] sm:$0xff]
  %v3654 = vld [vmem:[%s18 + $0x68] sm:$0xff]
  %v3655 = vld [vmem:[%s18 + $0x70] sm:$0xff]
  %v3656 = vld [vmem:[%s18 + $0x78] sm:$0xff]
  %v3657 = vld [vmem:[%s18 + $0x80] sm:$0xff]
  %v3658 = vld [vmem:[%s18 + $0x88] sm:$0xff]
  %v3659 = vld [vmem:[%s18 + $0x90] sm:$0xff]
  %v3660 = vld [vmem:[%s18 + $0x98] sm:$0xff]
  %v3661 = vld [vmem:[%s18 + $0xa0] sm:$0xff]
  %v3662 = vld [vmem:[%s18 + $0xa8] sm:$0xff]
  %v3663 = vld [vmem:[%s18 + $0xb0] sm:$0xff]
  %v3664 = vld [vmem:[%s18 + $0xb8] sm:$0xff]
  %v3665 = vld [vmem:[%s18 + $0xc0] sm:$0xff]
  %v3666 = vld [vmem:[%s18 + $0xc8] sm:$0xff]
  %v3667 = vld [vmem:[%s18 + $0xd0] sm:$0xff]
  %v3668 = vld [vmem:[%s18 + $0xd8] sm:$0xff]
  %v3669 = vld [vmem:[%s18 + $0xe0] sm:$0xff]
  %v3670 = vld [vmem:[%s18 + $0xe8] sm:$0xff]
  %v3671 = vld [vmem:[%s18 + $0xf0] sm:$0xff]
  %v3672 = vld [vmem:[%s18 + $0xf8] sm:$0xff]
  %v3673 = vld [vmem:[%s18 + $0x100] sm:$0xff]
  %v3674 = vld [vmem:[%s18 + $0x108] sm:$0xff]
  %v3675 = vld [vmem:[%s18 + $0x110] sm:$0xff]
  %v3676 = vld [vmem:[%s18 + $0x118] sm:$0xff]
  %v3677 = vld [vmem:[%s18 + $0x120] sm:$0xff]
  %v3678 = vld [vmem:[%s18 + $0x128] sm:$0xff]
  %v3679 = vld [vmem:[%s18 + $0x130] sm:$0xff]
  %v3680 = vld [vmem:[%s18 + $0x138] sm:$0xff]
  %v3681 = vld [vmem:[%s18 + $0x140] sm:$0xff]
  %v3682 = vld [vmem:[%s18 + $0x148] sm:$0xff]
  %v3683 = vld [vmem:[%s18 + $0x150] sm:$0xff]
  %v3684 = vld [vmem:[%s18 + $0x158] sm:$0xff]
  %v3685 = vld [vmem:[%s18 + $0x160] sm:$0xff]
  %v3686 = vld [vmem:[%s18 + $0x168] sm:$0xff]
  %v3687 = vld [vmem:[%s18 + $0x170] sm:$0xff]
  %v3688 = vld [vmem:[%s18 + $0x178] sm:$0xff]
  %v3689 = vld [vmem:[%s18 + $0x180] sm:$0xff]
  %v3690 = vld [vmem:[%s18 + $0x188] sm:$0xff]
  %v3691 = vld [vmem:[%s18 + $0x190] sm:$0xff]
  %v3692 = vld [vmem:[%s18 + $0x198] sm:$0xff]
  %v3693 = vld [vmem:[%s18 + $0x1a0] sm:$0xff]
  %v3694 = vld [vmem:[%s18 + $0x1a8] sm:$0xff]
  %v3695 = vld [vmem:[%s18 + $0x1b0] sm:$0xff]
  %v3696 = vld [vmem:[%s18 + $0x1b8] sm:$0xff]
  %v3697 = vld [vmem:[%s18 + $0x1c0] sm:$0xff]
  %v3698 = vld [vmem:[%s18 + $0x1c8] sm:$0xff]
  %v3699 = vld [vmem:[%s18 + $0x1d0] sm:$0xff]
  %v3700 = vld [vmem:[%s18 + $0x1d8] sm:$0xff]
  %v3701 = vld [vmem:[%s18 + $0x1e0] sm:$0xff]
  %v3702 = vld [vmem:[%s18 + $0x1e8] sm:$0xff]
  %v3703 = vld [vmem:[%s18 + $0x1f0] sm:$0xff]
  %v3704 = vld [vmem:[%s18 + $0x1f8] sm:$0xff]
  %v3705 = vld [vmem:[%s18 + $0x200] sm:$0xff]
  %v3706 = vld [vmem:[%s18 + $0x208] sm:$0xff]
  %v3707 = vld [vmem:[%s18 + $0x210] sm:$0xff]
  %v3708 = vld [vmem:[%s18 + $0x218] sm:$0xff]
  %v3709 = vld [vmem:[%s18 + $0x220] sm:$0xff]
  %v3710 = vld [vmem:[%s18 + $0x228] sm:$0xff]
  %v3711 = vld [vmem:[%s18 + $0x230] sm:$0xff]
  %v3712 = vld [vmem:[%s18 + $0x238] sm:$0xff]
  %v3713 = vld [vmem:[%s18 + $0x240] sm:$0xff]
  %v3714 = vld [vmem:[%s18 + $0x248] sm:$0xff]
  %v3715 = vld [vmem:[%s18 + $0x250] sm:$0xff]
  %v3716 = vld [vmem:[%s18 + $0x258] sm:$0xff]
  %v3717 = vld [vmem:[%s18 + $0x260] sm:$0xff]
  %v3718 = vld [vmem:[%s18 + $0x268] sm:$0xff]
  %v3719 = vld [vmem:[%s18 + $0x270] sm:$0xff]
  %v3720 = vld [vmem:[%s18 + $0x278] sm:$0xff]
  %v3721 = vld [vmem:[%s18 + $0x280] sm:$0xff]
  %v3722 = vld [vmem:[%s18 + $0x288] sm:$0xff]
  %v3723 = vld [vmem:[%s18 + $0x290] sm:$0xff]
  %v3724 = vld [vmem:[%s18 + $0x298] sm:$0xff]
  %v3725 = vld [vmem:[%s18 + $0x2a0] sm:$0xff]
  %v3726 = vld [vmem:[%s18 + $0x2a8] sm:$0xff]
  %v3727 = vld [vmem:[%s18 + $0x2b0] sm:$0xff]
  %v3728 = vld [vmem:[%s18 + $0x2b8] sm:$0xff]
  %v3729 = vld [vmem:[%s18 + $0x2c0] sm:$0xff]
  %v3730 = vld [vmem:[%s18 + $0x2c8] sm:$0xff]
  %v3731 = vld [vmem:[%s18 + $0x2d0] sm:$0xff]
  %v3732 = vld [vmem:[%s18 + $0x2d8] sm:$0xff]
  %v3733 = vld [vmem:[%s18 + $0x2e0] sm:$0xff]
  %v3734 = vld [vmem:[%s18 + $0x2e8] sm:$0xff]
  %v3735 = vld [vmem:[%s18 + $0x2f0] sm:$0xff]
  %v3736 = vld [vmem:[%s18 + $0x2f8] sm:$0xff]
  %v3737 = vld [vmem:[%s18 + $0x300] sm:$0xff]
  %v3738 = vld [vmem:[%s18 + $0x308] sm:$0xff]
  %v3739 = vld [vmem:[%s18 + $0x310] sm:$0xff]
  %v3740 = vld [vmem:[%s18 + $0x318] sm:$0xff]
  %v3741 = vld [vmem:[%s18 + $0x320] sm:$0xff]
  %v3742 = vld [vmem:[%s18 + $0x328] sm:$0xff]
  %v3743 = vld [vmem:[%s18 + $0x330] sm:$0xff]
  %v3744 = vld [vmem:[%s18 + $0x338] sm:$0xff]
  %v3745 = vld [vmem:[%s18 + $0x340] sm:$0xff]
  %v3746 = vld [vmem:[%s18 + $0x348] sm:$0xff]
  %v3747 = vld [vmem:[%s18 + $0x350] sm:$0xff]
  %v3748 = vld [vmem:[%s18 + $0x358] sm:$0xff]
  %v3749 = vld [vmem:[%s18 + $0x360] sm:$0xff]
  %v3750 = vld [vmem:[%s18 + $0x368] sm:$0xff]
  %v3751 = vld [vmem:[%s18 + $0x370] sm:$0xff]
  %v3752 = vld [vmem:[%s18 + $0x378] sm:$0xff]
  %v3753 = vld [vmem:[%s18 + $0x380] sm:$0xff]
  %v3754 = vld [vmem:[%s18 + $0x388] sm:$0xff]
  %v3755 = vld [vmem:[%s18 + $0x390] sm:$0xff]
  %v3756 = vld [vmem:[%s18 + $0x398] sm:$0xff]
  %v3757 = vld [vmem:[%s18 + $0x3a0] sm:$0xff]
  %v3758 = vld [vmem:[%s18 + $0x3a8] sm:$0xff]
  %v3759 = vld [vmem:[%s18 + $0x3b0] sm:$0xff]
  %v3760 = vld [vmem:[%s18 + $0x3b8] sm:$0xff]
  %v3761 = vld [vmem:[%s18 + $0x3c0] sm:$0xff]
  %v3762 = vld [vmem:[%s18 + $0x3c8] sm:$0xff]
  %v3763 = vld [vmem:[%s18 + $0x3d0] sm:$0xff]
  %v3764 = vld [vmem:[%s18 + $0x3d8] sm:$0xff]
  %v3765 = vld [vmem:[%s18 + $0x3e0] sm:$0xff]
  %v3766 = vld [vmem:[%s18 + $0x3e8] sm:$0xff]
  %v3767 = vld [vmem:[%s18 + $0x3f0] sm:$0xff]
  %v3768 = vld [vmem:[%s18 + $0x3f8] sm:$0xff]
  %v3769 = vld [vmem:[%s18 + $0x400] sm:$0xff]
  %v3770 = vld [vmem:[%s18 + $0x408] sm:$0xff]
  %v3771 = vld [vmem:[%s18 + $0x410] sm:$0xff]
  %v3772 = vld [vmem:[%s18 + $0x418] sm:$0xff]
  %v3773 = vld [vmem:[%s18 + $0x420] sm:$0xff]
  %v3774 = vld [vmem:[%s18 + $0x428] sm:$0xff]
  %v3775 = vld [vmem:[%s18 + $0x430] sm:$0xff]
  %v3776 = vld [vmem:[%s18 + $0x438] sm:$0xff]
  %v3777 = vld [vmem:[%s18 + $0x440] sm:$0xff]
  %v3778 = vld [vmem:[%s18 + $0x448] sm:$0xff]
  %v3779 = vld [vmem:[%s18 + $0x450] sm:$0xff]
  %v3780 = vld [vmem:[%s18 + $0x458] sm:$0xff]
  %v3781 = vld [vmem:[%s18 + $0x460] sm:$0xff]
  %v3782 = vld [vmem:[%s18 + $0x468] sm:$0xff]
  %v3783 = vld [vmem:[%s18 + $0x470] sm:$0xff]
  %v3784 = vld [vmem:[%s18 + $0x478] sm:$0xff]
  %v3785 = vld [vmem:[%s18 + $0x480] sm:$0xff]
  %v3786 = vld [vmem:[%s18 + $0x488] sm:$0xff]
  %v3787 = vld [vmem:[%s18 + $0x490] sm:$0xff]
  %v3788 = vld [vmem:[%s18 + $0x498] sm:$0xff]
  %v3789 = vld [vmem:[%s18 + $0x4a0] sm:$0xff]
  %v3790 = vld [vmem:[%s18 + $0x4a8] sm:$0xff]
  %v3791 = vld [vmem:[%s18 + $0x4b0] sm:$0xff]
  %v3792 = vld [vmem:[%s18 + $0x4b8] sm:$0xff]
  %v3793 = vld [vmem:[%s18 + $0x4c0] sm:$0xff]
  %v3794 = vld [vmem:[%s18 + $0x4c8] sm:$0xff]
  %v3795 = vld [vmem:[%s18 + $0x4d0] sm:$0xff]
  %v3796 = vld [vmem:[%s18 + $0x4d8] sm:$0xff]
  %v3797 = vld [vmem:[%s18 + $0x4e0] sm:$0xff]
  %v3798 = vld [vmem:[%s18 + $0x4e8] sm:$0xff]
  %v3799 = vld [vmem:[%s18 + $0x4f0] sm:$0xff]
  %v3800 = vld [vmem:[%s18 + $0x4f8] sm:$0xff]
  %v3801 = vld [vmem:[%s18 + $0x500] sm:$0xff]
  %v3802 = vld [vmem:[%s18 + $0x508] sm:$0xff]
  %v3803 = vld [vmem:[%s18 + $0x510] sm:$0xff]
  %v3804 = vld [vmem:[%s18 + $0x518] sm:$0xff]
  %v3805 = vld [vmem:[%s18 + $0x520] sm:$0xff]
  %v3806 = vld [vmem:[%s18 + $0x528] sm:$0xff]
  %v3807 = vld [vmem:[%s18 + $0x530] sm:$0xff]
  %v3808 = vld [vmem:[%s18 + $0x538] sm:$0xff]
  %v3809 = vld [vmem:[%s18 + $0x540] sm:$0xff]
  %v3810 = vld [vmem:[%s18 + $0x548] sm:$0xff]
  %v3811 = vld [vmem:[%s18 + $0x550] sm:$0xff]
  %v3812 = vld [vmem:[%s18 + $0x558] sm:$0xff]
  %v3813 = vld [vmem:[%s18 + $0x560] sm:$0xff]
  %v3814 = vld [vmem:[%s18 + $0x568] sm:$0xff]
  %v3815 = vld [vmem:[%s18 + $0x570] sm:$0xff]
  %v3816 = vld [vmem:[%s18 + $0x578] sm:$0xff]
  %v3817 = vld [vmem:[%s18 + $0x580] sm:$0xff]
  %v3818 = vld [vmem:[%s18 + $0x588] sm:$0xff]
  %v3819 = vld [vmem:[%s18 + $0x590] sm:$0xff]
  %v3820 = vld [vmem:[%s18 + $0x598] sm:$0xff]
  %v3821 = vld [vmem:[%s18 + $0x5a0] sm:$0xff]
  %v3822 = vld [vmem:[%s18 + $0x5a8] sm:$0xff]
  %v3823 = vld [vmem:[%s18 + $0x5b0] sm:$0xff]
  %v3824 = vld [vmem:[%s18 + $0x5b8] sm:$0xff]
  %v3825 = vld [vmem:[%s18 + $0x5c0] sm:$0xff]
  %v3826 = vld [vmem:[%s18 + $0x5c8] sm:$0xff]
  %v3827 = vld [vmem:[%s18 + $0x5d0] sm:$0xff]
  %v3828 = vld [vmem:[%s18 + $0x5d8] sm:$0xff]
  %v3829 = vld [vmem:[%s18 + $0x5e0] sm:$0xff]
  %v3830 = vld [vmem:[%s18 + $0x5e8] sm:$0xff]
  %v3831 = vld [vmem:[%s18 + $0x5f0] sm:$0xff]
  %v3832 = vld [vmem:[%s18 + $0x5f8] sm:$0xff]
  %v3833 = vld [vmem:[%s18 + $0x600] sm:$0xff]
  %v3834 = vld [vmem:[%s18 + $0x608] sm:$0xff]
  %v3835 = vld [vmem:[%s18 + $0x610] sm:$0xff]
  %v3836 = vld [vmem:[%s18 + $0x618] sm:$0xff]
  %v3837 = vld [vmem:[%s18 + $0x620] sm:$0xff]
  %v3838 = vld [vmem:[%s18 + $0x628] sm:$0xff]
  %v3839 = vld [vmem:[%s18 + $0x630] sm:$0xff]
  %v3840 = vld [vmem:[%s18 + $0x638] sm:$0xff]
  %v3841 = vld [vmem:[%s18 + $0x640] sm:$0xff]
  %v3842 = vld [vmem:[%s18 + $0x648] sm:$0xff]
  %v3843 = vld [vmem:[%s18 + $0x650] sm:$0xff]
  %v3844 = vld [vmem:[%s18 + $0x658] sm:$0xff]
  %v3845 = vld [vmem:[%s18 + $0x660] sm:$0xff]
  %v3846 = vld [vmem:[%s18 + $0x668] sm:$0xff]
  %v3847 = vld [vmem:[%s18 + $0x670] sm:$0xff]
  %v3848 = vld [vmem:[%s18 + $0x678] sm:$0xff]
  %v3849 = vld [vmem:[%s18 + $0x680] sm:$0xff]
  %v3850 = vld [vmem:[%s18 + $0x688] sm:$0xff]
  %v3851 = vld [vmem:[%s18 + $0x690] sm:$0xff]
  %v3852 = vld [vmem:[%s18 + $0x698] sm:$0xff]
  %v3853 = vld [vmem:[%s18 + $0x6a0] sm:$0xff]
  %v3854 = vld [vmem:[%s18 + $0x6a8] sm:$0xff]
  %v3855 = vld [vmem:[%s18 + $0x6b0] sm:$0xff]
  %v3856 = vld [vmem:[%s18 + $0x6b8] sm:$0xff]
  %v3857 = vld [vmem:[%s18 + $0x6c0] sm:$0xff]
  %v3858 = vld [vmem:[%s18 + $0x6c8] sm:$0xff]
  %v3859 = vld [vmem:[%s18 + $0x6d0] sm:$0xff]
  %v3860 = vld [vmem:[%s18 + $0x6d8] sm:$0xff]
  %v3861 = vld [vmem:[%s18 + $0x6e0] sm:$0xff]
  %v3862 = vld [vmem:[%s18 + $0x6e8] sm:$0xff]
  %v3863 = vld [vmem:[%s18 + $0x6f0] sm:$0xff]
  %v3864 = vld [vmem:[%s18 + $0x6f8] sm:$0xff]
  %v3865 = vld [vmem:[%s18 + $0x700] sm:$0xff]
  %v3866 = vld [vmem:[%s18 + $0x708] sm:$0xff]
  %v3867 = vld [vmem:[%s18 + $0x710] sm:$0xff]
  %v3868 = vld [vmem:[%s18 + $0x718] sm:$0xff]
  %v3869 = vld [vmem:[%s18 + $0x720] sm:$0xff]
  %v3870 = vld [vmem:[%s18 + $0x728] sm:$0xff]
  %v3871 = vld [vmem:[%s18 + $0x730] sm:$0xff]
  %v3872 = vld [vmem:[%s18 + $0x738] sm:$0xff]
  %v3873 = vld [vmem:[%s18 + $0x740] sm:$0xff]
  %v3874 = vld [vmem:[%s18 + $0x748] sm:$0xff]
  %v3875 = vld [vmem:[%s18 + $0x750] sm:$0xff]
  %v3876 = vld [vmem:[%s18 + $0x758] sm:$0xff]
  %v3877 = vld [vmem:[%s18 + $0x760] sm:$0xff]
  %v3878 = vld [vmem:[%s18 + $0x768] sm:$0xff]
  %v3879 = vld [vmem:[%s18 + $0x770] sm:$0xff]
  %v3880 = vld [vmem:[%s18 + $0x778] sm:$0xff]
  %v3881 = vld [vmem:[%s18 + $0x780] sm:$0xff]
  %v3882 = vld [vmem:[%s18 + $0x788] sm:$0xff]
  %v3883 = vld [vmem:[%s18 + $0x790] sm:$0xff]
  %v3884 = vld [vmem:[%s18 + $0x798] sm:$0xff]
  %v3885 = vld [vmem:[%s18 + $0x7a0] sm:$0xff]
  %v3886 = vld [vmem:[%s18 + $0x7a8] sm:$0xff]
  %v3887 = vld [vmem:[%s18 + $0x7b0] sm:$0xff]
  %v3888 = vld [vmem:[%s18 + $0x7b8] sm:$0xff]
  %v3889 = vld [vmem:[%s18 + $0x7c0] sm:$0xff]
  %v3890 = vld [vmem:[%s18 + $0x7c8] sm:$0xff]
  %v3891 = vld [vmem:[%s18 + $0x7d0] sm:$0xff]
  %v3892 = vld [vmem:[%s18 + $0x7d8] sm:$0xff]
  %v3893 = vld [vmem:[%s18 + $0x7e0] sm:$0xff]
  %v3894 = vld [vmem:[%s18 + $0x7e8] sm:$0xff]
  %v3895 = vld [vmem:[%s18 + $0x7f0] sm:$0xff]
  %v3896 = vld [vmem:[%s18 + $0x7f8] sm:$0xff]
  %v3897 = vld [vmem:[%s19] sm:$0xff]
  %v3899 = vlaneseq
  %v3900 = vshrl.u32 %v3899, 7
  %v3901 = vsub.s32 0, %v3900
  %v3902 = vrot.slane %v3897, %v3901
  %v3903 = vlaneseq
  %v3904 = vshrl.u32 %v3903, 7
  %v3905 = vsub.s32 1, %v3904
  %v3906 = vrot.slane %v3897, %v3905
  %v3907 = vlaneseq
  %v3908 = vshrl.u32 %v3907, 7
  %v3909 = vsub.s32 2, %v3908
  %v3910 = vrot.slane %v3897, %v3909
  %v3911 = vlaneseq
  %v3912 = vshrl.u32 %v3911, 7
  %v3913 = vsub.s32 3, %v3912
  %v3914 = vrot.slane %v3897, %v3913
  %v3915 = vlaneseq
  %v3916 = vshrl.u32 %v3915, 7
  %v3917 = vsub.s32 4, %v3916
  %v3918 = vrot.slane %v3897, %v3917
  %v3919 = vlaneseq
  %v3920 = vshrl.u32 %v3919, 7
  %v3921 = vsub.s32 5, %v3920
  %v3922 = vrot.slane %v3897, %v3921
  %v3923 = vlaneseq
  %v3924 = vshrl.u32 %v3923, 7
  %v3925 = vsub.s32 6, %v3924
  %v3926 = vrot.slane %v3897, %v3925
  %v3927 = vlaneseq
  %v3928 = vshrl.u32 %v3927, 7
  %v3929 = vsub.s32 7, %v3928
  %v3930 = vrot.slane %v3897, %v3929
  %v4195 = vunpack.c.l.b16 %v3641
  %v4196 = vunpack.c.h.b16 %v3641
  %v4197 = vunpack.c.l.b16 %v3642
  %v4198 = vunpack.c.h.b16 %v3642
  %v4199 = vunpack.c.l.b16 %v3643
  %v4200 = vunpack.c.h.b16 %v3643
  %v4201 = vunpack.c.l.b16 %v3644
  %v4202 = vunpack.c.h.b16 %v3644
  %v4203 = vunpack.c.l.b16 %v3645
  %v4204 = vunpack.c.h.b16 %v3645
  %v4205 = vunpack.c.l.b16 %v3646
  %v4206 = vunpack.c.h.b16 %v3646
  %v4207 = vunpack.c.l.b16 %v3647
  %v4208 = vunpack.c.h.b16 %v3647
  %v4209 = vunpack.c.l.b16 %v3648
  %v4210 = vunpack.c.h.b16 %v3648
  %v4211 = vunpack.c.l.b16 %v3649
  %v4212 = vunpack.c.h.b16 %v3649
  %v4213 = vunpack.c.l.b16 %v3650
  %v4214 = vunpack.c.h.b16 %v3650
  %v4215 = vunpack.c.l.b16 %v3651
  %v4216 = vunpack.c.h.b16 %v3651
  %v4217 = vunpack.c.l.b16 %v3652
  %v4218 = vunpack.c.h.b16 %v3652
  %v4219 = vunpack.c.l.b16 %v3653
  %v4220 = vunpack.c.h.b16 %v3653
  %v4221 = vunpack.c.l.b16 %v3654
  %v4222 = vunpack.c.h.b16 %v3654
  %v4223 = vunpack.c.l.b16 %v3655
  %v4224 = vunpack.c.h.b16 %v3655
  %v4225 = vunpack.c.l.b16 %v3656
  %v4226 = vunpack.c.h.b16 %v3656
  %v4227 = vunpack.c.l.b16 %v3657
  %v4228 = vunpack.c.h.b16 %v3657
  %v4229 = vunpack.c.l.b16 %v3658
  %v4230 = vunpack.c.h.b16 %v3658
  %v4231 = vunpack.c.l.b16 %v3659
  %v4232 = vunpack.c.h.b16 %v3659
  %v4233 = vunpack.c.l.b16 %v3660
  %v4234 = vunpack.c.h.b16 %v3660
  %v4235 = vunpack.c.l.b16 %v3661
  %v4236 = vunpack.c.h.b16 %v3661
  %v4237 = vunpack.c.l.b16 %v3662
  %v4238 = vunpack.c.h.b16 %v3662
  %v4239 = vunpack.c.l.b16 %v3663
  %v4240 = vunpack.c.h.b16 %v3663
  %v4241 = vunpack.c.l.b16 %v3664
  %v4242 = vunpack.c.h.b16 %v3664
  %v4243 = vunpack.c.l.b16 %v3665
  %v4244 = vunpack.c.h.b16 %v3665
  %v4245 = vunpack.c.l.b16 %v3666
  %v4246 = vunpack.c.h.b16 %v3666
  %v4247 = vunpack.c.l.b16 %v3667
  %v4248 = vunpack.c.h.b16 %v3667
  %v4249 = vunpack.c.l.b16 %v3668
  %v4250 = vunpack.c.h.b16 %v3668
  %v4251 = vunpack.c.l.b16 %v3669
  %v4252 = vunpack.c.h.b16 %v3669
  %v4253 = vunpack.c.l.b16 %v3670
  %v4254 = vunpack.c.h.b16 %v3670
  %v4255 = vunpack.c.l.b16 %v3671
  %v4256 = vunpack.c.h.b16 %v3671
  %v4257 = vunpack.c.l.b16 %v3672
  %v4258 = vunpack.c.h.b16 %v3672
  %v4259 = vunpack.c.l.b16 %v3673
  %v4260 = vunpack.c.h.b16 %v3673
  %v4261 = vunpack.c.l.b16 %v3674
  %v4262 = vunpack.c.h.b16 %v3674
  %v4263 = vunpack.c.l.b16 %v3675
  %v4264 = vunpack.c.h.b16 %v3675
  %v4265 = vunpack.c.l.b16 %v3676
  %v4266 = vunpack.c.h.b16 %v3676
  %v4267 = vunpack.c.l.b16 %v3677
  %v4268 = vunpack.c.h.b16 %v3677
  %v4269 = vunpack.c.l.b16 %v3678
  %v4270 = vunpack.c.h.b16 %v3678
  %v4271 = vunpack.c.l.b16 %v3679
  %v4272 = vunpack.c.h.b16 %v3679
  %v4273 = vunpack.c.l.b16 %v3680
  %v4274 = vunpack.c.h.b16 %v3680
  %v4275 = vunpack.c.l.b16 %v3681
  %v4276 = vunpack.c.h.b16 %v3681
  %v4277 = vunpack.c.l.b16 %v3682
  %v4278 = vunpack.c.h.b16 %v3682
  %v4279 = vunpack.c.l.b16 %v3683
  %v4280 = vunpack.c.h.b16 %v3683
  %v4281 = vunpack.c.l.b16 %v3684
  %v4282 = vunpack.c.h.b16 %v3684
  %v4283 = vunpack.c.l.b16 %v3685
  %v4284 = vunpack.c.h.b16 %v3685
  %v4285 = vunpack.c.l.b16 %v3686
  %v4286 = vunpack.c.h.b16 %v3686
  %v4287 = vunpack.c.l.b16 %v3687
  %v4288 = vunpack.c.h.b16 %v3687
  %v4289 = vunpack.c.l.b16 %v3688
  %v4290 = vunpack.c.h.b16 %v3688
  %v4291 = vunpack.c.l.b16 %v3689
  %v4292 = vunpack.c.h.b16 %v3689
  %v4293 = vunpack.c.l.b16 %v3690
  %v4294 = vunpack.c.h.b16 %v3690
  %v4295 = vunpack.c.l.b16 %v3691
  %v4296 = vunpack.c.h.b16 %v3691
  %v4297 = vunpack.c.l.b16 %v3692
  %v4298 = vunpack.c.h.b16 %v3692
  %v4299 = vunpack.c.l.b16 %v3693
  %v4300 = vunpack.c.h.b16 %v3693
  %v4301 = vunpack.c.l.b16 %v3694
  %v4302 = vunpack.c.h.b16 %v3694
  %v4303 = vunpack.c.l.b16 %v3695
  %v4304 = vunpack.c.h.b16 %v3695
  %v4305 = vunpack.c.l.b16 %v3696
  %v4306 = vunpack.c.h.b16 %v3696
  %v4307 = vunpack.c.l.b16 %v3697
  %v4308 = vunpack.c.h.b16 %v3697
  %v4309 = vunpack.c.l.b16 %v3698
  %v4310 = vunpack.c.h.b16 %v3698
  %v4311 = vunpack.c.l.b16 %v3699
  %v4312 = vunpack.c.h.b16 %v3699
  %v4313 = vunpack.c.l.b16 %v3700
  %v4314 = vunpack.c.h.b16 %v3700
  %v4315 = vunpack.c.l.b16 %v3701
  %v4316 = vunpack.c.h.b16 %v3701
  %v4317 = vunpack.c.l.b16 %v3702
  %v4318 = vunpack.c.h.b16 %v3702
  %v4319 = vunpack.c.l.b16 %v3703
  %v4320 = vunpack.c.h.b16 %v3703
  %v4321 = vunpack.c.l.b16 %v3704
  %v4322 = vunpack.c.h.b16 %v3704
  %v4323 = vunpack.c.l.b16 %v3705
  %v4324 = vunpack.c.h.b16 %v3705
  %v4325 = vunpack.c.l.b16 %v3706
  %v4326 = vunpack.c.h.b16 %v3706
  %v4327 = vunpack.c.l.b16 %v3707
  %v4328 = vunpack.c.h.b16 %v3707
  %v4329 = vunpack.c.l.b16 %v3708
  %v4330 = vunpack.c.h.b16 %v3708
  %v4331 = vunpack.c.l.b16 %v3709
  %v4332 = vunpack.c.h.b16 %v3709
  %v4333 = vunpack.c.l.b16 %v3710
  %v4334 = vunpack.c.h.b16 %v3710
  %v4335 = vunpack.c.l.b16 %v3711
  %v4336 = vunpack.c.h.b16 %v3711
  %v4337 = vunpack.c.l.b16 %v3712
  %v4338 = vunpack.c.h.b16 %v3712
  %v4339 = vunpack.c.l.b16 %v3713
  %v4340 = vunpack.c.h.b16 %v3713
  %v4341 = vunpack.c.l.b16 %v3714
  %v4342 = vunpack.c.h.b16 %v3714
  %v4343 = vunpack.c.l.b16 %v3715
  %v4344 = vunpack.c.h.b16 %v3715
  %v4345 = vunpack.c.l.b16 %v3716
  %v4346 = vunpack.c.h.b16 %v3716
  %v4347 = vunpack.c.l.b16 %v3717
  %v4348 = vunpack.c.h.b16 %v3717
  %v4349 = vunpack.c.l.b16 %v3718
  %v4350 = vunpack.c.h.b16 %v3718
  %v4351 = vunpack.c.l.b16 %v3719
  %v4352 = vunpack.c.h.b16 %v3719
  %v4353 = vunpack.c.l.b16 %v3720
  %v4354 = vunpack.c.h.b16 %v3720
  %v4355 = vunpack.c.l.b16 %v3721
  %v4356 = vunpack.c.h.b16 %v3721
  %v4357 = vunpack.c.l.b16 %v3722
  %v4358 = vunpack.c.h.b16 %v3722
  %v4359 = vunpack.c.l.b16 %v3723
  %v4360 = vunpack.c.h.b16 %v3723
  %v4361 = vunpack.c.l.b16 %v3724
  %v4362 = vunpack.c.h.b16 %v3724
  %v4363 = vunpack.c.l.b16 %v3725
  %v4364 = vunpack.c.h.b16 %v3725
  %v4365 = vunpack.c.l.b16 %v3726
  %v4366 = vunpack.c.h.b16 %v3726
  %v4367 = vunpack.c.l.b16 %v3727
  %v4368 = vunpack.c.h.b16 %v3727
  %v4369 = vunpack.c.l.b16 %v3728
  %v4370 = vunpack.c.h.b16 %v3728
  %v4371 = vunpack.c.l.b16 %v3729
  %v4372 = vunpack.c.h.b16 %v3729
  %v4373 = vunpack.c.l.b16 %v3730
  %v4374 = vunpack.c.h.b16 %v3730
  %v4375 = vunpack.c.l.b16 %v3731
  %v4376 = vunpack.c.h.b16 %v3731
  %v4377 = vunpack.c.l.b16 %v3732
  %v4378 = vunpack.c.h.b16 %v3732
  %v4379 = vunpack.c.l.b16 %v3733
  %v4380 = vunpack.c.h.b16 %v3733
  %v4381 = vunpack.c.l.b16 %v3734
  %v4382 = vunpack.c.h.b16 %v3734
  %v4383 = vunpack.c.l.b16 %v3735
  %v4384 = vunpack.c.h.b16 %v3735
  %v4385 = vunpack.c.l.b16 %v3736
  %v4386 = vunpack.c.h.b16 %v3736
  %v4387 = vunpack.c.l.b16 %v3737
  %v4388 = vunpack.c.h.b16 %v3737
  %v4389 = vunpack.c.l.b16 %v3738
  %v4390 = vunpack.c.h.b16 %v3738
  %v4391 = vunpack.c.l.b16 %v3739
  %v4392 = vunpack.c.h.b16 %v3739
  %v4393 = vunpack.c.l.b16 %v3740
  %v4394 = vunpack.c.h.b16 %v3740
  %v4395 = vunpack.c.l.b16 %v3741
  %v4396 = vunpack.c.h.b16 %v3741
  %v4397 = vunpack.c.l.b16 %v3742
  %v4398 = vunpack.c.h.b16 %v3742
  %v4399 = vunpack.c.l.b16 %v3743
  %v4400 = vunpack.c.h.b16 %v3743
  %v4401 = vunpack.c.l.b16 %v3744
  %v4402 = vunpack.c.h.b16 %v3744
  %v4403 = vunpack.c.l.b16 %v3745
  %v4404 = vunpack.c.h.b16 %v3745
  %v4405 = vunpack.c.l.b16 %v3746
  %v4406 = vunpack.c.h.b16 %v3746
  %v4407 = vunpack.c.l.b16 %v3747
  %v4408 = vunpack.c.h.b16 %v3747
  %v4409 = vunpack.c.l.b16 %v3748
  %v4410 = vunpack.c.h.b16 %v3748
  %v4411 = vunpack.c.l.b16 %v3749
  %v4412 = vunpack.c.h.b16 %v3749
  %v4413 = vunpack.c.l.b16 %v3750
  %v4414 = vunpack.c.h.b16 %v3750
  %v4415 = vunpack.c.l.b16 %v3751
  %v4416 = vunpack.c.h.b16 %v3751
  %v4417 = vunpack.c.l.b16 %v3752
  %v4418 = vunpack.c.h.b16 %v3752
  %v4419 = vunpack.c.l.b16 %v3753
  %v4420 = vunpack.c.h.b16 %v3753
  %v4421 = vunpack.c.l.b16 %v3754
  %v4422 = vunpack.c.h.b16 %v3754
  %v4423 = vunpack.c.l.b16 %v3755
  %v4424 = vunpack.c.h.b16 %v3755
  %v4425 = vunpack.c.l.b16 %v3756
  %v4426 = vunpack.c.h.b16 %v3756
  %v4427 = vunpack.c.l.b16 %v3757
  %v4428 = vunpack.c.h.b16 %v3757
  %v4429 = vunpack.c.l.b16 %v3758
  %v4430 = vunpack.c.h.b16 %v3758
  %v4431 = vunpack.c.l.b16 %v3759
  %v4432 = vunpack.c.h.b16 %v3759
  %v4433 = vunpack.c.l.b16 %v3760
  %v4434 = vunpack.c.h.b16 %v3760
  %v4435 = vunpack.c.l.b16 %v3761
  %v4436 = vunpack.c.h.b16 %v3761
  %v4437 = vunpack.c.l.b16 %v3762
  %v4438 = vunpack.c.h.b16 %v3762
  %v4439 = vunpack.c.l.b16 %v3763
  %v4440 = vunpack.c.h.b16 %v3763
  %v4441 = vunpack.c.l.b16 %v3764
  %v4442 = vunpack.c.h.b16 %v3764
  %v4443 = vunpack.c.l.b16 %v3765
  %v4444 = vunpack.c.h.b16 %v3765
  %v4445 = vunpack.c.l.b16 %v3766
  %v4446 = vunpack.c.h.b16 %v3766
  %v4447 = vunpack.c.l.b16 %v3767
  %v4448 = vunpack.c.h.b16 %v3767
  %v4449 = vunpack.c.l.b16 %v3768
  %v4450 = vunpack.c.h.b16 %v3768
  %v4451 = vunpack.c.l.b16 %v3769
  %v4452 = vunpack.c.h.b16 %v3769
  %v4453 = vunpack.c.l.b16 %v3770
  %v4454 = vunpack.c.h.b16 %v3770
  %v4455 = vunpack.c.l.b16 %v3771
  %v4456 = vunpack.c.h.b16 %v3771
  %v4457 = vunpack.c.l.b16 %v3772
  %v4458 = vunpack.c.h.b16 %v3772
  %v4459 = vunpack.c.l.b16 %v3773
  %v4460 = vunpack.c.h.b16 %v3773
  %v4461 = vunpack.c.l.b16 %v3774
  %v4462 = vunpack.c.h.b16 %v3774
  %v4463 = vunpack.c.l.b16 %v3775
  %v4464 = vunpack.c.h.b16 %v3775
  %v4465 = vunpack.c.l.b16 %v3776
  %v4466 = vunpack.c.h.b16 %v3776
  %v4467 = vunpack.c.l.b16 %v3777
  %v4468 = vunpack.c.h.b16 %v3777
  %v4469 = vunpack.c.l.b16 %v3778
  %v4470 = vunpack.c.h.b16 %v3778
  %v4471 = vunpack.c.l.b16 %v3779
  %v4472 = vunpack.c.h.b16 %v3779
  %v4473 = vunpack.c.l.b16 %v3780
  %v4474 = vunpack.c.h.b16 %v3780
  %v4475 = vunpack.c.l.b16 %v3781
  %v4476 = vunpack.c.h.b16 %v3781
  %v4477 = vunpack.c.l.b16 %v3782
  %v4478 = vunpack.c.h.b16 %v3782
  %v4479 = vunpack.c.l.b16 %v3783
  %v4480 = vunpack.c.h.b16 %v3783
  %v4481 = vunpack.c.l.b16 %v3784
  %v4482 = vunpack.c.h.b16 %v3784
  %v4483 = vunpack.c.l.b16 %v3785
  %v4484 = vunpack.c.h.b16 %v3785
  %v4485 = vunpack.c.l.b16 %v3786
  %v4486 = vunpack.c.h.b16 %v3786
  %v4487 = vunpack.c.l.b16 %v3787
  %v4488 = vunpack.c.h.b16 %v3787
  %v4489 = vunpack.c.l.b16 %v3788
  %v4490 = vunpack.c.h.b16 %v3788
  %v4491 = vunpack.c.l.b16 %v3789
  %v4492 = vunpack.c.h.b16 %v3789
  %v4493 = vunpack.c.l.b16 %v3790
  %v4494 = vunpack.c.h.b16 %v3790
  %v4495 = vunpack.c.l.b16 %v3791
  %v4496 = vunpack.c.h.b16 %v3791
  %v4497 = vunpack.c.l.b16 %v3792
  %v4498 = vunpack.c.h.b16 %v3792
  %v4499 = vunpack.c.l.b16 %v3793
  %v4500 = vunpack.c.h.b16 %v3793
  %v4501 = vunpack.c.l.b16 %v3794
  %v4502 = vunpack.c.h.b16 %v3794
  %v4503 = vunpack.c.l.b16 %v3795
  %v4504 = vunpack.c.h.b16 %v3795
  %v4505 = vunpack.c.l.b16 %v3796
  %v4506 = vunpack.c.h.b16 %v3796
  %v4507 = vunpack.c.l.b16 %v3797
  %v4508 = vunpack.c.h.b16 %v3797
  %v4509 = vunpack.c.l.b16 %v3798
  %v4510 = vunpack.c.h.b16 %v3798
  %v4511 = vunpack.c.l.b16 %v3799
  %v4512 = vunpack.c.h.b16 %v3799
  %v4513 = vunpack.c.l.b16 %v3800
  %v4514 = vunpack.c.h.b16 %v3800
  %v4515 = vunpack.c.l.b16 %v3801
  %v4516 = vunpack.c.h.b16 %v3801
  %v4517 = vunpack.c.l.b16 %v3802
  %v4518 = vunpack.c.h.b16 %v3802
  %v4519 = vunpack.c.l.b16 %v3803
  %v4520 = vunpack.c.h.b16 %v3803
  %v4521 = vunpack.c.l.b16 %v3804
  %v4522 = vunpack.c.h.b16 %v3804
  %v4523 = vunpack.c.l.b16 %v3805
  %v4524 = vunpack.c.h.b16 %v3805
  %v4525 = vunpack.c.l.b16 %v3806
  %v4526 = vunpack.c.h.b16 %v3806
  %v4527 = vunpack.c.l.b16 %v3807
  %v4528 = vunpack.c.h.b16 %v3807
  %v4529 = vunpack.c.l.b16 %v3808
  %v4530 = vunpack.c.h.b16 %v3808
  %v4531 = vunpack.c.l.b16 %v3809
  %v4532 = vunpack.c.h.b16 %v3809
  %v4533 = vunpack.c.l.b16 %v3810
  %v4534 = vunpack.c.h.b16 %v3810
  %v4535 = vunpack.c.l.b16 %v3811
  %v4536 = vunpack.c.h.b16 %v3811
  %v4537 = vunpack.c.l.b16 %v3812
  %v4538 = vunpack.c.h.b16 %v3812
  %v4539 = vunpack.c.l.b16 %v3813
  %v4540 = vunpack.c.h.b16 %v3813
  %v4541 = vunpack.c.l.b16 %v3814
  %v4542 = vunpack.c.h.b16 %v3814
  %v4543 = vunpack.c.l.b16 %v3815
  %v4544 = vunpack.c.h.b16 %v3815
  %v4545 = vunpack.c.l.b16 %v3816
  %v4546 = vunpack.c.h.b16 %v3816
  %v4547 = vunpack.c.l.b16 %v3817
  %v4548 = vunpack.c.h.b16 %v3817
  %v4549 = vunpack.c.l.b16 %v3818
  %v4550 = vunpack.c.h.b16 %v3818
  %v4551 = vunpack.c.l.b16 %v3819
  %v4552 = vunpack.c.h.b16 %v3819
  %v4553 = vunpack.c.l.b16 %v3820
  %v4554 = vunpack.c.h.b16 %v3820
  %v4555 = vunpack.c.l.b16 %v3821
  %v4556 = vunpack.c.h.b16 %v3821
  %v4557 = vunpack.c.l.b16 %v3822
  %v4558 = vunpack.c.h.b16 %v3822
  %v4559 = vunpack.c.l.b16 %v3823
  %v4560 = vunpack.c.h.b16 %v3823
  %v4561 = vunpack.c.l.b16 %v3824
  %v4562 = vunpack.c.h.b16 %v3824
  %v4563 = vunpack.c.l.b16 %v3825
  %v4564 = vunpack.c.h.b16 %v3825
  %v4565 = vunpack.c.l.b16 %v3826
  %v4566 = vunpack.c.h.b16 %v3826
  %v4567 = vunpack.c.l.b16 %v3827
  %v4568 = vunpack.c.h.b16 %v3827
  %v4569 = vunpack.c.l.b16 %v3828
  %v4570 = vunpack.c.h.b16 %v3828
  %v4571 = vunpack.c.l.b16 %v3829
  %v4572 = vunpack.c.h.b16 %v3829
  %v4573 = vunpack.c.l.b16 %v3830
  %v4574 = vunpack.c.h.b16 %v3830
  %v4575 = vunpack.c.l.b16 %v3831
  %v4576 = vunpack.c.h.b16 %v3831
  %v4577 = vunpack.c.l.b16 %v3832
  %v4578 = vunpack.c.h.b16 %v3832
  %v4579 = vunpack.c.l.b16 %v3833
  %v4580 = vunpack.c.h.b16 %v3833
  %v4581 = vunpack.c.l.b16 %v3834
  %v4582 = vunpack.c.h.b16 %v3834
  %v4583 = vunpack.c.l.b16 %v3835
  %v4584 = vunpack.c.h.b16 %v3835
  %v4585 = vunpack.c.l.b16 %v3836
  %v4586 = vunpack.c.h.b16 %v3836
  %v4587 = vunpack.c.l.b16 %v3837
  %v4588 = vunpack.c.h.b16 %v3837
  %v4589 = vunpack.c.l.b16 %v3838
  %v4590 = vunpack.c.h.b16 %v3838
  %v4591 = vunpack.c.l.b16 %v3839
  %v4592 = vunpack.c.h.b16 %v3839
  %v4593 = vunpack.c.l.b16 %v3840
  %v4594 = vunpack.c.h.b16 %v3840
  %v4595 = vunpack.c.l.b16 %v3841
  %v4596 = vunpack.c.h.b16 %v3841
  %v4597 = vunpack.c.l.b16 %v3842
  %v4598 = vunpack.c.h.b16 %v3842
  %v4599 = vunpack.c.l.b16 %v3843
  %v4600 = vunpack.c.h.b16 %v3843
  %v4601 = vunpack.c.l.b16 %v3844
  %v4602 = vunpack.c.h.b16 %v3844
  %v4603 = vunpack.c.l.b16 %v3845
  %v4604 = vunpack.c.h.b16 %v3845
  %v4605 = vunpack.c.l.b16 %v3846
  %v4606 = vunpack.c.h.b16 %v3846
  %v4607 = vunpack.c.l.b16 %v3847
  %v4608 = vunpack.c.h.b16 %v3847
  %v4609 = vunpack.c.l.b16 %v3848
  %v4610 = vunpack.c.h.b16 %v3848
  %v4611 = vunpack.c.l.b16 %v3849
  %v4612 = vunpack.c.h.b16 %v3849
  %v4613 = vunpack.c.l.b16 %v3850
  %v4614 = vunpack.c.h.b16 %v3850
  %v4615 = vunpack.c.l.b16 %v3851
  %v4616 = vunpack.c.h.b16 %v3851
  %v4617 = vunpack.c.l.b16 %v3852
  %v4618 = vunpack.c.h.b16 %v3852
  %v4619 = vunpack.c.l.b16 %v3853
  %v4620 = vunpack.c.h.b16 %v3853
  %v4621 = vunpack.c.l.b16 %v3854
  %v4622 = vunpack.c.h.b16 %v3854
  %v4623 = vunpack.c.l.b16 %v3855
  %v4624 = vunpack.c.h.b16 %v3855
  %v4625 = vunpack.c.l.b16 %v3856
  %v4626 = vunpack.c.h.b16 %v3856
  %v4627 = vunpack.c.l.b16 %v3857
  %v4628 = vunpack.c.h.b16 %v3857
  %v4629 = vunpack.c.l.b16 %v3858
  %v4630 = vunpack.c.h.b16 %v3858
  %v4631 = vunpack.c.l.b16 %v3859
  %v4632 = vunpack.c.h.b16 %v3859
  %v4633 = vunpack.c.l.b16 %v3860
  %v4634 = vunpack.c.h.b16 %v3860
  %v4635 = vunpack.c.l.b16 %v3861
  %v4636 = vunpack.c.h.b16 %v3861
  %v4637 = vunpack.c.l.b16 %v3862
  %v4638 = vunpack.c.h.b16 %v3862
  %v4639 = vunpack.c.l.b16 %v3863
  %v4640 = vunpack.c.h.b16 %v3863
  %v4641 = vunpack.c.l.b16 %v3864
  %v4642 = vunpack.c.h.b16 %v3864
  %v4643 = vunpack.c.l.b16 %v3865
  %v4644 = vunpack.c.h.b16 %v3865
  %v4645 = vunpack.c.l.b16 %v3866
  %v4646 = vunpack.c.h.b16 %v3866
  %v4647 = vunpack.c.l.b16 %v3867
  %v4648 = vunpack.c.h.b16 %v3867
  %v4649 = vunpack.c.l.b16 %v3868
  %v4650 = vunpack.c.h.b16 %v3868
  %v4651 = vunpack.c.l.b16 %v3869
  %v4652 = vunpack.c.h.b16 %v3869
  %v4653 = vunpack.c.l.b16 %v3870
  %v4654 = vunpack.c.h.b16 %v3870
  %v4655 = vunpack.c.l.b16 %v3871
  %v4656 = vunpack.c.h.b16 %v3871
  %v4657 = vunpack.c.l.b16 %v3872
  %v4658 = vunpack.c.h.b16 %v3872
  %v4659 = vunpack.c.l.b16 %v3873
  %v4660 = vunpack.c.h.b16 %v3873
  %v4661 = vunpack.c.l.b16 %v3874
  %v4662 = vunpack.c.h.b16 %v3874
  %v4663 = vunpack.c.l.b16 %v3875
  %v4664 = vunpack.c.h.b16 %v3875
  %v4665 = vunpack.c.l.b16 %v3876
  %v4666 = vunpack.c.h.b16 %v3876
  %v4667 = vunpack.c.l.b16 %v3877
  %v4668 = vunpack.c.h.b16 %v3877
  %v4669 = vunpack.c.l.b16 %v3878
  %v4670 = vunpack.c.h.b16 %v3878
  %v4671 = vunpack.c.l.b16 %v3879
  %v4672 = vunpack.c.h.b16 %v3879
  %v4673 = vunpack.c.l.b16 %v3880
  %v4674 = vunpack.c.h.b16 %v3880
  %v4675 = vunpack.c.l.b16 %v3881
  %v4676 = vunpack.c.h.b16 %v3881
  %v4677 = vunpack.c.l.b16 %v3882
  %v4678 = vunpack.c.h.b16 %v3882
  %v4679 = vunpack.c.l.b16 %v3883
  %v4680 = vunpack.c.h.b16 %v3883
  %v4681 = vunpack.c.l.b16 %v3884
  %v4682 = vunpack.c.h.b16 %v3884
  %v4683 = vunpack.c.l.b16 %v3885
  %v4684 = vunpack.c.h.b16 %v3885
  %v4685 = vunpack.c.l.b16 %v3886
  %v4686 = vunpack.c.h.b16 %v3886
  %v4687 = vunpack.c.l.b16 %v3887
  %v4688 = vunpack.c.h.b16 %v3887
  %v4689 = vunpack.c.l.b16 %v3888
  %v4690 = vunpack.c.h.b16 %v3888
  %v4691 = vunpack.c.l.b16 %v3889
  %v4692 = vunpack.c.h.b16 %v3889
  %v4693 = vunpack.c.l.b16 %v3890
  %v4694 = vunpack.c.h.b16 %v3890
  %v4695 = vunpack.c.l.b16 %v3891
  %v4696 = vunpack.c.h.b16 %v3891
  %v4697 = vunpack.c.l.b16 %v3892
  %v4698 = vunpack.c.h.b16 %v3892
  %v4699 = vunpack.c.l.b16 %v3893
  %v4700 = vunpack.c.h.b16 %v3893
  %v4701 = vunpack.c.l.b16 %v3894
  %v4702 = vunpack.c.h.b16 %v3894
  %v4703 = vunpack.c.l.b16 %v3895
  %v4704 = vunpack.c.h.b16 %v3895
  %v4705 = vunpack.c.l.b16 %v3896
  %v4706 = vunpack.c.h.b16 %v3896
  %v4707 = vpack.c.b16 %v4203, %v4195
  %v4708 = vpack.c.b16 %v4204, %v4196
  %v4709 = vpack.c.b16 %v4205, %v4197
  %v4710 = vpack.c.b16 %v4206, %v4198
  %v4711 = vpack.c.b16 %v4207, %v4199
  %v4712 = vpack.c.b16 %v4208, %v4200
  %v4713 = vpack.c.b16 %v4209, %v4201
  %v4714 = vpack.c.b16 %v4210, %v4202
  %v4715 = vpack.c.b16 %v4219, %v4211
  %v4716 = vpack.c.b16 %v4220, %v4212
  %v4717 = vpack.c.b16 %v4221, %v4213
  %v4718 = vpack.c.b16 %v4222, %v4214
  %v4719 = vpack.c.b16 %v4223, %v4215
  %v4720 = vpack.c.b16 %v4224, %v4216
  %v4721 = vpack.c.b16 %v4225, %v4217
  %v4722 = vpack.c.b16 %v4226, %v4218
  %v4723 = vpack.c.b16 %v4235, %v4227
  %v4724 = vpack.c.b16 %v4236, %v4228
  %v4725 = vpack.c.b16 %v4237, %v4229
  %v4726 = vpack.c.b16 %v4238, %v4230
  %v4727 = vpack.c.b16 %v4239, %v4231
  %v4728 = vpack.c.b16 %v4240, %v4232
  %v4729 = vpack.c.b16 %v4241, %v4233
  %v4730 = vpack.c.b16 %v4242, %v4234
  %v4731 = vpack.c.b16 %v4251, %v4243
  %v4732 = vpack.c.b16 %v4252, %v4244
  %v4733 = vpack.c.b16 %v4253, %v4245
  %v4734 = vpack.c.b16 %v4254, %v4246
  %v4735 = vpack.c.b16 %v4255, %v4247
  %v4736 = vpack.c.b16 %v4256, %v4248
  %v4737 = vpack.c.b16 %v4257, %v4249
  %v4738 = vpack.c.b16 %v4258, %v4250
  %v4739 = vpack.c.b16 %v4267, %v4259
  %v4740 = vpack.c.b16 %v4268, %v4260
  %v4741 = vpack.c.b16 %v4269, %v4261
  %v4742 = vpack.c.b16 %v4270, %v4262
  %v4743 = vpack.c.b16 %v4271, %v4263
  %v4744 = vpack.c.b16 %v4272, %v4264
  %v4745 = vpack.c.b16 %v4273, %v4265
  %v4746 = vpack.c.b16 %v4274, %v4266
  %v4747 = vpack.c.b16 %v4283, %v4275
  %v4748 = vpack.c.b16 %v4284, %v4276
  %v4749 = vpack.c.b16 %v4285, %v4277
  %v4750 = vpack.c.b16 %v4286, %v4278
  %v4751 = vpack.c.b16 %v4287, %v4279
  %v4752 = vpack.c.b16 %v4288, %v4280
  %v4753 = vpack.c.b16 %v4289, %v4281
  %v4754 = vpack.c.b16 %v4290, %v4282
  %v4755 = vpack.c.b16 %v4299, %v4291
  %v4756 = vpack.c.b16 %v4300, %v4292
  %v4757 = vpack.c.b16 %v4301, %v4293
  %v4758 = vpack.c.b16 %v4302, %v4294
  %v4759 = vpack.c.b16 %v4303, %v4295
  %v4760 = vpack.c.b16 %v4304, %v4296
  %v4761 = vpack.c.b16 %v4305, %v4297
  %v4762 = vpack.c.b16 %v4306, %v4298
  %v4763 = vpack.c.b16 %v4315, %v4307
  %v4764 = vpack.c.b16 %v4316, %v4308
  %v4765 = vpack.c.b16 %v4317, %v4309
  %v4766 = vpack.c.b16 %v4318, %v4310
  %v4767 = vpack.c.b16 %v4319, %v4311
  %v4768 = vpack.c.b16 %v4320, %v4312
  %v4769 = vpack.c.b16 %v4321, %v4313
  %v4770 = vpack.c.b16 %v4322, %v4314
  %v4771 = vpack.c.b16 %v4331, %v4323
  %v4772 = vpack.c.b16 %v4332, %v4324
  %v4773 = vpack.c.b16 %v4333, %v4325
  %v4774 = vpack.c.b16 %v4334, %v4326
  %v4775 = vpack.c.b16 %v4335, %v4327
  %v4776 = vpack.c.b16 %v4336, %v4328
  %v4777 = vpack.c.b16 %v4337, %v4329
  %v4778 = vpack.c.b16 %v4338, %v4330
  %v4779 = vpack.c.b16 %v4347, %v4339
  %v4780 = vpack.c.b16 %v4348, %v4340
  %v4781 = vpack.c.b16 %v4349, %v4341
  %v4782 = vpack.c.b16 %v4350, %v4342
  %v4783 = vpack.c.b16 %v4351, %v4343
  %v4784 = vpack.c.b16 %v4352, %v4344
  %v4785 = vpack.c.b16 %v4353, %v4345
  %v4786 = vpack.c.b16 %v4354, %v4346
  %v4787 = vpack.c.b16 %v4363, %v4355
  %v4788 = vpack.c.b16 %v4364, %v4356
  %v4789 = vpack.c.b16 %v4365, %v4357
  %v4790 = vpack.c.b16 %v4366, %v4358
  %v4791 = vpack.c.b16 %v4367, %v4359
  %v4792 = vpack.c.b16 %v4368, %v4360
  %v4793 = vpack.c.b16 %v4369, %v4361
  %v4794 = vpack.c.b16 %v4370, %v4362
  %v4795 = vpack.c.b16 %v4379, %v4371
  %v4796 = vpack.c.b16 %v4380, %v4372
  %v4797 = vpack.c.b16 %v4381, %v4373
  %v4798 = vpack.c.b16 %v4382, %v4374
  %v4799 = vpack.c.b16 %v4383, %v4375
  %v4800 = vpack.c.b16 %v4384, %v4376
  %v4801 = vpack.c.b16 %v4385, %v4377
  %v4802 = vpack.c.b16 %v4386, %v4378
  %v4803 = vpack.c.b16 %v4395, %v4387
  %v4804 = vpack.c.b16 %v4396, %v4388
  %v4805 = vpack.c.b16 %v4397, %v4389
  %v4806 = vpack.c.b16 %v4398, %v4390
  %v4807 = vpack.c.b16 %v4399, %v4391
  %v4808 = vpack.c.b16 %v4400, %v4392
  %v4809 = vpack.c.b16 %v4401, %v4393
  %v4810 = vpack.c.b16 %v4402, %v4394
  %v4811 = vpack.c.b16 %v4411, %v4403
  %v4812 = vpack.c.b16 %v4412, %v4404
  %v4813 = vpack.c.b16 %v4413, %v4405
  %v4814 = vpack.c.b16 %v4414, %v4406
  %v4815 = vpack.c.b16 %v4415, %v4407
  %v4816 = vpack.c.b16 %v4416, %v4408
  %v4817 = vpack.c.b16 %v4417, %v4409
  %v4818 = vpack.c.b16 %v4418, %v4410
  %v4819 = vpack.c.b16 %v4427, %v4419
  %v4820 = vpack.c.b16 %v4428, %v4420
  %v4821 = vpack.c.b16 %v4429, %v4421
  %v4822 = vpack.c.b16 %v4430, %v4422
  %v4823 = vpack.c.b16 %v4431, %v4423
  %v4824 = vpack.c.b16 %v4432, %v4424
  %v4825 = vpack.c.b16 %v4433, %v4425
  %v4826 = vpack.c.b16 %v4434, %v4426
  %v4827 = vpack.c.b16 %v4443, %v4435
  %v4828 = vpack.c.b16 %v4444, %v4436
  %v4829 = vpack.c.b16 %v4445, %v4437
  %v4830 = vpack.c.b16 %v4446, %v4438
  %v4831 = vpack.c.b16 %v4447, %v4439
  %v4832 = vpack.c.b16 %v4448, %v4440
  %v4833 = vpack.c.b16 %v4449, %v4441
  %v4834 = vpack.c.b16 %v4450, %v4442
  %v4835 = vpack.c.b16 %v4459, %v4451
  %v4836 = vpack.c.b16 %v4460, %v4452
  %v4837 = vpack.c.b16 %v4461, %v4453
  %v4838 = vpack.c.b16 %v4462, %v4454
  %v4839 = vpack.c.b16 %v4463, %v4455
  %v4840 = vpack.c.b16 %v4464, %v4456
  %v4841 = vpack.c.b16 %v4465, %v4457
  %v4842 = vpack.c.b16 %v4466, %v4458
  %v4843 = vpack.c.b16 %v4475, %v4467
  %v4844 = vpack.c.b16 %v4476, %v4468
  %v4845 = vpack.c.b16 %v4477, %v4469
  %v4846 = vpack.c.b16 %v4478, %v4470
  %v4847 = vpack.c.b16 %v4479, %v4471
  %v4848 = vpack.c.b16 %v4480, %v4472
  %v4849 = vpack.c.b16 %v4481, %v4473
  %v4850 = vpack.c.b16 %v4482, %v4474
  %v4851 = vpack.c.b16 %v4491, %v4483
  %v4852 = vpack.c.b16 %v4492, %v4484
  %v4853 = vpack.c.b16 %v4493, %v4485
  %v4854 = vpack.c.b16 %v4494, %v4486
  %v4855 = vpack.c.b16 %v4495, %v4487
  %v4856 = vpack.c.b16 %v4496, %v4488
  %v4857 = vpack.c.b16 %v4497, %v4489
  %v4858 = vpack.c.b16 %v4498, %v4490
  %v4859 = vpack.c.b16 %v4507, %v4499
  %v4860 = vpack.c.b16 %v4508, %v4500
  %v4861 = vpack.c.b16 %v4509, %v4501
  %v4862 = vpack.c.b16 %v4510, %v4502
  %v4863 = vpack.c.b16 %v4511, %v4503
  %v4864 = vpack.c.b16 %v4512, %v4504
  %v4865 = vpack.c.b16 %v4513, %v4505
  %v4866 = vpack.c.b16 %v4514, %v4506
  %v4867 = vpack.c.b16 %v4523, %v4515
  %v4868 = vpack.c.b16 %v4524, %v4516
  %v4869 = vpack.c.b16 %v4525, %v4517
  %v4870 = vpack.c.b16 %v4526, %v4518
  %v4871 = vpack.c.b16 %v4527, %v4519
  %v4872 = vpack.c.b16 %v4528, %v4520
  %v4873 = vpack.c.b16 %v4529, %v4521
  %v4874 = vpack.c.b16 %v4530, %v4522
  %v4875 = vpack.c.b16 %v4539, %v4531
  %v4876 = vpack.c.b16 %v4540, %v4532
  %v4877 = vpack.c.b16 %v4541, %v4533
  %v4878 = vpack.c.b16 %v4542, %v4534
  %v4879 = vpack.c.b16 %v4543, %v4535
  %v4880 = vpack.c.b16 %v4544, %v4536
  %v4881 = vpack.c.b16 %v4545, %v4537
  %v4882 = vpack.c.b16 %v4546, %v4538
  %v4883 = vpack.c.b16 %v4555, %v4547
  %v4884 = vpack.c.b16 %v4556, %v4548
  %v4885 = vpack.c.b16 %v4557, %v4549
  %v4886 = vpack.c.b16 %v4558, %v4550
  %v4887 = vpack.c.b16 %v4559, %v4551
  %v4888 = vpack.c.b16 %v4560, %v4552
  %v4889 = vpack.c.b16 %v4561, %v4553
  %v4890 = vpack.c.b16 %v4562, %v4554
  %v4891 = vpack.c.b16 %v4571, %v4563
  %v4892 = vpack.c.b16 %v4572, %v4564
  %v4893 = vpack.c.b16 %v4573, %v4565
  %v4894 = vpack.c.b16 %v4574, %v4566
  %v4895 = vpack.c.b16 %v4575, %v4567
  %v4896 = vpack.c.b16 %v4576, %v4568
  %v4897 = vpack.c.b16 %v4577, %v4569
  %v4898 = vpack.c.b16 %v4578, %v4570
  %v4899 = vpack.c.b16 %v4587, %v4579
  %v4900 = vpack.c.b16 %v4588, %v4580
  %v4901 = vpack.c.b16 %v4589, %v4581
  %v4902 = vpack.c.b16 %v4590, %v4582
  %v4903 = vpack.c.b16 %v4591, %v4583
  %v4904 = vpack.c.b16 %v4592, %v4584
  %v4905 = vpack.c.b16 %v4593, %v4585
  %v4906 = vpack.c.b16 %v4594, %v4586
  %v4907 = vpack.c.b16 %v4603, %v4595
  %v4908 = vpack.c.b16 %v4604, %v4596
  %v4909 = vpack.c.b16 %v4605, %v4597
  %v4910 = vpack.c.b16 %v4606, %v4598
  %v4911 = vpack.c.b16 %v4607, %v4599
  %v4912 = vpack.c.b16 %v4608, %v4600
  %v4913 = vpack.c.b16 %v4609, %v4601
  %v4914 = vpack.c.b16 %v4610, %v4602
  %v4915 = vpack.c.b16 %v4619, %v4611
  %v4916 = vpack.c.b16 %v4620, %v4612
  %v4917 = vpack.c.b16 %v4621, %v4613
  %v4918 = vpack.c.b16 %v4622, %v4614
  %v4919 = vpack.c.b16 %v4623, %v4615
  %v4920 = vpack.c.b16 %v4624, %v4616
  %v4921 = vpack.c.b16 %v4625, %v4617
  %v4922 = vpack.c.b16 %v4626, %v4618
  %v4923 = vpack.c.b16 %v4635, %v4627
  %v4924 = vpack.c.b16 %v4636, %v4628
  %v4925 = vpack.c.b16 %v4637, %v4629
  %v4926 = vpack.c.b16 %v4638, %v4630
  %v4927 = vpack.c.b16 %v4639, %v4631
  %v4928 = vpack.c.b16 %v4640, %v4632
  %v4929 = vpack.c.b16 %v4641, %v4633
  %v4930 = vpack.c.b16 %v4642, %v4634
  %v4931 = vpack.c.b16 %v4651, %v4643
  %v4932 = vpack.c.b16 %v4652, %v4644
  %v4933 = vpack.c.b16 %v4653, %v4645
  %v4934 = vpack.c.b16 %v4654, %v4646
  %v4935 = vpack.c.b16 %v4655, %v4647
  %v4936 = vpack.c.b16 %v4656, %v4648
  %v4937 = vpack.c.b16 %v4657, %v4649
  %v4938 = vpack.c.b16 %v4658, %v4650
  %v4939 = vpack.c.b16 %v4667, %v4659
  %v4940 = vpack.c.b16 %v4668, %v4660
  %v4941 = vpack.c.b16 %v4669, %v4661
  %v4942 = vpack.c.b16 %v4670, %v4662
  %v4943 = vpack.c.b16 %v4671, %v4663
  %v4944 = vpack.c.b16 %v4672, %v4664
  %v4945 = vpack.c.b16 %v4673, %v4665
  %v4946 = vpack.c.b16 %v4674, %v4666
  %v4947 = vpack.c.b16 %v4683, %v4675
  %v4948 = vpack.c.b16 %v4684, %v4676
  %v4949 = vpack.c.b16 %v4685, %v4677
  %v4950 = vpack.c.b16 %v4686, %v4678
  %v4951 = vpack.c.b16 %v4687, %v4679
  %v4952 = vpack.c.b16 %v4688, %v4680
  %v4953 = vpack.c.b16 %v4689, %v4681
  %v4954 = vpack.c.b16 %v4690, %v4682
  %v4955 = vpack.c.b16 %v4699, %v4691
  %v4956 = vpack.c.b16 %v4700, %v4692
  %v4957 = vpack.c.b16 %v4701, %v4693
  %v4958 = vpack.c.b16 %v4702, %v4694
  %v4959 = vpack.c.b16 %v4703, %v4695
  %v4960 = vpack.c.b16 %v4704, %v4696
  %v4961 = vpack.c.b16 %v4705, %v4697
  %v4962 = vpack.c.b16 %v4706, %v4698
  %5219 = vmatprep.subr.bf16.mxu0 %v4708
  %5220 = vmatpush1.bf16.msra.mxu0 %v4707
  %5221 = vmatprep.subr.bf16.mxu0 %v4716
  %5222 = vmatpush1.bf16.msra.mxu0 %v4715
  %5223 = vmatprep.subr.bf16.mxu0 %v4724
  %5224 = vmatpush1.bf16.msra.mxu0 %v4723
  %5225 = vmatprep.subr.bf16.mxu0 %v4732
  %5226 = vmatpush1.bf16.msra.mxu0 %v4731
  %5227 = vmatprep.subr.bf16.mxu0 %v4740
  %5228 = vmatpush1.bf16.msra.mxu0 %v4739
  %5229 = vmatprep.subr.bf16.mxu0 %v4748
  %5230 = vmatpush1.bf16.msra.mxu0 %v4747
  %5231 = vmatprep.subr.bf16.mxu0 %v4756
  %5232 = vmatpush1.bf16.msra.mxu0 %v4755
  %5233 = vmatprep.subr.bf16.mxu0 %v4764
  %5234 = vmatpush1.bf16.msra.mxu0 %v4763
  %5235 = vmatprep.subr.bf16.mxu0 %v4772
  %5236 = vmatpush1.bf16.msra.mxu0 %v4771
  %5237 = vmatprep.subr.bf16.mxu0 %v4780
  %5238 = vmatpush1.bf16.msra.mxu0 %v4779
  %5239 = vmatprep.subr.bf16.mxu0 %v4788
  %5240 = vmatpush1.bf16.msra.mxu0 %v4787
  %5241 = vmatprep.subr.bf16.mxu0 %v4796
  %5242 = vmatpush1.bf16.msra.mxu0 %v4795
  %5243 = vmatprep.subr.bf16.mxu0 %v4804
  %5244 = vmatpush1.bf16.msra.mxu0 %v4803
  %5245 = vmatprep.subr.bf16.mxu0 %v4812
  %5246 = vmatpush1.bf16.msra.mxu0 %v4811
  %5247 = vmatprep.subr.bf16.mxu0 %v4820
  %5248 = vmatpush1.bf16.msra.mxu0 %v4819
  %5249 = vmatprep.subr.bf16.mxu0 %v4828
  %5250 = vmatpush1.bf16.msra.mxu0 %v4827
  %5251 = vmatprep.mubr.bf16.mxu0 %v3638
  %5252 = vmatmul.mubr.bf16.gmra.mrb[0].mxu0 %v3637
  %v5253 = vpop.f32.mrb[0].mxu0
  %v5254 = vadd.f32 %v3902, %v5253
  %v5255 = vpop.f32.mrb[0].mxu0
  %v5256 = vadd.f32 %v3906, %v5255
  %v5257 = vpop.f32.mrb[0].mxu0
  %v5258 = vpop.f32.mrb[0].mxu0
  %5259 = vdwg.mxu0
  %5260 = vmatprep.subr.bf16.mxu0 %v4836
  %5261 = vmatpush1.bf16.msra.mxu0 %v4835
  %5262 = vmatprep.subr.bf16.mxu0 %v4844
  %5263 = vmatpush1.bf16.msra.mxu0 %v4843
  %5264 = vmatprep.subr.bf16.mxu0 %v4852
  %5265 = vmatpush1.bf16.msra.mxu0 %v4851
  %5266 = vmatprep.subr.bf16.mxu0 %v4860
  %5267 = vmatpush1.bf16.msra.mxu0 %v4859
  %5268 = vmatprep.subr.bf16.mxu0 %v4868
  %5269 = vmatpush1.bf16.msra.mxu0 %v4867
  %5270 = vmatprep.subr.bf16.mxu0 %v4876
  %5271 = vmatpush1.bf16.msra.mxu0 %v4875
  %5272 = vmatprep.subr.bf16.mxu0 %v4884
  %5273 = vmatpush1.bf16.msra.mxu0 %v4883
  %5274 = vmatprep.subr.bf16.mxu0 %v4892
  %5275 = vmatpush1.bf16.msra.mxu0 %v4891
  %5276 = vmatprep.subr.bf16.mxu0 %v4900
  %5277 = vmatpush1.bf16.msra.mxu0 %v4899
  %5278 = vmatprep.subr.bf16.mxu0 %v4908
  %5279 = vmatpush1.bf16.msra.mxu0 %v4907
  %5280 = vmatprep.subr.bf16.mxu0 %v4916
  %5281 = vmatpush1.bf16.msra.mxu0 %v4915
  %5282 = vmatprep.subr.bf16.mxu0 %v4924
  %5283 = vmatpush1.bf16.msra.mxu0 %v4923
  %5284 = vmatprep.subr.bf16.mxu0 %v4932
  %5285 = vmatpush1.bf16.msra.mxu0 %v4931
  %5286 = vmatprep.subr.bf16.mxu0 %v4940
  %5287 = vmatpush1.bf16.msra.mxu0 %v4939
  %5288 = vmatprep.subr.bf16.mxu0 %v4948
  %5289 = vmatpush1.bf16.msra.mxu0 %v4947
  %5290 = vmatprep.subr.bf16.mxu0 %v4956
  %5291 = vmatpush1.bf16.msra.mxu0 %v4955
  %5292 = vmatprep.mubr.bf16.mxu0 %v3640
  %5293 = vmatmul.mubr.bf16.gmra.mrb[0].mxu0 %v3639
  %v5294 = vpop.f32.mrb[0].mxu0
  %v5295 = vadd.f32 %v5254, %v5294
  %v5296 = vpop.f32.mrb[0].mxu0
  %v5297 = vadd.f32 %v5256, %v5296
  %v5298 = vpop.f32.mrb[0].mxu0
  %v5299 = vpop.f32.mrb[0].mxu0
  %5300 = vdwg.mxu0
  %5301 = vmatprep.subr.bf16.mxu0 %v4710
  %5302 = vmatpush1.bf16.msra.mxu0 %v4709
  %5303 = vmatprep.subr.bf16.mxu0 %v4718
  %5304 = vmatpush1.bf16.msra.mxu0 %v4717
  %5305 = vmatprep.subr.bf16.mxu0 %v4726
  %5306 = vmatpush1.bf16.msra.mxu0 %v4725
  %5307 = vmatprep.subr.bf16.mxu0 %v4734
  %5308 = vmatpush1.bf16.msra.mxu0 %v4733
  %5309 = vmatprep.subr.bf16.mxu0 %v4742
  %5310 = vmatpush1.bf16.msra.mxu0 %v4741
  %5311 = vmatprep.subr.bf16.mxu0 %v4750
  %5312 = vmatpush1.bf16.msra.mxu0 %v4749
  %5313 = vmatprep.subr.bf16.mxu0 %v4758
  %5314 = vmatpush1.bf16.msra.mxu0 %v4757
  %5315 = vmatprep.subr.bf16.mxu0 %v4766
  %5316 = vmatpush1.bf16.msra.mxu0 %v4765
  %5317 = vmatprep.subr.bf16.mxu0 %v4774
  %5318 = vmatpush1.bf16.msra.mxu0 %v4773
  %5319 = vmatprep.subr.bf16.mxu0 %v4782
  %5320 = vmatpush1.bf16.msra.mxu0 %v4781
  %5321 = vmatprep.subr.bf16.mxu0 %v4790
  %5322 = vmatpush1.bf16.msra.mxu0 %v4789
  %5323 = vmatprep.subr.bf16.mxu0 %v4798
  %5324 = vmatpush1.bf16.msra.mxu0 %v4797
  %5325 = vmatprep.subr.bf16.mxu0 %v4806
  %5326 = vmatpush1.bf16.msra.mxu0 %v4805
  %5327 = vmatprep.subr.bf16.mxu0 %v4814
  %5328 = vmatpush1.bf16.msra.mxu0 %v4813
  %5329 = vmatprep.subr.bf16.mxu0 %v4822
  %5330 = vmatpush1.bf16.msra.mxu0 %v4821
  %5331 = vmatprep.subr.bf16.mxu0 %v4830
  %5332 = vmatpush1.bf16.msra.mxu0 %v4829
  %5333 = vmatprep.mubr.bf16.mxu0 %v3638
  %5334 = vmatmul.mubr.bf16.gmra.mrb[0].mxu0 %v3637
  %v5335 = vpop.f32.mrb[0].mxu0
  %v5336 = vadd.f32 %v3910, %v5335
  %v5337 = vpop.f32.mrb[0].mxu0
  %v5338 = vadd.f32 %v3914, %v5337
  %v5339 = vpop.f32.mrb[0].mxu0
  %v5340 = vpop.f32.mrb[0].mxu0
  %5341 = vdwg.mxu0
  %5342 = vmatprep.subr.bf16.mxu0 %v4838
  %5343 = vmatpush1.bf16.msra.mxu0 %v4837
  %5344 = vmatprep.subr.bf16.mxu0 %v4846
  %5345 = vmatpush1.bf16.msra.mxu0 %v4845
  %5346 = vmatprep.subr.bf16.mxu0 %v4854
  %5347 = vmatpush1.bf16.msra.mxu0 %v4853
  %5348 = vmatprep.subr.bf16.mxu0 %v4862
  %5349 = vmatpush1.bf16.msra.mxu0 %v4861
  %5350 = vmatprep.subr.bf16.mxu0 %v4870
  %5351 = vmatpush1.bf16.msra.mxu0 %v4869
  %5352 = vmatprep.subr.bf16.mxu0 %v4878
  %5353 = vmatpush1.bf16.msra.mxu0 %v4877
  %5354 = vmatprep.subr.bf16.mxu0 %v4886
  %5355 = vmatpush1.bf16.msra.mxu0 %v4885
  %5356 = vmatprep.subr.bf16.mxu0 %v4894
  %5357 = vmatpush1.bf16.msra.mxu0 %v4893
  %5358 = vmatprep.subr.bf16.mxu0 %v4902
  %5359 = vmatpush1.bf16.msra.mxu0 %v4901
  %5360 = vmatprep.subr.bf16.mxu0 %v4910
  %5361 = vmatpush1.bf16.msra.mxu0 %v4909
  %5362 = vmatprep.subr.bf16.mxu0 %v4918
  %5363 = vmatpush1.bf16.msra.mxu0 %v4917
  %5364 = vmatprep.subr.bf16.mxu0 %v4926
  %5365 = vmatpush1.bf16.msra.mxu0 %v4925
  %5366 = vmatprep.subr.bf16.mxu0 %v4934
  %5367 = vmatpush1.bf16.msra.mxu0 %v4933
  %5368 = vmatprep.subr.bf16.mxu0 %v4942
  %5369 = vmatpush1.bf16.msra.mxu0 %v4941
  %5370 = vmatprep.subr.bf16.mxu0 %v4950
  %5371 = vmatpush1.bf16.msra.mxu0 %v4949
  %5372 = vmatprep.subr.bf16.mxu0 %v4958
  %5373 = vmatpush1.bf16.msra.mxu0 %v4957
  %5374 = vmatprep.mubr.bf16.mxu0 %v3640
  %5375 = vmatmul.mubr.bf16.gmra.mrb[0].mxu0 %v3639
  %v5376 = vpop.f32.mrb[0].mxu0
  %v5377 = vadd.f32 %v5336, %v5376
  %v5378 = vpop.f32.mrb[0].mxu0
  %v5379 = vadd.f32 %v5338, %v5378
  %v5380 = vpop.f32.mrb[0].mxu0
  %v5381 = vpop.f32.mrb[0].mxu0
  %5382 = vdwg.mxu0
  %5383 = vmatprep.subr.bf16.mxu0 %v4712
  %5384 = vmatpush1.bf16.msra.mxu0 %v4711
  %5385 = vmatprep.subr.bf16.mxu0 %v4720
  %5386 = vmatpush1.bf16.msra.mxu0 %v4719
  %5387 = vmatprep.subr.bf16.mxu0 %v4728
  %5388 = vmatpush1.bf16.msra.mxu0 %v4727
  %5389 = vmatprep.subr.bf16.mxu0 %v4736
  %5390 = vmatpush1.bf16.msra.mxu0 %v4735
  %5391 = vmatprep.subr.bf16.mxu0 %v4744
  %5392 = vmatpush1.bf16.msra.mxu0 %v4743
  %5393 = vmatprep.subr.bf16.mxu0 %v4752
  %5394 = vmatpush1.bf16.msra.mxu0 %v4751
  %5395 = vmatprep.subr.bf16.mxu0 %v4760
  %5396 = vmatpush1.bf16.msra.mxu0 %v4759
  %5397 = vmatprep.subr.bf16.mxu0 %v4768
  %5398 = vmatpush1.bf16.msra.mxu0 %v4767
  %5399 = vmatprep.subr.bf16.mxu0 %v4776
  %5400 = vmatpush1.bf16.msra.mxu0 %v4775
  %5401 = vmatprep.subr.bf16.mxu0 %v4784
  %5402 = vmatpush1.bf16.msra.mxu0 %v4783
  %5403 = vmatprep.subr.bf16.mxu0 %v4792
  %5404 = vmatpush1.bf16.msra.mxu0 %v4791
  %5405 = vmatprep.subr.bf16.mxu0 %v4800
  %5406 = vmatpush1.bf16.msra.mxu0 %v4799
  %5407 = vmatprep.subr.bf16.mxu0 %v4808
  %5408 = vmatpush1.bf16.msra.mxu0 %v4807
  %5409 = vmatprep.subr.bf16.mxu0 %v4816
  %5410 = vmatpush1.bf16.msra.mxu0 %v4815
  %5411 = vmatprep.subr.bf16.mxu0 %v4824
  %5412 = vmatpush1.bf16.msra.mxu0 %v4823
  %5413 = vmatprep.subr.bf16.mxu0 %v4832
  %5414 = vmatpush1.bf16.msra.mxu0 %v4831
  %5415 = vmatprep.mubr.bf16.mxu0 %v3638
  %5416 = vmatmul.mubr.bf16.gmra.mrb[0].mxu0 %v3637
  %v5417 = vpop.f32.mrb[0].mxu0
  %v5418 = vadd.f32 %v3918, %v5417
  %v5419 = vpop.f32.mrb[0].mxu0
  %v5420 = vadd.f32 %v3922, %v5419
  %v5421 = vpop.f32.mrb[0].mxu0
  %v5422 = vpop.f32.mrb[0].mxu0
  %5423 = vdwg.mxu0
  %5424 = vmatprep.subr.bf16.mxu0 %v4840
  %5425 = vmatpush1.bf16.msra.mxu0 %v4839
  %5426 = vmatprep.subr.bf16.mxu0 %v4848
  %5427 = vmatpush1.bf16.msra.mxu0 %v4847
  %5428 = vmatprep.subr.bf16.mxu0 %v4856
  %5429 = vmatpush1.bf16.msra.mxu0 %v4855
  %5430 = vmatprep.subr.bf16.mxu0 %v4864
  %5431 = vmatpush1.bf16.msra.mxu0 %v4863
  %5432 = vmatprep.subr.bf16.mxu0 %v4872
  %5433 = vmatpush1.bf16.msra.mxu0 %v4871
  %5434 = vmatprep.subr.bf16.mxu0 %v4880
  %5435 = vmatpush1.bf16.msra.mxu0 %v4879
  %5436 = vmatprep.subr.bf16.mxu0 %v4888
  %5437 = vmatpush1.bf16.msra.mxu0 %v4887
  %5438 = vmatprep.subr.bf16.mxu0 %v4896
  %5439 = vmatpush1.bf16.msra.mxu0 %v4895
  %5440 = vmatprep.subr.bf16.mxu0 %v4904
  %5441 = vmatpush1.bf16.msra.mxu0 %v4903
  %5442 = vmatprep.subr.bf16.mxu0 %v4912
  %5443 = vmatpush1.bf16.msra.mxu0 %v4911
  %5444 = vmatprep.subr.bf16.mxu0 %v4920
  %5445 = vmatpush1.bf16.msra.mxu0 %v4919
  %5446 = vmatprep.subr.bf16.mxu0 %v4928
  %5447 = vmatpush1.bf16.msra.mxu0 %v4927
  %5448 = vmatprep.subr.bf16.mxu0 %v4936
  %5449 = vmatpush1.bf16.msra.mxu0 %v4935
  %5450 = vmatprep.subr.bf16.mxu0 %v4944
  %5451 = vmatpush1.bf16.msra.mxu0 %v4943
  %5452 = vmatprep.subr.bf16.mxu0 %v4952
  %5453 = vmatpush1.bf16.msra.mxu0 %v4951
  %5454 = vmatprep.subr.bf16.mxu0 %v4960
  %5455 = vmatpush1.bf16.msra.mxu0 %v4959
  %5456 = vmatprep.mubr.bf16.mxu0 %v3640
  %5457 = vmatmul.mubr.bf16.gmra.mrb[0].mxu0 %v3639
  %v5458 = vpop.f32.mrb[0].mxu0
  %v5459 = vadd.f32 %v5418, %v5458
  %v5460 = vpop.f32.mrb[0].mxu0
  %v5461 = vadd.f32 %v5420, %v5460
  %v5462 = vpop.f32.mrb[0].mxu0
  %v5463 = vpop.f32.mrb[0].mxu0
  %5464 = vdwg.mxu0
  %5465 = vmatprep.subr.bf16.mxu0 %v4714
  %5466 = vmatpush1.bf16.msra.mxu0 %v4713
  %5467 = vmatprep.subr.bf16.mxu0 %v4722
  %5468 = vmatpush1.bf16.msra.mxu0 %v4721
  %5469 = vmatprep.subr.bf16.mxu0 %v4730
  %5470 = vmatpush1.bf16.msra.mxu0 %v4729
  %5471 = vmatprep.subr.bf16.mxu0 %v4738
  %5472 = vmatpush1.bf16.msra.mxu0 %v4737
  %5473 = vmatprep.subr.bf16.mxu0 %v4746
  %5474 = vmatpush1.bf16.msra.mxu0 %v4745
  %5475 = vmatprep.subr.bf16.mxu0 %v4754
  %5476 = vmatpush1.bf16.msra.mxu0 %v4753
  %5477 = vmatprep.subr.bf16.mxu0 %v4762
  %5478 = vmatpush1.bf16.msra.mxu0 %v4761
  %5479 = vmatprep.subr.bf16.mxu0 %v4770
  %5480 = vmatpush1.bf16.msra.mxu0 %v4769
  %5481 = vmatprep.subr.bf16.mxu0 %v4778
  %5482 = vmatpush1.bf16.msra.mxu0 %v4777
  %5483 = vmatprep.subr.bf16.mxu0 %v4786
  %5484 = vmatpush1.bf16.msra.mxu0 %v4785
  %5485 = vmatprep.subr.bf16.mxu0 %v4794
  %5486 = vmatpush1.bf16.msra.mxu0 %v4793
  %5487 = vmatprep.subr.bf16.mxu0 %v4802
  %5488 = vmatpush1.bf16.msra.mxu0 %v4801
  %5489 = vmatprep.subr.bf16.mxu0 %v4810
  %5490 = vmatpush1.bf16.msra.mxu0 %v4809
  %5491 = vmatprep.subr.bf16.mxu0 %v4818
  %5492 = vmatpush1.bf16.msra.mxu0 %v4817
  %5493 = vmatprep.subr.bf16.mxu0 %v4826
  %5494 = vmatpush1.bf16.msra.mxu0 %v4825
  %5495 = vmatprep.subr.bf16.mxu0 %v4834
  %5496 = vmatpush1.bf16.msra.mxu0 %v4833
  %5497 = vmatprep.mubr.bf16.mxu0 %v3638
  %5498 = vmatmul.mubr.bf16.gmra.mrb[0].mxu0 %v3637
  %v5499 = vpop.f32.mrb[0].mxu0
  %v5500 = vadd.f32 %v3926, %v5499
  %v5501 = vpop.f32.mrb[0].mxu0
  %v5502 = vadd.f32 %v3930, %v5501
  %v5503 = vpop.f32.mrb[0].mxu0
  %v5504 = vpop.f32.mrb[0].mxu0
  %5505 = vdwg.mxu0
  %5506 = vmatprep.subr.bf16.mxu0 %v4842
  %5507 = vmatpush1.bf16.msra.mxu0 %v4841
  %5508 = vmatprep.subr.bf16.mxu0 %v4850
  %5509 = vmatpush1.bf16.msra.mxu0 %v4849
  %5510 = vmatprep.subr.bf16.mxu0 %v4858
  %5511 = vmatpush1.bf16.msra.mxu0 %v4857
  %5512 = vmatprep.subr.bf16.mxu0 %v4866
  %5513 = vmatpush1.bf16.msra.mxu0 %v4865
  %5514 = vmatprep.subr.bf16.mxu0 %v4874
  %5515 = vmatpush1.bf16.msra.mxu0 %v4873
  %5516 = vmatprep.subr.bf16.mxu0 %v4882
  %5517 = vmatpush1.bf16.msra.mxu0 %v4881
  %5518 = vmatprep.subr.bf16.mxu0 %v4890
  %5519 = vmatpush1.bf16.msra.mxu0 %v4889
  %5520 = vmatprep.subr.bf16.mxu0 %v4898
  %5521 = vmatpush1.bf16.msra.mxu0 %v4897
  %5522 = vmatprep.subr.bf16.mxu0 %v4906
  %5523 = vmatpush1.bf16.msra.mxu0 %v4905
  %5524 = vmatprep.subr.bf16.mxu0 %v4914
  %5525 = vmatpush1.bf16.msra.mxu0 %v4913
  %5526 = vmatprep.subr.bf16.mxu0 %v4922
  %5527 = vmatpush1.bf16.msra.mxu0 %v4921
  %5528 = vmatprep.subr.bf16.mxu0 %v4930
  %5529 = vmatpush1.bf16.msra.mxu0 %v4929
  %5530 = vmatprep.subr.bf16.mxu0 %v4938
  %5531 = vmatpush1.bf16.msra.mxu0 %v4937
  %5532 = vmatprep.subr.bf16.mxu0 %v4946
  %5533 = vmatpush1.bf16.msra.mxu0 %v4945
  %5534 = vmatprep.subr.bf16.mxu0 %v4954
  %5535 = vmatpush1.bf16.msra.mxu0 %v4953
  %5536 = vmatprep.subr.bf16.mxu0 %v4962
  %5537 = vmatpush1.bf16.msra.mxu0 %v4961
  %5538 = vmatprep.mubr.bf16.mxu0 %v3640
  %5539 = vmatmul.mubr.bf16.gmra.mrb[0].mxu0 %v3639
  %v5540 = vpop.f32.mrb[0].mxu0
  %v5541 = vadd.f32 %v5500, %v5540
  %v5542 = vpop.f32.mrb[0].mxu0
  %v5543 = vadd.f32 %v5502, %v5542
  %v5544 = vpop.f32.mrb[0].mxu0
  %v5545 = vpop.f32.mrb[0].mxu0
  %5546 = vdwg.mxu0
  %v5547 = vmax.f32 %v5295, 0.0
  %v5548 = vmax.f32 %v5297, 0.0
  %v5549 = vmax.f32 %v5377, 0.0
  %v5550 = vmax.f32 %v5379, 0.0
  %v5551 = vmax.f32 %v5459, 0.0
  %v5552 = vmax.f32 %v5461, 0.0
  %v5553 = vmax.f32 %v5541, 0.0
  %v5554 = vmax.f32 %v5543, 0.0
  %v5555 = vpack.c.bf16 %v5547, %v5547
  %v5556 = vpack.c.bf16 %v5548, %v5548
  %v5557 = vpack.c.bf16 %v5549, %v5549
  %v5558 = vpack.c.bf16 %v5550, %v5550
  %v5559 = vpack.c.bf16 %v5551, %v5551
  %v5560 = vpack.c.bf16 %v5552, %v5552
  %v5561 = vpack.c.bf16 %v5553, %v5553
  %v5562 = vpack.c.bf16 %v5554, %v5554
  %v5563 = vld [vmem:[%s20] sm:$0xff]
  %v5564 = vld [vmem:[%s20 + $0x8] sm:$0xff]
  %v5565 = vld [vmem:[%s20 + $0x10] sm:$0xff]
  %v5566 = vld [vmem:[%s20 + $0x18] sm:$0xff]
  %v5567 = vld [vmem:[%s20 + $0x20] sm:$0xff]
  %v5568 = vld [vmem:[%s20 + $0x28] sm:$0xff]
  %v5569 = vld [vmem:[%s20 + $0x30] sm:$0xff]
  %v5570 = vld [vmem:[%s20 + $0x38] sm:$0xff]
  %v5571 = vld [vmem:[%s20 + $0x40] sm:$0xff]
  %v5572 = vld [vmem:[%s20 + $0x48] sm:$0xff]
  %v5573 = vld [vmem:[%s20 + $0x50] sm:$0xff]
  %v5574 = vld [vmem:[%s20 + $0x58] sm:$0xff]
  %v5575 = vld [vmem:[%s20 + $0x60] sm:$0xff]
  %v5576 = vld [vmem:[%s20 + $0x68] sm:$0xff]
  %v5577 = vld [vmem:[%s20 + $0x70] sm:$0xff]
  %v5578 = vld [vmem:[%s20 + $0x78] sm:$0xff]
  %v5579 = vld [vmem:[%s20 + $0x80] sm:$0xff]
  %v5580 = vld [vmem:[%s20 + $0x88] sm:$0xff]
  %v5581 = vld [vmem:[%s20 + $0x90] sm:$0xff]
  %v5582 = vld [vmem:[%s20 + $0x98] sm:$0xff]
  %v5583 = vld [vmem:[%s20 + $0xa0] sm:$0xff]
  %v5584 = vld [vmem:[%s20 + $0xa8] sm:$0xff]
  %v5585 = vld [vmem:[%s20 + $0xb0] sm:$0xff]
  %v5586 = vld [vmem:[%s20 + $0xb8] sm:$0xff]
  %v5587 = vld [vmem:[%s20 + $0xc0] sm:$0xff]
  %v5588 = vld [vmem:[%s20 + $0xc8] sm:$0xff]
  %v5589 = vld [vmem:[%s20 + $0xd0] sm:$0xff]
  %v5590 = vld [vmem:[%s20 + $0xd8] sm:$0xff]
  %v5591 = vld [vmem:[%s20 + $0xe0] sm:$0xff]
  %v5592 = vld [vmem:[%s20 + $0xe8] sm:$0xff]
  %v5593 = vld [vmem:[%s20 + $0xf0] sm:$0xff]
  %v5594 = vld [vmem:[%s20 + $0xf8] sm:$0xff]
  %v5595 = vld [vmem:[%s20 + $0x100] sm:$0xff]
  %v5596 = vld [vmem:[%s20 + $0x108] sm:$0xff]
  %v5597 = vld [vmem:[%s20 + $0x110] sm:$0xff]
  %v5598 = vld [vmem:[%s20 + $0x118] sm:$0xff]
  %v5599 = vld [vmem:[%s20 + $0x120] sm:$0xff]
  %v5600 = vld [vmem:[%s20 + $0x128] sm:$0xff]
  %v5601 = vld [vmem:[%s20 + $0x130] sm:$0xff]
  %v5602 = vld [vmem:[%s20 + $0x138] sm:$0xff]
  %v5603 = vld [vmem:[%s20 + $0x140] sm:$0xff]
  %v5604 = vld [vmem:[%s20 + $0x148] sm:$0xff]
  %v5605 = vld [vmem:[%s20 + $0x150] sm:$0xff]
  %v5606 = vld [vmem:[%s20 + $0x158] sm:$0xff]
  %v5607 = vld [vmem:[%s20 + $0x160] sm:$0xff]
  %v5608 = vld [vmem:[%s20 + $0x168] sm:$0xff]
  %v5609 = vld [vmem:[%s20 + $0x170] sm:$0xff]
  %v5610 = vld [vmem:[%s20 + $0x178] sm:$0xff]
  %v5611 = vld [vmem:[%s20 + $0x180] sm:$0xff]
  %v5612 = vld [vmem:[%s20 + $0x188] sm:$0xff]
  %v5613 = vld [vmem:[%s20 + $0x190] sm:$0xff]
  %v5614 = vld [vmem:[%s20 + $0x198] sm:$0xff]
  %v5615 = vld [vmem:[%s20 + $0x1a0] sm:$0xff]
  %v5616 = vld [vmem:[%s20 + $0x1a8] sm:$0xff]
  %v5617 = vld [vmem:[%s20 + $0x1b0] sm:$0xff]
  %v5618 = vld [vmem:[%s20 + $0x1b8] sm:$0xff]
  %v5619 = vld [vmem:[%s20 + $0x1c0] sm:$0xff]
  %v5620 = vld [vmem:[%s20 + $0x1c8] sm:$0xff]
  %v5621 = vld [vmem:[%s20 + $0x1d0] sm:$0xff]
  %v5622 = vld [vmem:[%s20 + $0x1d8] sm:$0xff]
  %v5623 = vld [vmem:[%s20 + $0x1e0] sm:$0xff]
  %v5624 = vld [vmem:[%s20 + $0x1e8] sm:$0xff]
  %v5625 = vld [vmem:[%s20 + $0x1f0] sm:$0xff]
  %v5626 = vld [vmem:[%s20 + $0x1f8] sm:$0xff]
  %v5627 = vld [vmem:[%s20 + $0x200] sm:$0xff]
  %v5628 = vld [vmem:[%s20 + $0x208] sm:$0xff]
  %v5629 = vld [vmem:[%s20 + $0x210] sm:$0xff]
  %v5630 = vld [vmem:[%s20 + $0x218] sm:$0xff]
  %v5631 = vld [vmem:[%s20 + $0x220] sm:$0xff]
  %v5632 = vld [vmem:[%s20 + $0x228] sm:$0xff]
  %v5633 = vld [vmem:[%s20 + $0x230] sm:$0xff]
  %v5634 = vld [vmem:[%s20 + $0x238] sm:$0xff]
  %v5635 = vld [vmem:[%s20 + $0x240] sm:$0xff]
  %v5636 = vld [vmem:[%s20 + $0x248] sm:$0xff]
  %v5637 = vld [vmem:[%s20 + $0x250] sm:$0xff]
  %v5638 = vld [vmem:[%s20 + $0x258] sm:$0xff]
  %v5639 = vld [vmem:[%s20 + $0x260] sm:$0xff]
  %v5640 = vld [vmem:[%s20 + $0x268] sm:$0xff]
  %v5641 = vld [vmem:[%s20 + $0x270] sm:$0xff]
  %v5642 = vld [vmem:[%s20 + $0x278] sm:$0xff]
  %v5643 = vld [vmem:[%s20 + $0x280] sm:$0xff]
  %v5644 = vld [vmem:[%s20 + $0x288] sm:$0xff]
  %v5645 = vld [vmem:[%s20 + $0x290] sm:$0xff]
  %v5646 = vld [vmem:[%s20 + $0x298] sm:$0xff]
  %v5647 = vld [vmem:[%s20 + $0x2a0] sm:$0xff]
  %v5648 = vld [vmem:[%s20 + $0x2a8] sm:$0xff]
  %v5649 = vld [vmem:[%s20 + $0x2b0] sm:$0xff]
  %v5650 = vld [vmem:[%s20 + $0x2b8] sm:$0xff]
  %v5651 = vld [vmem:[%s20 + $0x2c0] sm:$0xff]
  %v5652 = vld [vmem:[%s20 + $0x2c8] sm:$0xff]
  %v5653 = vld [vmem:[%s20 + $0x2d0] sm:$0xff]
  %v5654 = vld [vmem:[%s20 + $0x2d8] sm:$0xff]
  %v5655 = vld [vmem:[%s20 + $0x2e0] sm:$0xff]
  %v5656 = vld [vmem:[%s20 + $0x2e8] sm:$0xff]
  %v5657 = vld [vmem:[%s20 + $0x2f0] sm:$0xff]
  %v5658 = vld [vmem:[%s20 + $0x2f8] sm:$0xff]
  %v5659 = vld [vmem:[%s20 + $0x300] sm:$0xff]
  %v5660 = vld [vmem:[%s20 + $0x308] sm:$0xff]
  %v5661 = vld [vmem:[%s20 + $0x310] sm:$0xff]
  %v5662 = vld [vmem:[%s20 + $0x318] sm:$0xff]
  %v5663 = vld [vmem:[%s20 + $0x320] sm:$0xff]
  %v5664 = vld [vmem:[%s20 + $0x328] sm:$0xff]
  %v5665 = vld [vmem:[%s20 + $0x330] sm:$0xff]
  %v5666 = vld [vmem:[%s20 + $0x338] sm:$0xff]
  %v5667 = vld [vmem:[%s20 + $0x340] sm:$0xff]
  %v5668 = vld [vmem:[%s20 + $0x348] sm:$0xff]
  %v5669 = vld [vmem:[%s20 + $0x350] sm:$0xff]
  %v5670 = vld [vmem:[%s20 + $0x358] sm:$0xff]
  %v5671 = vld [vmem:[%s20 + $0x360] sm:$0xff]
  %v5672 = vld [vmem:[%s20 + $0x368] sm:$0xff]
  %v5673 = vld [vmem:[%s20 + $0x370] sm:$0xff]
  %v5674 = vld [vmem:[%s20 + $0x378] sm:$0xff]
  %v5675 = vld [vmem:[%s20 + $0x380] sm:$0xff]
  %v5676 = vld [vmem:[%s20 + $0x388] sm:$0xff]
  %v5677 = vld [vmem:[%s20 + $0x390] sm:$0xff]
  %v5678 = vld [vmem:[%s20 + $0x398] sm:$0xff]
  %v5679 = vld [vmem:[%s20 + $0x3a0] sm:$0xff]
  %v5680 = vld [vmem:[%s20 + $0x3a8] sm:$0xff]
  %v5681 = vld [vmem:[%s20 + $0x3b0] sm:$0xff]
  %v5682 = vld [vmem:[%s20 + $0x3b8] sm:$0xff]
  %v5683 = vld [vmem:[%s20 + $0x3c0] sm:$0xff]
  %v5684 = vld [vmem:[%s20 + $0x3c8] sm:$0xff]
  %v5685 = vld [vmem:[%s20 + $0x3d0] sm:$0xff]
  %v5686 = vld [vmem:[%s20 + $0x3d8] sm:$0xff]
  %v5687 = vld [vmem:[%s20 + $0x3e0] sm:$0xff]
  %v5688 = vld [vmem:[%s20 + $0x3e8] sm:$0xff]
  %v5689 = vld [vmem:[%s20 + $0x3f0] sm:$0xff]
  %v5690 = vld [vmem:[%s20 + $0x3f8] sm:$0xff]
  %v5691 = vld [vmem:[%s21] sm:$0x3]
  %v5693 = vlaneseq
  %v5694 = vshrl.u32 %v5693, 7
  %v5695 = vsub.s32 0, %v5694
  %v5696 = vrot.slane %v5691, %v5695
  %v5697 = vlaneseq
  %v5698 = vshrl.u32 %v5697, 7
  %v5699 = vsub.s32 1, %v5698
  %v5700 = vrot.slane %v5691, %v5699
  %v5831 = vunpack.c.l.b16 %v5563
  %v5832 = vunpack.c.h.b16 %v5563
  %v5833 = vunpack.c.l.b16 %v5564
  %v5834 = vunpack.c.h.b16 %v5564
  %v5835 = vunpack.c.l.b16 %v5565
  %v5836 = vunpack.c.h.b16 %v5565
  %v5837 = vunpack.c.l.b16 %v5566
  %v5838 = vunpack.c.h.b16 %v5566
  %v5839 = vunpack.c.l.b16 %v5567
  %v5840 = vunpack.c.h.b16 %v5567
  %v5841 = vunpack.c.l.b16 %v5568
  %v5842 = vunpack.c.h.b16 %v5568
  %v5843 = vunpack.c.l.b16 %v5569
  %v5844 = vunpack.c.h.b16 %v5569
  %v5845 = vunpack.c.l.b16 %v5570
  %v5846 = vunpack.c.h.b16 %v5570
  %v5847 = vunpack.c.l.b16 %v5571
  %v5848 = vunpack.c.h.b16 %v5571
  %v5849 = vunpack.c.l.b16 %v5572
  %v5850 = vunpack.c.h.b16 %v5572
  %v5851 = vunpack.c.l.b16 %v5573
  %v5852 = vunpack.c.h.b16 %v5573
  %v5853 = vunpack.c.l.b16 %v5574
  %v5854 = vunpack.c.h.b16 %v5574
  %v5855 = vunpack.c.l.b16 %v5575
  %v5856 = vunpack.c.h.b16 %v5575
  %v5857 = vunpack.c.l.b16 %v5576
  %v5858 = vunpack.c.h.b16 %v5576
  %v5859 = vunpack.c.l.b16 %v5577
  %v5860 = vunpack.c.h.b16 %v5577
  %v5861 = vunpack.c.l.b16 %v5578
  %v5862 = vunpack.c.h.b16 %v5578
  %v5863 = vunpack.c.l.b16 %v5579
  %v5864 = vunpack.c.h.b16 %v5579
  %v5865 = vunpack.c.l.b16 %v5580
  %v5866 = vunpack.c.h.b16 %v5580
  %v5867 = vunpack.c.l.b16 %v5581
  %v5868 = vunpack.c.h.b16 %v5581
  %v5869 = vunpack.c.l.b16 %v5582
  %v5870 = vunpack.c.h.b16 %v5582
  %v5871 = vunpack.c.l.b16 %v5583
  %v5872 = vunpack.c.h.b16 %v5583
  %v5873 = vunpack.c.l.b16 %v5584
  %v5874 = vunpack.c.h.b16 %v5584
  %v5875 = vunpack.c.l.b16 %v5585
  %v5876 = vunpack.c.h.b16 %v5585
  %v5877 = vunpack.c.l.b16 %v5586
  %v5878 = vunpack.c.h.b16 %v5586
  %v5879 = vunpack.c.l.b16 %v5587
  %v5880 = vunpack.c.h.b16 %v5587
  %v5881 = vunpack.c.l.b16 %v5588
  %v5882 = vunpack.c.h.b16 %v5588
  %v5883 = vunpack.c.l.b16 %v5589
  %v5884 = vunpack.c.h.b16 %v5589
  %v5885 = vunpack.c.l.b16 %v5590
  %v5886 = vunpack.c.h.b16 %v5590
  %v5887 = vunpack.c.l.b16 %v5591
  %v5888 = vunpack.c.h.b16 %v5591
  %v5889 = vunpack.c.l.b16 %v5592
  %v5890 = vunpack.c.h.b16 %v5592
  %v5891 = vunpack.c.l.b16 %v5593
  %v5892 = vunpack.c.h.b16 %v5593
  %v5893 = vunpack.c.l.b16 %v5594
  %v5894 = vunpack.c.h.b16 %v5594
  %v5895 = vunpack.c.l.b16 %v5595
  %v5896 = vunpack.c.h.b16 %v5595
  %v5897 = vunpack.c.l.b16 %v5596
  %v5898 = vunpack.c.h.b16 %v5596
  %v5899 = vunpack.c.l.b16 %v5597
  %v5900 = vunpack.c.h.b16 %v5597
  %v5901 = vunpack.c.l.b16 %v5598
  %v5902 = vunpack.c.h.b16 %v5598
  %v5903 = vunpack.c.l.b16 %v5599
  %v5904 = vunpack.c.h.b16 %v5599
  %v5905 = vunpack.c.l.b16 %v5600
  %v5906 = vunpack.c.h.b16 %v5600
  %v5907 = vunpack.c.l.b16 %v5601
  %v5908 = vunpack.c.h.b16 %v5601
  %v5909 = vunpack.c.l.b16 %v5602
  %v5910 = vunpack.c.h.b16 %v5602
  %v5911 = vunpack.c.l.b16 %v5603
  %v5912 = vunpack.c.h.b16 %v5603
  %v5913 = vunpack.c.l.b16 %v5604
  %v5914 = vunpack.c.h.b16 %v5604
  %v5915 = vunpack.c.l.b16 %v5605
  %v5916 = vunpack.c.h.b16 %v5605
  %v5917 = vunpack.c.l.b16 %v5606
  %v5918 = vunpack.c.h.b16 %v5606
  %v5919 = vunpack.c.l.b16 %v5607
  %v5920 = vunpack.c.h.b16 %v5607
  %v5921 = vunpack.c.l.b16 %v5608
  %v5922 = vunpack.c.h.b16 %v5608
  %v5923 = vunpack.c.l.b16 %v5609
  %v5924 = vunpack.c.h.b16 %v5609
  %v5925 = vunpack.c.l.b16 %v5610
  %v5926 = vunpack.c.h.b16 %v5610
  %v5927 = vunpack.c.l.b16 %v5611
  %v5928 = vunpack.c.h.b16 %v5611
  %v5929 = vunpack.c.l.b16 %v5612
  %v5930 = vunpack.c.h.b16 %v5612
  %v5931 = vunpack.c.l.b16 %v5613
  %v5932 = vunpack.c.h.b16 %v5613
  %v5933 = vunpack.c.l.b16 %v5614
  %v5934 = vunpack.c.h.b16 %v5614
  %v5935 = vunpack.c.l.b16 %v5615
  %v5936 = vunpack.c.h.b16 %v5615
  %v5937 = vunpack.c.l.b16 %v5616
  %v5938 = vunpack.c.h.b16 %v5616
  %v5939 = vunpack.c.l.b16 %v5617
  %v5940 = vunpack.c.h.b16 %v5617
  %v5941 = vunpack.c.l.b16 %v5618
  %v5942 = vunpack.c.h.b16 %v5618
  %v5943 = vunpack.c.l.b16 %v5619
  %v5944 = vunpack.c.h.b16 %v5619
  %v5945 = vunpack.c.l.b16 %v5620
  %v5946 = vunpack.c.h.b16 %v5620
  %v5947 = vunpack.c.l.b16 %v5621
  %v5948 = vunpack.c.h.b16 %v5621
  %v5949 = vunpack.c.l.b16 %v5622
  %v5950 = vunpack.c.h.b16 %v5622
  %v5951 = vunpack.c.l.b16 %v5623
  %v5952 = vunpack.c.h.b16 %v5623
  %v5953 = vunpack.c.l.b16 %v5624
  %v5954 = vunpack.c.h.b16 %v5624
  %v5955 = vunpack.c.l.b16 %v5625
  %v5956 = vunpack.c.h.b16 %v5625
  %v5957 = vunpack.c.l.b16 %v5626
  %v5958 = vunpack.c.h.b16 %v5626
  %v5959 = vunpack.c.l.b16 %v5627
  %v5960 = vunpack.c.h.b16 %v5627
  %v5961 = vunpack.c.l.b16 %v5628
  %v5962 = vunpack.c.h.b16 %v5628
  %v5963 = vunpack.c.l.b16 %v5629
  %v5964 = vunpack.c.h.b16 %v5629
  %v5965 = vunpack.c.l.b16 %v5630
  %v5966 = vunpack.c.h.b16 %v5630
  %v5967 = vunpack.c.l.b16 %v5631
  %v5968 = vunpack.c.h.b16 %v5631
  %v5969 = vunpack.c.l.b16 %v5632
  %v5970 = vunpack.c.h.b16 %v5632
  %v5971 = vunpack.c.l.b16 %v5633
  %v5972 = vunpack.c.h.b16 %v5633
  %v5973 = vunpack.c.l.b16 %v5634
  %v5974 = vunpack.c.h.b16 %v5634
  %v5975 = vunpack.c.l.b16 %v5635
  %v5976 = vunpack.c.h.b16 %v5635
  %v5977 = vunpack.c.l.b16 %v5636
  %v5978 = vunpack.c.h.b16 %v5636
  %v5979 = vunpack.c.l.b16 %v5637
  %v5980 = vunpack.c.h.b16 %v5637
  %v5981 = vunpack.c.l.b16 %v5638
  %v5982 = vunpack.c.h.b16 %v5638
  %v5983 = vunpack.c.l.b16 %v5639
  %v5984 = vunpack.c.h.b16 %v5639
  %v5985 = vunpack.c.l.b16 %v5640
  %v5986 = vunpack.c.h.b16 %v5640
  %v5987 = vunpack.c.l.b16 %v5641
  %v5988 = vunpack.c.h.b16 %v5641
  %v5989 = vunpack.c.l.b16 %v5642
  %v5990 = vunpack.c.h.b16 %v5642
  %v5991 = vunpack.c.l.b16 %v5643
  %v5992 = vunpack.c.h.b16 %v5643
  %v5993 = vunpack.c.l.b16 %v5644
  %v5994 = vunpack.c.h.b16 %v5644
  %v5995 = vunpack.c.l.b16 %v5645
  %v5996 = vunpack.c.h.b16 %v5645
  %v5997 = vunpack.c.l.b16 %v5646
  %v5998 = vunpack.c.h.b16 %v5646
  %v5999 = vunpack.c.l.b16 %v5647
  %v6000 = vunpack.c.h.b16 %v5647
  %v6001 = vunpack.c.l.b16 %v5648
  %v6002 = vunpack.c.h.b16 %v5648
  %v6003 = vunpack.c.l.b16 %v5649
  %v6004 = vunpack.c.h.b16 %v5649
  %v6005 = vunpack.c.l.b16 %v5650
  %v6006 = vunpack.c.h.b16 %v5650
  %v6007 = vunpack.c.l.b16 %v5651
  %v6008 = vunpack.c.h.b16 %v5651
  %v6009 = vunpack.c.l.b16 %v5652
  %v6010 = vunpack.c.h.b16 %v5652
  %v6011 = vunpack.c.l.b16 %v5653
  %v6012 = vunpack.c.h.b16 %v5653
  %v6013 = vunpack.c.l.b16 %v5654
  %v6014 = vunpack.c.h.b16 %v5654
  %v6015 = vunpack.c.l.b16 %v5655
  %v6016 = vunpack.c.h.b16 %v5655
  %v6017 = vunpack.c.l.b16 %v5656
  %v6018 = vunpack.c.h.b16 %v5656
  %v6019 = vunpack.c.l.b16 %v5657
  %v6020 = vunpack.c.h.b16 %v5657
  %v6021 = vunpack.c.l.b16 %v5658
  %v6022 = vunpack.c.h.b16 %v5658
  %v6023 = vunpack.c.l.b16 %v5659
  %v6024 = vunpack.c.h.b16 %v5659
  %v6025 = vunpack.c.l.b16 %v5660
  %v6026 = vunpack.c.h.b16 %v5660
  %v6027 = vunpack.c.l.b16 %v5661
  %v6028 = vunpack.c.h.b16 %v5661
  %v6029 = vunpack.c.l.b16 %v5662
  %v6030 = vunpack.c.h.b16 %v5662
  %v6031 = vunpack.c.l.b16 %v5663
  %v6032 = vunpack.c.h.b16 %v5663
  %v6033 = vunpack.c.l.b16 %v5664
  %v6034 = vunpack.c.h.b16 %v5664
  %v6035 = vunpack.c.l.b16 %v5665
  %v6036 = vunpack.c.h.b16 %v5665
  %v6037 = vunpack.c.l.b16 %v5666
  %v6038 = vunpack.c.h.b16 %v5666
  %v6039 = vunpack.c.l.b16 %v5667
  %v6040 = vunpack.c.h.b16 %v5667
  %v6041 = vunpack.c.l.b16 %v5668
  %v6042 = vunpack.c.h.b16 %v5668
  %v6043 = vunpack.c.l.b16 %v5669
  %v6044 = vunpack.c.h.b16 %v5669
  %v6045 = vunpack.c.l.b16 %v5670
  %v6046 = vunpack.c.h.b16 %v5670
  %v6047 = vunpack.c.l.b16 %v5671
  %v6048 = vunpack.c.h.b16 %v5671
  %v6049 = vunpack.c.l.b16 %v5672
  %v6050 = vunpack.c.h.b16 %v5672
  %v6051 = vunpack.c.l.b16 %v5673
  %v6052 = vunpack.c.h.b16 %v5673
  %v6053 = vunpack.c.l.b16 %v5674
  %v6054 = vunpack.c.h.b16 %v5674
  %v6055 = vunpack.c.l.b16 %v5675
  %v6056 = vunpack.c.h.b16 %v5675
  %v6057 = vunpack.c.l.b16 %v5676
  %v6058 = vunpack.c.h.b16 %v5676
  %v6059 = vunpack.c.l.b16 %v5677
  %v6060 = vunpack.c.h.b16 %v5677
  %v6061 = vunpack.c.l.b16 %v5678
  %v6062 = vunpack.c.h.b16 %v5678
  %v6063 = vunpack.c.l.b16 %v5679
  %v6064 = vunpack.c.h.b16 %v5679
  %v6065 = vunpack.c.l.b16 %v5680
  %v6066 = vunpack.c.h.b16 %v5680
  %v6067 = vunpack.c.l.b16 %v5681
  %v6068 = vunpack.c.h.b16 %v5681
  %v6069 = vunpack.c.l.b16 %v5682
  %v6070 = vunpack.c.h.b16 %v5682
  %v6071 = vunpack.c.l.b16 %v5683
  %v6072 = vunpack.c.h.b16 %v5683
  %v6073 = vunpack.c.l.b16 %v5684
  %v6074 = vunpack.c.h.b16 %v5684
  %v6075 = vunpack.c.l.b16 %v5685
  %v6076 = vunpack.c.h.b16 %v5685
  %v6077 = vunpack.c.l.b16 %v5686
  %v6078 = vunpack.c.h.b16 %v5686
  %v6079 = vunpack.c.l.b16 %v5687
  %v6080 = vunpack.c.h.b16 %v5687
  %v6081 = vunpack.c.l.b16 %v5688
  %v6082 = vunpack.c.h.b16 %v5688
  %v6083 = vunpack.c.l.b16 %v5689
  %v6084 = vunpack.c.h.b16 %v5689
  %v6085 = vunpack.c.l.b16 %v5690
  %v6086 = vunpack.c.h.b16 %v5690
  %v6087 = vpack.c.b16 %v5833, %v5831
  %v6088 = vpack.c.b16 %v5834, %v5832
  %v6089 = vpack.c.b16 %v5837, %v5835
  %v6090 = vpack.c.b16 %v5838, %v5836
  %v6091 = vpack.c.b16 %v5841, %v5839
  %v6092 = vpack.c.b16 %v5842, %v5840
  %v6093 = vpack.c.b16 %v5845, %v5843
  %v6094 = vpack.c.b16 %v5846, %v5844
  %v6095 = vpack.c.b16 %v5849, %v5847
  %v6096 = vpack.c.b16 %v5850, %v5848
  %v6097 = vpack.c.b16 %v5853, %v5851
  %v6098 = vpack.c.b16 %v5854, %v5852
  %v6099 = vpack.c.b16 %v5857, %v5855
  %v6100 = vpack.c.b16 %v5858, %v5856
  %v6101 = vpack.c.b16 %v5861, %v5859
  %v6102 = vpack.c.b16 %v5862, %v5860
  %v6103 = vpack.c.b16 %v5865, %v5863
  %v6104 = vpack.c.b16 %v5866, %v5864
  %v6105 = vpack.c.b16 %v5869, %v5867
  %v6106 = vpack.c.b16 %v5870, %v5868
  %v6107 = vpack.c.b16 %v5873, %v5871
  %v6108 = vpack.c.b16 %v5874, %v5872
  %v6109 = vpack.c.b16 %v5877, %v5875
  %v6110 = vpack.c.b16 %v5878, %v5876
  %v6111 = vpack.c.b16 %v5881, %v5879
  %v6112 = vpack.c.b16 %v5882, %v5880
  %v6113 = vpack.c.b16 %v5885, %v5883
  %v6114 = vpack.c.b16 %v5886, %v5884
  %v6115 = vpack.c.b16 %v5889, %v5887
  %v6116 = vpack.c.b16 %v5890, %v5888
  %v6117 = vpack.c.b16 %v5893, %v5891
  %v6118 = vpack.c.b16 %v5894, %v5892
  %v6119 = vpack.c.b16 %v5897, %v5895
  %v6120 = vpack.c.b16 %v5898, %v5896
  %v6121 = vpack.c.b16 %v5901, %v5899
  %v6122 = vpack.c.b16 %v5902, %v5900
  %v6123 = vpack.c.b16 %v5905, %v5903
  %v6124 = vpack.c.b16 %v5906, %v5904
  %v6125 = vpack.c.b16 %v5909, %v5907
  %v6126 = vpack.c.b16 %v5910, %v5908
  %v6127 = vpack.c.b16 %v5913, %v5911
  %v6128 = vpack.c.b16 %v5914, %v5912
  %v6129 = vpack.c.b16 %v5917, %v5915
  %v6130 = vpack.c.b16 %v5918, %v5916
  %v6131 = vpack.c.b16 %v5921, %v5919
  %v6132 = vpack.c.b16 %v5922, %v5920
  %v6133 = vpack.c.b16 %v5925, %v5923
  %v6134 = vpack.c.b16 %v5926, %v5924
  %v6135 = vpack.c.b16 %v5929, %v5927
  %v6136 = vpack.c.b16 %v5930, %v5928
  %v6137 = vpack.c.b16 %v5933, %v5931
  %v6138 = vpack.c.b16 %v5934, %v5932
  %v6139 = vpack.c.b16 %v5937, %v5935
  %v6140 = vpack.c.b16 %v5938, %v5936
  %v6141 = vpack.c.b16 %v5941, %v5939
  %v6142 = vpack.c.b16 %v5942, %v5940
  %v6143 = vpack.c.b16 %v5945, %v5943
  %v6144 = vpack.c.b16 %v5946, %v5944
  %v6145 = vpack.c.b16 %v5949, %v5947
  %v6146 = vpack.c.b16 %v5950, %v5948
  %v6147 = vpack.c.b16 %v5953, %v5951
  %v6148 = vpack.c.b16 %v5954, %v5952
  %v6149 = vpack.c.b16 %v5957, %v5955
  %v6150 = vpack.c.b16 %v5958, %v5956
  %v6151 = vpack.c.b16 %v5961, %v5959
  %v6152 = vpack.c.b16 %v5962, %v5960
  %v6153 = vpack.c.b16 %v5965, %v5963
  %v6154 = vpack.c.b16 %v5966, %v5964
  %v6155 = vpack.c.b16 %v5969, %v5967
  %v6156 = vpack.c.b16 %v5970, %v5968
  %v6157 = vpack.c.b16 %v5973, %v5971
  %v6158 = vpack.c.b16 %v5974, %v5972
  %v6159 = vpack.c.b16 %v5977, %v5975
  %v6160 = vpack.c.b16 %v5978, %v5976
  %v6161 = vpack.c.b16 %v5981, %v5979
  %v6162 = vpack.c.b16 %v5982, %v5980
  %v6163 = vpack.c.b16 %v5985, %v5983
  %v6164 = vpack.c.b16 %v5986, %v5984
  %v6165 = vpack.c.b16 %v5989, %v5987
  %v6166 = vpack.c.b16 %v5990, %v5988
  %v6167 = vpack.c.b16 %v5993, %v5991
  %v6168 = vpack.c.b16 %v5994, %v5992
  %v6169 = vpack.c.b16 %v5997, %v5995
  %v6170 = vpack.c.b16 %v5998, %v5996
  %v6171 = vpack.c.b16 %v6001, %v5999
  %v6172 = vpack.c.b16 %v6002, %v6000
  %v6173 = vpack.c.b16 %v6005, %v6003
  %v6174 = vpack.c.b16 %v6006, %v6004
  %v6175 = vpack.c.b16 %v6009, %v6007
  %v6176 = vpack.c.b16 %v6010, %v6008
  %v6177 = vpack.c.b16 %v6013, %v6011
  %v6178 = vpack.c.b16 %v6014, %v6012
  %v6179 = vpack.c.b16 %v6017, %v6015
  %v6180 = vpack.c.b16 %v6018, %v6016
  %v6181 = vpack.c.b16 %v6021, %v6019
  %v6182 = vpack.c.b16 %v6022, %v6020
  %v6183 = vpack.c.b16 %v6025, %v6023
  %v6184 = vpack.c.b16 %v6026, %v6024
  %v6185 = vpack.c.b16 %v6029, %v6027
  %v6186 = vpack.c.b16 %v6030, %v6028
  %v6187 = vpack.c.b16 %v6033, %v6031
  %v6188 = vpack.c.b16 %v6034, %v6032
  %v6189 = vpack.c.b16 %v6037, %v6035
  %v6190 = vpack.c.b16 %v6038, %v6036
  %v6191 = vpack.c.b16 %v6041, %v6039
  %v6192 = vpack.c.b16 %v6042, %v6040
  %v6193 = vpack.c.b16 %v6045, %v6043
  %v6194 = vpack.c.b16 %v6046, %v6044
  %v6195 = vpack.c.b16 %v6049, %v6047
  %v6196 = vpack.c.b16 %v6050, %v6048
  %v6197 = vpack.c.b16 %v6053, %v6051
  %v6198 = vpack.c.b16 %v6054, %v6052
  %v6199 = vpack.c.b16 %v6057, %v6055
  %v6200 = vpack.c.b16 %v6058, %v6056
  %v6201 = vpack.c.b16 %v6061, %v6059
  %v6202 = vpack.c.b16 %v6062, %v6060
  %v6203 = vpack.c.b16 %v6065, %v6063
  %v6204 = vpack.c.b16 %v6066, %v6064
  %v6205 = vpack.c.b16 %v6069, %v6067
  %v6206 = vpack.c.b16 %v6070, %v6068
  %v6207 = vpack.c.b16 %v6073, %v6071
  %v6208 = vpack.c.b16 %v6074, %v6072
  %v6209 = vpack.c.b16 %v6077, %v6075
  %v6210 = vpack.c.b16 %v6078, %v6076
  %v6211 = vpack.c.b16 %v6081, %v6079
  %v6212 = vpack.c.b16 %v6082, %v6080
  %v6213 = vpack.c.b16 %v6085, %v6083
  %v6214 = vpack.c.b16 %v6086, %v6084
  %6343 = vmatprep.subr.bf16.mxu0 %v6088
  %6344 = vmatpush1.bf16.msra.mxu0 %v6087
  %6345 = vmatprep.subr.bf16.mxu0 %v6090
  %6346 = vmatpush1.bf16.msra.mxu0 %v6089
  %6347 = vmatprep.subr.bf16.mxu0 %v6092
  %6348 = vmatpush1.bf16.msra.mxu0 %v6091
  %6349 = vmatprep.subr.bf16.mxu0 %v6094
  %6350 = vmatpush1.bf16.msra.mxu0 %v6093
  %6351 = vmatprep.subr.bf16.mxu0 %v6096
  %6352 = vmatpush1.bf16.msra.mxu0 %v6095
  %6353 = vmatprep.subr.bf16.mxu0 %v6098
  %6354 = vmatpush1.bf16.msra.mxu0 %v6097
  %6355 = vmatprep.subr.bf16.mxu0 %v6100
  %6356 = vmatpush1.bf16.msra.mxu0 %v6099
  %6357 = vmatprep.subr.bf16.mxu0 %v6102
  %6358 = vmatpush1.bf16.msra.mxu0 %v6101
  %6359 = vmatprep.subr.bf16.mxu0 %v6104
  %6360 = vmatpush1.bf16.msra.mxu0 %v6103
  %6361 = vmatprep.subr.bf16.mxu0 %v6106
  %6362 = vmatpush1.bf16.msra.mxu0 %v6105
  %6363 = vmatprep.subr.bf16.mxu0 %v6108
  %6364 = vmatpush1.bf16.msra.mxu0 %v6107
  %6365 = vmatprep.subr.bf16.mxu0 %v6110
  %6366 = vmatpush1.bf16.msra.mxu0 %v6109
  %6367 = vmatprep.subr.bf16.mxu0 %v6112
  %6368 = vmatpush1.bf16.msra.mxu0 %v6111
  %6369 = vmatprep.subr.bf16.mxu0 %v6114
  %6370 = vmatpush1.bf16.msra.mxu0 %v6113
  %6371 = vmatprep.subr.bf16.mxu0 %v6116
  %6372 = vmatpush1.bf16.msra.mxu0 %v6115
  %6373 = vmatprep.subr.bf16.mxu0 %v6118
  %6374 = vmatpush1.bf16.msra.mxu0 %v6117
  %6375 = vmatprep.mubr.bf16.mxu0 %v5556
  %6376 = vmatmul.mubr.bf16.gmra.mrb[0].mxu0 %v5555
  %v6377 = vpop.f32.mrb[0].mxu0
  %v6378 = vadd.f32 %v5696, %v6377
  %v6379 = vpop.f32.mrb[0].mxu0
  %v6380 = vadd.f32 %v5700, %v6379
  %v6381 = vpop.f32.mrb[0].mxu0
  %v6382 = vpop.f32.mrb[0].mxu0
  %6383 = vdwg.mxu0
  %6384 = vmatprep.subr.bf16.mxu0 %v6120
  %6385 = vmatpush1.bf16.msra.mxu0 %v6119
  %6386 = vmatprep.subr.bf16.mxu0 %v6122
  %6387 = vmatpush1.bf16.msra.mxu0 %v6121
  %6388 = vmatprep.subr.bf16.mxu0 %v6124
  %6389 = vmatpush1.bf16.msra.mxu0 %v6123
  %6390 = vmatprep.subr.bf16.mxu0 %v6126
  %6391 = vmatpush1.bf16.msra.mxu0 %v6125
  %6392 = vmatprep.subr.bf16.mxu0 %v6128
  %6393 = vmatpush1.bf16.msra.mxu0 %v6127
  %6394 = vmatprep.subr.bf16.mxu0 %v6130
  %6395 = vmatpush1.bf16.msra.mxu0 %v6129
  %6396 = vmatprep.subr.bf16.mxu0 %v6132
  %6397 = vmatpush1.bf16.msra.mxu0 %v6131
  %6398 = vmatprep.subr.bf16.mxu0 %v6134
  %6399 = vmatpush1.bf16.msra.mxu0 %v6133
  %6400 = vmatprep.subr.bf16.mxu0 %v6136
  %6401 = vmatpush1.bf16.msra.mxu0 %v6135
  %6402 = vmatprep.subr.bf16.mxu0 %v6138
  %6403 = vmatpush1.bf16.msra.mxu0 %v6137
  %6404 = vmatprep.subr.bf16.mxu0 %v6140
  %6405 = vmatpush1.bf16.msra.mxu0 %v6139
  %6406 = vmatprep.subr.bf16.mxu0 %v6142
  %6407 = vmatpush1.bf16.msra.mxu0 %v6141
  %6408 = vmatprep.subr.bf16.mxu0 %v6144
  %6409 = vmatpush1.bf16.msra.mxu0 %v6143
  %6410 = vmatprep.subr.bf16.mxu0 %v6146
  %6411 = vmatpush1.bf16.msra.mxu0 %v6145
  %6412 = vmatprep.subr.bf16.mxu0 %v6148
  %6413 = vmatpush1.bf16.msra.mxu0 %v6147
  %6414 = vmatprep.subr.bf16.mxu0 %v6150
  %6415 = vmatpush1.bf16.msra.mxu0 %v6149
  %6416 = vmatprep.mubr.bf16.mxu0 %v5558
  %6417 = vmatmul.mubr.bf16.gmra.mrb[0].mxu0 %v5557
  %v6418 = vpop.f32.mrb[0].mxu0
  %v6419 = vadd.f32 %v6378, %v6418
  %v6420 = vpop.f32.mrb[0].mxu0
  %v6421 = vadd.f32 %v6380, %v6420
  %v6422 = vpop.f32.mrb[0].mxu0
  %v6423 = vpop.f32.mrb[0].mxu0
  %6424 = vdwg.mxu0
  %6425 = vmatprep.subr.bf16.mxu0 %v6152
  %6426 = vmatpush1.bf16.msra.mxu0 %v6151
  %6427 = vmatprep.subr.bf16.mxu0 %v6154
  %6428 = vmatpush1.bf16.msra.mxu0 %v6153
  %6429 = vmatprep.subr.bf16.mxu0 %v6156
  %6430 = vmatpush1.bf16.msra.mxu0 %v6155
  %6431 = vmatprep.subr.bf16.mxu0 %v6158
  %6432 = vmatpush1.bf16.msra.mxu0 %v6157
  %6433 = vmatprep.subr.bf16.mxu0 %v6160
  %6434 = vmatpush1.bf16.msra.mxu0 %v6159
  %6435 = vmatprep.subr.bf16.mxu0 %v6162
  %6436 = vmatpush1.bf16.msra.mxu0 %v6161
  %6437 = vmatprep.subr.bf16.mxu0 %v6164
  %6438 = vmatpush1.bf16.msra.mxu0 %v6163
  %6439 = vmatprep.subr.bf16.mxu0 %v6166
  %6440 = vmatpush1.bf16.msra.mxu0 %v6165
  %6441 = vmatprep.subr.bf16.mxu0 %v6168
  %6442 = vmatpush1.bf16.msra.mxu0 %v6167
  %6443 = vmatprep.subr.bf16.mxu0 %v6170
  %6444 = vmatpush1.bf16.msra.mxu0 %v6169
  %6445 = vmatprep.subr.bf16.mxu0 %v6172
  %6446 = vmatpush1.bf16.msra.mxu0 %v6171
  %6447 = vmatprep.subr.bf16.mxu0 %v6174
  %6448 = vmatpush1.bf16.msra.mxu0 %v6173
  %6449 = vmatprep.subr.bf16.mxu0 %v6176
  %6450 = vmatpush1.bf16.msra.mxu0 %v6175
  %6451 = vmatprep.subr.bf16.mxu0 %v6178
  %6452 = vmatpush1.bf16.msra.mxu0 %v6177
  %6453 = vmatprep.subr.bf16.mxu0 %v6180
  %6454 = vmatpush1.bf16.msra.mxu0 %v6179
  %6455 = vmatprep.subr.bf16.mxu0 %v6182
  %6456 = vmatpush1.bf16.msra.mxu0 %v6181
  %6457 = vmatprep.mubr.bf16.mxu0 %v5560
  %6458 = vmatmul.mubr.bf16.gmra.mrb[0].mxu0 %v5559
  %v6459 = vpop.f32.mrb[0].mxu0
  %v6460 = vadd.f32 %v6419, %v6459
  %v6461 = vpop.f32.mrb[0].mxu0
  %v6462 = vadd.f32 %v6421, %v6461
  %v6463 = vpop.f32.mrb[0].mxu0
  %v6464 = vpop.f32.mrb[0].mxu0
  %6465 = vdwg.mxu0
  %6466 = vmatprep.subr.bf16.mxu0 %v6184
  %6467 = vmatpush1.bf16.msra.mxu0 %v6183
  %6468 = vmatprep.subr.bf16.mxu0 %v6186
  %6469 = vmatpush1.bf16.msra.mxu0 %v6185
  %6470 = vmatprep.subr.bf16.mxu0 %v6188
  %6471 = vmatpush1.bf16.msra.mxu0 %v6187
  %6472 = vmatprep.subr.bf16.mxu0 %v6190
  %6473 = vmatpush1.bf16.msra.mxu0 %v6189
  %6474 = vmatprep.subr.bf16.mxu0 %v6192
  %6475 = vmatpush1.bf16.msra.mxu0 %v6191
  %6476 = vmatprep.subr.bf16.mxu0 %v6194
  %6477 = vmatpush1.bf16.msra.mxu0 %v6193
  %6478 = vmatprep.subr.bf16.mxu0 %v6196
  %6479 = vmatpush1.bf16.msra.mxu0 %v6195
  %6480 = vmatprep.subr.bf16.mxu0 %v6198
  %6481 = vmatpush1.bf16.msra.mxu0 %v6197
  %6482 = vmatprep.subr.bf16.mxu0 %v6200
  %6483 = vmatpush1.bf16.msra.mxu0 %v6199
  %6484 = vmatprep.subr.bf16.mxu0 %v6202
  %6485 = vmatpush1.bf16.msra.mxu0 %v6201
  %6486 = vmatprep.subr.bf16.mxu0 %v6204
  %6487 = vmatpush1.bf16.msra.mxu0 %v6203
  %6488 = vmatprep.subr.bf16.mxu0 %v6206
  %6489 = vmatpush1.bf16.msra.mxu0 %v6205
  %6490 = vmatprep.subr.bf16.mxu0 %v6208
  %6491 = vmatpush1.bf16.msra.mxu0 %v6207
  %6492 = vmatprep.subr.bf16.mxu0 %v6210
  %6493 = vmatpush1.bf16.msra.mxu0 %v6209
  %6494 = vmatprep.subr.bf16.mxu0 %v6212
  %6495 = vmatpush1.bf16.msra.mxu0 %v6211
  %6496 = vmatprep.subr.bf16.mxu0 %v6214
  %6497 = vmatpush1.bf16.msra.mxu0 %v6213
  %6498 = vmatprep.mubr.bf16.mxu0 %v5562
  %6499 = vmatmul.mubr.bf16.gmra.mrb[0].mxu0 %v5561
  %v6500 = vpop.f32.mrb[0].mxu0
  %v6501 = vadd.f32 %v6460, %v6500
  %v6502 = vpop.f32.mrb[0].mxu0
  %v6503 = vadd.f32 %v6462, %v6502
  %v6504 = vpop.f32.mrb[0].mxu0
  %v6505 = vpop.f32.mrb[0].mxu0
  %6506 = vdwg.mxu0
  %v6507 = vtanh.pop %v6501
  %v6508 = vtanh.pop %v6503
  %6509 = vst [vmem:[%s22] sm:$0xff] %v6507
  %6510 = vst [vmem:[%s22 + $0x8] sm:$0xff] %v6508
  %6511 = vst [vmem:[%s23] sm:$0xff] %v2759
  %6512 = vst [vmem:[%s24] sm:$0xff] %v2871
  // Predicated region
  $region90: #{vae_forward.3} parent=0 // pred_check
    _
  $region91: #{vae_forward.3} parent=0 // pred_check_branch
    %6514 = sbr.rel (0) target = $region93
  $region92: #{vae_forward.3} parent=0 // pred_region
    _
  $region93: #{vae_forward.3} parent=0 // pred_fallthru
    _
  // Predicated region
  $region94: #{vae_forward.3} parent=0 // pred_check
    _
  $region95: #{vae_forward.3} parent=0 // pred_check_branch
    %6516 = sbr.rel (0) target = $region97
  $region96: #{vae_forward.3} parent=0 // pred_region
    _
  $region97: #{vae_forward.3} parent=0 // pred_fallthru
    _
  // Predicated region
  $region98: #{vae_forward.3} parent=0 // pred_check
    _
  $region99: #{vae_forward.3} parent=0 // pred_check_branch
    %6518 = sbr.rel (0) target = $region101
  $region100: #{vae_forward.3} parent=0 // pred_region
    _
  $region101: #{vae_forward.3} parent=0 // pred_fallthru
    _
  // Predicated region
  $region102: #{vae_forward.3} parent=0 // pred_check
    _
  $region103: #{vae_forward.3} parent=0 // pred_check_branch
    %6520 = sbr.rel (0) target = $region105
  $region104: #{vae_forward.3} parent=0 // pred_region
    _
  $region105: #{vae_forward.3} parent=0 // pred_fallthru
    _
  // Predicated region
  $region106: #{vae_forward.3} parent=0 // pred_check
    _
  $region107: #{vae_forward.3} parent=0 // pred_check_branch
    %6522 = sbr.rel (0) target = $region109
  $region108: #{vae_forward.3} parent=0 // pred_region
    _
  $region109: #{vae_forward.3} parent=0 // pred_fallthru
    _
  // Predicated region
  $region110: #{vae_forward.3} parent=0 // pred_check
    _
  $region111: #{vae_forward.3} parent=0 // pred_check_branch
    %6524 = sbr.rel (0) target = $region113
  $region112: #{vae_forward.3} parent=0 // pred_region
    _
  $region113: #{vae_forward.3} parent=0 // pred_fallthru
    _

</llo_original>
